<compile_context>
chip_gen: v6e
topology: v6e:2x2x1
jax: 0.10.0
libtpu: 0.0.40
codegen_flags: <defaults>
</compile_context>

<pallas_src>
import jax
import jax.numpy as jnp
from jax import lax
from jax.experimental import pallas as pl
from jax.experimental.pallas import tpu as pltpu

LANE = 128


def _round_up(v, m):
    return (v + m - 1) // m * m


def _pad_last(a, target):
    pad = target - a.shape[-1]
    if pad == 0:
        return a
    widths = [(0, 0)] * (a.ndim - 1) + [(0, pad)]
    return jnp.pad(a, widths)


def _fold_bn(gamma, beta, mean, var, eps):
    scale = gamma / jnp.sqrt(var + eps)
    bias = beta - mean * scale
    return scale, bias


# ---------------------------------------------------------------------------
# In-kernel helpers
# ---------------------------------------------------------------------------
def _zero_border(pad_ref):
    """Zero only the 1-pixel halo border of a (h+2, w+2, C) scratch buffer."""
    hp, wp, c = pad_ref.shape
    z_row = jnp.zeros((1, wp, c), pad_ref.dtype)
    pad_ref[0:1, :, :] = z_row
    pad_ref[hp - 1:hp, :, :] = z_row
    z_col = jnp.zeros((hp, 1, c), pad_ref.dtype)
    pad_ref[:, 0:1, :] = z_col
    pad_ref[:, wp - 1:wp, :] = z_col


def _fill_patch(pad_ref, patch_ref, h, w):
    """Write the full 3x3 im2col patch (columns = tap*C + c) into patch_ref.

    pad_ref   : (h+2, w+2, C) bf16 halo buffer.
    patch_ref : (h*w, >= 9*C) bf16 patch scratch, written in place.
    """
    c = pad_ref.shape[-1]
    hw = h * w
    for dy in range(3):
        for dx in range(3):
            t = dy * 3 + dx
            patch_ref[:, t * c:(t + 1) * c] = (
                pad_ref[dy:dy + h, dx:dx + w, :].reshape(hw, c))


# ---------------------------------------------------------------------------
# Fused BasicBlock kernel (one grid step per batch element, stride = 1)
# ---------------------------------------------------------------------------
def _basic_block_kernel(x_ref, w1_ref, s1_ref, b1_ref, w2_ref, s2_ref, b2_ref,
                        out_ref, xpad_ref, mid_ref, patch_ref):
    _, h, w, _ = x_ref.shape
    cp_in = xpad_ref.shape[-1]
    cp_mid = mid_ref.shape[-1]
    cp_out = out_ref.shape[-1]
    hw = h * w

    # --- zero only the 1-px halo border (interior is fully rewritten) -------
    _zero_border(xpad_ref)
    _zero_border(mid_ref)

    # --- x tile -> bf16 halo scratch (no f32 upcast) -------------------------
    xpad_ref[1:h + 1, 1:w + 1, :] = x_ref[0]

    # --- conv1: ONE im2col matmul (K = 9*Cp_in) + folded BN + ReLU -----------
    _fill_patch(xpad_ref, patch_ref, h, w)
    acc1 = jnp.dot(patch_ref[:, :9 * cp_in], w1_ref[...],
                   preferred_element_type=jnp.float32)
    y1 = jnp.maximum(acc1 * s1_ref[...] + b1_ref[...], 0.0)
    mid_ref[1:h + 1, 1:w + 1, :] = y1.reshape(h, w, cp_mid).astype(mid_ref.dtype)

    # --- conv2: ONE im2col matmul + folded BN + residual add + ReLU ----------
    _fill_patch(mid_ref, patch_ref, h, w)
    acc2 = jnp.dot(patch_ref[:, :9 * cp_mid], w2_ref[...],
                   preferred_element_type=jnp.float32)
    y2 = acc2 * s2_ref[...] + b2_ref[...]
    y2 = y2 + x_ref[0].astype(jnp.float32).reshape(hw, cp_out)   # identity path
    out_ref[0] = jnp.maximum(y2, 0.0).reshape(h, w, cp_out).astype(out_ref.dtype)


# ---------------------------------------------------------------------------
# Wrapper
# ---------------------------------------------------------------------------
def basic_block_forward(x_nchw, params):
    """BasicBlock forward (eval-mode BN folded).  x_nchw: (N, Cin, H, W)."""
    w1, w2 = params["w1"], params["w2"]
    stride = int(params["stride"])
    eps = float(params.get("eps", 1e-5))
    c_in, c_mid = w1.shape[2], w1.shape[3]
    c_out = w2.shape[3]
    if stride != 1 or c_in != c_out:
        # TODO(synk): downsample branch (1x1 conv + BN) for stride>1 / channel
        # change is not implemented.
        raise NotImplementedError(
            "Pallas BasicBlock supports stride=1 with inplanes == outplanes")

    # NCHW -> NHWC once at the block boundary.
    x = jnp.transpose(x_nchw, (0, 2, 3, 1))
    n, h, w, xc = x.shape
    assert xc == c_in, (xc, c_in)

    cp_in = _round_up(c_in, LANE)
    cp_mid = _round_up(c_mid, LANE)
    cp_out = _round_up(c_out, LANE)
    cp_k = max(cp_in, cp_mid)

    s1, b1 = _fold_bn(params["bn1_gamma"], params["bn1_beta"],
                      params["bn1_mean"], params["bn1_var"], eps)
    s2, b2 = _fold_bn(params["bn2_gamma"], params["bn2_beta"],
                      params["bn2_mean"], params["bn2_var"], eps)

    # bf16 operands (f32 accumulation on the MXU); lane-padded channels;
    # weights reshaped so columns of the im2col patch match (tap*Cp + c).
    x_p = _pad_last(x, cp_in).astype(jnp.bfloat16)
    w1_p = jnp.pad(w1, ((0, 0), (0, 0), (0, cp_in - c_in), (0, cp_mid - c_mid))
                   ).astype(jnp.bfloat16).reshape(9 * cp_in, cp_mid)
    w2_p = jnp.pad(w2, ((0, 0), (0, 0), (0, cp_mid - c_mid), (0, cp_out - c_out))
                   ).astype(jnp.bfloat16).reshape(9 * cp_mid, cp_out)
    s1_p = _pad_last(s1, cp_mid).reshape(1, cp_mid).astype(jnp.float32)
    b1_p = _pad_last(b1, cp_mid).reshape(1, cp_mid).astype(jnp.float32)
    s2_p = _pad_last(s2, cp_out).reshape(1, cp_out).astype(jnp.float32)
    b2_p = _pad_last(b2, cp_out).reshape(1, cp_out).astype(jnp.float32)

    # VMEM budget derived from the actual footprint (scratch + double-buffered
    # in/out blocks + resident weights), clamped to stay safe on v7x (64 MiB).
    bpe = 2  # bf16 bytes/elem
    est = ((h + 2) * (w + 2) * (cp_in + cp_mid) * bpe          # halo scratch
           + h * w * 9 * cp_k * bpe                            # patch scratch
           + 2 * h * w * cp_in * bpe                           # x double buffer
           + 2 * h * w * cp_out * bpe                          # out double buffer
           + 2 * 9 * (cp_in * cp_mid + cp_mid * cp_out) * bpe  # weights
           + 8 * (cp_mid + cp_out) * 4)                        # BN scale/bias
    vmem_limit = int(min(48 * 1024 * 1024,
                         max(32 * 1024 * 1024, est + est // 2)))

    out = pl.pallas_call(
        _basic_block_kernel,
        out_shape=jax.ShapeDtypeStruct((n, h, w, cp_out), jnp.bfloat16),
        grid=(n,),
        in_specs=[
            pl.BlockSpec((1, h, w, cp_in), lambda b: (b, 0, 0, 0)),
            # weights / BN params: constant index_map -> VMEM-resident
            pl.BlockSpec((9 * cp_in, cp_mid), lambda b: (0, 0)),
            pl.BlockSpec((1, cp_mid), lambda b: (0, 0)),
            pl.BlockSpec((1, cp_mid), lambda b: (0, 0)),
            pl.BlockSpec((9 * cp_mid, cp_out), lambda b: (0, 0)),
            pl.BlockSpec((1, cp_out), lambda b: (0, 0)),
            pl.BlockSpec((1, cp_out), lambda b: (0, 0)),
        ],
        out_specs=pl.BlockSpec((1, h, w, cp_out), lambda b: (b, 0, 0, 0)),
        scratch_shapes=[
            pltpu.VMEM((h + 2, w + 2, cp_in), jnp.bfloat16),   # x halo (bf16)
            pltpu.VMEM((h + 2, w + 2, cp_mid), jnp.bfloat16),  # mid halo (bf16)
            pltpu.VMEM((h * w, 9 * cp_k), jnp.bfloat16),       # shared im2col patch
        ],
        compiler_params=pltpu.CompilerParams(
            dimension_semantics=("parallel",),
            vmem_limit_bytes=vmem_limit,
        ),
    )(x_p, w1_p, s1_p, b1_p, w2_p, s2_p, b2_p)

    # Standalone module interface: drop lane padding, back to NCHW (bf16).
    out = out[..., :c_out]
    return jnp.transpose(out, (0, 3, 1, 2))


# ---------------------------------------------------------------------------
# Pure-JAX reference with matching numerics (bf16 operands, f32 accumulation,
# bf16 mid activation; kernel additionally rounds the output to bf16).
# ---------------------------------------------------------------------------
def basic_block_reference(x_nchw, params):
    eps = float(params.get("eps", 1e-5))
    x = jnp.transpose(x_nchw, (0, 2, 3, 1)).astype(jnp.bfloat16)
    s1, b1 = _fold_bn(params["bn1_gamma"], params["bn1_beta"],
                      params["bn1_mean"], params["bn1_var"], eps)
    s2, b2 = _fold_bn(params["bn2_gamma"], params["bn2_beta"],
                      params["bn2_mean"], params["bn2_var"], eps)

    def conv(inp, wgt, stride):
        return lax.conv_general_dilated(
            inp.astype(jnp.bfloat16), wgt.astype(jnp.bfloat16),
            window_strides=(stride, stride), padding=((1, 1), (1, 1)),
            dimension_numbers=("NHWC", "HWIO", "NHWC"),
            preferred_element_type=jnp.float32,
            precision=lax.Precision.HIGHEST)

    mid = jnp.maximum(conv(x, params["w1"], int(params["stride"])) * s1 + b1, 0.0)
    mid = mid.astype(jnp.bfloat16)      # kernel feeds the mid activation as bf16
    out = conv(mid, params["w2"], 1) * s2 + b2
    out = jnp.maximum(out + x.astype(jnp.float32), 0.0)
    return jnp.transpose(out, (0, 3, 1, 2))


# ---------------------------------------------------------------------------
if __name__ == "__main__":
    # Small shapes: batch=2, inplanes=4, midplanes=8, outplanes=4, 16x16, stride=1
    N, C_IN, C_MID, C_OUT, H, W = 2, 4, 8, 4, 16, 16
    key = jax.random.PRNGKey(0)
    k = jax.random.split(key, 11)

    x = jax.random.normal(k[0], (N, C_IN, H, W), jnp.float32)

    params = {
        "stride": 1,
        "eps": 1e-5,
        # conv weights in HWIO layout
        "w1": jax.random.normal(k[1], (3, 3, C_IN, C_MID), jnp.float32) * 0.2,
        "w2": jax.random.normal(k[2], (3, 3, C_MID, C_OUT), jnp.float32) * 0.2,
        # deterministic, non-trivial BN params (eval mode)
        "bn1_gamma": 1.0 + 0.1 * jax.random.normal(k[3], (C_MID,), jnp.float32),
        "bn1_beta": 0.1 * jax.random.normal(k[4], (C_MID,), jnp.float32),
        "bn1_mean": 0.05 * jax.random.normal(k[5], (C_MID,), jnp.float32),
        "bn1_var": 1.0 + 0.1 * jax.random.uniform(k[6], (C_MID,), jnp.float32),
        "bn2_gamma": 1.0 + 0.1 * jax.random.normal(k[7], (C_OUT,), jnp.float32),
        "bn2_beta": 0.1 * jax.random.normal(k[8], (C_OUT,), jnp.float32),
        "bn2_mean": 0.05 * jax.random.normal(k[9], (C_OUT,), jnp.float32),
        "bn2_var": 1.0 + 0.1 * jax.random.uniform(k[10], (C_OUT,), jnp.float32),
    }

    out = jax.block_until_ready(basic_block_forward(x, params))
    ref = jax.block_until_ready(basic_block_reference(x, params))

    assert out.shape == (N, C_OUT, H, W), out.shape
    out32 = out.astype(jnp.float32)
    max_err = float(jnp.max(jnp.abs(out32 - ref)))
    # Kernel output is bf16 (identity path bf16-quantized too); tolerance covers
    # bf16 rounding plus accumulation-order differences.
    assert jnp.allclose(out32, ref, atol=5e-2, rtol=5e-2), max_err
    print("KERNEL_OK")
</pallas_src>

<mosaic_0001>
module attributes {stable_mosaic.version = 11 : i64} {
  func.func @_basic_block_kernel(%arg0: i32, %arg1: memref<1x16x16x128xbf16, #tpu.memory_space<vmem>>, %arg2: memref<1152x128xbf16, #tpu.memory_space<vmem>>, %arg3: memref<1x128xf32, #tpu.memory_space<vmem>>, %arg4: memref<1x128xf32, #tpu.memory_space<vmem>>, %arg5: memref<1152x128xbf16, #tpu.memory_space<vmem>>, %arg6: memref<1x128xf32, #tpu.memory_space<vmem>>, %arg7: memref<1x128xf32, #tpu.memory_space<vmem>>, %arg8: memref<1x16x16x128xbf16, #tpu.memory_space<vmem>>, %arg9: memref<18x18x128xbf16, #tpu.memory_space<vmem>>, %arg10: memref<18x18x128xbf16, #tpu.memory_space<vmem>>, %arg11: memref<256x1152xbf16, #tpu.memory_space<vmem>>) attributes {dimension_semantics = [#tpu.dimension_semantics<parallel>], iteration_bounds = array<i64: 2>, scalar_prefetch = 0 : i64, scratch_operands = 3 : i64, tpu.core_type = #tpu.core_type<tc>, window_params = [{transform_indices = @transform_0, window_bounds = array<i64: 1, 16, 16, 128>}, {pipeline_mode = #tpu.pipeline_mode<synchronous>, transform_indices = @transform_1, window_bounds = array<i64: 1152, 128>}, {pipeline_mode = #tpu.pipeline_mode<synchronous>, transform_indices = @transform_2, window_bounds = array<i64: 1, 128>}, {pipeline_mode = #tpu.pipeline_mode<synchronous>, transform_indices = @transform_3, window_bounds = array<i64: 1, 128>}, {pipeline_mode = #tpu.pipeline_mode<synchronous>, transform_indices = @transform_4, window_bounds = array<i64: 1152, 128>}, {pipeline_mode = #tpu.pipeline_mode<synchronous>, transform_indices = @transform_5, window_bounds = array<i64: 1, 128>}, {pipeline_mode = #tpu.pipeline_mode<synchronous>, transform_indices = @transform_6, window_bounds = array<i64: 1, 128>}, {transform_indices = @transform_7, window_bounds = array<i64: 1, 16, 16, 128>}]} {
    %cst = arith.constant 0.000000e+00 : bf16
    %0 = vector.broadcast %cst : bf16 to vector<1x18x128xbf16>
    %c0 = arith.constant 0 : index
    %c0_0 = arith.constant 0 : index
    %c0_1 = arith.constant 0 : index
    %1 = vector.load %arg9[%c0, %c0_0, %c0_1] : memref<18x18x128xbf16, #tpu.memory_space<vmem>>, vector<1x18x128xbf16>
    tpu.vector_store %arg9[%c0, %c0_0, %c0_1], %0 {strides = array<i32>} : memref<18x18x128xbf16, #tpu.memory_space<vmem>>, vector<1x18x128xbf16>,
    %c17 = arith.constant 17 : index
    %c0_2 = arith.constant 0 : index
    %c0_3 = arith.constant 0 : index
    %2 = vector.load %arg9[%c17, %c0_2, %c0_3] : memref<18x18x128xbf16, #tpu.memory_space<vmem>>, vector<1x18x128xbf16>
    tpu.vector_store %arg9[%c17, %c0_2, %c0_3], %0 {strides = array<i32>} : memref<18x18x128xbf16, #tpu.memory_space<vmem>>, vector<1x18x128xbf16>,
    %cst_4 = arith.constant 0.000000e+00 : bf16
    %3 = vector.broadcast %cst_4 : bf16 to vector<18x1x128xbf16>
    %c0_5 = arith.constant 0 : index
    %c0_6 = arith.constant 0 : index
    %c0_7 = arith.constant 0 : index
    %4 = vector.load %arg9[%c0_5, %c0_6, %c0_7] : memref<18x18x128xbf16, #tpu.memory_space<vmem>>, vector<18x1x128xbf16>
    tpu.vector_store %arg9[%c0_5, %c0_6, %c0_7], %3 {strides = array<i32>} : memref<18x18x128xbf16, #tpu.memory_space<vmem>>, vector<18x1x128xbf16>,
    %c0_8 = arith.constant 0 : index
    %c17_9 = arith.constant 17 : index
    %c0_10 = arith.constant 0 : index
    %5 = vector.load %arg9[%c0_8, %c17_9, %c0_10] : memref<18x18x128xbf16, #tpu.memory_space<vmem>>, vector<18x1x128xbf16>
    tpu.vector_store %arg9[%c0_8, %c17_9, %c0_10], %3 {strides = array<i32>} : memref<18x18x128xbf16, #tpu.memory_space<vmem>>, vector<18x1x128xbf16>,
    %cst_11 = arith.constant 0.000000e+00 : bf16
    %6 = vector.broadcast %cst_11 : bf16 to vector<1x18x128xbf16>
    %c0_12 = arith.constant 0 : index
    %c0_13 = arith.constant 0 : index
    %c0_14 = arith.constant 0 : index
    %7 = vector.load %arg10[%c0_12, %c0_13, %c0_14] : memref<18x18x128xbf16, #tpu.memory_space<vmem>>, vector<1x18x128xbf16>
    tpu.vector_store %arg10[%c0_12, %c0_13, %c0_14], %6 {strides = array<i32>} : memref<18x18x128xbf16, #tpu.memory_space<vmem>>, vector<1x18x128xbf16>,
    %c17_15 = arith.constant 17 : index
    %c0_16 = arith.constant 0 : index
    %c0_17 = arith.constant 0 : index
    %8 = vector.load %arg10[%c17_15, %c0_16, %c0_17] : memref<18x18x128xbf16, #tpu.memory_space<vmem>>, vector<1x18x128xbf16>
    tpu.vector_store %arg10[%c17_15, %c0_16, %c0_17], %6 {strides = array<i32>} : memref<18x18x128xbf16, #tpu.memory_space<vmem>>, vector<1x18x128xbf16>,
    %cst_18 = arith.constant 0.000000e+00 : bf16
    %9 = vector.broadcast %cst_18 : bf16 to vector<18x1x128xbf16>
    %c0_19 = arith.constant 0 : index
    %c0_20 = arith.constant 0 : index
    %c0_21 = arith.constant 0 : index
    %10 = vector.load %arg10[%c0_19, %c0_20, %c0_21] : memref<18x18x128xbf16, #tpu.memory_space<vmem>>, vector<18x1x128xbf16>
    tpu.vector_store %arg10[%c0_19, %c0_20, %c0_21], %9 {strides = array<i32>} : memref<18x18x128xbf16, #tpu.memory_space<vmem>>, vector<18x1x128xbf16>,
    %c0_22 = arith.constant 0 : index
    %c17_23 = arith.constant 17 : index
    %c0_24 = arith.constant 0 : index
    %11 = vector.load %arg10[%c0_22, %c17_23, %c0_24] : memref<18x18x128xbf16, #tpu.memory_space<vmem>>, vector<18x1x128xbf16>
    tpu.vector_store %arg10[%c0_22, %c17_23, %c0_24], %9 {strides = array<i32>} : memref<18x18x128xbf16, #tpu.memory_space<vmem>>, vector<18x1x128xbf16>,
    %c0_25 = arith.constant 0 : index
    %c0_26 = arith.constant 0 : index
    %c0_27 = arith.constant 0 : index
    %c0_28 = arith.constant 0 : index
    %12 = vector.load %arg1[%c0_25, %c0_26, %c0_27, %c0_28] : memref<1x16x16x128xbf16, #tpu.memory_space<vmem>>, vector<1x16x16x128xbf16>
    %13 = vector.shape_cast %12 : vector<1x16x16x128xbf16> to vector<16x16x128xbf16>
    %c1 = arith.constant 1 : index
    %c1_29 = arith.constant 1 : index
    %c0_30 = arith.constant 0 : index
    %14 = vector.load %arg9[%c1, %c1_29, %c0_30] : memref<18x18x128xbf16, #tpu.memory_space<vmem>>, vector<16x16x128xbf16>
    tpu.vector_store %arg9[%c1, %c1_29, %c0_30], %13 {strides = array<i32>} : memref<18x18x128xbf16, #tpu.memory_space<vmem>>, vector<16x16x128xbf16>,
    %c0_31 = arith.constant 0 : index
    %c0_32 = arith.constant 0 : index
    %c0_33 = arith.constant 0 : index
    %15 = vector.load %arg9[%c0_31, %c0_32, %c0_33] : memref<18x18x128xbf16, #tpu.memory_space<vmem>>, vector<16x16x128xbf16>
    %16 = vector.shape_cast %15 : vector<16x16x128xbf16> to vector<256x128xbf16>
    %c0_34 = arith.constant 0 : index
    %c0_35 = arith.constant 0 : index
    %17 = vector.load %arg11[%c0_34, %c0_35] : memref<256x1152xbf16, #tpu.memory_space<vmem>>, vector<256x128xbf16>
    tpu.vector_store %arg11[%c0_34, %c0_35], %16 {strides = array<i32>} : memref<256x1152xbf16, #tpu.memory_space<vmem>>, vector<256x128xbf16>,
    %c0_36 = arith.constant 0 : index
    %c1_37 = arith.constant 1 : index
    %c0_38 = arith.constant 0 : index
    %18 = vector.load %arg9[%c0_36, %c1_37, %c0_38] : memref<18x18x128xbf16, #tpu.memory_space<vmem>>, vector<16x16x128xbf16>
    %19 = vector.shape_cast %18 : vector<16x16x128xbf16> to vector<256x128xbf16>
    %c0_39 = arith.constant 0 : index
    %c128 = arith.constant 128 : index
    %20 = vector.load %arg11[%c0_39, %c128] : memref<256x1152xbf16, #tpu.memory_space<vmem>>, vector<256x128xbf16>
    tpu.vector_store %arg11[%c0_39, %c128], %19 {strides = array<i32>} : memref<256x1152xbf16, #tpu.memory_space<vmem>>, vector<256x128xbf16>,
    %c0_40 = arith.constant 0 : index
    %c2 = arith.constant 2 : index
    %c0_41 = arith.constant 0 : index
    %21 = vector.load %arg9[%c0_40, %c2, %c0_41] : memref<18x18x128xbf16, #tpu.memory_space<vmem>>, vector<16x16x128xbf16>
    %22 = vector.shape_cast %21 : vector<16x16x128xbf16> to vector<256x128xbf16>
    %c0_42 = arith.constant 0 : index
    %c256 = arith.constant 256 : index
    %23 = vector.load %arg11[%c0_42, %c256] : memref<256x1152xbf16, #tpu.memory_space<vmem>>, vector<256x128xbf16>
    tpu.vector_store %arg11[%c0_42, %c256], %22 {strides = array<i32>} : memref<256x1152xbf16, #tpu.memory_space<vmem>>, vector<256x128xbf16>,
    %c1_43 = arith.constant 1 : index
    %c0_44 = arith.constant 0 : index
    %c0_45 = arith.constant 0 : index
    %24 = vector.load %arg9[%c1_43, %c0_44, %c0_45] : memref<18x18x128xbf16, #tpu.memory_space<vmem>>, vector<16x16x128xbf16>
    %25 = vector.shape_cast %24 : vector<16x16x128xbf16> to vector<256x128xbf16>
    %c0_46 = arith.constant 0 : index
    %c384 = arith.constant 384 : index
    %26 = vector.load %arg11[%c0_46, %c384] : memref<256x1152xbf16, #tpu.memory_space<vmem>>, vector<256x128xbf16>
    tpu.vector_store %arg11[%c0_46, %c384], %25 {strides = array<i32>} : memref<256x1152xbf16, #tpu.memory_space<vmem>>, vector<256x128xbf16>,
    %c1_47 = arith.constant 1 : index
    %c1_48 = arith.constant 1 : index
    %c0_49 = arith.constant 0 : index
    %27 = vector.load %arg9[%c1_47, %c1_48, %c0_49] : memref<18x18x128xbf16, #tpu.memory_space<vmem>>, vector<16x16x128xbf16>
    %28 = vector.shape_cast %27 : vector<16x16x128xbf16> to vector<256x128xbf16>
    %c0_50 = arith.constant 0 : index
    %c512 = arith.constant 512 : index
    %29 = vector.load %arg11[%c0_50, %c512] : memref<256x1152xbf16, #tpu.memory_space<vmem>>, vector<256x128xbf16>
    tpu.vector_store %arg11[%c0_50, %c512], %28 {strides = array<i32>} : memref<256x1152xbf16, #tpu.memory_space<vmem>>, vector<256x128xbf16>,
    %c1_51 = arith.constant 1 : index
    %c2_52 = arith.constant 2 : index
    %c0_53 = arith.constant 0 : index
    %30 = vector.load %arg9[%c1_51, %c2_52, %c0_53] : memref<18x18x128xbf16, #tpu.memory_space<vmem>>, vector<16x16x128xbf16>
    %31 = vector.shape_cast %30 : vector<16x16x128xbf16> to vector<256x128xbf16>
    %c0_54 = arith.constant 0 : index
    %c640 = arith.constant 640 : index
    %32 = vector.load %arg11[%c0_54, %c640] : memref<256x1152xbf16, #tpu.memory_space<vmem>>, vector<256x128xbf16>
    tpu.vector_store %arg11[%c0_54, %c640], %31 {strides = array<i32>} : memref<256x1152xbf16, #tpu.memory_space<vmem>>, vector<256x128xbf16>,
    %c2_55 = arith.constant 2 : index
    %c0_56 = arith.constant 0 : index
    %c0_57 = arith.constant 0 : index
    %33 = vector.load %arg9[%c2_55, %c0_56, %c0_57] : memref<18x18x128xbf16, #tpu.memory_space<vmem>>, vector<16x16x128xbf16>
    %34 = vector.shape_cast %33 : vector<16x16x128xbf16> to vector<256x128xbf16>
    %c0_58 = arith.constant 0 : index
    %c768 = arith.constant 768 : index
    %35 = vector.load %arg11[%c0_58, %c768] : memref<256x1152xbf16, #tpu.memory_space<vmem>>, vector<256x128xbf16>
    tpu.vector_store %arg11[%c0_58, %c768], %34 {strides = array<i32>} : memref<256x1152xbf16, #tpu.memory_space<vmem>>, vector<256x128xbf16>,
    %c2_59 = arith.constant 2 : index
    %c1_60 = arith.constant 1 : index
    %c0_61 = arith.constant 0 : index
    %36 = vector.load %arg9[%c2_59, %c1_60, %c0_61] : memref<18x18x128xbf16, #tpu.memory_space<vmem>>, vector<16x16x128xbf16>
    %37 = vector.shape_cast %36 : vector<16x16x128xbf16> to vector<256x128xbf16>
    %c0_62 = arith.constant 0 : index
    %c896 = arith.constant 896 : index
    %38 = vector.load %arg11[%c0_62, %c896] : memref<256x1152xbf16, #tpu.memory_space<vmem>>, vector<256x128xbf16>
    tpu.vector_store %arg11[%c0_62, %c896], %37 {strides = array<i32>} : memref<256x1152xbf16, #tpu.memory_space<vmem>>, vector<256x128xbf16>,
    %c2_63 = arith.constant 2 : index
    %c2_64 = arith.constant 2 : index
    %c0_65 = arith.constant 0 : index
    %39 = vector.load %arg9[%c2_63, %c2_64, %c0_65] : memref<18x18x128xbf16, #tpu.memory_space<vmem>>, vector<16x16x128xbf16>
    %40 = vector.shape_cast %39 : vector<16x16x128xbf16> to vector<256x128xbf16>
    %c0_66 = arith.constant 0 : index
    %c1024 = arith.constant 1024 : index
    %41 = vector.load %arg11[%c0_66, %c1024] : memref<256x1152xbf16, #tpu.memory_space<vmem>>, vector<256x128xbf16>
    tpu.vector_store %arg11[%c0_66, %c1024], %40 {strides = array<i32>} : memref<256x1152xbf16, #tpu.memory_space<vmem>>, vector<256x128xbf16>,
    %c0_67 = arith.constant 0 : index
    %c0_68 = arith.constant 0 : index
    %42 = vector.load %arg11[%c0_67, %c0_68] : memref<256x1152xbf16, #tpu.memory_space<vmem>>, vector<256x1152xbf16>
    %c0_69 = arith.constant 0 : index
    %c0_70 = arith.constant 0 : index
    %43 = vector.load %arg2[%c0_69, %c0_70] : memref<1152x128xbf16, #tpu.memory_space<vmem>>, vector<1152x128xbf16>
    %cst_71 = arith.constant dense<0.000000e+00> : vector<256x128xf32>
    %44 = tpu.matmul %42, %43, %cst_71 {dimension_numbers = #tpu.dot_dimension_numbers<[1], [0], [0], [1], [0, 0, 1, 1], [], []>} : vector<256x1152xbf16>, vector<1152x128xbf16>, vector<256x128xf32> -> vector<256x128xf32>
    %c0_72 = arith.constant 0 : index
    %c0_73 = arith.constant 0 : index
    %45 = vector.load %arg3[%c0_72, %c0_73] : memref<1x128xf32, #tpu.memory_space<vmem>>, vector<1x128xf32>
    %46 = vector.broadcast %45 : vector<1x128xf32> to vector<256x128xf32>
    %47 = arith.mulf %44, %46 : vector<256x128xf32>
    %c0_74 = arith.constant 0 : index
    %c0_75 = arith.constant 0 : index
    %48 = vector.load %arg4[%c0_74, %c0_75] : memref<1x128xf32, #tpu.memory_space<vmem>>, vector<1x128xf32>
    %49 = vector.broadcast %48 : vector<1x128xf32> to vector<256x128xf32>
    %50 = arith.addf %47, %49 : vector<256x128xf32>
    %cst_76 = arith.constant 0.000000e+00 : f32
    %51 = vector.broadcast %cst_76 : f32 to vector<256x128xf32>
    %52 = arith.maximumf %50, %51 : vector<256x128xf32>
    %53 = vector.shape_cast %52 : vector<256x128xf32> to vector<16x16x128xf32>
    %54 = arith.truncf %53 : vector<16x16x128xf32> to vector<16x16x128xbf16>
    %c1_77 = arith.constant 1 : index
    %c1_78 = arith.constant 1 : index
    %c0_79 = arith.constant 0 : index
    %55 = vector.load %arg10[%c1_77, %c1_78, %c0_79] : memref<18x18x128xbf16, #tpu.memory_space<vmem>>, vector<16x16x128xbf16>
    tpu.vector_store %arg10[%c1_77, %c1_78, %c0_79], %54 {strides = array<i32>} : memref<18x18x128xbf16, #tpu.memory_space<vmem>>, vector<16x16x128xbf16>,
    %c0_80 = arith.constant 0 : index
    %c0_81 = arith.constant 0 : index
    %c0_82 = arith.constant 0 : index
    %56 = vector.load %arg10[%c0_80, %c0_81, %c0_82] : memref<18x18x128xbf16, #tpu.memory_space<vmem>>, vector<16x16x128xbf16>
    %57 = vector.shape_cast %56 : vector<16x16x128xbf16> to vector<256x128xbf16>
    %c0_83 = arith.constant 0 : index
    %c0_84 = arith.constant 0 : index
    %58 = vector.load %arg11[%c0_83, %c0_84] : memref<256x1152xbf16, #tpu.memory_space<vmem>>, vector<256x128xbf16>
    tpu.vector_store %arg11[%c0_83, %c0_84], %57 {strides = array<i32>} : memref<256x1152xbf16, #tpu.memory_space<vmem>>, vector<256x128xbf16>,
    %c0_85 = arith.constant 0 : index
    %c1_86 = arith.constant 1 : index
    %c0_87 = arith.constant 0 : index
    %59 = vector.load %arg10[%c0_85, %c1_86, %c0_87] : memref<18x18x128xbf16, #tpu.memory_space<vmem>>, vector<16x16x128xbf16>
    %60 = vector.shape_cast %59 : vector<16x16x128xbf16> to vector<256x128xbf16>
    %c0_88 = arith.constant 0 : index
    %c128_89 = arith.constant 128 : index
    %61 = vector.load %arg11[%c0_88, %c128_89] : memref<256x1152xbf16, #tpu.memory_space<vmem>>, vector<256x128xbf16>
    tpu.vector_store %arg11[%c0_88, %c128_89], %60 {strides = array<i32>} : memref<256x1152xbf16, #tpu.memory_space<vmem>>, vector<256x128xbf16>,
    %c0_90 = arith.constant 0 : index
    %c2_91 = arith.constant 2 : index
    %c0_92 = arith.constant 0 : index
    %62 = vector.load %arg10[%c0_90, %c2_91, %c0_92] : memref<18x18x128xbf16, #tpu.memory_space<vmem>>, vector<16x16x128xbf16>
    %63 = vector.shape_cast %62 : vector<16x16x128xbf16> to vector<256x128xbf16>
    %c0_93 = arith.constant 0 : index
    %c256_94 = arith.constant 256 : index
    %64 = vector.load %arg11[%c0_93, %c256_94] : memref<256x1152xbf16, #tpu.memory_space<vmem>>, vector<256x128xbf16>
    tpu.vector_store %arg11[%c0_93, %c256_94], %63 {strides = array<i32>} : memref<256x1152xbf16, #tpu.memory_space<vmem>>, vector<256x128xbf16>,
    %c1_95 = arith.constant 1 : index
    %c0_96 = arith.constant 0 : index
    %c0_97 = arith.constant 0 : index
    %65 = vector.load %arg10[%c1_95, %c0_96, %c0_97] : memref<18x18x128xbf16, #tpu.memory_space<vmem>>, vector<16x16x128xbf16>
    %66 = vector.shape_cast %65 : vector<16x16x128xbf16> to vector<256x128xbf16>
    %c0_98 = arith.constant 0 : index
    %c384_99 = arith.constant 384 : index
    %67 = vector.load %arg11[%c0_98, %c384_99] : memref<256x1152xbf16, #tpu.memory_space<vmem>>, vector<256x128xbf16>
    tpu.vector_store %arg11[%c0_98, %c384_99], %66 {strides = array<i32>} : memref<256x1152xbf16, #tpu.memory_space<vmem>>, vector<256x128xbf16>,
    %c1_100 = arith.constant 1 : index
    %c1_101 = arith.constant 1 : index
    %c0_102 = arith.constant 0 : index
    %68 = vector.load %arg10[%c1_100, %c1_101, %c0_102] : memref<18x18x128xbf16, #tpu.memory_space<vmem>>, vector<16x16x128xbf16>
    %69 = vector.shape_cast %68 : vector<16x16x128xbf16> to vector<256x128xbf16>
    %c0_103 = arith.constant 0 : index
    %c512_104 = arith.constant 512 : index
    %70 = vector.load %arg11[%c0_103, %c512_104] : memref<256x1152xbf16, #tpu.memory_space<vmem>>, vector<256x128xbf16>
    tpu.vector_store %arg11[%c0_103, %c512_104], %69 {strides = array<i32>} : memref<256x1152xbf16, #tpu.memory_space<vmem>>, vector<256x128xbf16>,
    %c1_105 = arith.constant 1 : index
    %c2_106 = arith.constant 2 : index
    %c0_107 = arith.constant 0 : index
    %71 = vector.load %arg10[%c1_105, %c2_106, %c0_107] : memref<18x18x128xbf16, #tpu.memory_space<vmem>>, vector<16x16x128xbf16>
    %72 = vector.shape_cast %71 : vector<16x16x128xbf16> to vector<256x128xbf16>
    %c0_108 = arith.constant 0 : index
    %c640_109 = arith.constant 640 : index
    %73 = vector.load %arg11[%c0_108, %c640_109] : memref<256x1152xbf16, #tpu.memory_space<vmem>>, vector<256x128xbf16>
    tpu.vector_store %arg11[%c0_108, %c640_109], %72 {strides = array<i32>} : memref<256x1152xbf16, #tpu.memory_space<vmem>>, vector<256x128xbf16>,
    %c2_110 = arith.constant 2 : index
    %c0_111 = arith.constant 0 : index
    %c0_112 = arith.constant 0 : index
    %74 = vector.load %arg10[%c2_110, %c0_111, %c0_112] : memref<18x18x128xbf16, #tpu.memory_space<vmem>>, vector<16x16x128xbf16>
    %75 = vector.shape_cast %74 : vector<16x16x128xbf16> to vector<256x128xbf16>
    %c0_113 = arith.constant 0 : index
    %c768_114 = arith.constant 768 : index
    %76 = vector.load %arg11[%c0_113, %c768_114] : memref<256x1152xbf16, #tpu.memory_space<vmem>>, vector<256x128xbf16>
    tpu.vector_store %arg11[%c0_113, %c768_114], %75 {strides = array<i32>} : memref<256x1152xbf16, #tpu.memory_space<vmem>>, vector<256x128xbf16>,
    %c2_115 = arith.constant 2 : index
    %c1_116 = arith.constant 1 : index
    %c0_117 = arith.constant 0 : index
    %77 = vector.load %arg10[%c2_115, %c1_116, %c0_117] : memref<18x18x128xbf16, #tpu.memory_space<vmem>>, vector<16x16x128xbf16>
    %78 = vector.shape_cast %77 : vector<16x16x128xbf16> to vector<256x128xbf16>
    %c0_118 = arith.constant 0 : index
    %c896_119 = arith.constant 896 : index
    %79 = vector.load %arg11[%c0_118, %c896_119] : memref<256x1152xbf16, #tpu.memory_space<vmem>>, vector<256x128xbf16>
    tpu.vector_store %arg11[%c0_118, %c896_119], %78 {strides = array<i32>} : memref<256x1152xbf16, #tpu.memory_space<vmem>>, vector<256x128xbf16>,
    %c2_120 = arith.constant 2 : index
    %c2_121 = arith.constant 2 : index
    %c0_122 = arith.constant 0 : index
    %80 = vector.load %arg10[%c2_120, %c2_121, %c0_122] : memref<18x18x128xbf16, #tpu.memory_space<vmem>>, vector<16x16x128xbf16>
    %81 = vector.shape_cast %80 : vector<16x16x128xbf16> to vector<256x128xbf16>
    %c0_123 = arith.constant 0 : index
    %c1024_124 = arith.constant 1024 : index
    %82 = vector.load %arg11[%c0_123, %c1024_124] : memref<256x1152xbf16, #tpu.memory_space<vmem>>, vector<256x128xbf16>
    tpu.vector_store %arg11[%c0_123, %c1024_124], %81 {strides = array<i32>} : memref<256x1152xbf16, #tpu.memory_space<vmem>>, vector<256x128xbf16>,
    %c0_125 = arith.constant 0 : index
    %c0_126 = arith.constant 0 : index
    %83 = vector.load %arg11[%c0_125, %c0_126] : memref<256x1152xbf16, #tpu.memory_space<vmem>>, vector<256x1152xbf16>
    %c0_127 = arith.constant 0 : index
    %c0_128 = arith.constant 0 : index
    %84 = vector.load %arg5[%c0_127, %c0_128] : memref<1152x128xbf16, #tpu.memory_space<vmem>>, vector<1152x128xbf16>
    %cst_129 = arith.constant dense<0.000000e+00> : vector<256x128xf32>
    %85 = tpu.matmul %83, %84, %cst_129 {dimension_numbers = #tpu.dot_dimension_numbers<[1], [0], [0], [1], [0, 0, 1, 1], [], []>} : vector<256x1152xbf16>, vector<1152x128xbf16>, vector<256x128xf32> -> vector<256x128xf32>
    %c0_130 = arith.constant 0 : index
    %c0_131 = arith.constant 0 : index
    %86 = vector.load %arg6[%c0_130, %c0_131] : memref<1x128xf32, #tpu.memory_space<vmem>>, vector<1x128xf32>
    %87 = vector.broadcast %86 : vector<1x128xf32> to vector<256x128xf32>
    %88 = arith.mulf %85, %87 : vector<256x128xf32>
    %c0_132 = arith.constant 0 : index
    %c0_133 = arith.constant 0 : index
    %89 = vector.load %arg7[%c0_132, %c0_133] : memref<1x128xf32, #tpu.memory_space<vmem>>, vector<1x128xf32>
    %90 = vector.broadcast %89 : vector<1x128xf32> to vector<256x128xf32>
    %91 = arith.addf %88, %90 : vector<256x128xf32>
    %c0_134 = arith.constant 0 : index
    %c0_135 = arith.constant 0 : index
    %c0_136 = arith.constant 0 : index
    %c0_137 = arith.constant 0 : index
    %92 = vector.load %arg1[%c0_134, %c0_135, %c0_136, %c0_137] : memref<1x16x16x128xbf16, #tpu.memory_space<vmem>>, vector<1x16x16x128xbf16>
    %93 = vector.shape_cast %92 : vector<1x16x16x128xbf16> to vector<16x16x128xbf16>
    %94 = arith.extf %93 : vector<16x16x128xbf16> to vector<16x16x128xf32>
    %95 = vector.shape_cast %94 : vector<16x16x128xf32> to vector<256x128xf32>
    %96 = arith.addf %91, %95 : vector<256x128xf32>
    %cst_138 = arith.constant 0.000000e+00 : f32
    %97 = vector.broadcast %cst_138 : f32 to vector<256x128xf32>
    %98 = arith.maximumf %96, %97 : vector<256x128xf32>
    %99 = vector.shape_cast %98 : vector<256x128xf32> to vector<16x16x128xf32>
    %100 = arith.truncf %99 : vector<16x16x128xf32> to vector<16x16x128xbf16>
    %c0_139 = arith.constant 0 : index
    %c0_140 = arith.constant 0 : index
    %c0_141 = arith.constant 0 : index
    %c0_142 = arith.constant 0 : index
    %101 = vector.load %arg8[%c0_139, %c0_140, %c0_141, %c0_142] : memref<1x16x16x128xbf16, #tpu.memory_space<vmem>>, vector<1x16x16x128xbf16>
    %102 = vector.shape_cast %101 : vector<1x16x16x128xbf16> to vector<16x16x128xbf16>
    %103 = vector.shape_cast %100 : vector<16x16x128xbf16> to vector<1x16x16x128xbf16>
    tpu.vector_store %arg8[%c0_139, %c0_140, %c0_141, %c0_142], %103 {strides = array<i32>} : memref<1x16x16x128xbf16, #tpu.memory_space<vmem>>, vector<1x16x16x128xbf16>,
    return
  }
  func.func @transform_0(%arg0: i32) -> (i32, i32, i32, i32) {
    %c0_i32 = arith.constant 0 : i32
    %c0_i32_0 = arith.constant 0 : i32
    %c0_i32_1 = arith.constant 0 : i32
    %c0_i32_2 = arith.constant 0 : i32
    return %arg0, %c0_i32, %c0_i32_0, %c0_i32_1 : i32, i32, i32, i32
  }
  func.func @transform_1(%arg0: i32) -> (i32, i32) {
    %c0_i32 = arith.constant 0 : i32
    %c0_i32_0 = arith.constant 0 : i32
    %c0_i32_1 = arith.constant 0 : i32
    return %c0_i32, %c0_i32_0 : i32, i32
  }
  func.func @transform_2(%arg0: i32) -> (i32, i32) {
    %c0_i32 = arith.constant 0 : i32
    %c0_i32_0 = arith.constant 0 : i32
    %c0_i32_1 = arith.constant 0 : i32
    return %c0_i32, %c0_i32_0 : i32, i32
  }
  func.func @transform_3(%arg0: i32) -> (i32, i32) {
    %c0_i32 = arith.constant 0 : i32
    %c0_i32_0 = arith.constant 0 : i32
    %c0_i32_1 = arith.constant 0 : i32
    return %c0_i32, %c0_i32_0 : i32, i32
  }
  func.func @transform_4(%arg0: i32) -> (i32, i32) {
    %c0_i32 = arith.constant 0 : i32
    %c0_i32_0 = arith.constant 0 : i32
    %c0_i32_1 = arith.constant 0 : i32
    return %c0_i32, %c0_i32_0 : i32, i32
  }
  func.func @transform_5(%arg0: i32) -> (i32, i32) {
    %c0_i32 = arith.constant 0 : i32
    %c0_i32_0 = arith.constant 0 : i32
    %c0_i32_1 = arith.constant 0 : i32
    return %c0_i32, %c0_i32_0 : i32, i32
  }
  func.func @transform_6(%arg0: i32) -> (i32, i32) {
    %c0_i32 = arith.constant 0 : i32
    %c0_i32_0 = arith.constant 0 : i32
    %c0_i32_1 = arith.constant 0 : i32
    return %c0_i32, %c0_i32_0 : i32, i32
  }
  func.func @transform_7(%arg0: i32) -> (i32, i32, i32, i32) {
    %c0_i32 = arith.constant 0 : i32
    %c0_i32_0 = arith.constant 0 : i32
    %c0_i32_1 = arith.constant 0 : i32
    %c0_i32_2 = arith.constant 0 : i32
    return %arg0, %c0_i32, %c0_i32_0, %c0_i32_1 : i32, i32, i32, i32
  }
}

</mosaic_0001>

<llo_original>
// kernel: tpu_custom_call.1
$region0: #{tpu_custom_call.1}
  #allocation0 [shape = 'u32[]', space=smem, size = 0x4, offset = 0x4, fixed_abs, tag = 'smem constant byte address 0x4 - core index']
  #allocation1 [shape = 'u32[144,128]{1,0:T(1,128)}', space=vmem, size = 0x12000, scoped, tag = 'internal scratch']
  #allocation2 [shape = 'bf16[18,18,128]{2,1,0:T(8,128)(2,1)}', space=vmem, size = 0x1b000, scoped, tag = 'scratch operand']
  #allocation3 [shape = 'bf16[18,18,128]{2,1,0:T(8,128)(2,1)}', space=vmem, size = 0x1b000, scoped, tag = 'scratch operand']
  #allocation4 [shape = 'bf16[256,1152]{1,0:T(8,128)(2,1)}', space=vmem, size = 0x90000, scoped, tag = 'scratch operand']
  %s0 = inlined_call_operand.hbm [shape: bf16[2,16,16,128], index: 0, kind: input, shape index: {}]
  %s1 = inlined_call_operand.hbm [shape: bf16[1152,128], index: 1, kind: input, shape index: {}]
  %s2 = inlined_call_operand.vmem [shape: f32[1,128], index: 2, kind: input, shape index: {}]
  %s3 = inlined_call_operand.vmem [shape: f32[1,128], index: 3, kind: input, shape index: {}]
  %s4 = inlined_call_operand.hbm [shape: bf16[1152,128], index: 4, kind: input, shape index: {}]
  %s5 = inlined_call_operand.vmem [shape: f32[1,128], index: 5, kind: input, shape index: {}]
  %s6 = inlined_call_operand.vmem [shape: f32[1,128], index: 6, kind: input, shape index: {}]
  %s7 = inlined_call_operand.hbm [shape: bf16[2,16,16,128], index: 7, kind: output, shape index: {}]
  %s8 = sld [smem:[#allocation0]]
  $region73: #{tpu_custom_call.1} parent=0
    _
  %s10 = ssub.s32 1, %s8
  %s11 = scalar_select 0, %s10, %s8
  $region1: #{tpu_custom_call.1} parent=0
    #allocation5 [shape = 'u8[131072]{0}', space=vmem, size = 0x20000, scoped, tag = 'input window, operand 0']
    #allocation6 [shape = 's32[2]{0}', space=sflag, size = 0x8, scoped, tag = 'scoped memory for tpu_custom_call.1']
    #allocation7 [shape = 's32[2]{0}', space=sflag, size = 0x8, scoped, tag = 'scoped memory for tpu_custom_call.1']
    #allocation8 [shape = 'u8[294912]{0}', space=vmem, size = 0x48000, scoped, tag = 'input window, operand 1, single buffered']
    #allocation9 [shape = 's32[1]{0}', space=sflag, size = 0x4, scoped, tag = 'scoped memory for tpu_custom_call.1']
    #allocation10 [shape = 'u8[294912]{0}', space=vmem, size = 0x48000, scoped, tag = 'input window, operand 4, single buffered']
    #allocation11 [shape = 'u8[131072]{0}', space=vmem, size = 0x20000, scoped, tag = 'output window, operand 0']
    %12 = vsyncpa [#allocation6], 0
    %s13 = scalar_lea.sflag [#allocation6], 1
    %14 = vsyncpa %s13, 0
    %15 = vsyncpa [#allocation9], 0
    %16 = vsyncpa [#allocation7], 0
    %s17 = scalar_lea.sflag [#allocation7], 1
    %18 = vsyncpa %s17, 0
    loop: start=0, step=1, limit=4
    $region2: #{tpu_custom_call.1} parent=1 // loop_pre_header
      _
    $region3: #{tpu_custom_call.1} parent=1 // loop_header
      %s20 = sphi 0, %s24
      %p21 = scmp.ge.s32.totalorder %s20, 4
      %s30 = sphi 0, %s32
      %s33 = sphi 0, %s30
      %s34 = sphi 0, %s33
      %s50 = sphi 0, %s34
      %s54 = sphi 0, %s54
      %s56 = sphi 0, %s54
      %s57 = sphi 0, %s56
      %s71 = sphi 0, %s57
      %s75 = sphi 0, %s75
      %s77 = sphi 0, %s75
      %s78 = sphi 0, %s77
      %s92 = sphi 0, %s78
      %s96 = sphi 0, %s96
      %s98 = sphi 0, %s96
      %s99 = sphi 0, %s98
      %s113 = sphi 0, %s99
      %s117 = sphi 0, %s117
      %s119 = sphi 0, %s117
      %s120 = sphi 0, %s119
      %s134 = sphi 0, %s120
      %s138 = sphi 0, %s138
      %s140 = sphi 0, %s138
      %s141 = sphi 0, %s140
      %s155 = sphi 0, %s141
      %s159 = sphi 0, %s159
      %s161 = sphi 0, %s159
      %s162 = sphi 0, %s161
      %s176 = sphi 0, %s162
      %s182 = sphi 0, %s184
      %s185 = sphi 0, %s182
      %s186 = sphi 0, %s185
      %s202 = sphi 0, %s186
    $region4: #{tpu_custom_call.1} parent=1 // loop_header_branch
      %23 = sbr.rel (%p21) target = $region8
    $region5: #{tpu_custom_call.1} parent=1 // loop_body
      %s25 = ssub.s32 %s20, 1
      %s26 = ssub.s32 %s20, 2
      %s27 = sadd.s32 %s20, 1
      %s28 = ssub.s32 %s20, %s27
      %p29 = scmp.eq.s32.totalorder %s28, 0
      %s31 = sadd.s32 %s30, 1
      %s32 = scalar_select %p29, %s30, %s31
      %p35 = pneg %p29
      %p36 = scmp.eq.s32.totalorder %s20, 1
      %p37 = por %p35, %p36
      %p38 = scmp.ne.s32.totalorder %s30, %s33
      %p39 = scmp.eq.s32.totalorder %s20, 0
      %p40 = por %p38, %p39
      %p41 = scmp.ne.s32.totalorder %s30, %s33
      %p42 = scmp.eq.s32.totalorder %s25, 1
      %p43 = por %p41, %p42
      %p44 = scmp.ne.s32.totalorder %s33, %s34
      %p45 = scmp.eq.s32.totalorder %s25, 0
      %p46 = por %p44, %p45
      %p47 = scmp.ne.s32.totalorder %s33, %s34
      %p48 = scmp.eq.s32.totalorder %s26, 1
      %p49 = por %p47, %p48
      %p51 = scmp.ne.s32.totalorder %s34, %s50
      %p52 = scmp.eq.s32.totalorder %s26, 0
      %p53 = por %p51, %p52
      %s55 = sadd.s32 %s54, 1
      %p58 = scmp.eq.s32.totalorder %s20, 1
      %p59 = scmp.ne.s32.totalorder %s54, %s56
      %p60 = scmp.eq.s32.totalorder %s20, 0
      %p61 = por %p59, %p60
      %p62 = scmp.ne.s32.totalorder %s54, %s56
      %p63 = scmp.eq.s32.totalorder %s25, 1
      %p64 = por %p62, %p63
      %p65 = scmp.ne.s32.totalorder %s56, %s57
      %p66 = scmp.eq.s32.totalorder %s25, 0
      %p67 = por %p65, %p66
      %p68 = scmp.ne.s32.totalorder %s56, %s57
      %p69 = scmp.eq.s32.totalorder %s26, 1
      %p70 = por %p68, %p69
      %p72 = scmp.ne.s32.totalorder %s57, %s71
      %p73 = scmp.eq.s32.totalorder %s26, 0
      %p74 = por %p72, %p73
      %s76 = sadd.s32 %s75, 1
      %p79 = scmp.eq.s32.totalorder %s20, 1
      %p80 = scmp.ne.s32.totalorder %s75, %s77
      %p81 = scmp.eq.s32.totalorder %s20, 0
      %p82 = por %p80, %p81
      %p83 = scmp.ne.s32.totalorder %s75, %s77
      %p84 = scmp.eq.s32.totalorder %s25, 1
      %p85 = por %p83, %p84
      %p86 = scmp.ne.s32.totalorder %s77, %s78
      %p87 = scmp.eq.s32.totalorder %s25, 0
      %p88 = por %p86, %p87
      %p89 = scmp.ne.s32.totalorder %s77, %s78
      %p90 = scmp.eq.s32.totalorder %s26, 1
      %p91 = por %p89, %p90
      %p93 = scmp.ne.s32.totalorder %s78, %s92
      %p94 = scmp.eq.s32.totalorder %s26, 0
      %p95 = por %p93, %p94
      %s97 = sadd.s32 %s96, 1
      %p100 = scmp.eq.s32.totalorder %s20, 1
      %p101 = scmp.ne.s32.totalorder %s96, %s98
      %p102 = scmp.eq.s32.totalorder %s20, 0
      %p103 = por %p101, %p102
      %p104 = scmp.ne.s32.totalorder %s96, %s98
      %p105 = scmp.eq.s32.totalorder %s25, 1
      %p106 = por %p104, %p105
      %p107 = scmp.ne.s32.totalorder %s98, %s99
      %p108 = scmp.eq.s32.totalorder %s25, 0
      %p109 = por %p107, %p108
      %p110 = scmp.ne.s32.totalorder %s98, %s99
      %p111 = scmp.eq.s32.totalorder %s26, 1
      %p112 = por %p110, %p111
      %p114 = scmp.ne.s32.totalorder %s99, %s113
      %p115 = scmp.eq.s32.totalorder %s26, 0
      %p116 = por %p114, %p115
      %s118 = sadd.s32 %s117, 1
      %p121 = scmp.eq.s32.totalorder %s20, 1
      %p122 = scmp.ne.s32.totalorder %s117, %s119
      %p123 = scmp.eq.s32.totalorder %s20, 0
      %p124 = por %p122, %p123
      %p125 = scmp.ne.s32.totalorder %s117, %s119
      %p126 = scmp.eq.s32.totalorder %s25, 1
      %p127 = por %p125, %p126
      %p128 = scmp.ne.s32.totalorder %s119, %s120
      %p129 = scmp.eq.s32.totalorder %s25, 0
      %p130 = por %p128, %p129
      %p131 = scmp.ne.s32.totalorder %s119, %s120
      %p132 = scmp.eq.s32.totalorder %s26, 1
      %p133 = por %p131, %p132
      %p135 = scmp.ne.s32.totalorder %s120, %s134
      %p136 = scmp.eq.s32.totalorder %s26, 0
      %p137 = por %p135, %p136
      %s139 = sadd.s32 %s138, 1
      %p142 = scmp.eq.s32.totalorder %s20, 1
      %p143 = scmp.ne.s32.totalorder %s138, %s140
      %p144 = scmp.eq.s32.totalorder %s20, 0
      %p145 = por %p143, %p144
      %p146 = scmp.ne.s32.totalorder %s138, %s140
      %p147 = scmp.eq.s32.totalorder %s25, 1
      %p148 = por %p146, %p147
      %p149 = scmp.ne.s32.totalorder %s140, %s141
      %p150 = scmp.eq.s32.totalorder %s25, 0
      %p151 = por %p149, %p150
      %p152 = scmp.ne.s32.totalorder %s140, %s141
      %p153 = scmp.eq.s32.totalorder %s26, 1
      %p154 = por %p152, %p153
      %p156 = scmp.ne.s32.totalorder %s141, %s155
      %p157 = scmp.eq.s32.totalorder %s26, 0
      %p158 = por %p156, %p157
      %s160 = sadd.s32 %s159, 1
      %p163 = scmp.eq.s32.totalorder %s20, 1
      %p164 = scmp.ne.s32.totalorder %s159, %s161
      %p165 = scmp.eq.s32.totalorder %s20, 0
      %p166 = por %p164, %p165
      %p167 = scmp.ne.s32.totalorder %s159, %s161
      %p168 = scmp.eq.s32.totalorder %s25, 1
      %p169 = por %p167, %p168
      %p170 = scmp.ne.s32.totalorder %s161, %s162
      %p171 = scmp.eq.s32.totalorder %s25, 0
      %p172 = por %p170, %p171
      %p173 = scmp.ne.s32.totalorder %s161, %s162
      %p174 = scmp.eq.s32.totalorder %s26, 1
      %p175 = por %p173, %p174
      %p177 = scmp.ne.s32.totalorder %s162, %s176
      %p178 = scmp.eq.s32.totalorder %s26, 0
      %p179 = por %p177, %p178
      %s180 = ssub.s32 %s20, %s27
      %p181 = scmp.eq.s32.totalorder %s180, 0
      %s183 = sadd.s32 %s182, 1
      %s184 = scalar_select %p181, %s182, %s183
      %p187 = pneg %p181
      %p188 = scmp.eq.s32.totalorder %s20, 1
      %p189 = por %p187, %p188
      %p190 = scmp.ne.s32.totalorder %s182, %s185
      %p191 = scmp.eq.s32.totalorder %s20, 0
      %p192 = por %p190, %p191
      %p193 = scmp.ne.s32.totalorder %s182, %s185
      %p194 = scmp.eq.s32.totalorder %s25, 1
      %p195 = por %p193, %p194
      %p196 = scmp.ne.s32.totalorder %s185, %s186
      %p197 = scmp.eq.s32.totalorder %s25, 0
      %p198 = por %p196, %p197
      %p199 = scmp.ne.s32.totalorder %s185, %s186
      %p200 = scmp.eq.s32.totalorder %s26, 1
      %p201 = por %p199, %p200
      %p203 = scmp.ne.s32.totalorder %s186, %s202
      %p204 = scmp.eq.s32.totalorder %s26, 0
      %p205 = por %p203, %p204
      %p206 = scmp.le.s32.totalorder 1, %s20
      %p207 = scmp.lt.s32.totalorder %s20, 3
      %p208 = pnand %p206, %p207
      %p209 = pneg %p208
      // Predicated region
      $region9: #{tpu_custom_call.1} parent=5 // pred_check
        _
      $region10: #{tpu_custom_call.1} parent=5 // pred_check_branch
        %211 = sbr.rel (%p208) target = $region12
      $region11: #{tpu_custom_call.1} parent=5 // pred_region
        %s212 = ssub.s32 %s20, 1
        // Predicated region
        $region13: #{tpu_custom_call.1} parent=11 // pred_check
          %p213 = pneg %p67
        $region14: #{tpu_custom_call.1} parent=11 // pred_check_branch
          %215 = sbr.rel (%p213) target = $region16
        $region15: #{tpu_custom_call.1} parent=11 // pred_region
          %s217 = ssub.s32 9216, 9216
          %218 = vsyncadd [#allocation9], %s217
          %s219 = sshll.u32 [#allocation8], 4
          %s220 = int_to_ptr.vmem [resolvable:$true] %s219
          %225 = dma.hbm_to_vmem [thread:$0]  %s1, 9216, %s220, [#allocation9], 64, 64, 4
        $region16: #{tpu_custom_call.1} parent=11 // pred_fallthru
          _
        // Predicated region
        $region17: #{tpu_custom_call.1} parent=11 // pred_check
          %p226 = pneg %p88
        $region18: #{tpu_custom_call.1} parent=11 // pred_check_branch
          %228 = sbr.rel (%p226) target = $region20
        $region19: #{tpu_custom_call.1} parent=11 // pred_region
          _
        $region20: #{tpu_custom_call.1} parent=11 // pred_fallthru
          _
        // Predicated region
        $region21: #{tpu_custom_call.1} parent=11 // pred_check
          %p229 = pneg %p109
        $region22: #{tpu_custom_call.1} parent=11 // pred_check_branch
          %231 = sbr.rel (%p229) target = $region24
        $region23: #{tpu_custom_call.1} parent=11 // pred_region
          _
        $region24: #{tpu_custom_call.1} parent=11 // pred_fallthru
          _
        // Predicated region
        $region25: #{tpu_custom_call.1} parent=11 // pred_check
          %p232 = pneg %p130
        $region26: #{tpu_custom_call.1} parent=11 // pred_check_branch
          %234 = sbr.rel (%p232) target = $region28
        $region27: #{tpu_custom_call.1} parent=11 // pred_region
          %s236 = ssub.s32 9216, 9216
          %237 = vsyncadd [#allocation9], %s236
          %s238 = sshll.u32 [#allocation10], 4
          %s239 = int_to_ptr.vmem [resolvable:$true] %s238
          %244 = dma.hbm_to_vmem [thread:$0]  %s4, 9216, %s239, [#allocation9], 64, 64, 4
        $region28: #{tpu_custom_call.1} parent=11 // pred_fallthru
          _
        // Predicated region
        $region29: #{tpu_custom_call.1} parent=11 // pred_check
          %p245 = pneg %p151
        $region30: #{tpu_custom_call.1} parent=11 // pred_check_branch
          %247 = sbr.rel (%p245) target = $region32
        $region31: #{tpu_custom_call.1} parent=11 // pred_region
          _
        $region32: #{tpu_custom_call.1} parent=11 // pred_fallthru
          _
        // Predicated region
        $region33: #{tpu_custom_call.1} parent=11 // pred_check
          %p248 = pneg %p172
        $region34: #{tpu_custom_call.1} parent=11 // pred_check_branch
          %250 = sbr.rel (%p248) target = $region36
        $region35: #{tpu_custom_call.1} parent=11 // pred_region
          _
        $region36: #{tpu_custom_call.1} parent=11 // pred_fallthru
          _
      $region12: #{tpu_custom_call.1} parent=5 // pred_fallthru
        _
      %p251 = scmp.lt.s32.totalorder %s20, 2
      // Predicated region
      $region37: #{tpu_custom_call.1} parent=5 // pred_check
        %p252 = pneg %p251
      $region38: #{tpu_custom_call.1} parent=5 // pred_check_branch
        %254 = sbr.rel (%p252) target = $region40
      $region39: #{tpu_custom_call.1} parent=5 // pred_region
        // Predicated region
        $region41: #{tpu_custom_call.1} parent=39 // pred_check
          %p255 = pneg %p40
        $region42: #{tpu_custom_call.1} parent=39 // pred_check_branch
          %257 = sbr.rel (%p255) target = $region44
        $region43: #{tpu_custom_call.1} parent=39 // pred_region
          %s258 = sand.u32 %s30, 1
          %s259 = scalar_lea.sflag [#allocation6], %s258
          %s260 = sand.u32 %s30, 1
          %s261 = smul.addr %s260, 128
          %s262 = scalar_lea.vmem [#allocation5], %s261
          %s264 = ssub.s32 2048, 2048
          %265 = vsyncadd %s259, %s264
          %s266 = smul.addr %s20, 32
          %s267 = smul.addr %s266, 64
          %s268 = scalar_lea.hbm %s0, %s267
          %s269 = sshll.u32 %s262, 4
          %s270 = int_to_ptr.vmem [resolvable:$true] %s269
          %275 = dma.hbm_to_vmem [thread:$0]  %s268, 2048, %s270, %s259, 64, 64, 4
        $region44: #{tpu_custom_call.1} parent=39 // pred_fallthru
          _
      $region40: #{tpu_custom_call.1} parent=5 // pred_fallthru
        _
      %p276 = scmp.le.s32.totalorder 1, %s20
      %p277 = scmp.lt.s32.totalorder %s20, 3
      %p278 = pnand %p276, %p277
      %p279 = pneg %p278
      // Predicated region
      $region45: #{tpu_custom_call.1} parent=5 // pred_check
        _
      $region46: #{tpu_custom_call.1} parent=5 // pred_check_branch
        %281 = sbr.rel (%p278) target = $region48
      $region47: #{tpu_custom_call.1} parent=5 // pred_region
        %s282 = ssub.s32 %s20, 1
        %s283 = sand.u32 %s33, 1
        %s284 = scalar_lea.sflag [#allocation6], %s283
        %s285 = sand.u32 %s33, 1
        %s286 = smul.addr %s285, 128
        %s287 = scalar_lea.vmem [#allocation5], %s286
        // Predicated region
        $region49: #{tpu_custom_call.1} parent=47 // pred_check
          %p288 = pneg %p46
        $region50: #{tpu_custom_call.1} parent=47 // pred_check_branch
          %290 = sbr.rel (%p288) target = $region52
        $region51: #{tpu_custom_call.1} parent=47 // pred_region
          %291 = dma.done %s284, 2048
        $region52: #{tpu_custom_call.1} parent=47 // pred_fallthru
          _
        // Predicated region
        $region53: #{tpu_custom_call.1} parent=47 // pred_check
          %p292 = pneg %p67
        $region54: #{tpu_custom_call.1} parent=47 // pred_check_branch
          %294 = sbr.rel (%p292) target = $region56
        $region55: #{tpu_custom_call.1} parent=47 // pred_region
          %295 = dma.done [#allocation9], 9216
        $region56: #{tpu_custom_call.1} parent=47 // pred_fallthru
          _
        // Predicated region
        $region57: #{tpu_custom_call.1} parent=47 // pred_check
          %p296 = pneg %p130
        $region58: #{tpu_custom_call.1} parent=47 // pred_check_branch
          %298 = sbr.rel (%p296) target = $region60
        $region59: #{tpu_custom_call.1} parent=47 // pred_region
          %299 = dma.done [#allocation9], 9216
        $region60: #{tpu_custom_call.1} parent=47 // pred_fallthru
          _
        %s300 = sand.u32 %s33, 1
        %s301 = scalar_lea.sflag [#allocation6], %s300
        %s302 = sand.u32 %s33, 1
        %s303 = smul.addr %s302, 128
        %s304 = scalar_lea.vmem [#allocation5], %s303
        %p305 = pneg %p46
        %p306 = pneg %p43
        %p307 = pneg %p67
        %p308 = pneg %p64
        %p309 = pneg %p88
        %p310 = pneg %p85
        %p311 = pneg %p109
        %p312 = pneg %p106
        %p313 = pneg %p130
        %p314 = pneg %p127
        %p315 = pneg %p151
        %p316 = pneg %p148
        %p317 = pneg %p172
        %p318 = pneg %p169
        %p319 = pneg %p198
        %p320 = pneg %p195
        %s321 = sand.u32 %s185, 1
        %s322 = scalar_lea.sflag [#allocation7], %s321
        %s323 = sand.u32 %s185, 1
        %s324 = smul.addr %s323, 128
        %s325 = scalar_lea.vmem [#allocation11], %s324
        %327 = vst [vmem:[#allocation2] sm:$0xf] 0
        %328 = vst [vmem:[#allocation2 + $0x4] sm:$0xf] 0
        %329 = vst [vmem:[#allocation2 + $0x8] sm:$0x1] 0
        %s330 = scalar_lea.vmem [#allocation2], 204
        %331 = vst [vmem:[%s330] sm:$0xf] 0
        %332 = vst [vmem:[%s330 + $0x4] sm:$0xf] 0
        %333 = vst [vmem:[%s330 + $0x8] sm:$0x1] 0
        %vm334 = vcmask 1040384
        %vm335 = vsmask.f32 256
        %vm336 = vmand %vm334, %vm335
        %v337 = vld [vmem:[#allocation2] sm:$0x1]
        %v338 = vsel %vm336, 0, %v337
        %339 = vst [vmem:[#allocation2] sm:$0x1] %v338
        %v340 = vld [vmem:[#allocation2 + $0xc] sm:$0x1]
        %v341 = vsel %vm336, 0, %v340
        %342 = vst [vmem:[#allocation2 + $0xc] sm:$0x1] %v341
        %v343 = vld [vmem:[#allocation2 + $0x18] sm:$0x1]
        %v344 = vsel %vm336, 0, %v343
        %345 = vst [vmem:[#allocation2 + $0x18] sm:$0x1] %v344
        %v346 = vld [vmem:[#allocation2 + $0x24] sm:$0x1]
        %v347 = vsel %vm336, 0, %v346
        %348 = vst [vmem:[#allocation2 + $0x24] sm:$0x1] %v347
        %v349 = vld [vmem:[#allocation2 + $0x30] sm:$0x1]
        %v350 = vsel %vm336, 0, %v349
        %351 = vst [vmem:[#allocation2 + $0x30] sm:$0x1] %v350
        %v352 = vld [vmem:[#allocation2 + $0x3c] sm:$0x1]
        %v353 = vsel %vm336, 0, %v352
        %354 = vst [vmem:[#allocation2 + $0x3c] sm:$0x1] %v353
        %v355 = vld [vmem:[#allocation2 + $0x48] sm:$0x1]
        %v356 = vsel %vm336, 0, %v355
        %357 = vst [vmem:[#allocation2 + $0x48] sm:$0x1] %v356
        %v358 = vld [vmem:[#allocation2 + $0x54] sm:$0x1]
        %v359 = vsel %vm336, 0, %v358
        %360 = vst [vmem:[#allocation2 + $0x54] sm:$0x1] %v359
        %v361 = vld [vmem:[#allocation2 + $0x60] sm:$0x1]
        %v362 = vsel %vm336, 0, %v361
        %363 = vst [vmem:[#allocation2 + $0x60] sm:$0x1] %v362
        %v364 = vld [vmem:[#allocation2 + $0x6c] sm:$0x1]
        %v365 = vsel %vm336, 0, %v364
        %366 = vst [vmem:[#allocation2 + $0x6c] sm:$0x1] %v365
        %v367 = vld [vmem:[#allocation2 + $0x78] sm:$0x1]
        %v368 = vsel %vm336, 0, %v367
        %369 = vst [vmem:[#allocation2 + $0x78] sm:$0x1] %v368
        %v370 = vld [vmem:[#allocation2 + $0x84] sm:$0x1]
        %v371 = vsel %vm336, 0, %v370
        %372 = vst [vmem:[#allocation2 + $0x84] sm:$0x1] %v371
        %v373 = vld [vmem:[#allocation2 + $0x90] sm:$0x1]
        %v374 = vsel %vm336, 0, %v373
        %375 = vst [vmem:[#allocation2 + $0x90] sm:$0x1] %v374
        %v376 = vld [vmem:[#allocation2 + $0x9c] sm:$0x1]
        %v377 = vsel %vm336, 0, %v376
        %378 = vst [vmem:[#allocation2 + $0x9c] sm:$0x1] %v377
        %v379 = vld [vmem:[#allocation2 + $0xa8] sm:$0x1]
        %v380 = vsel %vm336, 0, %v379
        %381 = vst [vmem:[#allocation2 + $0xa8] sm:$0x1] %v380
        %v382 = vld [vmem:[#allocation2 + $0xb4] sm:$0x1]
        %v383 = vsel %vm336, 0, %v382
        %384 = vst [vmem:[#allocation2 + $0xb4] sm:$0x1] %v383
        %v385 = vld [vmem:[#allocation2 + $0xc0] sm:$0x1]
        %v386 = vsel %vm336, 0, %v385
        %387 = vst [vmem:[#allocation2 + $0xc0] sm:$0x1] %v386
        %v388 = vld [vmem:[#allocation2 + $0xcc] sm:$0x1]
        %v389 = vsel %vm336, 0, %v388
        %390 = vst [vmem:[#allocation2 + $0xcc] sm:$0x1] %v389
        %vm391 = vsmask.f32 7938
        %vm392 = vmand %vm334, %vm391
        %v393 = vld [vmem:[#allocation2 + $0x8] sm:$0x1]
        %v394 = vsel %vm392, 0, %v393
        %395 = vst [vmem:[#allocation2 + $0x8] sm:$0x1] %v394
        %v396 = vld [vmem:[#allocation2 + $0x14] sm:$0x1]
        %v397 = vsel %vm392, 0, %v396
        %398 = vst [vmem:[#allocation2 + $0x14] sm:$0x1] %v397
        %v399 = vld [vmem:[#allocation2 + $0x20] sm:$0x1]
        %v400 = vsel %vm392, 0, %v399
        %401 = vst [vmem:[#allocation2 + $0x20] sm:$0x1] %v400
        %v402 = vld [vmem:[#allocation2 + $0x2c] sm:$0x1]
        %v403 = vsel %vm392, 0, %v402
        %404 = vst [vmem:[#allocation2 + $0x2c] sm:$0x1] %v403
        %v405 = vld [vmem:[#allocation2 + $0x38] sm:$0x1]
        %v406 = vsel %vm392, 0, %v405
        %407 = vst [vmem:[#allocation2 + $0x38] sm:$0x1] %v406
        %v408 = vld [vmem:[#allocation2 + $0x44] sm:$0x1]
        %v409 = vsel %vm392, 0, %v408
        %410 = vst [vmem:[#allocation2 + $0x44] sm:$0x1] %v409
        %v411 = vld [vmem:[#allocation2 + $0x50] sm:$0x1]
        %v412 = vsel %vm392, 0, %v411
        %413 = vst [vmem:[#allocation2 + $0x50] sm:$0x1] %v412
        %v414 = vld [vmem:[#allocation2 + $0x5c] sm:$0x1]
        %v415 = vsel %vm392, 0, %v414
        %416 = vst [vmem:[#allocation2 + $0x5c] sm:$0x1] %v415
        %v417 = vld [vmem:[#allocation2 + $0x68] sm:$0x1]
        %v418 = vsel %vm392, 0, %v417
        %419 = vst [vmem:[#allocation2 + $0x68] sm:$0x1] %v418
        %v420 = vld [vmem:[#allocation2 + $0x74] sm:$0x1]
        %v421 = vsel %vm392, 0, %v420
        %422 = vst [vmem:[#allocation2 + $0x74] sm:$0x1] %v421
        %v423 = vld [vmem:[#allocation2 + $0x80] sm:$0x1]
        %v424 = vsel %vm392, 0, %v423
        %425 = vst [vmem:[#allocation2 + $0x80] sm:$0x1] %v424
        %v426 = vld [vmem:[#allocation2 + $0x8c] sm:$0x1]
        %v427 = vsel %vm392, 0, %v426
        %428 = vst [vmem:[#allocation2 + $0x8c] sm:$0x1] %v427
        %v429 = vld [vmem:[#allocation2 + $0x98] sm:$0x1]
        %v430 = vsel %vm392, 0, %v429
        %431 = vst [vmem:[#allocation2 + $0x98] sm:$0x1] %v430
        %v432 = vld [vmem:[#allocation2 + $0xa4] sm:$0x1]
        %v433 = vsel %vm392, 0, %v432
        %434 = vst [vmem:[#allocation2 + $0xa4] sm:$0x1] %v433
        %v435 = vld [vmem:[#allocation2 + $0xb0] sm:$0x1]
        %v436 = vsel %vm392, 0, %v435
        %437 = vst [vmem:[#allocation2 + $0xb0] sm:$0x1] %v436
        %v438 = vld [vmem:[#allocation2 + $0xbc] sm:$0x1]
        %v439 = vsel %vm392, 0, %v438
        %440 = vst [vmem:[#allocation2 + $0xbc] sm:$0x1] %v439
        %v441 = vld [vmem:[#allocation2 + $0xc8] sm:$0x1]
        %v442 = vsel %vm392, 0, %v441
        %443 = vst [vmem:[#allocation2 + $0xc8] sm:$0x1] %v442
        %v444 = vld [vmem:[#allocation2 + $0xd4] sm:$0x1]
        %v445 = vsel %vm392, 0, %v444
        %446 = vst [vmem:[#allocation2 + $0xd4] sm:$0x1] %v445
        %447 = vst [vmem:[#allocation3] sm:$0xf] 0
        %448 = vst [vmem:[#allocation3 + $0x4] sm:$0xf] 0
        %449 = vst [vmem:[#allocation3 + $0x8] sm:$0x1] 0
        %s450 = scalar_lea.vmem [#allocation3], 204
        %451 = vst [vmem:[%s450] sm:$0xf] 0
        %452 = vst [vmem:[%s450 + $0x4] sm:$0xf] 0
        %453 = vst [vmem:[%s450 + $0x8] sm:$0x1] 0
        %v454 = vld [vmem:[#allocation3] sm:$0x1]
        %v455 = vsel %vm336, 0, %v454
        %456 = vst [vmem:[#allocation3] sm:$0x1] %v455
        %v457 = vld [vmem:[#allocation3 + $0xc] sm:$0x1]
        %v458 = vsel %vm336, 0, %v457
        %459 = vst [vmem:[#allocation3 + $0xc] sm:$0x1] %v458
        %v460 = vld [vmem:[#allocation3 + $0x18] sm:$0x1]
        %v461 = vsel %vm336, 0, %v460
        %462 = vst [vmem:[#allocation3 + $0x18] sm:$0x1] %v461
        %v463 = vld [vmem:[#allocation3 + $0x24] sm:$0x1]
        %v464 = vsel %vm336, 0, %v463
        %465 = vst [vmem:[#allocation3 + $0x24] sm:$0x1] %v464
        %v466 = vld [vmem:[#allocation3 + $0x30] sm:$0x1]
        %v467 = vsel %vm336, 0, %v466
        %468 = vst [vmem:[#allocation3 + $0x30] sm:$0x1] %v467
        %v469 = vld [vmem:[#allocation3 + $0x3c] sm:$0x1]
        %v470 = vsel %vm336, 0, %v469
        %471 = vst [vmem:[#allocation3 + $0x3c] sm:$0x1] %v470
        %v472 = vld [vmem:[#allocation3 + $0x48] sm:$0x1]
        %v473 = vsel %vm336, 0, %v472
        %474 = vst [vmem:[#allocation3 + $0x48] sm:$0x1] %v473
        %v475 = vld [vmem:[#allocation3 + $0x54] sm:$0x1]
        %v476 = vsel %vm336, 0, %v475
        %477 = vst [vmem:[#allocation3 + $0x54] sm:$0x1] %v476
        %v478 = vld [vmem:[#allocation3 + $0x60] sm:$0x1]
        %v479 = vsel %vm336, 0, %v478
        %480 = vst [vmem:[#allocation3 + $0x60] sm:$0x1] %v479
        %v481 = vld [vmem:[#allocation3 + $0x6c] sm:$0x1]
        %v482 = vsel %vm336, 0, %v481
        %483 = vst [vmem:[#allocation3 + $0x6c] sm:$0x1] %v482
        %v484 = vld [vmem:[#allocation3 + $0x78] sm:$0x1]
        %v485 = vsel %vm336, 0, %v484
        %486 = vst [vmem:[#allocation3 + $0x78] sm:$0x1] %v485
        %v487 = vld [vmem:[#allocation3 + $0x84] sm:$0x1]
        %v488 = vsel %vm336, 0, %v487
        %489 = vst [vmem:[#allocation3 + $0x84] sm:$0x1] %v488
        %v490 = vld [vmem:[#allocation3 + $0x90] sm:$0x1]
        %v491 = vsel %vm336, 0, %v490
        %492 = vst [vmem:[#allocation3 + $0x90] sm:$0x1] %v491
        %v493 = vld [vmem:[#allocation3 + $0x9c] sm:$0x1]
        %v494 = vsel %vm336, 0, %v493
        %495 = vst [vmem:[#allocation3 + $0x9c] sm:$0x1] %v494
        %v496 = vld [vmem:[#allocation3 + $0xa8] sm:$0x1]
        %v497 = vsel %vm336, 0, %v496
        %498 = vst [vmem:[#allocation3 + $0xa8] sm:$0x1] %v497
        %v499 = vld [vmem:[#allocation3 + $0xb4] sm:$0x1]
        %v500 = vsel %vm336, 0, %v499
        %501 = vst [vmem:[#allocation3 + $0xb4] sm:$0x1] %v500
        %v502 = vld [vmem:[#allocation3 + $0xc0] sm:$0x1]
        %v503 = vsel %vm336, 0, %v502
        %504 = vst [vmem:[#allocation3 + $0xc0] sm:$0x1] %v503
        %v505 = vld [vmem:[#allocation3 + $0xcc] sm:$0x1]
        %v506 = vsel %vm336, 0, %v505
        %507 = vst [vmem:[#allocation3 + $0xcc] sm:$0x1] %v506
        %v508 = vld [vmem:[#allocation3 + $0x8] sm:$0x1]
        %v509 = vsel %vm392, 0, %v508
        %510 = vst [vmem:[#allocation3 + $0x8] sm:$0x1] %v509
        %v511 = vld [vmem:[#allocation3 + $0x14] sm:$0x1]
        %v512 = vsel %vm392, 0, %v511
        %513 = vst [vmem:[#allocation3 + $0x14] sm:$0x1] %v512
        %v514 = vld [vmem:[#allocation3 + $0x20] sm:$0x1]
        %v515 = vsel %vm392, 0, %v514
        %516 = vst [vmem:[#allocation3 + $0x20] sm:$0x1] %v515
        %v517 = vld [vmem:[#allocation3 + $0x2c] sm:$0x1]
        %v518 = vsel %vm392, 0, %v517
        %519 = vst [vmem:[#allocation3 + $0x2c] sm:$0x1] %v518
        %v520 = vld [vmem:[#allocation3 + $0x38] sm:$0x1]
        %v521 = vsel %vm392, 0, %v520
        %522 = vst [vmem:[#allocation3 + $0x38] sm:$0x1] %v521
        %v523 = vld [vmem:[#allocation3 + $0x44] sm:$0x1]
        %v524 = vsel %vm392, 0, %v523
        %525 = vst [vmem:[#allocation3 + $0x44] sm:$0x1] %v524
        %v526 = vld [vmem:[#allocation3 + $0x50] sm:$0x1]
        %v527 = vsel %vm392, 0, %v526
        %528 = vst [vmem:[#allocation3 + $0x50] sm:$0x1] %v527
        %v529 = vld [vmem:[#allocation3 + $0x5c] sm:$0x1]
        %v530 = vsel %vm392, 0, %v529
        %531 = vst [vmem:[#allocation3 + $0x5c] sm:$0x1] %v530
        %v532 = vld [vmem:[#allocation3 + $0x68] sm:$0x1]
        %v533 = vsel %vm392, 0, %v532
        %534 = vst [vmem:[#allocation3 + $0x68] sm:$0x1] %v533
        %v535 = vld [vmem:[#allocation3 + $0x74] sm:$0x1]
        %v536 = vsel %vm392, 0, %v535
        %537 = vst [vmem:[#allocation3 + $0x74] sm:$0x1] %v536
        %v538 = vld [vmem:[#allocation3 + $0x80] sm:$0x1]
        %v539 = vsel %vm392, 0, %v538
        %540 = vst [vmem:[#allocation3 + $0x80] sm:$0x1] %v539
        %v541 = vld [vmem:[#allocation3 + $0x8c] sm:$0x1]
        %v542 = vsel %vm392, 0, %v541
        %543 = vst [vmem:[#allocation3 + $0x8c] sm:$0x1] %v542
        %v544 = vld [vmem:[#allocation3 + $0x98] sm:$0x1]
        %v545 = vsel %vm392, 0, %v544
        %546 = vst [vmem:[#allocation3 + $0x98] sm:$0x1] %v545
        %v547 = vld [vmem:[#allocation3 + $0xa4] sm:$0x1]
        %v548 = vsel %vm392, 0, %v547
        %549 = vst [vmem:[#allocation3 + $0xa4] sm:$0x1] %v548
        %v550 = vld [vmem:[#allocation3 + $0xb0] sm:$0x1]
        %v551 = vsel %vm392, 0, %v550
        %552 = vst [vmem:[#allocation3 + $0xb0] sm:$0x1] %v551
        %v553 = vld [vmem:[#allocation3 + $0xbc] sm:$0x1]
        %v554 = vsel %vm392, 0, %v553
        %555 = vst [vmem:[#allocation3 + $0xbc] sm:$0x1] %v554
        %v556 = vld [vmem:[#allocation3 + $0xc8] sm:$0x1]
        %v557 = vsel %vm392, 0, %v556
        %558 = vst [vmem:[#allocation3 + $0xc8] sm:$0x1] %v557
        %v559 = vld [vmem:[#allocation3 + $0xd4] sm:$0x1]
        %v560 = vsel %vm392, 0, %v559
        %561 = vst [vmem:[#allocation3 + $0xd4] sm:$0x1] %v560
        %v562 = vld [vmem:[%s287] sm:$0xf]
        %v563 = vld [vmem:[%s287 + $0x4] sm:$0xf]
        %v564 = vld [vmem:[%s287 + $0x8] sm:$0xf]
        %v565 = vld [vmem:[%s287 + $0xc] sm:$0xf]
        %v566 = vld [vmem:[%s287 + $0x10] sm:$0xf]
        %v567 = vld [vmem:[%s287 + $0x14] sm:$0xf]
        %v568 = vld [vmem:[%s287 + $0x18] sm:$0xf]
        %v569 = vld [vmem:[%s287 + $0x1c] sm:$0xf]
        %v570 = vld [vmem:[%s287 + $0x20] sm:$0xf]
        %v571 = vld [vmem:[%s287 + $0x24] sm:$0xf]
        %v572 = vld [vmem:[%s287 + $0x28] sm:$0xf]
        %v573 = vld [vmem:[%s287 + $0x2c] sm:$0xf]
        %v574 = vld [vmem:[%s287 + $0x30] sm:$0xf]
        %v575 = vld [vmem:[%s287 + $0x34] sm:$0xf]
        %v576 = vld [vmem:[%s287 + $0x38] sm:$0xf]
        %v577 = vld [vmem:[%s287 + $0x3c] sm:$0xf]
        %v578 = vld [vmem:[%s287 + $0x40] sm:$0xf]
        %v579 = vld [vmem:[%s287 + $0x44] sm:$0xf]
        %v580 = vld [vmem:[%s287 + $0x48] sm:$0xf]
        %v581 = vld [vmem:[%s287 + $0x4c] sm:$0xf]
        %v582 = vld [vmem:[%s287 + $0x50] sm:$0xf]
        %v583 = vld [vmem:[%s287 + $0x54] sm:$0xf]
        %v584 = vld [vmem:[%s287 + $0x58] sm:$0xf]
        %v585 = vld [vmem:[%s287 + $0x5c] sm:$0xf]
        %v586 = vld [vmem:[%s287 + $0x60] sm:$0xf]
        %v587 = vld [vmem:[%s287 + $0x64] sm:$0xf]
        %v588 = vld [vmem:[%s287 + $0x68] sm:$0xf]
        %v589 = vld [vmem:[%s287 + $0x6c] sm:$0xf]
        %v590 = vld [vmem:[%s287 + $0x70] sm:$0xf]
        %v591 = vld [vmem:[%s287 + $0x74] sm:$0xf]
        %v592 = vld [vmem:[%s287 + $0x78] sm:$0xf]
        %v593 = vld [vmem:[%s287 + $0x7c] sm:$0xf]
        %vm594 = vsmask.f32 4368
        %vm595 = vmor %vm335, %vm594
        %v597 = vshrl.u32 %v562, 16
        %v599 = vrot.slane %v597, 7
        %v600 = vshll.u32 %v562, 16
        %v602 = vor.u32 %v599, %v600
        %v603 = vrot.slane %v599, 4
        %v605 = vshrl.u32 %v563, 16
        %v607 = vrot.slane %v605, 7
        %v608 = vshll.u32 %v563, 16
        %v610 = vor.u32 %v607, %v608
        %v611 = vsel %vm595, %v603, %v610
        %v612 = vrot.slane %v607, 4
        %v614 = vshrl.u32 %v564, 16
        %v616 = vrot.slane %v614, 7
        %v617 = vshll.u32 %v564, 16
        %v619 = vor.u32 %v616, %v617
        %v620 = vrot.slane %v616, 4
        %v622 = vshrl.u32 %v565, 16
        %v624 = vrot.slane %v622, 7
        %v625 = vshll.u32 %v565, 16
        %v627 = vor.u32 %v624, %v625
        %v628 = vsel %vm595, %v620, %v627
        %v629 = vrot.slane %v624, 4
        %v631 = vshrl.u32 %v566, 16
        %v633 = vrot.slane %v631, 7
        %v634 = vshll.u32 %v566, 16
        %v636 = vor.u32 %v633, %v634
        %v637 = vrot.slane %v633, 4
        %v639 = vshrl.u32 %v567, 16
        %v641 = vrot.slane %v639, 7
        %v642 = vshll.u32 %v567, 16
        %v644 = vor.u32 %v641, %v642
        %v645 = vsel %vm595, %v637, %v644
        %v646 = vrot.slane %v641, 4
        %v648 = vshrl.u32 %v568, 16
        %v650 = vrot.slane %v648, 7
        %v651 = vshll.u32 %v568, 16
        %v653 = vor.u32 %v650, %v651
        %v654 = vrot.slane %v650, 4
        %v656 = vshrl.u32 %v569, 16
        %v658 = vrot.slane %v656, 7
        %v659 = vshll.u32 %v569, 16
        %v661 = vor.u32 %v658, %v659
        %v662 = vsel %vm595, %v654, %v661
        %v663 = vrot.slane %v658, 4
        %v665 = vshrl.u32 %v570, 16
        %v667 = vrot.slane %v665, 7
        %v668 = vshll.u32 %v570, 16
        %v670 = vor.u32 %v667, %v668
        %v671 = vrot.slane %v667, 4
        %v673 = vshrl.u32 %v571, 16
        %v675 = vrot.slane %v673, 7
        %v676 = vshll.u32 %v571, 16
        %v678 = vor.u32 %v675, %v676
        %v679 = vsel %vm595, %v671, %v678
        %v680 = vrot.slane %v675, 4
        %v682 = vshrl.u32 %v572, 16
        %v684 = vrot.slane %v682, 7
        %v685 = vshll.u32 %v572, 16
        %v687 = vor.u32 %v684, %v685
        %v688 = vrot.slane %v684, 4
        %v690 = vshrl.u32 %v573, 16
        %v692 = vrot.slane %v690, 7
        %v693 = vshll.u32 %v573, 16
        %v695 = vor.u32 %v692, %v693
        %v696 = vsel %vm595, %v688, %v695
        %v697 = vrot.slane %v692, 4
        %v699 = vshrl.u32 %v574, 16
        %v701 = vrot.slane %v699, 7
        %v702 = vshll.u32 %v574, 16
        %v704 = vor.u32 %v701, %v702
        %v705 = vrot.slane %v701, 4
        %v707 = vshrl.u32 %v575, 16
        %v709 = vrot.slane %v707, 7
        %v710 = vshll.u32 %v575, 16
        %v712 = vor.u32 %v709, %v710
        %v713 = vsel %vm595, %v705, %v712
        %v714 = vrot.slane %v709, 4
        %v716 = vshrl.u32 %v576, 16
        %v718 = vrot.slane %v716, 7
        %v719 = vshll.u32 %v576, 16
        %v721 = vor.u32 %v718, %v719
        %v722 = vrot.slane %v718, 4
        %v724 = vshrl.u32 %v577, 16
        %v726 = vrot.slane %v724, 7
        %v727 = vshll.u32 %v577, 16
        %v729 = vor.u32 %v726, %v727
        %v730 = vsel %vm595, %v722, %v729
        %v731 = vrot.slane %v726, 4
        %v733 = vshrl.u32 %v578, 16
        %v735 = vrot.slane %v733, 7
        %v736 = vshll.u32 %v578, 16
        %v738 = vor.u32 %v735, %v736
        %v739 = vrot.slane %v735, 4
        %v741 = vshrl.u32 %v579, 16
        %v743 = vrot.slane %v741, 7
        %v744 = vshll.u32 %v579, 16
        %v746 = vor.u32 %v743, %v744
        %v747 = vsel %vm595, %v739, %v746
        %v748 = vrot.slane %v743, 4
        %v750 = vshrl.u32 %v580, 16
        %v752 = vrot.slane %v750, 7
        %v753 = vshll.u32 %v580, 16
        %v755 = vor.u32 %v752, %v753
        %v756 = vrot.slane %v752, 4
        %v758 = vshrl.u32 %v581, 16
        %v760 = vrot.slane %v758, 7
        %v761 = vshll.u32 %v581, 16
        %v763 = vor.u32 %v760, %v761
        %v764 = vsel %vm595, %v756, %v763
        %v765 = vrot.slane %v760, 4
        %v767 = vshrl.u32 %v582, 16
        %v769 = vrot.slane %v767, 7
        %v770 = vshll.u32 %v582, 16
        %v772 = vor.u32 %v769, %v770
        %v773 = vrot.slane %v769, 4
        %v775 = vshrl.u32 %v583, 16
        %v777 = vrot.slane %v775, 7
        %v778 = vshll.u32 %v583, 16
        %v780 = vor.u32 %v777, %v778
        %v781 = vsel %vm595, %v773, %v780
        %v782 = vrot.slane %v777, 4
        %v784 = vshrl.u32 %v584, 16
        %v786 = vrot.slane %v784, 7
        %v787 = vshll.u32 %v584, 16
        %v789 = vor.u32 %v786, %v787
        %v790 = vrot.slane %v786, 4
        %v792 = vshrl.u32 %v585, 16
        %v794 = vrot.slane %v792, 7
        %v795 = vshll.u32 %v585, 16
        %v797 = vor.u32 %v794, %v795
        %v798 = vsel %vm595, %v790, %v797
        %v799 = vrot.slane %v794, 4
        %v801 = vshrl.u32 %v586, 16
        %v803 = vrot.slane %v801, 7
        %v804 = vshll.u32 %v586, 16
        %v806 = vor.u32 %v803, %v804
        %v807 = vrot.slane %v803, 4
        %v809 = vshrl.u32 %v587, 16
        %v811 = vrot.slane %v809, 7
        %v812 = vshll.u32 %v587, 16
        %v814 = vor.u32 %v811, %v812
        %v815 = vsel %vm595, %v807, %v814
        %v816 = vrot.slane %v811, 4
        %v818 = vshrl.u32 %v588, 16
        %v820 = vrot.slane %v818, 7
        %v821 = vshll.u32 %v588, 16
        %v823 = vor.u32 %v820, %v821
        %v824 = vrot.slane %v820, 4
        %v826 = vshrl.u32 %v589, 16
        %v828 = vrot.slane %v826, 7
        %v829 = vshll.u32 %v589, 16
        %v831 = vor.u32 %v828, %v829
        %v832 = vsel %vm595, %v824, %v831
        %v833 = vrot.slane %v828, 4
        %v835 = vshrl.u32 %v590, 16
        %v837 = vrot.slane %v835, 7
        %v838 = vshll.u32 %v590, 16
        %v840 = vor.u32 %v837, %v838
        %v841 = vrot.slane %v837, 4
        %v843 = vshrl.u32 %v591, 16
        %v845 = vrot.slane %v843, 7
        %v846 = vshll.u32 %v591, 16
        %v848 = vor.u32 %v845, %v846
        %v849 = vsel %vm595, %v841, %v848
        %v850 = vrot.slane %v845, 4
        %v852 = vshrl.u32 %v592, 16
        %v854 = vrot.slane %v852, 7
        %v855 = vshll.u32 %v592, 16
        %v857 = vor.u32 %v854, %v855
        %v858 = vrot.slane %v854, 4
        %v860 = vshrl.u32 %v593, 16
        %v862 = vrot.slane %v860, 7
        %v863 = vshll.u32 %v593, 16
        %v865 = vor.u32 %v862, %v863
        %v866 = vsel %vm595, %v858, %v865
        %v867 = vrot.slane %v862, 4
        %s916 = scalar_lea.vmem [#allocation2], 12
        %vm917 = vcmask 1043456
        %vm918 = vmand %vm917, %vm391
        %v919 = vld [vmem:[%s916] sm:$0xf]
        %v920 = vsel %vm918, %v602, %v919
        %921 = vst [vmem:[%s916] sm:$0xf] %v920
        %922 = vst [vmem:[%s916 + $0x4] sm:$0xf] %v611
        %v923 = vld [vmem:[%s916 + $0x8] sm:$0x1]
        %v924 = vsel %vm336, %v612, %v923
        %925 = vst [vmem:[%s916 + $0x8] sm:$0x1] %v924
        %v926 = vld [vmem:[%s916 + $0xc] sm:$0xf]
        %v927 = vsel %vm918, %v619, %v926
        %928 = vst [vmem:[%s916 + $0xc] sm:$0xf] %v927
        %929 = vst [vmem:[%s916 + $0x10] sm:$0xf] %v628
        %v930 = vld [vmem:[%s916 + $0x14] sm:$0x1]
        %v931 = vsel %vm336, %v629, %v930
        %932 = vst [vmem:[%s916 + $0x14] sm:$0x1] %v931
        %v933 = vld [vmem:[%s916 + $0x18] sm:$0xf]
        %v934 = vsel %vm918, %v636, %v933
        %935 = vst [vmem:[%s916 + $0x18] sm:$0xf] %v934
        %936 = vst [vmem:[%s916 + $0x1c] sm:$0xf] %v645
        %v937 = vld [vmem:[%s916 + $0x20] sm:$0x1]
        %v938 = vsel %vm336, %v646, %v937
        %939 = vst [vmem:[%s916 + $0x20] sm:$0x1] %v938
        %v940 = vld [vmem:[%s916 + $0x24] sm:$0xf]
        %v941 = vsel %vm918, %v653, %v940
        %942 = vst [vmem:[%s916 + $0x24] sm:$0xf] %v941
        %943 = vst [vmem:[%s916 + $0x28] sm:$0xf] %v662
        %v944 = vld [vmem:[%s916 + $0x2c] sm:$0x1]
        %v945 = vsel %vm336, %v663, %v944
        %946 = vst [vmem:[%s916 + $0x2c] sm:$0x1] %v945
        %v947 = vld [vmem:[%s916 + $0x30] sm:$0xf]
        %v948 = vsel %vm918, %v670, %v947
        %949 = vst [vmem:[%s916 + $0x30] sm:$0xf] %v948
        %950 = vst [vmem:[%s916 + $0x34] sm:$0xf] %v679
        %v951 = vld [vmem:[%s916 + $0x38] sm:$0x1]
        %v952 = vsel %vm336, %v680, %v951
        %953 = vst [vmem:[%s916 + $0x38] sm:$0x1] %v952
        %v954 = vld [vmem:[%s916 + $0x3c] sm:$0xf]
        %v955 = vsel %vm918, %v687, %v954
        %956 = vst [vmem:[%s916 + $0x3c] sm:$0xf] %v955
        %957 = vst [vmem:[%s916 + $0x40] sm:$0xf] %v696
        %v958 = vld [vmem:[%s916 + $0x44] sm:$0x1]
        %v959 = vsel %vm336, %v697, %v958
        %960 = vst [vmem:[%s916 + $0x44] sm:$0x1] %v959
        %v961 = vld [vmem:[%s916 + $0x48] sm:$0xf]
        %v962 = vsel %vm918, %v704, %v961
        %963 = vst [vmem:[%s916 + $0x48] sm:$0xf] %v962
        %964 = vst [vmem:[%s916 + $0x4c] sm:$0xf] %v713
        %v965 = vld [vmem:[%s916 + $0x50] sm:$0x1]
        %v966 = vsel %vm336, %v714, %v965
        %967 = vst [vmem:[%s916 + $0x50] sm:$0x1] %v966
        %v968 = vld [vmem:[%s916 + $0x54] sm:$0xf]
        %v969 = vsel %vm918, %v721, %v968
        %970 = vst [vmem:[%s916 + $0x54] sm:$0xf] %v969
        %971 = vst [vmem:[%s916 + $0x58] sm:$0xf] %v730
        %v972 = vld [vmem:[%s916 + $0x5c] sm:$0x1]
        %v973 = vsel %vm336, %v731, %v972
        %974 = vst [vmem:[%s916 + $0x5c] sm:$0x1] %v973
        %v975 = vld [vmem:[%s916 + $0x60] sm:$0xf]
        %v976 = vsel %vm918, %v738, %v975
        %977 = vst [vmem:[%s916 + $0x60] sm:$0xf] %v976
        %978 = vst [vmem:[%s916 + $0x64] sm:$0xf] %v747
        %v979 = vld [vmem:[%s916 + $0x68] sm:$0x1]
        %v980 = vsel %vm336, %v748, %v979
        %981 = vst [vmem:[%s916 + $0x68] sm:$0x1] %v980
        %v982 = vld [vmem:[%s916 + $0x6c] sm:$0xf]
        %v983 = vsel %vm918, %v755, %v982
        %984 = vst [vmem:[%s916 + $0x6c] sm:$0xf] %v983
        %985 = vst [vmem:[%s916 + $0x70] sm:$0xf] %v764
        %v986 = vld [vmem:[%s916 + $0x74] sm:$0x1]
        %v987 = vsel %vm336, %v765, %v986
        %988 = vst [vmem:[%s916 + $0x74] sm:$0x1] %v987
        %v989 = vld [vmem:[%s916 + $0x78] sm:$0xf]
        %v990 = vsel %vm918, %v772, %v989
        %991 = vst [vmem:[%s916 + $0x78] sm:$0xf] %v990
        %992 = vst [vmem:[%s916 + $0x7c] sm:$0xf] %v781
        %v993 = vld [vmem:[%s916 + $0x80] sm:$0x1]
        %v994 = vsel %vm336, %v782, %v993
        %995 = vst [vmem:[%s916 + $0x80] sm:$0x1] %v994
        %v996 = vld [vmem:[%s916 + $0x84] sm:$0xf]
        %v997 = vsel %vm918, %v789, %v996
        %998 = vst [vmem:[%s916 + $0x84] sm:$0xf] %v997
        %999 = vst [vmem:[%s916 + $0x88] sm:$0xf] %v798
        %v1000 = vld [vmem:[%s916 + $0x8c] sm:$0x1]
        %v1001 = vsel %vm336, %v799, %v1000
        %1002 = vst [vmem:[%s916 + $0x8c] sm:$0x1] %v1001
        %v1003 = vld [vmem:[%s916 + $0x90] sm:$0xf]
        %v1004 = vsel %vm918, %v806, %v1003
        %1005 = vst [vmem:[%s916 + $0x90] sm:$0xf] %v1004
        %1006 = vst [vmem:[%s916 + $0x94] sm:$0xf] %v815
        %v1007 = vld [vmem:[%s916 + $0x98] sm:$0x1]
        %v1008 = vsel %vm336, %v816, %v1007
        %1009 = vst [vmem:[%s916 + $0x98] sm:$0x1] %v1008
        %v1010 = vld [vmem:[%s916 + $0x9c] sm:$0xf]
        %v1011 = vsel %vm918, %v823, %v1010
        %1012 = vst [vmem:[%s916 + $0x9c] sm:$0xf] %v1011
        %1013 = vst [vmem:[%s916 + $0xa0] sm:$0xf] %v832
        %v1014 = vld [vmem:[%s916 + $0xa4] sm:$0x1]
        %v1015 = vsel %vm336, %v833, %v1014
        %1016 = vst [vmem:[%s916 + $0xa4] sm:$0x1] %v1015
        %v1017 = vld [vmem:[%s916 + $0xa8] sm:$0xf]
        %v1018 = vsel %vm918, %v840, %v1017
        %1019 = vst [vmem:[%s916 + $0xa8] sm:$0xf] %v1018
        %1020 = vst [vmem:[%s916 + $0xac] sm:$0xf] %v849
        %v1021 = vld [vmem:[%s916 + $0xb0] sm:$0x1]
        %v1022 = vsel %vm336, %v850, %v1021
        %1023 = vst [vmem:[%s916 + $0xb0] sm:$0x1] %v1022
        %v1024 = vld [vmem:[%s916 + $0xb4] sm:$0xf]
        %v1025 = vsel %vm918, %v857, %v1024
        %1026 = vst [vmem:[%s916 + $0xb4] sm:$0xf] %v1025
        %1027 = vst [vmem:[%s916 + $0xb8] sm:$0xf] %v866
        %v1028 = vld [vmem:[%s916 + $0xbc] sm:$0x1]
        %v1029 = vsel %vm336, %v867, %v1028
        %1030 = vst [vmem:[%s916 + $0xbc] sm:$0x1] %v1029
        %v1031 = vld [vmem:[#allocation2] sm:$0xf]
        %v1032 = vld [vmem:[#allocation2 + $0x4] sm:$0xf]
        %v1033 = vld [vmem:[#allocation2 + $0xc] sm:$0xf]
        %v1034 = vld [vmem:[#allocation2 + $0x10] sm:$0xf]
        %v1035 = vld [vmem:[#allocation2 + $0x18] sm:$0xf]
        %v1036 = vld [vmem:[#allocation2 + $0x1c] sm:$0xf]
        %v1037 = vld [vmem:[#allocation2 + $0x24] sm:$0xf]
        %v1038 = vld [vmem:[#allocation2 + $0x28] sm:$0xf]
        %v1039 = vld [vmem:[#allocation2 + $0x30] sm:$0xf]
        %v1040 = vld [vmem:[#allocation2 + $0x34] sm:$0xf]
        %v1041 = vld [vmem:[#allocation2 + $0x3c] sm:$0xf]
        %v1042 = vld [vmem:[#allocation2 + $0x40] sm:$0xf]
        %v1043 = vld [vmem:[#allocation2 + $0x48] sm:$0xf]
        %v1044 = vld [vmem:[#allocation2 + $0x4c] sm:$0xf]
        %v1045 = vld [vmem:[#allocation2 + $0x54] sm:$0xf]
        %v1046 = vld [vmem:[#allocation2 + $0x58] sm:$0xf]
        %v1047 = vld [vmem:[#allocation2 + $0x60] sm:$0xf]
        %v1048 = vld [vmem:[#allocation2 + $0x64] sm:$0xf]
        %v1049 = vld [vmem:[#allocation2 + $0x6c] sm:$0xf]
        %v1050 = vld [vmem:[#allocation2 + $0x70] sm:$0xf]
        %v1051 = vld [vmem:[#allocation2 + $0x78] sm:$0xf]
        %v1052 = vld [vmem:[#allocation2 + $0x7c] sm:$0xf]
        %v1053 = vld [vmem:[#allocation2 + $0x84] sm:$0xf]
        %v1054 = vld [vmem:[#allocation2 + $0x88] sm:$0xf]
        %v1055 = vld [vmem:[#allocation2 + $0x90] sm:$0xf]
        %v1056 = vld [vmem:[#allocation2 + $0x94] sm:$0xf]
        %v1057 = vld [vmem:[#allocation2 + $0x9c] sm:$0xf]
        %v1058 = vld [vmem:[#allocation2 + $0xa0] sm:$0xf]
        %v1059 = vld [vmem:[#allocation2 + $0xa8] sm:$0xf]
        %v1060 = vld [vmem:[#allocation2 + $0xac] sm:$0xf]
        %v1061 = vld [vmem:[#allocation2 + $0xb4] sm:$0xf]
        %v1062 = vld [vmem:[#allocation2 + $0xb8] sm:$0xf]
        %1063 = vst [vmem:[#allocation4] sm:$0xf] %v1031
        %1064 = vst [vmem:[#allocation4 + $0x24] sm:$0xf] %v1032
        %1065 = vst [vmem:[#allocation4 + $0x48] sm:$0xf] %v1033
        %1066 = vst [vmem:[#allocation4 + $0x6c] sm:$0xf] %v1034
        %1067 = vst [vmem:[#allocation4 + $0x90] sm:$0xf] %v1035
        %1068 = vst [vmem:[#allocation4 + $0xb4] sm:$0xf] %v1036
        %1069 = vst [vmem:[#allocation4 + $0xd8] sm:$0xf] %v1037
        %1070 = vst [vmem:[#allocation4 + $0xfc] sm:$0xf] %v1038
        %1071 = vst [vmem:[#allocation4 + $0x120] sm:$0xf] %v1039
        %1072 = vst [vmem:[#allocation4 + $0x144] sm:$0xf] %v1040
        %1073 = vst [vmem:[#allocation4 + $0x168] sm:$0xf] %v1041
        %1074 = vst [vmem:[#allocation4 + $0x18c] sm:$0xf] %v1042
        %1075 = vst [vmem:[#allocation4 + $0x1b0] sm:$0xf] %v1043
        %1076 = vst [vmem:[#allocation4 + $0x1d4] sm:$0xf] %v1044
        %1077 = vst [vmem:[#allocation4 + $0x1f8] sm:$0xf] %v1045
        %1078 = vst [vmem:[#allocation4 + $0x21c] sm:$0xf] %v1046
        %1079 = vst [vmem:[#allocation4 + $0x240] sm:$0xf] %v1047
        %1080 = vst [vmem:[#allocation4 + $0x264] sm:$0xf] %v1048
        %1081 = vst [vmem:[#allocation4 + $0x288] sm:$0xf] %v1049
        %1082 = vst [vmem:[#allocation4 + $0x2ac] sm:$0xf] %v1050
        %1083 = vst [vmem:[#allocation4 + $0x2d0] sm:$0xf] %v1051
        %1084 = vst [vmem:[#allocation4 + $0x2f4] sm:$0xf] %v1052
        %1085 = vst [vmem:[#allocation4 + $0x318] sm:$0xf] %v1053
        %1086 = vst [vmem:[#allocation4 + $0x33c] sm:$0xf] %v1054
        %1087 = vst [vmem:[#allocation4 + $0x360] sm:$0xf] %v1055
        %1088 = vst [vmem:[#allocation4 + $0x384] sm:$0xf] %v1056
        %1089 = vst [vmem:[#allocation4 + $0x3a8] sm:$0xf] %v1057
        %1090 = vst [vmem:[#allocation4 + $0x3cc] sm:$0xf] %v1058
        %1091 = vst [vmem:[#allocation4 + $0x3f0] sm:$0xf] %v1059
        %1092 = vst [vmem:[#allocation4 + $0x414] sm:$0xf] %v1060
        %1093 = vst [vmem:[#allocation4 + $0x438] sm:$0xf] %v1061
        %1094 = vst [vmem:[#allocation4 + $0x45c] sm:$0xf] %v1062
        %v1095 = vld [vmem:[#allocation2] sm:$0xf]
        %v1096 = vld [vmem:[#allocation2 + $0x4] sm:$0xf]
        %v1097 = vld [vmem:[#allocation2 + $0x8] sm:$0x1]
        %v1098 = vld [vmem:[#allocation2 + $0xc] sm:$0xf]
        %v1099 = vld [vmem:[#allocation2 + $0x10] sm:$0xf]
        %v1100 = vld [vmem:[#allocation2 + $0x14] sm:$0x1]
        %v1101 = vld [vmem:[#allocation2 + $0x18] sm:$0xf]
        %v1102 = vld [vmem:[#allocation2 + $0x1c] sm:$0xf]
        %v1103 = vld [vmem:[#allocation2 + $0x20] sm:$0x1]
        %v1104 = vld [vmem:[#allocation2 + $0x24] sm:$0xf]
        %v1105 = vld [vmem:[#allocation2 + $0x28] sm:$0xf]
        %v1106 = vld [vmem:[#allocation2 + $0x2c] sm:$0x1]
        %v1107 = vld [vmem:[#allocation2 + $0x30] sm:$0xf]
        %v1108 = vld [vmem:[#allocation2 + $0x34] sm:$0xf]
        %v1109 = vld [vmem:[#allocation2 + $0x38] sm:$0x1]
        %v1110 = vld [vmem:[#allocation2 + $0x3c] sm:$0xf]
        %v1111 = vld [vmem:[#allocation2 + $0x40] sm:$0xf]
        %v1112 = vld [vmem:[#allocation2 + $0x44] sm:$0x1]
        %v1113 = vld [vmem:[#allocation2 + $0x48] sm:$0xf]
        %v1114 = vld [vmem:[#allocation2 + $0x4c] sm:$0xf]
        %v1115 = vld [vmem:[#allocation2 + $0x50] sm:$0x1]
        %v1116 = vld [vmem:[#allocation2 + $0x54] sm:$0xf]
        %v1117 = vld [vmem:[#allocation2 + $0x58] sm:$0xf]
        %v1118 = vld [vmem:[#allocation2 + $0x5c] sm:$0x1]
        %v1119 = vld [vmem:[#allocation2 + $0x60] sm:$0xf]
        %v1120 = vld [vmem:[#allocation2 + $0x64] sm:$0xf]
        %v1121 = vld [vmem:[#allocation2 + $0x68] sm:$0x1]
        %v1122 = vld [vmem:[#allocation2 + $0x6c] sm:$0xf]
        %v1123 = vld [vmem:[#allocation2 + $0x70] sm:$0xf]
        %v1124 = vld [vmem:[#allocation2 + $0x74] sm:$0x1]
        %v1125 = vld [vmem:[#allocation2 + $0x78] sm:$0xf]
        %v1126 = vld [vmem:[#allocation2 + $0x7c] sm:$0xf]
        %v1127 = vld [vmem:[#allocation2 + $0x80] sm:$0x1]
        %v1128 = vld [vmem:[#allocation2 + $0x84] sm:$0xf]
        %v1129 = vld [vmem:[#allocation2 + $0x88] sm:$0xf]
        %v1130 = vld [vmem:[#allocation2 + $0x8c] sm:$0x1]
        %v1131 = vld [vmem:[#allocation2 + $0x90] sm:$0xf]
        %v1132 = vld [vmem:[#allocation2 + $0x94] sm:$0xf]
        %v1133 = vld [vmem:[#allocation2 + $0x98] sm:$0x1]
        %v1134 = vld [vmem:[#allocation2 + $0x9c] sm:$0xf]
        %v1135 = vld [vmem:[#allocation2 + $0xa0] sm:$0xf]
        %v1136 = vld [vmem:[#allocation2 + $0xa4] sm:$0x1]
        %v1137 = vld [vmem:[#allocation2 + $0xa8] sm:$0xf]
        %v1138 = vld [vmem:[#allocation2 + $0xac] sm:$0xf]
        %v1139 = vld [vmem:[#allocation2 + $0xb0] sm:$0x1]
        %v1140 = vld [vmem:[#allocation2 + $0xb4] sm:$0xf]
        %v1141 = vld [vmem:[#allocation2 + $0xb8] sm:$0xf]
        %v1142 = vld [vmem:[#allocation2 + $0xbc] sm:$0x1]
        %vm1143 = vsmask.f32 3328
        %vm1144 = vsmask.f32 7440
        %vm1145 = vmor %vm1143, %vm1144
        %v1147 = vshrl.u32 %v1095, 16
        %v1149 = vrot.slane %v1147, 4
        %v1150 = vshll.u32 %v1095, 16
        %v1152 = vrot.slane %v1150, 5
        %v1153 = vor.u32 %v1149, %v1152
        %v1154 = vrot.slane %v1153, 4
        %v1156 = vshll.u32 %v1096, 16
        %v1158 = vrot.slane %v1156, 5
        %v1159 = vsel %vm1145, %v1154, %v1158
        %v1160 = vshrl.u32 %v1096, 16
        %v1162 = vrot.slane %v1160, 4
        %v1163 = vor.u32 %v1162, %v1158
        %v1164 = vrot.slane %v1163, 4
        %v1166 = vshll.u32 %v1097, 16
        %v1168 = vrot.slane %v1166, 5
        %v1169 = vsel %vm1145, %v1164, %v1168
        %v1171 = vshrl.u32 %v1098, 16
        %v1173 = vrot.slane %v1171, 4
        %v1174 = vshll.u32 %v1098, 16
        %v1176 = vrot.slane %v1174, 5
        %v1177 = vor.u32 %v1173, %v1176
        %v1178 = vrot.slane %v1177, 4
        %v1180 = vshll.u32 %v1099, 16
        %v1182 = vrot.slane %v1180, 5
        %v1183 = vsel %vm1145, %v1178, %v1182
        %v1184 = vshrl.u32 %v1099, 16
        %v1186 = vrot.slane %v1184, 4
        %v1187 = vor.u32 %v1186, %v1182
        %v1188 = vrot.slane %v1187, 4
        %v1190 = vshll.u32 %v1100, 16
        %v1192 = vrot.slane %v1190, 5
        %v1193 = vsel %vm1145, %v1188, %v1192
        %v1195 = vshrl.u32 %v1101, 16
        %v1197 = vrot.slane %v1195, 4
        %v1198 = vshll.u32 %v1101, 16
        %v1200 = vrot.slane %v1198, 5
        %v1201 = vor.u32 %v1197, %v1200
        %v1202 = vrot.slane %v1201, 4
        %v1204 = vshll.u32 %v1102, 16
        %v1206 = vrot.slane %v1204, 5
        %v1207 = vsel %vm1145, %v1202, %v1206
        %v1208 = vshrl.u32 %v1102, 16
        %v1210 = vrot.slane %v1208, 4
        %v1211 = vor.u32 %v1210, %v1206
        %v1212 = vrot.slane %v1211, 4
        %v1214 = vshll.u32 %v1103, 16
        %v1216 = vrot.slane %v1214, 5
        %v1217 = vsel %vm1145, %v1212, %v1216
        %v1219 = vshrl.u32 %v1104, 16
        %v1221 = vrot.slane %v1219, 4
        %v1222 = vshll.u32 %v1104, 16
        %v1224 = vrot.slane %v1222, 5
        %v1225 = vor.u32 %v1221, %v1224
        %v1226 = vrot.slane %v1225, 4
        %v1228 = vshll.u32 %v1105, 16
        %v1230 = vrot.slane %v1228, 5
        %v1231 = vsel %vm1145, %v1226, %v1230
        %v1232 = vshrl.u32 %v1105, 16
        %v1234 = vrot.slane %v1232, 4
        %v1235 = vor.u32 %v1234, %v1230
        %v1236 = vrot.slane %v1235, 4
        %v1238 = vshll.u32 %v1106, 16
        %v1240 = vrot.slane %v1238, 5
        %v1241 = vsel %vm1145, %v1236, %v1240
        %v1243 = vshrl.u32 %v1107, 16
        %v1245 = vrot.slane %v1243, 4
        %v1246 = vshll.u32 %v1107, 16
        %v1248 = vrot.slane %v1246, 5
        %v1249 = vor.u32 %v1245, %v1248
        %v1250 = vrot.slane %v1249, 4
        %v1252 = vshll.u32 %v1108, 16
        %v1254 = vrot.slane %v1252, 5
        %v1255 = vsel %vm1145, %v1250, %v1254
        %v1256 = vshrl.u32 %v1108, 16
        %v1258 = vrot.slane %v1256, 4
        %v1259 = vor.u32 %v1258, %v1254
        %v1260 = vrot.slane %v1259, 4
        %v1262 = vshll.u32 %v1109, 16
        %v1264 = vrot.slane %v1262, 5
        %v1265 = vsel %vm1145, %v1260, %v1264
        %v1267 = vshrl.u32 %v1110, 16
        %v1269 = vrot.slane %v1267, 4
        %v1270 = vshll.u32 %v1110, 16
        %v1272 = vrot.slane %v1270, 5
        %v1273 = vor.u32 %v1269, %v1272
        %v1274 = vrot.slane %v1273, 4
        %v1276 = vshll.u32 %v1111, 16
        %v1278 = vrot.slane %v1276, 5
        %v1279 = vsel %vm1145, %v1274, %v1278
        %v1280 = vshrl.u32 %v1111, 16
        %v1282 = vrot.slane %v1280, 4
        %v1283 = vor.u32 %v1282, %v1278
        %v1284 = vrot.slane %v1283, 4
        %v1286 = vshll.u32 %v1112, 16
        %v1288 = vrot.slane %v1286, 5
        %v1289 = vsel %vm1145, %v1284, %v1288
        %v1291 = vshrl.u32 %v1113, 16
        %v1293 = vrot.slane %v1291, 4
        %v1294 = vshll.u32 %v1113, 16
        %v1296 = vrot.slane %v1294, 5
        %v1297 = vor.u32 %v1293, %v1296
        %v1298 = vrot.slane %v1297, 4
        %v1300 = vshll.u32 %v1114, 16
        %v1302 = vrot.slane %v1300, 5
        %v1303 = vsel %vm1145, %v1298, %v1302
        %v1304 = vshrl.u32 %v1114, 16
        %v1306 = vrot.slane %v1304, 4
        %v1307 = vor.u32 %v1306, %v1302
        %v1308 = vrot.slane %v1307, 4
        %v1310 = vshll.u32 %v1115, 16
        %v1312 = vrot.slane %v1310, 5
        %v1313 = vsel %vm1145, %v1308, %v1312
        %v1315 = vshrl.u32 %v1116, 16
        %v1317 = vrot.slane %v1315, 4
        %v1318 = vshll.u32 %v1116, 16
        %v1320 = vrot.slane %v1318, 5
        %v1321 = vor.u32 %v1317, %v1320
        %v1322 = vrot.slane %v1321, 4
        %v1324 = vshll.u32 %v1117, 16
        %v1326 = vrot.slane %v1324, 5
        %v1327 = vsel %vm1145, %v1322, %v1326
        %v1328 = vshrl.u32 %v1117, 16
        %v1330 = vrot.slane %v1328, 4
        %v1331 = vor.u32 %v1330, %v1326
        %v1332 = vrot.slane %v1331, 4
        %v1334 = vshll.u32 %v1118, 16
        %v1336 = vrot.slane %v1334, 5
        %v1337 = vsel %vm1145, %v1332, %v1336
        %v1339 = vshrl.u32 %v1119, 16
        %v1341 = vrot.slane %v1339, 4
        %v1342 = vshll.u32 %v1119, 16
        %v1344 = vrot.slane %v1342, 5
        %v1345 = vor.u32 %v1341, %v1344
        %v1346 = vrot.slane %v1345, 4
        %v1348 = vshll.u32 %v1120, 16
        %v1350 = vrot.slane %v1348, 5
        %v1351 = vsel %vm1145, %v1346, %v1350
        %v1352 = vshrl.u32 %v1120, 16
        %v1354 = vrot.slane %v1352, 4
        %v1355 = vor.u32 %v1354, %v1350
        %v1356 = vrot.slane %v1355, 4
        %v1358 = vshll.u32 %v1121, 16
        %v1360 = vrot.slane %v1358, 5
        %v1361 = vsel %vm1145, %v1356, %v1360
        %v1363 = vshrl.u32 %v1122, 16
        %v1365 = vrot.slane %v1363, 4
        %v1366 = vshll.u32 %v1122, 16
        %v1368 = vrot.slane %v1366, 5
        %v1369 = vor.u32 %v1365, %v1368
        %v1370 = vrot.slane %v1369, 4
        %v1372 = vshll.u32 %v1123, 16
        %v1374 = vrot.slane %v1372, 5
        %v1375 = vsel %vm1145, %v1370, %v1374
        %v1376 = vshrl.u32 %v1123, 16
        %v1378 = vrot.slane %v1376, 4
        %v1379 = vor.u32 %v1378, %v1374
        %v1380 = vrot.slane %v1379, 4
        %v1382 = vshll.u32 %v1124, 16
        %v1384 = vrot.slane %v1382, 5
        %v1385 = vsel %vm1145, %v1380, %v1384
        %v1387 = vshrl.u32 %v1125, 16
        %v1389 = vrot.slane %v1387, 4
        %v1390 = vshll.u32 %v1125, 16
        %v1392 = vrot.slane %v1390, 5
        %v1393 = vor.u32 %v1389, %v1392
        %v1394 = vrot.slane %v1393, 4
        %v1396 = vshll.u32 %v1126, 16
        %v1398 = vrot.slane %v1396, 5
        %v1399 = vsel %vm1145, %v1394, %v1398
        %v1400 = vshrl.u32 %v1126, 16
        %v1402 = vrot.slane %v1400, 4
        %v1403 = vor.u32 %v1402, %v1398
        %v1404 = vrot.slane %v1403, 4
        %v1406 = vshll.u32 %v1127, 16
        %v1408 = vrot.slane %v1406, 5
        %v1409 = vsel %vm1145, %v1404, %v1408
        %v1411 = vshrl.u32 %v1128, 16
        %v1413 = vrot.slane %v1411, 4
        %v1414 = vshll.u32 %v1128, 16
        %v1416 = vrot.slane %v1414, 5
        %v1417 = vor.u32 %v1413, %v1416
        %v1418 = vrot.slane %v1417, 4
        %v1420 = vshll.u32 %v1129, 16
        %v1422 = vrot.slane %v1420, 5
        %v1423 = vsel %vm1145, %v1418, %v1422
        %v1424 = vshrl.u32 %v1129, 16
        %v1426 = vrot.slane %v1424, 4
        %v1427 = vor.u32 %v1426, %v1422
        %v1428 = vrot.slane %v1427, 4
        %v1430 = vshll.u32 %v1130, 16
        %v1432 = vrot.slane %v1430, 5
        %v1433 = vsel %vm1145, %v1428, %v1432
        %v1435 = vshrl.u32 %v1131, 16
        %v1437 = vrot.slane %v1435, 4
        %v1438 = vshll.u32 %v1131, 16
        %v1440 = vrot.slane %v1438, 5
        %v1441 = vor.u32 %v1437, %v1440
        %v1442 = vrot.slane %v1441, 4
        %v1444 = vshll.u32 %v1132, 16
        %v1446 = vrot.slane %v1444, 5
        %v1447 = vsel %vm1145, %v1442, %v1446
        %v1448 = vshrl.u32 %v1132, 16
        %v1450 = vrot.slane %v1448, 4
        %v1451 = vor.u32 %v1450, %v1446
        %v1452 = vrot.slane %v1451, 4
        %v1454 = vshll.u32 %v1133, 16
        %v1456 = vrot.slane %v1454, 5
        %v1457 = vsel %vm1145, %v1452, %v1456
        %v1459 = vshrl.u32 %v1134, 16
        %v1461 = vrot.slane %v1459, 4
        %v1462 = vshll.u32 %v1134, 16
        %v1464 = vrot.slane %v1462, 5
        %v1465 = vor.u32 %v1461, %v1464
        %v1466 = vrot.slane %v1465, 4
        %v1468 = vshll.u32 %v1135, 16
        %v1470 = vrot.slane %v1468, 5
        %v1471 = vsel %vm1145, %v1466, %v1470
        %v1472 = vshrl.u32 %v1135, 16
        %v1474 = vrot.slane %v1472, 4
        %v1475 = vor.u32 %v1474, %v1470
        %v1476 = vrot.slane %v1475, 4
        %v1478 = vshll.u32 %v1136, 16
        %v1480 = vrot.slane %v1478, 5
        %v1481 = vsel %vm1145, %v1476, %v1480
        %v1483 = vshrl.u32 %v1137, 16
        %v1485 = vrot.slane %v1483, 4
        %v1486 = vshll.u32 %v1137, 16
        %v1488 = vrot.slane %v1486, 5
        %v1489 = vor.u32 %v1485, %v1488
        %v1490 = vrot.slane %v1489, 4
        %v1492 = vshll.u32 %v1138, 16
        %v1494 = vrot.slane %v1492, 5
        %v1495 = vsel %vm1145, %v1490, %v1494
        %v1496 = vshrl.u32 %v1138, 16
        %v1498 = vrot.slane %v1496, 4
        %v1499 = vor.u32 %v1498, %v1494
        %v1500 = vrot.slane %v1499, 4
        %v1502 = vshll.u32 %v1139, 16
        %v1504 = vrot.slane %v1502, 5
        %v1505 = vsel %vm1145, %v1500, %v1504
        %v1507 = vshrl.u32 %v1140, 16
        %v1509 = vrot.slane %v1507, 4
        %v1510 = vshll.u32 %v1140, 16
        %v1512 = vrot.slane %v1510, 5
        %v1513 = vor.u32 %v1509, %v1512
        %v1514 = vrot.slane %v1513, 4
        %v1516 = vshll.u32 %v1141, 16
        %v1518 = vrot.slane %v1516, 5
        %v1519 = vsel %vm1145, %v1514, %v1518
        %v1520 = vshrl.u32 %v1141, 16
        %v1522 = vrot.slane %v1520, 4
        %v1523 = vor.u32 %v1522, %v1518
        %v1524 = vrot.slane %v1523, 4
        %v1526 = vshll.u32 %v1142, 16
        %v1528 = vrot.slane %v1526, 5
        %v1529 = vsel %vm1145, %v1524, %v1528
        %1562 = vst [vmem:[#allocation4 + $0x4] sm:$0xf] %v1159
        %1563 = vst [vmem:[#allocation4 + $0x28] sm:$0xf] %v1169
        %1564 = vst [vmem:[#allocation4 + $0x4c] sm:$0xf] %v1183
        %1565 = vst [vmem:[#allocation4 + $0x70] sm:$0xf] %v1193
        %1566 = vst [vmem:[#allocation4 + $0x94] sm:$0xf] %v1207
        %1567 = vst [vmem:[#allocation4 + $0xb8] sm:$0xf] %v1217
        %1568 = vst [vmem:[#allocation4 + $0xdc] sm:$0xf] %v1231
        %1569 = vst [vmem:[#allocation4 + $0x100] sm:$0xf] %v1241
        %1570 = vst [vmem:[#allocation4 + $0x124] sm:$0xf] %v1255
        %1571 = vst [vmem:[#allocation4 + $0x148] sm:$0xf] %v1265
        %1572 = vst [vmem:[#allocation4 + $0x16c] sm:$0xf] %v1279
        %1573 = vst [vmem:[#allocation4 + $0x190] sm:$0xf] %v1289
        %1574 = vst [vmem:[#allocation4 + $0x1b4] sm:$0xf] %v1303
        %1575 = vst [vmem:[#allocation4 + $0x1d8] sm:$0xf] %v1313
        %1576 = vst [vmem:[#allocation4 + $0x1fc] sm:$0xf] %v1327
        %1577 = vst [vmem:[#allocation4 + $0x220] sm:$0xf] %v1337
        %1578 = vst [vmem:[#allocation4 + $0x244] sm:$0xf] %v1351
        %1579 = vst [vmem:[#allocation4 + $0x268] sm:$0xf] %v1361
        %1580 = vst [vmem:[#allocation4 + $0x28c] sm:$0xf] %v1375
        %1581 = vst [vmem:[#allocation4 + $0x2b0] sm:$0xf] %v1385
        %1582 = vst [vmem:[#allocation4 + $0x2d4] sm:$0xf] %v1399
        %1583 = vst [vmem:[#allocation4 + $0x2f8] sm:$0xf] %v1409
        %1584 = vst [vmem:[#allocation4 + $0x31c] sm:$0xf] %v1423
        %1585 = vst [vmem:[#allocation4 + $0x340] sm:$0xf] %v1433
        %1586 = vst [vmem:[#allocation4 + $0x364] sm:$0xf] %v1447
        %1587 = vst [vmem:[#allocation4 + $0x388] sm:$0xf] %v1457
        %1588 = vst [vmem:[#allocation4 + $0x3ac] sm:$0xf] %v1471
        %1589 = vst [vmem:[#allocation4 + $0x3d0] sm:$0xf] %v1481
        %1590 = vst [vmem:[#allocation4 + $0x3f4] sm:$0xf] %v1495
        %1591 = vst [vmem:[#allocation4 + $0x418] sm:$0xf] %v1505
        %1592 = vst [vmem:[#allocation4 + $0x43c] sm:$0xf] %v1519
        %1593 = vst [vmem:[#allocation4 + $0x460] sm:$0xf] %v1529
        %v1594 = vld [vmem:[#allocation2] sm:$0xe]
        %v1595 = vld [vmem:[#allocation2 + $0x4] sm:$0xf]
        %v1596 = vld [vmem:[#allocation2 + $0x8] sm:$0x1]
        %v1597 = vld [vmem:[#allocation2 + $0xc] sm:$0xe]
        %v1598 = vld [vmem:[#allocation2 + $0x10] sm:$0xf]
        %v1599 = vld [vmem:[#allocation2 + $0x14] sm:$0x1]
        %v1600 = vld [vmem:[#allocation2 + $0x18] sm:$0xe]
        %v1601 = vld [vmem:[#allocation2 + $0x1c] sm:$0xf]
        %v1602 = vld [vmem:[#allocation2 + $0x20] sm:$0x1]
        %v1603 = vld [vmem:[#allocation2 + $0x24] sm:$0xe]
        %v1604 = vld [vmem:[#allocation2 + $0x28] sm:$0xf]
        %v1605 = vld [vmem:[#allocation2 + $0x2c] sm:$0x1]
        %v1606 = vld [vmem:[#allocation2 + $0x30] sm:$0xe]
        %v1607 = vld [vmem:[#allocation2 + $0x34] sm:$0xf]
        %v1608 = vld [vmem:[#allocation2 + $0x38] sm:$0x1]
        %v1609 = vld [vmem:[#allocation2 + $0x3c] sm:$0xe]
        %v1610 = vld [vmem:[#allocation2 + $0x40] sm:$0xf]
        %v1611 = vld [vmem:[#allocation2 + $0x44] sm:$0x1]
        %v1612 = vld [vmem:[#allocation2 + $0x48] sm:$0xe]
        %v1613 = vld [vmem:[#allocation2 + $0x4c] sm:$0xf]
        %v1614 = vld [vmem:[#allocation2 + $0x50] sm:$0x1]
        %v1615 = vld [vmem:[#allocation2 + $0x54] sm:$0xe]
        %v1616 = vld [vmem:[#allocation2 + $0x58] sm:$0xf]
        %v1617 = vld [vmem:[#allocation2 + $0x5c] sm:$0x1]
        %v1618 = vld [vmem:[#allocation2 + $0x60] sm:$0xe]
        %v1619 = vld [vmem:[#allocation2 + $0x64] sm:$0xf]
        %v1620 = vld [vmem:[#allocation2 + $0x68] sm:$0x1]
        %v1621 = vld [vmem:[#allocation2 + $0x6c] sm:$0xe]
        %v1622 = vld [vmem:[#allocation2 + $0x70] sm:$0xf]
        %v1623 = vld [vmem:[#allocation2 + $0x74] sm:$0x1]
        %v1624 = vld [vmem:[#allocation2 + $0x78] sm:$0xe]
        %v1625 = vld [vmem:[#allocation2 + $0x7c] sm:$0xf]
        %v1626 = vld [vmem:[#allocation2 + $0x80] sm:$0x1]
        %v1627 = vld [vmem:[#allocation2 + $0x84] sm:$0xe]
        %v1628 = vld [vmem:[#allocation2 + $0x88] sm:$0xf]
        %v1629 = vld [vmem:[#allocation2 + $0x8c] sm:$0x1]
        %v1630 = vld [vmem:[#allocation2 + $0x90] sm:$0xe]
        %v1631 = vld [vmem:[#allocation2 + $0x94] sm:$0xf]
        %v1632 = vld [vmem:[#allocation2 + $0x98] sm:$0x1]
        %v1633 = vld [vmem:[#allocation2 + $0x9c] sm:$0xe]
        %v1634 = vld [vmem:[#allocation2 + $0xa0] sm:$0xf]
        %v1635 = vld [vmem:[#allocation2 + $0xa4] sm:$0x1]
        %v1636 = vld [vmem:[#allocation2 + $0xa8] sm:$0xe]
        %v1637 = vld [vmem:[#allocation2 + $0xac] sm:$0xf]
        %v1638 = vld [vmem:[#allocation2 + $0xb0] sm:$0x1]
        %v1639 = vld [vmem:[#allocation2 + $0xb4] sm:$0xe]
        %v1640 = vld [vmem:[#allocation2 + $0xb8] sm:$0xf]
        %v1641 = vld [vmem:[#allocation2 + $0xbc] sm:$0x1]
        %vm1690 = vcmask 1042432
        %vm1691 = vcmask 1046532
        %vm1692 = vmor %vm1690, %vm1691
        %v1693 = vrot.slane %v1594, 5
        %v1694 = vrot.slane %v1693, 4
        %v1695 = vrot.slane %v1595, 5
        %v1696 = vsel %vm1692, %v1694, %v1695
        %v1697 = vrot.slane %v1695, 4
        %v1698 = vrot.slane %v1596, 5
        %v1699 = vsel %vm1692, %v1697, %v1698
        %v1700 = vrot.slane %v1597, 5
        %v1701 = vrot.slane %v1700, 4
        %v1702 = vrot.slane %v1598, 5
        %v1703 = vsel %vm1692, %v1701, %v1702
        %v1704 = vrot.slane %v1702, 4
        %v1705 = vrot.slane %v1599, 5
        %v1706 = vsel %vm1692, %v1704, %v1705
        %v1707 = vrot.slane %v1600, 5
        %v1708 = vrot.slane %v1707, 4
        %v1709 = vrot.slane %v1601, 5
        %v1710 = vsel %vm1692, %v1708, %v1709
        %v1711 = vrot.slane %v1709, 4
        %v1712 = vrot.slane %v1602, 5
        %v1713 = vsel %vm1692, %v1711, %v1712
        %v1714 = vrot.slane %v1603, 5
        %v1715 = vrot.slane %v1714, 4
        %v1716 = vrot.slane %v1604, 5
        %v1717 = vsel %vm1692, %v1715, %v1716
        %v1718 = vrot.slane %v1716, 4
        %v1719 = vrot.slane %v1605, 5
        %v1720 = vsel %vm1692, %v1718, %v1719
        %v1721 = vrot.slane %v1606, 5
        %v1722 = vrot.slane %v1721, 4
        %v1723 = vrot.slane %v1607, 5
        %v1724 = vsel %vm1692, %v1722, %v1723
        %v1725 = vrot.slane %v1723, 4
        %v1726 = vrot.slane %v1608, 5
        %v1727 = vsel %vm1692, %v1725, %v1726
        %v1728 = vrot.slane %v1609, 5
        %v1729 = vrot.slane %v1728, 4
        %v1730 = vrot.slane %v1610, 5
        %v1731 = vsel %vm1692, %v1729, %v1730
        %v1732 = vrot.slane %v1730, 4
        %v1733 = vrot.slane %v1611, 5
        %v1734 = vsel %vm1692, %v1732, %v1733
        %v1735 = vrot.slane %v1612, 5
        %v1736 = vrot.slane %v1735, 4
        %v1737 = vrot.slane %v1613, 5
        %v1738 = vsel %vm1692, %v1736, %v1737
        %v1739 = vrot.slane %v1737, 4
        %v1740 = vrot.slane %v1614, 5
        %v1741 = vsel %vm1692, %v1739, %v1740
        %v1742 = vrot.slane %v1615, 5
        %v1743 = vrot.slane %v1742, 4
        %v1744 = vrot.slane %v1616, 5
        %v1745 = vsel %vm1692, %v1743, %v1744
        %v1746 = vrot.slane %v1744, 4
        %v1747 = vrot.slane %v1617, 5
        %v1748 = vsel %vm1692, %v1746, %v1747
        %v1749 = vrot.slane %v1618, 5
        %v1750 = vrot.slane %v1749, 4
        %v1751 = vrot.slane %v1619, 5
        %v1752 = vsel %vm1692, %v1750, %v1751
        %v1753 = vrot.slane %v1751, 4
        %v1754 = vrot.slane %v1620, 5
        %v1755 = vsel %vm1692, %v1753, %v1754
        %v1756 = vrot.slane %v1621, 5
        %v1757 = vrot.slane %v1756, 4
        %v1758 = vrot.slane %v1622, 5
        %v1759 = vsel %vm1692, %v1757, %v1758
        %v1760 = vrot.slane %v1758, 4
        %v1761 = vrot.slane %v1623, 5
        %v1762 = vsel %vm1692, %v1760, %v1761
        %v1763 = vrot.slane %v1624, 5
        %v1764 = vrot.slane %v1763, 4
        %v1765 = vrot.slane %v1625, 5
        %v1766 = vsel %vm1692, %v1764, %v1765
        %v1767 = vrot.slane %v1765, 4
        %v1768 = vrot.slane %v1626, 5
        %v1769 = vsel %vm1692, %v1767, %v1768
        %v1770 = vrot.slane %v1627, 5
        %v1771 = vrot.slane %v1770, 4
        %v1772 = vrot.slane %v1628, 5
        %v1773 = vsel %vm1692, %v1771, %v1772
        %v1774 = vrot.slane %v1772, 4
        %v1775 = vrot.slane %v1629, 5
        %v1776 = vsel %vm1692, %v1774, %v1775
        %v1777 = vrot.slane %v1630, 5
        %v1778 = vrot.slane %v1777, 4
        %v1779 = vrot.slane %v1631, 5
        %v1780 = vsel %vm1692, %v1778, %v1779
        %v1781 = vrot.slane %v1779, 4
        %v1782 = vrot.slane %v1632, 5
        %v1783 = vsel %vm1692, %v1781, %v1782
        %v1784 = vrot.slane %v1633, 5
        %v1785 = vrot.slane %v1784, 4
        %v1786 = vrot.slane %v1634, 5
        %v1787 = vsel %vm1692, %v1785, %v1786
        %v1788 = vrot.slane %v1786, 4
        %v1789 = vrot.slane %v1635, 5
        %v1790 = vsel %vm1692, %v1788, %v1789
        %v1791 = vrot.slane %v1636, 5
        %v1792 = vrot.slane %v1791, 4
        %v1793 = vrot.slane %v1637, 5
        %v1794 = vsel %vm1692, %v1792, %v1793
        %v1795 = vrot.slane %v1793, 4
        %v1796 = vrot.slane %v1638, 5
        %v1797 = vsel %vm1692, %v1795, %v1796
        %v1798 = vrot.slane %v1639, 5
        %v1799 = vrot.slane %v1798, 4
        %v1800 = vrot.slane %v1640, 5
        %v1801 = vsel %vm1692, %v1799, %v1800
        %v1802 = vrot.slane %v1800, 4
        %v1803 = vrot.slane %v1641, 5
        %v1804 = vsel %vm1692, %v1802, %v1803
        %1837 = vst [vmem:[#allocation4 + $0x8] sm:$0xf] %v1696
        %1838 = vst [vmem:[#allocation4 + $0x2c] sm:$0xf] %v1699
        %1839 = vst [vmem:[#allocation4 + $0x50] sm:$0xf] %v1703
        %1840 = vst [vmem:[#allocation4 + $0x74] sm:$0xf] %v1706
        %1841 = vst [vmem:[#allocation4 + $0x98] sm:$0xf] %v1710
        %1842 = vst [vmem:[#allocation4 + $0xbc] sm:$0xf] %v1713
        %1843 = vst [vmem:[#allocation4 + $0xe0] sm:$0xf] %v1717
        %1844 = vst [vmem:[#allocation4 + $0x104] sm:$0xf] %v1720
        %1845 = vst [vmem:[#allocation4 + $0x128] sm:$0xf] %v1724
        %1846 = vst [vmem:[#allocation4 + $0x14c] sm:$0xf] %v1727
        %1847 = vst [vmem:[#allocation4 + $0x170] sm:$0xf] %v1731
        %1848 = vst [vmem:[#allocation4 + $0x194] sm:$0xf] %v1734
        %1849 = vst [vmem:[#allocation4 + $0x1b8] sm:$0xf] %v1738
        %1850 = vst [vmem:[#allocation4 + $0x1dc] sm:$0xf] %v1741
        %1851 = vst [vmem:[#allocation4 + $0x200] sm:$0xf] %v1745
        %1852 = vst [vmem:[#allocation4 + $0x224] sm:$0xf] %v1748
        %1853 = vst [vmem:[#allocation4 + $0x248] sm:$0xf] %v1752
        %1854 = vst [vmem:[#allocation4 + $0x26c] sm:$0xf] %v1755
        %1855 = vst [vmem:[#allocation4 + $0x290] sm:$0xf] %v1759
        %1856 = vst [vmem:[#allocation4 + $0x2b4] sm:$0xf] %v1762
        %1857 = vst [vmem:[#allocation4 + $0x2d8] sm:$0xf] %v1766
        %1858 = vst [vmem:[#allocation4 + $0x2fc] sm:$0xf] %v1769
        %1859 = vst [vmem:[#allocation4 + $0x320] sm:$0xf] %v1773
        %1860 = vst [vmem:[#allocation4 + $0x344] sm:$0xf] %v1776
        %1861 = vst [vmem:[#allocation4 + $0x368] sm:$0xf] %v1780
        %1862 = vst [vmem:[#allocation4 + $0x38c] sm:$0xf] %v1783
        %1863 = vst [vmem:[#allocation4 + $0x3b0] sm:$0xf] %v1787
        %1864 = vst [vmem:[#allocation4 + $0x3d4] sm:$0xf] %v1790
        %1865 = vst [vmem:[#allocation4 + $0x3f8] sm:$0xf] %v1794
        %1866 = vst [vmem:[#allocation4 + $0x41c] sm:$0xf] %v1797
        %1867 = vst [vmem:[#allocation4 + $0x440] sm:$0xf] %v1801
        %1868 = vst [vmem:[#allocation4 + $0x464] sm:$0xf] %v1804
        %v1869 = vld [vmem:[%s916] sm:$0xf]
        %v1870 = vld [vmem:[%s916 + $0x4] sm:$0xf]
        %v1871 = vld [vmem:[%s916 + $0xc] sm:$0xf]
        %v1872 = vld [vmem:[%s916 + $0x10] sm:$0xf]
        %v1873 = vld [vmem:[%s916 + $0x18] sm:$0xf]
        %v1874 = vld [vmem:[%s916 + $0x1c] sm:$0xf]
        %v1875 = vld [vmem:[%s916 + $0x24] sm:$0xf]
        %v1876 = vld [vmem:[%s916 + $0x28] sm:$0xf]
        %v1877 = vld [vmem:[%s916 + $0x30] sm:$0xf]
        %v1878 = vld [vmem:[%s916 + $0x34] sm:$0xf]
        %v1879 = vld [vmem:[%s916 + $0x3c] sm:$0xf]
        %v1880 = vld [vmem:[%s916 + $0x40] sm:$0xf]
        %v1881 = vld [vmem:[%s916 + $0x48] sm:$0xf]
        %v1882 = vld [vmem:[%s916 + $0x4c] sm:$0xf]
        %v1883 = vld [vmem:[%s916 + $0x54] sm:$0xf]
        %v1884 = vld [vmem:[%s916 + $0x58] sm:$0xf]
        %v1885 = vld [vmem:[%s916 + $0x60] sm:$0xf]
        %v1886 = vld [vmem:[%s916 + $0x64] sm:$0xf]
        %v1887 = vld [vmem:[%s916 + $0x6c] sm:$0xf]
        %v1888 = vld [vmem:[%s916 + $0x70] sm:$0xf]
        %v1889 = vld [vmem:[%s916 + $0x78] sm:$0xf]
        %v1890 = vld [vmem:[%s916 + $0x7c] sm:$0xf]
        %v1891 = vld [vmem:[%s916 + $0x84] sm:$0xf]
        %v1892 = vld [vmem:[%s916 + $0x88] sm:$0xf]
        %v1893 = vld [vmem:[%s916 + $0x90] sm:$0xf]
        %v1894 = vld [vmem:[%s916 + $0x94] sm:$0xf]
        %v1895 = vld [vmem:[%s916 + $0x9c] sm:$0xf]
        %v1896 = vld [vmem:[%s916 + $0xa0] sm:$0xf]
        %v1897 = vld [vmem:[%s916 + $0xa8] sm:$0xf]
        %v1898 = vld [vmem:[%s916 + $0xac] sm:$0xf]
        %v1899 = vld [vmem:[%s916 + $0xb4] sm:$0xf]
        %v1900 = vld [vmem:[%s916 + $0xb8] sm:$0xf]
        %1901 = vst [vmem:[#allocation4 + $0xc] sm:$0xf] %v1869
        %1902 = vst [vmem:[#allocation4 + $0x30] sm:$0xf] %v1870
        %1903 = vst [vmem:[#allocation4 + $0x54] sm:$0xf] %v1871
        %1904 = vst [vmem:[#allocation4 + $0x78] sm:$0xf] %v1872
        %1905 = vst [vmem:[#allocation4 + $0x9c] sm:$0xf] %v1873
        %1906 = vst [vmem:[#allocation4 + $0xc0] sm:$0xf] %v1874
        %1907 = vst [vmem:[#allocation4 + $0xe4] sm:$0xf] %v1875
        %1908 = vst [vmem:[#allocation4 + $0x108] sm:$0xf] %v1876
        %1909 = vst [vmem:[#allocation4 + $0x12c] sm:$0xf] %v1877
        %1910 = vst [vmem:[#allocation4 + $0x150] sm:$0xf] %v1878
        %1911 = vst [vmem:[#allocation4 + $0x174] sm:$0xf] %v1879
        %1912 = vst [vmem:[#allocation4 + $0x198] sm:$0xf] %v1880
        %1913 = vst [vmem:[#allocation4 + $0x1bc] sm:$0xf] %v1881
        %1914 = vst [vmem:[#allocation4 + $0x1e0] sm:$0xf] %v1882
        %1915 = vst [vmem:[#allocation4 + $0x204] sm:$0xf] %v1883
        %1916 = vst [vmem:[#allocation4 + $0x228] sm:$0xf] %v1884
        %1917 = vst [vmem:[#allocation4 + $0x24c] sm:$0xf] %v1885
        %1918 = vst [vmem:[#allocation4 + $0x270] sm:$0xf] %v1886
        %1919 = vst [vmem:[#allocation4 + $0x294] sm:$0xf] %v1887
        %1920 = vst [vmem:[#allocation4 + $0x2b8] sm:$0xf] %v1888
        %1921 = vst [vmem:[#allocation4 + $0x2dc] sm:$0xf] %v1889
        %1922 = vst [vmem:[#allocation4 + $0x300] sm:$0xf] %v1890
        %1923 = vst [vmem:[#allocation4 + $0x324] sm:$0xf] %v1891
        %1924 = vst [vmem:[#allocation4 + $0x348] sm:$0xf] %v1892
        %1925 = vst [vmem:[#allocation4 + $0x36c] sm:$0xf] %v1893
        %1926 = vst [vmem:[#allocation4 + $0x390] sm:$0xf] %v1894
        %1927 = vst [vmem:[#allocation4 + $0x3b4] sm:$0xf] %v1895
        %1928 = vst [vmem:[#allocation4 + $0x3d8] sm:$0xf] %v1896
        %1929 = vst [vmem:[#allocation4 + $0x3fc] sm:$0xf] %v1897
        %1930 = vst [vmem:[#allocation4 + $0x420] sm:$0xf] %v1898
        %1931 = vst [vmem:[#allocation4 + $0x444] sm:$0xf] %v1899
        %1932 = vst [vmem:[#allocation4 + $0x468] sm:$0xf] %v1900
        %v1933 = vld [vmem:[%s916] sm:$0xf]
        %v1934 = vld [vmem:[%s916 + $0x4] sm:$0xf]
        %v1935 = vld [vmem:[%s916 + $0x8] sm:$0x1]
        %v1936 = vld [vmem:[%s916 + $0xc] sm:$0xf]
        %v1937 = vld [vmem:[%s916 + $0x10] sm:$0xf]
        %v1938 = vld [vmem:[%s916 + $0x14] sm:$0x1]
        %v1939 = vld [vmem:[%s916 + $0x18] sm:$0xf]
        %v1940 = vld [vmem:[%s916 + $0x1c] sm:$0xf]
        %v1941 = vld [vmem:[%s916 + $0x20] sm:$0x1]
        %v1942 = vld [vmem:[%s916 + $0x24] sm:$0xf]
        %v1943 = vld [vmem:[%s916 + $0x28] sm:$0xf]
        %v1944 = vld [vmem:[%s916 + $0x2c] sm:$0x1]
        %v1945 = vld [vmem:[%s916 + $0x30] sm:$0xf]
        %v1946 = vld [vmem:[%s916 + $0x34] sm:$0xf]
        %v1947 = vld [vmem:[%s916 + $0x38] sm:$0x1]
        %v1948 = vld [vmem:[%s916 + $0x3c] sm:$0xf]
        %v1949 = vld [vmem:[%s916 + $0x40] sm:$0xf]
        %v1950 = vld [vmem:[%s916 + $0x44] sm:$0x1]
        %v1951 = vld [vmem:[%s916 + $0x48] sm:$0xf]
        %v1952 = vld [vmem:[%s916 + $0x4c] sm:$0xf]
        %v1953 = vld [vmem:[%s916 + $0x50] sm:$0x1]
        %v1954 = vld [vmem:[%s916 + $0x54] sm:$0xf]
        %v1955 = vld [vmem:[%s916 + $0x58] sm:$0xf]
        %v1956 = vld [vmem:[%s916 + $0x5c] sm:$0x1]
        %v1957 = vld [vmem:[%s916 + $0x60] sm:$0xf]
        %v1958 = vld [vmem:[%s916 + $0x64] sm:$0xf]
        %v1959 = vld [vmem:[%s916 + $0x68] sm:$0x1]
        %v1960 = vld [vmem:[%s916 + $0x6c] sm:$0xf]
        %v1961 = vld [vmem:[%s916 + $0x70] sm:$0xf]
        %v1962 = vld [vmem:[%s916 + $0x74] sm:$0x1]
        %v1963 = vld [vmem:[%s916 + $0x78] sm:$0xf]
        %v1964 = vld [vmem:[%s916 + $0x7c] sm:$0xf]
        %v1965 = vld [vmem:[%s916 + $0x80] sm:$0x1]
        %v1966 = vld [vmem:[%s916 + $0x84] sm:$0xf]
        %v1967 = vld [vmem:[%s916 + $0x88] sm:$0xf]
        %v1968 = vld [vmem:[%s916 + $0x8c] sm:$0x1]
        %v1969 = vld [vmem:[%s916 + $0x90] sm:$0xf]
        %v1970 = vld [vmem:[%s916 + $0x94] sm:$0xf]
        %v1971 = vld [vmem:[%s916 + $0x98] sm:$0x1]
        %v1972 = vld [vmem:[%s916 + $0x9c] sm:$0xf]
        %v1973 = vld [vmem:[%s916 + $0xa0] sm:$0xf]
        %v1974 = vld [vmem:[%s916 + $0xa4] sm:$0x1]
        %v1975 = vld [vmem:[%s916 + $0xa8] sm:$0xf]
        %v1976 = vld [vmem:[%s916 + $0xac] sm:$0xf]
        %v1977 = vld [vmem:[%s916 + $0xb0] sm:$0x1]
        %v1978 = vld [vmem:[%s916 + $0xb4] sm:$0xf]
        %v1979 = vld [vmem:[%s916 + $0xb8] sm:$0xf]
        %v1980 = vld [vmem:[%s916 + $0xbc] sm:$0x1]
        %v1982 = vshrl.u32 %v1933, 16
        %v1984 = vrot.slane %v1982, 4
        %v1985 = vshll.u32 %v1933, 16
        %v1987 = vrot.slane %v1985, 5
        %v1988 = vor.u32 %v1984, %v1987
        %v1989 = vrot.slane %v1988, 4
        %v1991 = vshll.u32 %v1934, 16
        %v1993 = vrot.slane %v1991, 5
        %v1994 = vsel %vm1145, %v1989, %v1993
        %v1995 = vshrl.u32 %v1934, 16
        %v1997 = vrot.slane %v1995, 4
        %v1998 = vor.u32 %v1997, %v1993
        %v1999 = vrot.slane %v1998, 4
        %v2001 = vshll.u32 %v1935, 16
        %v2003 = vrot.slane %v2001, 5
        %v2004 = vsel %vm1145, %v1999, %v2003
        %v2006 = vshrl.u32 %v1936, 16
        %v2008 = vrot.slane %v2006, 4
        %v2009 = vshll.u32 %v1936, 16
        %v2011 = vrot.slane %v2009, 5
        %v2012 = vor.u32 %v2008, %v2011
        %v2013 = vrot.slane %v2012, 4
        %v2015 = vshll.u32 %v1937, 16
        %v2017 = vrot.slane %v2015, 5
        %v2018 = vsel %vm1145, %v2013, %v2017
        %v2019 = vshrl.u32 %v1937, 16
        %v2021 = vrot.slane %v2019, 4
        %v2022 = vor.u32 %v2021, %v2017
        %v2023 = vrot.slane %v2022, 4
        %v2025 = vshll.u32 %v1938, 16
        %v2027 = vrot.slane %v2025, 5
        %v2028 = vsel %vm1145, %v2023, %v2027
        %v2030 = vshrl.u32 %v1939, 16
        %v2032 = vrot.slane %v2030, 4
        %v2033 = vshll.u32 %v1939, 16
        %v2035 = vrot.slane %v2033, 5
        %v2036 = vor.u32 %v2032, %v2035
        %v2037 = vrot.slane %v2036, 4
        %v2039 = vshll.u32 %v1940, 16
        %v2041 = vrot.slane %v2039, 5
        %v2042 = vsel %vm1145, %v2037, %v2041
        %v2043 = vshrl.u32 %v1940, 16
        %v2045 = vrot.slane %v2043, 4
        %v2046 = vor.u32 %v2045, %v2041
        %v2047 = vrot.slane %v2046, 4
        %v2049 = vshll.u32 %v1941, 16
        %v2051 = vrot.slane %v2049, 5
        %v2052 = vsel %vm1145, %v2047, %v2051
        %v2054 = vshrl.u32 %v1942, 16
        %v2056 = vrot.slane %v2054, 4
        %v2057 = vshll.u32 %v1942, 16
        %v2059 = vrot.slane %v2057, 5
        %v2060 = vor.u32 %v2056, %v2059
        %v2061 = vrot.slane %v2060, 4
        %v2063 = vshll.u32 %v1943, 16
        %v2065 = vrot.slane %v2063, 5
        %v2066 = vsel %vm1145, %v2061, %v2065
        %v2067 = vshrl.u32 %v1943, 16
        %v2069 = vrot.slane %v2067, 4
        %v2070 = vor.u32 %v2069, %v2065
        %v2071 = vrot.slane %v2070, 4
        %v2073 = vshll.u32 %v1944, 16
        %v2075 = vrot.slane %v2073, 5
        %v2076 = vsel %vm1145, %v2071, %v2075
        %v2078 = vshrl.u32 %v1945, 16
        %v2080 = vrot.slane %v2078, 4
        %v2081 = vshll.u32 %v1945, 16
        %v2083 = vrot.slane %v2081, 5
        %v2084 = vor.u32 %v2080, %v2083
        %v2085 = vrot.slane %v2084, 4
        %v2087 = vshll.u32 %v1946, 16
        %v2089 = vrot.slane %v2087, 5
        %v2090 = vsel %vm1145, %v2085, %v2089
        %v2091 = vshrl.u32 %v1946, 16
        %v2093 = vrot.slane %v2091, 4
        %v2094 = vor.u32 %v2093, %v2089
        %v2095 = vrot.slane %v2094, 4
        %v2097 = vshll.u32 %v1947, 16
        %v2099 = vrot.slane %v2097, 5
        %v2100 = vsel %vm1145, %v2095, %v2099
        %v2102 = vshrl.u32 %v1948, 16
        %v2104 = vrot.slane %v2102, 4
        %v2105 = vshll.u32 %v1948, 16
        %v2107 = vrot.slane %v2105, 5
        %v2108 = vor.u32 %v2104, %v2107
        %v2109 = vrot.slane %v2108, 4
        %v2111 = vshll.u32 %v1949, 16
        %v2113 = vrot.slane %v2111, 5
        %v2114 = vsel %vm1145, %v2109, %v2113
        %v2115 = vshrl.u32 %v1949, 16
        %v2117 = vrot.slane %v2115, 4
        %v2118 = vor.u32 %v2117, %v2113
        %v2119 = vrot.slane %v2118, 4
        %v2121 = vshll.u32 %v1950, 16
        %v2123 = vrot.slane %v2121, 5
        %v2124 = vsel %vm1145, %v2119, %v2123
        %v2126 = vshrl.u32 %v1951, 16
        %v2128 = vrot.slane %v2126, 4
        %v2129 = vshll.u32 %v1951, 16
        %v2131 = vrot.slane %v2129, 5
        %v2132 = vor.u32 %v2128, %v2131
        %v2133 = vrot.slane %v2132, 4
        %v2135 = vshll.u32 %v1952, 16
        %v2137 = vrot.slane %v2135, 5
        %v2138 = vsel %vm1145, %v2133, %v2137
        %v2139 = vshrl.u32 %v1952, 16
        %v2141 = vrot.slane %v2139, 4
        %v2142 = vor.u32 %v2141, %v2137
        %v2143 = vrot.slane %v2142, 4
        %v2145 = vshll.u32 %v1953, 16
        %v2147 = vrot.slane %v2145, 5
        %v2148 = vsel %vm1145, %v2143, %v2147
        %v2150 = vshrl.u32 %v1954, 16
        %v2152 = vrot.slane %v2150, 4
        %v2153 = vshll.u32 %v1954, 16
        %v2155 = vrot.slane %v2153, 5
        %v2156 = vor.u32 %v2152, %v2155
        %v2157 = vrot.slane %v2156, 4
        %v2159 = vshll.u32 %v1955, 16
        %v2161 = vrot.slane %v2159, 5
        %v2162 = vsel %vm1145, %v2157, %v2161
        %v2163 = vshrl.u32 %v1955, 16
        %v2165 = vrot.slane %v2163, 4
        %v2166 = vor.u32 %v2165, %v2161
        %v2167 = vrot.slane %v2166, 4
        %v2169 = vshll.u32 %v1956, 16
        %v2171 = vrot.slane %v2169, 5
        %v2172 = vsel %vm1145, %v2167, %v2171
        %v2174 = vshrl.u32 %v1957, 16
        %v2176 = vrot.slane %v2174, 4
        %v2177 = vshll.u32 %v1957, 16
        %v2179 = vrot.slane %v2177, 5
        %v2180 = vor.u32 %v2176, %v2179
        %v2181 = vrot.slane %v2180, 4
        %v2183 = vshll.u32 %v1958, 16
        %v2185 = vrot.slane %v2183, 5
        %v2186 = vsel %vm1145, %v2181, %v2185
        %v2187 = vshrl.u32 %v1958, 16
        %v2189 = vrot.slane %v2187, 4
        %v2190 = vor.u32 %v2189, %v2185
        %v2191 = vrot.slane %v2190, 4
        %v2193 = vshll.u32 %v1959, 16
        %v2195 = vrot.slane %v2193, 5
        %v2196 = vsel %vm1145, %v2191, %v2195
        %v2198 = vshrl.u32 %v1960, 16
        %v2200 = vrot.slane %v2198, 4
        %v2201 = vshll.u32 %v1960, 16
        %v2203 = vrot.slane %v2201, 5
        %v2204 = vor.u32 %v2200, %v2203
        %v2205 = vrot.slane %v2204, 4
        %v2207 = vshll.u32 %v1961, 16
        %v2209 = vrot.slane %v2207, 5
        %v2210 = vsel %vm1145, %v2205, %v2209
        %v2211 = vshrl.u32 %v1961, 16
        %v2213 = vrot.slane %v2211, 4
        %v2214 = vor.u32 %v2213, %v2209
        %v2215 = vrot.slane %v2214, 4
        %v2217 = vshll.u32 %v1962, 16
        %v2219 = vrot.slane %v2217, 5
        %v2220 = vsel %vm1145, %v2215, %v2219
        %v2222 = vshrl.u32 %v1963, 16
        %v2224 = vrot.slane %v2222, 4
        %v2225 = vshll.u32 %v1963, 16
        %v2227 = vrot.slane %v2225, 5
        %v2228 = vor.u32 %v2224, %v2227
        %v2229 = vrot.slane %v2228, 4
        %v2231 = vshll.u32 %v1964, 16
        %v2233 = vrot.slane %v2231, 5
        %v2234 = vsel %vm1145, %v2229, %v2233
        %v2235 = vshrl.u32 %v1964, 16
        %v2237 = vrot.slane %v2235, 4
        %v2238 = vor.u32 %v2237, %v2233
        %v2239 = vrot.slane %v2238, 4
        %v2241 = vshll.u32 %v1965, 16
        %v2243 = vrot.slane %v2241, 5
        %v2244 = vsel %vm1145, %v2239, %v2243
        %v2246 = vshrl.u32 %v1966, 16
        %v2248 = vrot.slane %v2246, 4
        %v2249 = vshll.u32 %v1966, 16
        %v2251 = vrot.slane %v2249, 5
        %v2252 = vor.u32 %v2248, %v2251
        %v2253 = vrot.slane %v2252, 4
        %v2255 = vshll.u32 %v1967, 16
        %v2257 = vrot.slane %v2255, 5
        %v2258 = vsel %vm1145, %v2253, %v2257
        %v2259 = vshrl.u32 %v1967, 16
        %v2261 = vrot.slane %v2259, 4
        %v2262 = vor.u32 %v2261, %v2257
        %v2263 = vrot.slane %v2262, 4
        %v2265 = vshll.u32 %v1968, 16
        %v2267 = vrot.slane %v2265, 5
        %v2268 = vsel %vm1145, %v2263, %v2267
        %v2270 = vshrl.u32 %v1969, 16
        %v2272 = vrot.slane %v2270, 4
        %v2273 = vshll.u32 %v1969, 16
        %v2275 = vrot.slane %v2273, 5
        %v2276 = vor.u32 %v2272, %v2275
        %v2277 = vrot.slane %v2276, 4
        %v2279 = vshll.u32 %v1970, 16
        %v2281 = vrot.slane %v2279, 5
        %v2282 = vsel %vm1145, %v2277, %v2281
        %v2283 = vshrl.u32 %v1970, 16
        %v2285 = vrot.slane %v2283, 4
        %v2286 = vor.u32 %v2285, %v2281
        %v2287 = vrot.slane %v2286, 4
        %v2289 = vshll.u32 %v1971, 16
        %v2291 = vrot.slane %v2289, 5
        %v2292 = vsel %vm1145, %v2287, %v2291
        %v2294 = vshrl.u32 %v1972, 16
        %v2296 = vrot.slane %v2294, 4
        %v2297 = vshll.u32 %v1972, 16
        %v2299 = vrot.slane %v2297, 5
        %v2300 = vor.u32 %v2296, %v2299
        %v2301 = vrot.slane %v2300, 4
        %v2303 = vshll.u32 %v1973, 16
        %v2305 = vrot.slane %v2303, 5
        %v2306 = vsel %vm1145, %v2301, %v2305
        %v2307 = vshrl.u32 %v1973, 16
        %v2309 = vrot.slane %v2307, 4
        %v2310 = vor.u32 %v2309, %v2305
        %v2311 = vrot.slane %v2310, 4
        %v2313 = vshll.u32 %v1974, 16
        %v2315 = vrot.slane %v2313, 5
        %v2316 = vsel %vm1145, %v2311, %v2315
        %v2318 = vshrl.u32 %v1975, 16
        %v2320 = vrot.slane %v2318, 4
        %v2321 = vshll.u32 %v1975, 16
        %v2323 = vrot.slane %v2321, 5
        %v2324 = vor.u32 %v2320, %v2323
        %v2325 = vrot.slane %v2324, 4
        %v2327 = vshll.u32 %v1976, 16
        %v2329 = vrot.slane %v2327, 5
        %v2330 = vsel %vm1145, %v2325, %v2329
        %v2331 = vshrl.u32 %v1976, 16
        %v2333 = vrot.slane %v2331, 4
        %v2334 = vor.u32 %v2333, %v2329
        %v2335 = vrot.slane %v2334, 4
        %v2337 = vshll.u32 %v1977, 16
        %v2339 = vrot.slane %v2337, 5
        %v2340 = vsel %vm1145, %v2335, %v2339
        %v2342 = vshrl.u32 %v1978, 16
        %v2344 = vrot.slane %v2342, 4
        %v2345 = vshll.u32 %v1978, 16
        %v2347 = vrot.slane %v2345, 5
        %v2348 = vor.u32 %v2344, %v2347
        %v2349 = vrot.slane %v2348, 4
        %v2351 = vshll.u32 %v1979, 16
        %v2353 = vrot.slane %v2351, 5
        %v2354 = vsel %vm1145, %v2349, %v2353
        %v2355 = vshrl.u32 %v1979, 16
        %v2357 = vrot.slane %v2355, 4
        %v2358 = vor.u32 %v2357, %v2353
        %v2359 = vrot.slane %v2358, 4
        %v2361 = vshll.u32 %v1980, 16
        %v2363 = vrot.slane %v2361, 5
        %v2364 = vsel %vm1145, %v2359, %v2363
        %2397 = vst [vmem:[#allocation4 + $0x10] sm:$0xf] %v1994
        %2398 = vst [vmem:[#allocation4 + $0x34] sm:$0xf] %v2004
        %2399 = vst [vmem:[#allocation4 + $0x58] sm:$0xf] %v2018
        %2400 = vst [vmem:[#allocation4 + $0x7c] sm:$0xf] %v2028
        %2401 = vst [vmem:[#allocation4 + $0xa0] sm:$0xf] %v2042
        %2402 = vst [vmem:[#allocation4 + $0xc4] sm:$0xf] %v2052
        %2403 = vst [vmem:[#allocation4 + $0xe8] sm:$0xf] %v2066
        %2404 = vst [vmem:[#allocation4 + $0x10c] sm:$0xf] %v2076
        %2405 = vst [vmem:[#allocation4 + $0x130] sm:$0xf] %v2090
        %2406 = vst [vmem:[#allocation4 + $0x154] sm:$0xf] %v2100
        %2407 = vst [vmem:[#allocation4 + $0x178] sm:$0xf] %v2114
        %2408 = vst [vmem:[#allocation4 + $0x19c] sm:$0xf] %v2124
        %2409 = vst [vmem:[#allocation4 + $0x1c0] sm:$0xf] %v2138
        %2410 = vst [vmem:[#allocation4 + $0x1e4] sm:$0xf] %v2148
        %2411 = vst [vmem:[#allocation4 + $0x208] sm:$0xf] %v2162
        %2412 = vst [vmem:[#allocation4 + $0x22c] sm:$0xf] %v2172
        %2413 = vst [vmem:[#allocation4 + $0x250] sm:$0xf] %v2186
        %2414 = vst [vmem:[#allocation4 + $0x274] sm:$0xf] %v2196
        %2415 = vst [vmem:[#allocation4 + $0x298] sm:$0xf] %v2210
        %2416 = vst [vmem:[#allocation4 + $0x2bc] sm:$0xf] %v2220
        %2417 = vst [vmem:[#allocation4 + $0x2e0] sm:$0xf] %v2234
        %2418 = vst [vmem:[#allocation4 + $0x304] sm:$0xf] %v2244
        %2419 = vst [vmem:[#allocation4 + $0x328] sm:$0xf] %v2258
        %2420 = vst [vmem:[#allocation4 + $0x34c] sm:$0xf] %v2268
        %2421 = vst [vmem:[#allocation4 + $0x370] sm:$0xf] %v2282
        %2422 = vst [vmem:[#allocation4 + $0x394] sm:$0xf] %v2292
        %2423 = vst [vmem:[#allocation4 + $0x3b8] sm:$0xf] %v2306
        %2424 = vst [vmem:[#allocation4 + $0x3dc] sm:$0xf] %v2316
        %2425 = vst [vmem:[#allocation4 + $0x400] sm:$0xf] %v2330
        %2426 = vst [vmem:[#allocation4 + $0x424] sm:$0xf] %v2340
        %2427 = vst [vmem:[#allocation4 + $0x448] sm:$0xf] %v2354
        %2428 = vst [vmem:[#allocation4 + $0x46c] sm:$0xf] %v2364
        %v2429 = vld [vmem:[%s916] sm:$0xe]
        %v2430 = vld [vmem:[%s916 + $0x4] sm:$0xf]
        %v2431 = vld [vmem:[%s916 + $0x8] sm:$0x1]
        %v2432 = vld [vmem:[%s916 + $0xc] sm:$0xe]
        %v2433 = vld [vmem:[%s916 + $0x10] sm:$0xf]
        %v2434 = vld [vmem:[%s916 + $0x14] sm:$0x1]
        %v2435 = vld [vmem:[%s916 + $0x18] sm:$0xe]
        %v2436 = vld [vmem:[%s916 + $0x1c] sm:$0xf]
        %v2437 = vld [vmem:[%s916 + $0x20] sm:$0x1]
        %v2438 = vld [vmem:[%s916 + $0x24] sm:$0xe]
        %v2439 = vld [vmem:[%s916 + $0x28] sm:$0xf]
        %v2440 = vld [vmem:[%s916 + $0x2c] sm:$0x1]
        %v2441 = vld [vmem:[%s916 + $0x30] sm:$0xe]
        %v2442 = vld [vmem:[%s916 + $0x34] sm:$0xf]
        %v2443 = vld [vmem:[%s916 + $0x38] sm:$0x1]
        %v2444 = vld [vmem:[%s916 + $0x3c] sm:$0xe]
        %v2445 = vld [vmem:[%s916 + $0x40] sm:$0xf]
        %v2446 = vld [vmem:[%s916 + $0x44] sm:$0x1]
        %v2447 = vld [vmem:[%s916 + $0x48] sm:$0xe]
        %v2448 = vld [vmem:[%s916 + $0x4c] sm:$0xf]
        %v2449 = vld [vmem:[%s916 + $0x50] sm:$0x1]
        %v2450 = vld [vmem:[%s916 + $0x54] sm:$0xe]
        %v2451 = vld [vmem:[%s916 + $0x58] sm:$0xf]
        %v2452 = vld [vmem:[%s916 + $0x5c] sm:$0x1]
        %v2453 = vld [vmem:[%s916 + $0x60] sm:$0xe]
        %v2454 = vld [vmem:[%s916 + $0x64] sm:$0xf]
        %v2455 = vld [vmem:[%s916 + $0x68] sm:$0x1]
        %v2456 = vld [vmem:[%s916 + $0x6c] sm:$0xe]
        %v2457 = vld [vmem:[%s916 + $0x70] sm:$0xf]
        %v2458 = vld [vmem:[%s916 + $0x74] sm:$0x1]
        %v2459 = vld [vmem:[%s916 + $0x78] sm:$0xe]
        %v2460 = vld [vmem:[%s916 + $0x7c] sm:$0xf]
        %v2461 = vld [vmem:[%s916 + $0x80] sm:$0x1]
        %v2462 = vld [vmem:[%s916 + $0x84] sm:$0xe]
        %v2463 = vld [vmem:[%s916 + $0x88] sm:$0xf]
        %v2464 = vld [vmem:[%s916 + $0x8c] sm:$0x1]
        %v2465 = vld [vmem:[%s916 + $0x90] sm:$0xe]
        %v2466 = vld [vmem:[%s916 + $0x94] sm:$0xf]
        %v2467 = vld [vmem:[%s916 + $0x98] sm:$0x1]
        %v2468 = vld [vmem:[%s916 + $0x9c] sm:$0xe]
        %v2469 = vld [vmem:[%s916 + $0xa0] sm:$0xf]
        %v2470 = vld [vmem:[%s916 + $0xa4] sm:$0x1]
        %v2471 = vld [vmem:[%s916 + $0xa8] sm:$0xe]
        %v2472 = vld [vmem:[%s916 + $0xac] sm:$0xf]
        %v2473 = vld [vmem:[%s916 + $0xb0] sm:$0x1]
        %v2474 = vld [vmem:[%s916 + $0xb4] sm:$0xe]
        %v2475 = vld [vmem:[%s916 + $0xb8] sm:$0xf]
        %v2476 = vld [vmem:[%s916 + $0xbc] sm:$0x1]
        %v2525 = vrot.slane %v2429, 5
        %v2526 = vrot.slane %v2525, 4
        %v2527 = vrot.slane %v2430, 5
        %v2528 = vsel %vm1692, %v2526, %v2527
        %v2529 = vrot.slane %v2527, 4
        %v2530 = vrot.slane %v2431, 5
        %v2531 = vsel %vm1692, %v2529, %v2530
        %v2532 = vrot.slane %v2432, 5
        %v2533 = vrot.slane %v2532, 4
        %v2534 = vrot.slane %v2433, 5
        %v2535 = vsel %vm1692, %v2533, %v2534
        %v2536 = vrot.slane %v2534, 4
        %v2537 = vrot.slane %v2434, 5
        %v2538 = vsel %vm1692, %v2536, %v2537
        %v2539 = vrot.slane %v2435, 5
        %v2540 = vrot.slane %v2539, 4
        %v2541 = vrot.slane %v2436, 5
        %v2542 = vsel %vm1692, %v2540, %v2541
        %v2543 = vrot.slane %v2541, 4
        %v2544 = vrot.slane %v2437, 5
        %v2545 = vsel %vm1692, %v2543, %v2544
        %v2546 = vrot.slane %v2438, 5
        %v2547 = vrot.slane %v2546, 4
        %v2548 = vrot.slane %v2439, 5
        %v2549 = vsel %vm1692, %v2547, %v2548
        %v2550 = vrot.slane %v2548, 4
        %v2551 = vrot.slane %v2440, 5
        %v2552 = vsel %vm1692, %v2550, %v2551
        %v2553 = vrot.slane %v2441, 5
        %v2554 = vrot.slane %v2553, 4
        %v2555 = vrot.slane %v2442, 5
        %v2556 = vsel %vm1692, %v2554, %v2555
        %v2557 = vrot.slane %v2555, 4
        %v2558 = vrot.slane %v2443, 5
        %v2559 = vsel %vm1692, %v2557, %v2558
        %v2560 = vrot.slane %v2444, 5
        %v2561 = vrot.slane %v2560, 4
        %v2562 = vrot.slane %v2445, 5
        %v2563 = vsel %vm1692, %v2561, %v2562
        %v2564 = vrot.slane %v2562, 4
        %v2565 = vrot.slane %v2446, 5
        %v2566 = vsel %vm1692, %v2564, %v2565
        %v2567 = vrot.slane %v2447, 5
        %v2568 = vrot.slane %v2567, 4
        %v2569 = vrot.slane %v2448, 5
        %v2570 = vsel %vm1692, %v2568, %v2569
        %v2571 = vrot.slane %v2569, 4
        %v2572 = vrot.slane %v2449, 5
        %v2573 = vsel %vm1692, %v2571, %v2572
        %v2574 = vrot.slane %v2450, 5
        %v2575 = vrot.slane %v2574, 4
        %v2576 = vrot.slane %v2451, 5
        %v2577 = vsel %vm1692, %v2575, %v2576
        %v2578 = vrot.slane %v2576, 4
        %v2579 = vrot.slane %v2452, 5
        %v2580 = vsel %vm1692, %v2578, %v2579
        %v2581 = vrot.slane %v2453, 5
        %v2582 = vrot.slane %v2581, 4
        %v2583 = vrot.slane %v2454, 5
        %v2584 = vsel %vm1692, %v2582, %v2583
        %v2585 = vrot.slane %v2583, 4
        %v2586 = vrot.slane %v2455, 5
        %v2587 = vsel %vm1692, %v2585, %v2586
        %v2588 = vrot.slane %v2456, 5
        %v2589 = vrot.slane %v2588, 4
        %v2590 = vrot.slane %v2457, 5
        %v2591 = vsel %vm1692, %v2589, %v2590
        %v2592 = vrot.slane %v2590, 4
        %v2593 = vrot.slane %v2458, 5
        %v2594 = vsel %vm1692, %v2592, %v2593
        %v2595 = vrot.slane %v2459, 5
        %v2596 = vrot.slane %v2595, 4
        %v2597 = vrot.slane %v2460, 5
        %v2598 = vsel %vm1692, %v2596, %v2597
        %v2599 = vrot.slane %v2597, 4
        %v2600 = vrot.slane %v2461, 5
        %v2601 = vsel %vm1692, %v2599, %v2600
        %v2602 = vrot.slane %v2462, 5
        %v2603 = vrot.slane %v2602, 4
        %v2604 = vrot.slane %v2463, 5
        %v2605 = vsel %vm1692, %v2603, %v2604
        %v2606 = vrot.slane %v2604, 4
        %v2607 = vrot.slane %v2464, 5
        %v2608 = vsel %vm1692, %v2606, %v2607
        %v2609 = vrot.slane %v2465, 5
        %v2610 = vrot.slane %v2609, 4
        %v2611 = vrot.slane %v2466, 5
        %v2612 = vsel %vm1692, %v2610, %v2611
        %v2613 = vrot.slane %v2611, 4
        %v2614 = vrot.slane %v2467, 5
        %v2615 = vsel %vm1692, %v2613, %v2614
        %v2616 = vrot.slane %v2468, 5
        %v2617 = vrot.slane %v2616, 4
        %v2618 = vrot.slane %v2469, 5
        %v2619 = vsel %vm1692, %v2617, %v2618
        %v2620 = vrot.slane %v2618, 4
        %v2621 = vrot.slane %v2470, 5
        %v2622 = vsel %vm1692, %v2620, %v2621
        %v2623 = vrot.slane %v2471, 5
        %v2624 = vrot.slane %v2623, 4
        %v2625 = vrot.slane %v2472, 5
        %v2626 = vsel %vm1692, %v2624, %v2625
        %v2627 = vrot.slane %v2625, 4
        %v2628 = vrot.slane %v2473, 5
        %v2629 = vsel %vm1692, %v2627, %v2628
        %v2630 = vrot.slane %v2474, 5
        %v2631 = vrot.slane %v2630, 4
        %v2632 = vrot.slane %v2475, 5
        %v2633 = vsel %vm1692, %v2631, %v2632
        %v2634 = vrot.slane %v2632, 4
        %v2635 = vrot.slane %v2476, 5
        %v2636 = vsel %vm1692, %v2634, %v2635
        %2669 = vst [vmem:[#allocation4 + $0x14] sm:$0xf] %v2528
        %2670 = vst [vmem:[#allocation4 + $0x38] sm:$0xf] %v2531
        %2671 = vst [vmem:[#allocation4 + $0x5c] sm:$0xf] %v2535
        %2672 = vst [vmem:[#allocation4 + $0x80] sm:$0xf] %v2538
        %2673 = vst [vmem:[#allocation4 + $0xa4] sm:$0xf] %v2542
        %2674 = vst [vmem:[#allocation4 + $0xc8] sm:$0xf] %v2545
        %2675 = vst [vmem:[#allocation4 + $0xec] sm:$0xf] %v2549
        %2676 = vst [vmem:[#allocation4 + $0x110] sm:$0xf] %v2552
        %2677 = vst [vmem:[#allocation4 + $0x134] sm:$0xf] %v2556
        %2678 = vst [vmem:[#allocation4 + $0x158] sm:$0xf] %v2559
        %2679 = vst [vmem:[#allocation4 + $0x17c] sm:$0xf] %v2563
        %2680 = vst [vmem:[#allocation4 + $0x1a0] sm:$0xf] %v2566
        %2681 = vst [vmem:[#allocation4 + $0x1c4] sm:$0xf] %v2570
        %2682 = vst [vmem:[#allocation4 + $0x1e8] sm:$0xf] %v2573
        %2683 = vst [vmem:[#allocation4 + $0x20c] sm:$0xf] %v2577
        %2684 = vst [vmem:[#allocation4 + $0x230] sm:$0xf] %v2580
        %2685 = vst [vmem:[#allocation4 + $0x254] sm:$0xf] %v2584
        %2686 = vst [vmem:[#allocation4 + $0x278] sm:$0xf] %v2587
        %2687 = vst [vmem:[#allocation4 + $0x29c] sm:$0xf] %v2591
        %2688 = vst [vmem:[#allocation4 + $0x2c0] sm:$0xf] %v2594
        %2689 = vst [vmem:[#allocation4 + $0x2e4] sm:$0xf] %v2598
        %2690 = vst [vmem:[#allocation4 + $0x308] sm:$0xf] %v2601
        %2691 = vst [vmem:[#allocation4 + $0x32c] sm:$0xf] %v2605
        %2692 = vst [vmem:[#allocation4 + $0x350] sm:$0xf] %v2608
        %2693 = vst [vmem:[#allocation4 + $0x374] sm:$0xf] %v2612
        %2694 = vst [vmem:[#allocation4 + $0x398] sm:$0xf] %v2615
        %2695 = vst [vmem:[#allocation4 + $0x3bc] sm:$0xf] %v2619
        %2696 = vst [vmem:[#allocation4 + $0x3e0] sm:$0xf] %v2622
        %2697 = vst [vmem:[#allocation4 + $0x404] sm:$0xf] %v2626
        %2698 = vst [vmem:[#allocation4 + $0x428] sm:$0xf] %v2629
        %2699 = vst [vmem:[#allocation4 + $0x44c] sm:$0xf] %v2633
        %2700 = vst [vmem:[#allocation4 + $0x470] sm:$0xf] %v2636
        %s2701 = scalar_lea.vmem [#allocation2], 24
        %v2702 = vld [vmem:[%s2701] sm:$0xf]
        %v2703 = vld [vmem:[%s2701 + $0x4] sm:$0xf]
        %v2704 = vld [vmem:[%s2701 + $0xc] sm:$0xf]
        %v2705 = vld [vmem:[%s2701 + $0x10] sm:$0xf]
        %v2706 = vld [vmem:[%s2701 + $0x18] sm:$0xf]
        %v2707 = vld [vmem:[%s2701 + $0x1c] sm:$0xf]
        %v2708 = vld [vmem:[%s2701 + $0x24] sm:$0xf]
        %v2709 = vld [vmem:[%s2701 + $0x28] sm:$0xf]
        %v2710 = vld [vmem:[%s2701 + $0x30] sm:$0xf]
        %v2711 = vld [vmem:[%s2701 + $0x34] sm:$0xf]
        %v2712 = vld [vmem:[%s2701 + $0x3c] sm:$0xf]
        %v2713 = vld [vmem:[%s2701 + $0x40] sm:$0xf]
        %v2714 = vld [vmem:[%s2701 + $0x48] sm:$0xf]
        %v2715 = vld [vmem:[%s2701 + $0x4c] sm:$0xf]
        %v2716 = vld [vmem:[%s2701 + $0x54] sm:$0xf]
        %v2717 = vld [vmem:[%s2701 + $0x58] sm:$0xf]
        %v2718 = vld [vmem:[%s2701 + $0x60] sm:$0xf]
        %v2719 = vld [vmem:[%s2701 + $0x64] sm:$0xf]
        %v2720 = vld [vmem:[%s2701 + $0x6c] sm:$0xf]
        %v2721 = vld [vmem:[%s2701 + $0x70] sm:$0xf]
        %v2722 = vld [vmem:[%s2701 + $0x78] sm:$0xf]
        %v2723 = vld [vmem:[%s2701 + $0x7c] sm:$0xf]
        %v2724 = vld [vmem:[%s2701 + $0x84] sm:$0xf]
        %v2725 = vld [vmem:[%s2701 + $0x88] sm:$0xf]
        %v2726 = vld [vmem:[%s2701 + $0x90] sm:$0xf]
        %v2727 = vld [vmem:[%s2701 + $0x94] sm:$0xf]
        %v2728 = vld [vmem:[%s2701 + $0x9c] sm:$0xf]
        %v2729 = vld [vmem:[%s2701 + $0xa0] sm:$0xf]
        %v2730 = vld [vmem:[%s2701 + $0xa8] sm:$0xf]
        %v2731 = vld [vmem:[%s2701 + $0xac] sm:$0xf]
        %v2732 = vld [vmem:[%s2701 + $0xb4] sm:$0xf]
        %v2733 = vld [vmem:[%s2701 + $0xb8] sm:$0xf]
        %2734 = vst [vmem:[#allocation4 + $0x18] sm:$0xf] %v2702
        %2735 = vst [vmem:[#allocation4 + $0x3c] sm:$0xf] %v2703
        %2736 = vst [vmem:[#allocation4 + $0x60] sm:$0xf] %v2704
        %2737 = vst [vmem:[#allocation4 + $0x84] sm:$0xf] %v2705
        %2738 = vst [vmem:[#allocation4 + $0xa8] sm:$0xf] %v2706
        %2739 = vst [vmem:[#allocation4 + $0xcc] sm:$0xf] %v2707
        %2740 = vst [vmem:[#allocation4 + $0xf0] sm:$0xf] %v2708
        %2741 = vst [vmem:[#allocation4 + $0x114] sm:$0xf] %v2709
        %2742 = vst [vmem:[#allocation4 + $0x138] sm:$0xf] %v2710
        %2743 = vst [vmem:[#allocation4 + $0x15c] sm:$0xf] %v2711
        %2744 = vst [vmem:[#allocation4 + $0x180] sm:$0xf] %v2712
        %2745 = vst [vmem:[#allocation4 + $0x1a4] sm:$0xf] %v2713
        %2746 = vst [vmem:[#allocation4 + $0x1c8] sm:$0xf] %v2714
        %2747 = vst [vmem:[#allocation4 + $0x1ec] sm:$0xf] %v2715
        %2748 = vst [vmem:[#allocation4 + $0x210] sm:$0xf] %v2716
        %2749 = vst [vmem:[#allocation4 + $0x234] sm:$0xf] %v2717
        %2750 = vst [vmem:[#allocation4 + $0x258] sm:$0xf] %v2718
        %2751 = vst [vmem:[#allocation4 + $0x27c] sm:$0xf] %v2719
        %2752 = vst [vmem:[#allocation4 + $0x2a0] sm:$0xf] %v2720
        %2753 = vst [vmem:[#allocation4 + $0x2c4] sm:$0xf] %v2721
        %2754 = vst [vmem:[#allocation4 + $0x2e8] sm:$0xf] %v2722
        %2755 = vst [vmem:[#allocation4 + $0x30c] sm:$0xf] %v2723
        %2756 = vst [vmem:[#allocation4 + $0x330] sm:$0xf] %v2724
        %2757 = vst [vmem:[#allocation4 + $0x354] sm:$0xf] %v2725
        %2758 = vst [vmem:[#allocation4 + $0x378] sm:$0xf] %v2726
        %2759 = vst [vmem:[#allocation4 + $0x39c] sm:$0xf] %v2727
        %2760 = vst [vmem:[#allocation4 + $0x3c0] sm:$0xf] %v2728
        %2761 = vst [vmem:[#allocation4 + $0x3e4] sm:$0xf] %v2729
        %2762 = vst [vmem:[#allocation4 + $0x408] sm:$0xf] %v2730
        %2763 = vst [vmem:[#allocation4 + $0x42c] sm:$0xf] %v2731
        %2764 = vst [vmem:[#allocation4 + $0x450] sm:$0xf] %v2732
        %2765 = vst [vmem:[#allocation4 + $0x474] sm:$0xf] %v2733
        %v2766 = vld [vmem:[%s2701] sm:$0xf]
        %v2767 = vld [vmem:[%s2701 + $0x4] sm:$0xf]
        %v2768 = vld [vmem:[%s2701 + $0x8] sm:$0x1]
        %v2769 = vld [vmem:[%s2701 + $0xc] sm:$0xf]
        %v2770 = vld [vmem:[%s2701 + $0x10] sm:$0xf]
        %v2771 = vld [vmem:[%s2701 + $0x14] sm:$0x1]
        %v2772 = vld [vmem:[%s2701 + $0x18] sm:$0xf]
        %v2773 = vld [vmem:[%s2701 + $0x1c] sm:$0xf]
        %v2774 = vld [vmem:[%s2701 + $0x20] sm:$0x1]
        %v2775 = vld [vmem:[%s2701 + $0x24] sm:$0xf]
        %v2776 = vld [vmem:[%s2701 + $0x28] sm:$0xf]
        %v2777 = vld [vmem:[%s2701 + $0x2c] sm:$0x1]
        %v2778 = vld [vmem:[%s2701 + $0x30] sm:$0xf]
        %v2779 = vld [vmem:[%s2701 + $0x34] sm:$0xf]
        %v2780 = vld [vmem:[%s2701 + $0x38] sm:$0x1]
        %v2781 = vld [vmem:[%s2701 + $0x3c] sm:$0xf]
        %v2782 = vld [vmem:[%s2701 + $0x40] sm:$0xf]
        %v2783 = vld [vmem:[%s2701 + $0x44] sm:$0x1]
        %v2784 = vld [vmem:[%s2701 + $0x48] sm:$0xf]
        %v2785 = vld [vmem:[%s2701 + $0x4c] sm:$0xf]
        %v2786 = vld [vmem:[%s2701 + $0x50] sm:$0x1]
        %v2787 = vld [vmem:[%s2701 + $0x54] sm:$0xf]
        %v2788 = vld [vmem:[%s2701 + $0x58] sm:$0xf]
        %v2789 = vld [vmem:[%s2701 + $0x5c] sm:$0x1]
        %v2790 = vld [vmem:[%s2701 + $0x60] sm:$0xf]
        %v2791 = vld [vmem:[%s2701 + $0x64] sm:$0xf]
        %v2792 = vld [vmem:[%s2701 + $0x68] sm:$0x1]
        %v2793 = vld [vmem:[%s2701 + $0x6c] sm:$0xf]
        %v2794 = vld [vmem:[%s2701 + $0x70] sm:$0xf]
        %v2795 = vld [vmem:[%s2701 + $0x74] sm:$0x1]
        %v2796 = vld [vmem:[%s2701 + $0x78] sm:$0xf]
        %v2797 = vld [vmem:[%s2701 + $0x7c] sm:$0xf]
        %v2798 = vld [vmem:[%s2701 + $0x80] sm:$0x1]
        %v2799 = vld [vmem:[%s2701 + $0x84] sm:$0xf]
        %v2800 = vld [vmem:[%s2701 + $0x88] sm:$0xf]
        %v2801 = vld [vmem:[%s2701 + $0x8c] sm:$0x1]
        %v2802 = vld [vmem:[%s2701 + $0x90] sm:$0xf]
        %v2803 = vld [vmem:[%s2701 + $0x94] sm:$0xf]
        %v2804 = vld [vmem:[%s2701 + $0x98] sm:$0x1]
        %v2805 = vld [vmem:[%s2701 + $0x9c] sm:$0xf]
        %v2806 = vld [vmem:[%s2701 + $0xa0] sm:$0xf]
        %v2807 = vld [vmem:[%s2701 + $0xa4] sm:$0x1]
        %v2808 = vld [vmem:[%s2701 + $0xa8] sm:$0xf]
        %v2809 = vld [vmem:[%s2701 + $0xac] sm:$0xf]
        %v2810 = vld [vmem:[%s2701 + $0xb0] sm:$0x1]
        %v2811 = vld [vmem:[%s2701 + $0xb4] sm:$0xf]
        %v2812 = vld [vmem:[%s2701 + $0xb8] sm:$0xf]
        %v2813 = vld [vmem:[%s2701 + $0xbc] sm:$0x1]
        %v2815 = vshrl.u32 %v2766, 16
        %v2817 = vrot.slane %v2815, 4
        %v2818 = vshll.u32 %v2766, 16
        %v2820 = vrot.slane %v2818, 5
        %v2821 = vor.u32 %v2817, %v2820
        %v2822 = vrot.slane %v2821, 4
        %v2824 = vshll.u32 %v2767, 16
        %v2826 = vrot.slane %v2824, 5
        %v2827 = vsel %vm1145, %v2822, %v2826
        %v2828 = vshrl.u32 %v2767, 16
        %v2830 = vrot.slane %v2828, 4
        %v2831 = vor.u32 %v2830, %v2826
        %v2832 = vrot.slane %v2831, 4
        %v2834 = vshll.u32 %v2768, 16
        %v2836 = vrot.slane %v2834, 5
        %v2837 = vsel %vm1145, %v2832, %v2836
        %v2839 = vshrl.u32 %v2769, 16
        %v2841 = vrot.slane %v2839, 4
        %v2842 = vshll.u32 %v2769, 16
        %v2844 = vrot.slane %v2842, 5
        %v2845 = vor.u32 %v2841, %v2844
        %v2846 = vrot.slane %v2845, 4
        %v2848 = vshll.u32 %v2770, 16
        %v2850 = vrot.slane %v2848, 5
        %v2851 = vsel %vm1145, %v2846, %v2850
        %v2852 = vshrl.u32 %v2770, 16
        %v2854 = vrot.slane %v2852, 4
        %v2855 = vor.u32 %v2854, %v2850
        %v2856 = vrot.slane %v2855, 4
        %v2858 = vshll.u32 %v2771, 16
        %v2860 = vrot.slane %v2858, 5
        %v2861 = vsel %vm1145, %v2856, %v2860
        %v2863 = vshrl.u32 %v2772, 16
        %v2865 = vrot.slane %v2863, 4
        %v2866 = vshll.u32 %v2772, 16
        %v2868 = vrot.slane %v2866, 5
        %v2869 = vor.u32 %v2865, %v2868
        %v2870 = vrot.slane %v2869, 4
        %v2872 = vshll.u32 %v2773, 16
        %v2874 = vrot.slane %v2872, 5
        %v2875 = vsel %vm1145, %v2870, %v2874
        %v2876 = vshrl.u32 %v2773, 16
        %v2878 = vrot.slane %v2876, 4
        %v2879 = vor.u32 %v2878, %v2874
        %v2880 = vrot.slane %v2879, 4
        %v2882 = vshll.u32 %v2774, 16
        %v2884 = vrot.slane %v2882, 5
        %v2885 = vsel %vm1145, %v2880, %v2884
        %v2887 = vshrl.u32 %v2775, 16
        %v2889 = vrot.slane %v2887, 4
        %v2890 = vshll.u32 %v2775, 16
        %v2892 = vrot.slane %v2890, 5
        %v2893 = vor.u32 %v2889, %v2892
        %v2894 = vrot.slane %v2893, 4
        %v2896 = vshll.u32 %v2776, 16
        %v2898 = vrot.slane %v2896, 5
        %v2899 = vsel %vm1145, %v2894, %v2898
        %v2900 = vshrl.u32 %v2776, 16
        %v2902 = vrot.slane %v2900, 4
        %v2903 = vor.u32 %v2902, %v2898
        %v2904 = vrot.slane %v2903, 4
        %v2906 = vshll.u32 %v2777, 16
        %v2908 = vrot.slane %v2906, 5
        %v2909 = vsel %vm1145, %v2904, %v2908
        %v2911 = vshrl.u32 %v2778, 16
        %v2913 = vrot.slane %v2911, 4
        %v2914 = vshll.u32 %v2778, 16
        %v2916 = vrot.slane %v2914, 5
        %v2917 = vor.u32 %v2913, %v2916
        %v2918 = vrot.slane %v2917, 4
        %v2920 = vshll.u32 %v2779, 16
        %v2922 = vrot.slane %v2920, 5
        %v2923 = vsel %vm1145, %v2918, %v2922
        %v2924 = vshrl.u32 %v2779, 16
        %v2926 = vrot.slane %v2924, 4
        %v2927 = vor.u32 %v2926, %v2922
        %v2928 = vrot.slane %v2927, 4
        %v2930 = vshll.u32 %v2780, 16
        %v2932 = vrot.slane %v2930, 5
        %v2933 = vsel %vm1145, %v2928, %v2932
        %v2935 = vshrl.u32 %v2781, 16
        %v2937 = vrot.slane %v2935, 4
        %v2938 = vshll.u32 %v2781, 16
        %v2940 = vrot.slane %v2938, 5
        %v2941 = vor.u32 %v2937, %v2940
        %v2942 = vrot.slane %v2941, 4
        %v2944 = vshll.u32 %v2782, 16
        %v2946 = vrot.slane %v2944, 5
        %v2947 = vsel %vm1145, %v2942, %v2946
        %v2948 = vshrl.u32 %v2782, 16
        %v2950 = vrot.slane %v2948, 4
        %v2951 = vor.u32 %v2950, %v2946
        %v2952 = vrot.slane %v2951, 4
        %v2954 = vshll.u32 %v2783, 16
        %v2956 = vrot.slane %v2954, 5
        %v2957 = vsel %vm1145, %v2952, %v2956
        %v2959 = vshrl.u32 %v2784, 16
        %v2961 = vrot.slane %v2959, 4
        %v2962 = vshll.u32 %v2784, 16
        %v2964 = vrot.slane %v2962, 5
        %v2965 = vor.u32 %v2961, %v2964
        %v2966 = vrot.slane %v2965, 4
        %v2968 = vshll.u32 %v2785, 16
        %v2970 = vrot.slane %v2968, 5
        %v2971 = vsel %vm1145, %v2966, %v2970
        %v2972 = vshrl.u32 %v2785, 16
        %v2974 = vrot.slane %v2972, 4
        %v2975 = vor.u32 %v2974, %v2970
        %v2976 = vrot.slane %v2975, 4
        %v2978 = vshll.u32 %v2786, 16
        %v2980 = vrot.slane %v2978, 5
        %v2981 = vsel %vm1145, %v2976, %v2980
        %v2983 = vshrl.u32 %v2787, 16
        %v2985 = vrot.slane %v2983, 4
        %v2986 = vshll.u32 %v2787, 16
        %v2988 = vrot.slane %v2986, 5
        %v2989 = vor.u32 %v2985, %v2988
        %v2990 = vrot.slane %v2989, 4
        %v2992 = vshll.u32 %v2788, 16
        %v2994 = vrot.slane %v2992, 5
        %v2995 = vsel %vm1145, %v2990, %v2994
        %v2996 = vshrl.u32 %v2788, 16
        %v2998 = vrot.slane %v2996, 4
        %v2999 = vor.u32 %v2998, %v2994
        %v3000 = vrot.slane %v2999, 4
        %v3002 = vshll.u32 %v2789, 16
        %v3004 = vrot.slane %v3002, 5
        %v3005 = vsel %vm1145, %v3000, %v3004
        %v3007 = vshrl.u32 %v2790, 16
        %v3009 = vrot.slane %v3007, 4
        %v3010 = vshll.u32 %v2790, 16
        %v3012 = vrot.slane %v3010, 5
        %v3013 = vor.u32 %v3009, %v3012
        %v3014 = vrot.slane %v3013, 4
        %v3016 = vshll.u32 %v2791, 16
        %v3018 = vrot.slane %v3016, 5
        %v3019 = vsel %vm1145, %v3014, %v3018
        %v3020 = vshrl.u32 %v2791, 16
        %v3022 = vrot.slane %v3020, 4
        %v3023 = vor.u32 %v3022, %v3018
        %v3024 = vrot.slane %v3023, 4
        %v3026 = vshll.u32 %v2792, 16
        %v3028 = vrot.slane %v3026, 5
        %v3029 = vsel %vm1145, %v3024, %v3028
        %v3031 = vshrl.u32 %v2793, 16
        %v3033 = vrot.slane %v3031, 4
        %v3034 = vshll.u32 %v2793, 16
        %v3036 = vrot.slane %v3034, 5
        %v3037 = vor.u32 %v3033, %v3036
        %v3038 = vrot.slane %v3037, 4
        %v3040 = vshll.u32 %v2794, 16
        %v3042 = vrot.slane %v3040, 5
        %v3043 = vsel %vm1145, %v3038, %v3042
        %v3044 = vshrl.u32 %v2794, 16
        %v3046 = vrot.slane %v3044, 4
        %v3047 = vor.u32 %v3046, %v3042
        %v3048 = vrot.slane %v3047, 4
        %v3050 = vshll.u32 %v2795, 16
        %v3052 = vrot.slane %v3050, 5
        %v3053 = vsel %vm1145, %v3048, %v3052
        %v3055 = vshrl.u32 %v2796, 16
        %v3057 = vrot.slane %v3055, 4
        %v3058 = vshll.u32 %v2796, 16
        %v3060 = vrot.slane %v3058, 5
        %v3061 = vor.u32 %v3057, %v3060
        %v3062 = vrot.slane %v3061, 4
        %v3064 = vshll.u32 %v2797, 16
        %v3066 = vrot.slane %v3064, 5
        %v3067 = vsel %vm1145, %v3062, %v3066
        %v3068 = vshrl.u32 %v2797, 16
        %v3070 = vrot.slane %v3068, 4
        %v3071 = vor.u32 %v3070, %v3066
        %v3072 = vrot.slane %v3071, 4
        %v3074 = vshll.u32 %v2798, 16
        %v3076 = vrot.slane %v3074, 5
        %v3077 = vsel %vm1145, %v3072, %v3076
        %v3079 = vshrl.u32 %v2799, 16
        %v3081 = vrot.slane %v3079, 4
        %v3082 = vshll.u32 %v2799, 16
        %v3084 = vrot.slane %v3082, 5
        %v3085 = vor.u32 %v3081, %v3084
        %v3086 = vrot.slane %v3085, 4
        %v3088 = vshll.u32 %v2800, 16
        %v3090 = vrot.slane %v3088, 5
        %v3091 = vsel %vm1145, %v3086, %v3090
        %v3092 = vshrl.u32 %v2800, 16
        %v3094 = vrot.slane %v3092, 4
        %v3095 = vor.u32 %v3094, %v3090
        %v3096 = vrot.slane %v3095, 4
        %v3098 = vshll.u32 %v2801, 16
        %v3100 = vrot.slane %v3098, 5
        %v3101 = vsel %vm1145, %v3096, %v3100
        %v3103 = vshrl.u32 %v2802, 16
        %v3105 = vrot.slane %v3103, 4
        %v3106 = vshll.u32 %v2802, 16
        %v3108 = vrot.slane %v3106, 5
        %v3109 = vor.u32 %v3105, %v3108
        %v3110 = vrot.slane %v3109, 4
        %v3112 = vshll.u32 %v2803, 16
        %v3114 = vrot.slane %v3112, 5
        %v3115 = vsel %vm1145, %v3110, %v3114
        %v3116 = vshrl.u32 %v2803, 16
        %v3118 = vrot.slane %v3116, 4
        %v3119 = vor.u32 %v3118, %v3114
        %v3120 = vrot.slane %v3119, 4
        %v3122 = vshll.u32 %v2804, 16
        %v3124 = vrot.slane %v3122, 5
        %v3125 = vsel %vm1145, %v3120, %v3124
        %v3127 = vshrl.u32 %v2805, 16
        %v3129 = vrot.slane %v3127, 4
        %v3130 = vshll.u32 %v2805, 16
        %v3132 = vrot.slane %v3130, 5
        %v3133 = vor.u32 %v3129, %v3132
        %v3134 = vrot.slane %v3133, 4
        %v3136 = vshll.u32 %v2806, 16
        %v3138 = vrot.slane %v3136, 5
        %v3139 = vsel %vm1145, %v3134, %v3138
        %v3140 = vshrl.u32 %v2806, 16
        %v3142 = vrot.slane %v3140, 4
        %v3143 = vor.u32 %v3142, %v3138
        %v3144 = vrot.slane %v3143, 4
        %v3146 = vshll.u32 %v2807, 16
        %v3148 = vrot.slane %v3146, 5
        %v3149 = vsel %vm1145, %v3144, %v3148
        %v3151 = vshrl.u32 %v2808, 16
        %v3153 = vrot.slane %v3151, 4
        %v3154 = vshll.u32 %v2808, 16
        %v3156 = vrot.slane %v3154, 5
        %v3157 = vor.u32 %v3153, %v3156
        %v3158 = vrot.slane %v3157, 4
        %v3160 = vshll.u32 %v2809, 16
        %v3162 = vrot.slane %v3160, 5
        %v3163 = vsel %vm1145, %v3158, %v3162
        %v3164 = vshrl.u32 %v2809, 16
        %v3166 = vrot.slane %v3164, 4
        %v3167 = vor.u32 %v3166, %v3162
        %v3168 = vrot.slane %v3167, 4
        %v3170 = vshll.u32 %v2810, 16
        %v3172 = vrot.slane %v3170, 5
        %v3173 = vsel %vm1145, %v3168, %v3172
        %v3175 = vshrl.u32 %v2811, 16
        %v3177 = vrot.slane %v3175, 4
        %v3178 = vshll.u32 %v2811, 16
        %v3180 = vrot.slane %v3178, 5
        %v3181 = vor.u32 %v3177, %v3180
        %v3182 = vrot.slane %v3181, 4
        %v3184 = vshll.u32 %v2812, 16
        %v3186 = vrot.slane %v3184, 5
        %v3187 = vsel %vm1145, %v3182, %v3186
        %v3188 = vshrl.u32 %v2812, 16
        %v3190 = vrot.slane %v3188, 4
        %v3191 = vor.u32 %v3190, %v3186
        %v3192 = vrot.slane %v3191, 4
        %v3194 = vshll.u32 %v2813, 16
        %v3196 = vrot.slane %v3194, 5
        %v3197 = vsel %vm1145, %v3192, %v3196
        %3230 = vst [vmem:[#allocation4 + $0x1c] sm:$0xf] %v2827
        %3231 = vst [vmem:[#allocation4 + $0x40] sm:$0xf] %v2837
        %3232 = vst [vmem:[#allocation4 + $0x64] sm:$0xf] %v2851
        %3233 = vst [vmem:[#allocation4 + $0x88] sm:$0xf] %v2861
        %3234 = vst [vmem:[#allocation4 + $0xac] sm:$0xf] %v2875
        %3235 = vst [vmem:[#allocation4 + $0xd0] sm:$0xf] %v2885
        %3236 = vst [vmem:[#allocation4 + $0xf4] sm:$0xf] %v2899
        %3237 = vst [vmem:[#allocation4 + $0x118] sm:$0xf] %v2909
        %3238 = vst [vmem:[#allocation4 + $0x13c] sm:$0xf] %v2923
        %3239 = vst [vmem:[#allocation4 + $0x160] sm:$0xf] %v2933
        %3240 = vst [vmem:[#allocation4 + $0x184] sm:$0xf] %v2947
        %3241 = vst [vmem:[#allocation4 + $0x1a8] sm:$0xf] %v2957
        %3242 = vst [vmem:[#allocation4 + $0x1cc] sm:$0xf] %v2971
        %3243 = vst [vmem:[#allocation4 + $0x1f0] sm:$0xf] %v2981
        %3244 = vst [vmem:[#allocation4 + $0x214] sm:$0xf] %v2995
        %3245 = vst [vmem:[#allocation4 + $0x238] sm:$0xf] %v3005
        %3246 = vst [vmem:[#allocation4 + $0x25c] sm:$0xf] %v3019
        %3247 = vst [vmem:[#allocation4 + $0x280] sm:$0xf] %v3029
        %3248 = vst [vmem:[#allocation4 + $0x2a4] sm:$0xf] %v3043
        %3249 = vst [vmem:[#allocation4 + $0x2c8] sm:$0xf] %v3053
        %3250 = vst [vmem:[#allocation4 + $0x2ec] sm:$0xf] %v3067
        %3251 = vst [vmem:[#allocation4 + $0x310] sm:$0xf] %v3077
        %3252 = vst [vmem:[#allocation4 + $0x334] sm:$0xf] %v3091
        %3253 = vst [vmem:[#allocation4 + $0x358] sm:$0xf] %v3101
        %3254 = vst [vmem:[#allocation4 + $0x37c] sm:$0xf] %v3115
        %3255 = vst [vmem:[#allocation4 + $0x3a0] sm:$0xf] %v3125
        %3256 = vst [vmem:[#allocation4 + $0x3c4] sm:$0xf] %v3139
        %3257 = vst [vmem:[#allocation4 + $0x3e8] sm:$0xf] %v3149
        %3258 = vst [vmem:[#allocation4 + $0x40c] sm:$0xf] %v3163
        %3259 = vst [vmem:[#allocation4 + $0x430] sm:$0xf] %v3173
        %3260 = vst [vmem:[#allocation4 + $0x454] sm:$0xf] %v3187
        %3261 = vst [vmem:[#allocation4 + $0x478] sm:$0xf] %v3197
        %v3262 = vld [vmem:[%s2701] sm:$0xe]
        %v3263 = vld [vmem:[%s2701 + $0x4] sm:$0xf]
        %v3264 = vld [vmem:[%s2701 + $0x8] sm:$0x1]
        %v3265 = vld [vmem:[%s2701 + $0xc] sm:$0xe]
        %v3266 = vld [vmem:[%s2701 + $0x10] sm:$0xf]
        %v3267 = vld [vmem:[%s2701 + $0x14] sm:$0x1]
        %v3268 = vld [vmem:[%s2701 + $0x18] sm:$0xe]
        %v3269 = vld [vmem:[%s2701 + $0x1c] sm:$0xf]
        %v3270 = vld [vmem:[%s2701 + $0x20] sm:$0x1]
        %v3271 = vld [vmem:[%s2701 + $0x24] sm:$0xe]
        %v3272 = vld [vmem:[%s2701 + $0x28] sm:$0xf]
        %v3273 = vld [vmem:[%s2701 + $0x2c] sm:$0x1]
        %v3274 = vld [vmem:[%s2701 + $0x30] sm:$0xe]
        %v3275 = vld [vmem:[%s2701 + $0x34] sm:$0xf]
        %v3276 = vld [vmem:[%s2701 + $0x38] sm:$0x1]
        %v3277 = vld [vmem:[%s2701 + $0x3c] sm:$0xe]
        %v3278 = vld [vmem:[%s2701 + $0x40] sm:$0xf]
        %v3279 = vld [vmem:[%s2701 + $0x44] sm:$0x1]
        %v3280 = vld [vmem:[%s2701 + $0x48] sm:$0xe]
        %v3281 = vld [vmem:[%s2701 + $0x4c] sm:$0xf]
        %v3282 = vld [vmem:[%s2701 + $0x50] sm:$0x1]
        %v3283 = vld [vmem:[%s2701 + $0x54] sm:$0xe]
        %v3284 = vld [vmem:[%s2701 + $0x58] sm:$0xf]
        %v3285 = vld [vmem:[%s2701 + $0x5c] sm:$0x1]
        %v3286 = vld [vmem:[%s2701 + $0x60] sm:$0xe]
        %v3287 = vld [vmem:[%s2701 + $0x64] sm:$0xf]
        %v3288 = vld [vmem:[%s2701 + $0x68] sm:$0x1]
        %v3289 = vld [vmem:[%s2701 + $0x6c] sm:$0xe]
        %v3290 = vld [vmem:[%s2701 + $0x70] sm:$0xf]
        %v3291 = vld [vmem:[%s2701 + $0x74] sm:$0x1]
        %v3292 = vld [vmem:[%s2701 + $0x78] sm:$0xe]
        %v3293 = vld [vmem:[%s2701 + $0x7c] sm:$0xf]
        %v3294 = vld [vmem:[%s2701 + $0x80] sm:$0x1]
        %v3295 = vld [vmem:[%s2701 + $0x84] sm:$0xe]
        %v3296 = vld [vmem:[%s2701 + $0x88] sm:$0xf]
        %v3297 = vld [vmem:[%s2701 + $0x8c] sm:$0x1]
        %v3298 = vld [vmem:[%s2701 + $0x90] sm:$0xe]
        %v3299 = vld [vmem:[%s2701 + $0x94] sm:$0xf]
        %v3300 = vld [vmem:[%s2701 + $0x98] sm:$0x1]
        %v3301 = vld [vmem:[%s2701 + $0x9c] sm:$0xe]
        %v3302 = vld [vmem:[%s2701 + $0xa0] sm:$0xf]
        %v3303 = vld [vmem:[%s2701 + $0xa4] sm:$0x1]
        %v3304 = vld [vmem:[%s2701 + $0xa8] sm:$0xe]
        %v3305 = vld [vmem:[%s2701 + $0xac] sm:$0xf]
        %v3306 = vld [vmem:[%s2701 + $0xb0] sm:$0x1]
        %v3307 = vld [vmem:[%s2701 + $0xb4] sm:$0xe]
        %v3308 = vld [vmem:[%s2701 + $0xb8] sm:$0xf]
        %v3309 = vld [vmem:[%s2701 + $0xbc] sm:$0x1]
        %v3358 = vrot.slane %v3262, 5
        %v3359 = vrot.slane %v3358, 4
        %v3360 = vrot.slane %v3263, 5
        %v3361 = vsel %vm1692, %v3359, %v3360
        %v3362 = vrot.slane %v3360, 4
        %v3363 = vrot.slane %v3264, 5
        %v3364 = vsel %vm1692, %v3362, %v3363
        %v3365 = vrot.slane %v3265, 5
        %v3366 = vrot.slane %v3365, 4
        %v3367 = vrot.slane %v3266, 5
        %v3368 = vsel %vm1692, %v3366, %v3367
        %v3369 = vrot.slane %v3367, 4
        %v3370 = vrot.slane %v3267, 5
        %v3371 = vsel %vm1692, %v3369, %v3370
        %v3372 = vrot.slane %v3268, 5
        %v3373 = vrot.slane %v3372, 4
        %v3374 = vrot.slane %v3269, 5
        %v3375 = vsel %vm1692, %v3373, %v3374
        %v3376 = vrot.slane %v3374, 4
        %v3377 = vrot.slane %v3270, 5
        %v3378 = vsel %vm1692, %v3376, %v3377
        %v3379 = vrot.slane %v3271, 5
        %v3380 = vrot.slane %v3379, 4
        %v3381 = vrot.slane %v3272, 5
        %v3382 = vsel %vm1692, %v3380, %v3381
        %v3383 = vrot.slane %v3381, 4
        %v3384 = vrot.slane %v3273, 5
        %v3385 = vsel %vm1692, %v3383, %v3384
        %v3386 = vrot.slane %v3274, 5
        %v3387 = vrot.slane %v3386, 4
        %v3388 = vrot.slane %v3275, 5
        %v3389 = vsel %vm1692, %v3387, %v3388
        %v3390 = vrot.slane %v3388, 4
        %v3391 = vrot.slane %v3276, 5
        %v3392 = vsel %vm1692, %v3390, %v3391
        %v3393 = vrot.slane %v3277, 5
        %v3394 = vrot.slane %v3393, 4
        %v3395 = vrot.slane %v3278, 5
        %v3396 = vsel %vm1692, %v3394, %v3395
        %v3397 = vrot.slane %v3395, 4
        %v3398 = vrot.slane %v3279, 5
        %v3399 = vsel %vm1692, %v3397, %v3398
        %v3400 = vrot.slane %v3280, 5
        %v3401 = vrot.slane %v3400, 4
        %v3402 = vrot.slane %v3281, 5
        %v3403 = vsel %vm1692, %v3401, %v3402
        %v3404 = vrot.slane %v3402, 4
        %v3405 = vrot.slane %v3282, 5
        %v3406 = vsel %vm1692, %v3404, %v3405
        %v3407 = vrot.slane %v3283, 5
        %v3408 = vrot.slane %v3407, 4
        %v3409 = vrot.slane %v3284, 5
        %v3410 = vsel %vm1692, %v3408, %v3409
        %v3411 = vrot.slane %v3409, 4
        %v3412 = vrot.slane %v3285, 5
        %v3413 = vsel %vm1692, %v3411, %v3412
        %v3414 = vrot.slane %v3286, 5
        %v3415 = vrot.slane %v3414, 4
        %v3416 = vrot.slane %v3287, 5
        %v3417 = vsel %vm1692, %v3415, %v3416
        %v3418 = vrot.slane %v3416, 4
        %v3419 = vrot.slane %v3288, 5
        %v3420 = vsel %vm1692, %v3418, %v3419
        %v3421 = vrot.slane %v3289, 5
        %v3422 = vrot.slane %v3421, 4
        %v3423 = vrot.slane %v3290, 5
        %v3424 = vsel %vm1692, %v3422, %v3423
        %v3425 = vrot.slane %v3423, 4
        %v3426 = vrot.slane %v3291, 5
        %v3427 = vsel %vm1692, %v3425, %v3426
        %v3428 = vrot.slane %v3292, 5
        %v3429 = vrot.slane %v3428, 4
        %v3430 = vrot.slane %v3293, 5
        %v3431 = vsel %vm1692, %v3429, %v3430
        %v3432 = vrot.slane %v3430, 4
        %v3433 = vrot.slane %v3294, 5
        %v3434 = vsel %vm1692, %v3432, %v3433
        %v3435 = vrot.slane %v3295, 5
        %v3436 = vrot.slane %v3435, 4
        %v3437 = vrot.slane %v3296, 5
        %v3438 = vsel %vm1692, %v3436, %v3437
        %v3439 = vrot.slane %v3437, 4
        %v3440 = vrot.slane %v3297, 5
        %v3441 = vsel %vm1692, %v3439, %v3440
        %v3442 = vrot.slane %v3298, 5
        %v3443 = vrot.slane %v3442, 4
        %v3444 = vrot.slane %v3299, 5
        %v3445 = vsel %vm1692, %v3443, %v3444
        %v3446 = vrot.slane %v3444, 4
        %v3447 = vrot.slane %v3300, 5
        %v3448 = vsel %vm1692, %v3446, %v3447
        %v3449 = vrot.slane %v3301, 5
        %v3450 = vrot.slane %v3449, 4
        %v3451 = vrot.slane %v3302, 5
        %v3452 = vsel %vm1692, %v3450, %v3451
        %v3453 = vrot.slane %v3451, 4
        %v3454 = vrot.slane %v3303, 5
        %v3455 = vsel %vm1692, %v3453, %v3454
        %v3456 = vrot.slane %v3304, 5
        %v3457 = vrot.slane %v3456, 4
        %v3458 = vrot.slane %v3305, 5
        %v3459 = vsel %vm1692, %v3457, %v3458
        %v3460 = vrot.slane %v3458, 4
        %v3461 = vrot.slane %v3306, 5
        %v3462 = vsel %vm1692, %v3460, %v3461
        %v3463 = vrot.slane %v3307, 5
        %v3464 = vrot.slane %v3463, 4
        %v3465 = vrot.slane %v3308, 5
        %v3466 = vsel %vm1692, %v3464, %v3465
        %v3467 = vrot.slane %v3465, 4
        %v3468 = vrot.slane %v3309, 5
        %v3469 = vsel %vm1692, %v3467, %v3468
        %3502 = vst [vmem:[#allocation4 + $0x20] sm:$0xf] %v3361
        %3503 = vst [vmem:[#allocation4 + $0x44] sm:$0xf] %v3364
        %3504 = vst [vmem:[#allocation4 + $0x68] sm:$0xf] %v3368
        %3505 = vst [vmem:[#allocation4 + $0x8c] sm:$0xf] %v3371
        %3506 = vst [vmem:[#allocation4 + $0xb0] sm:$0xf] %v3375
        %3507 = vst [vmem:[#allocation4 + $0xd4] sm:$0xf] %v3378
        %3508 = vst [vmem:[#allocation4 + $0xf8] sm:$0xf] %v3382
        %3509 = vst [vmem:[#allocation4 + $0x11c] sm:$0xf] %v3385
        %3510 = vst [vmem:[#allocation4 + $0x140] sm:$0xf] %v3389
        %3511 = vst [vmem:[#allocation4 + $0x164] sm:$0xf] %v3392
        %3512 = vst [vmem:[#allocation4 + $0x188] sm:$0xf] %v3396
        %3513 = vst [vmem:[#allocation4 + $0x1ac] sm:$0xf] %v3399
        %3514 = vst [vmem:[#allocation4 + $0x1d0] sm:$0xf] %v3403
        %3515 = vst [vmem:[#allocation4 + $0x1f4] sm:$0xf] %v3406
        %3516 = vst [vmem:[#allocation4 + $0x218] sm:$0xf] %v3410
        %3517 = vst [vmem:[#allocation4 + $0x23c] sm:$0xf] %v3413
        %3518 = vst [vmem:[#allocation4 + $0x260] sm:$0xf] %v3417
        %3519 = vst [vmem:[#allocation4 + $0x284] sm:$0xf] %v3420
        %3520 = vst [vmem:[#allocation4 + $0x2a8] sm:$0xf] %v3424
        %3521 = vst [vmem:[#allocation4 + $0x2cc] sm:$0xf] %v3427
        %3522 = vst [vmem:[#allocation4 + $0x2f0] sm:$0xf] %v3431
        %3523 = vst [vmem:[#allocation4 + $0x314] sm:$0xf] %v3434
        %3524 = vst [vmem:[#allocation4 + $0x338] sm:$0xf] %v3438
        %3525 = vst [vmem:[#allocation4 + $0x35c] sm:$0xf] %v3441
        %3526 = vst [vmem:[#allocation4 + $0x380] sm:$0xf] %v3445
        %3527 = vst [vmem:[#allocation4 + $0x3a4] sm:$0xf] %v3448
        %3528 = vst [vmem:[#allocation4 + $0x3c8] sm:$0xf] %v3452
        %3529 = vst [vmem:[#allocation4 + $0x3ec] sm:$0xf] %v3455
        %3530 = vst [vmem:[#allocation4 + $0x410] sm:$0xf] %v3459
        %3531 = vst [vmem:[#allocation4 + $0x434] sm:$0xf] %v3462
        %3532 = vst [vmem:[#allocation4 + $0x458] sm:$0xf] %v3466
        %3533 = vst [vmem:[#allocation4 + $0x47c] sm:$0xf] %v3469
        %v3534 = vld [vmem:[#allocation4] sm:$0xff]
        %v3535 = vld [vmem:[#allocation4 + $0x8] sm:$0xff]
        %v3536 = vld [vmem:[#allocation4 + $0x10] sm:$0xff]
        %v3537 = vld [vmem:[#allocation4 + $0x18] sm:$0xff]
        %v3538 = vld [vmem:[#allocation4 + $0x20] sm:$0xf]
        %v3539 = vld [vmem:[#allocation4 + $0x24] sm:$0xff]
        %v3540 = vld [vmem:[#allocation4 + $0x2c] sm:$0xff]
        %v3541 = vld [vmem:[#allocation4 + $0x34] sm:$0xff]
        %v3542 = vld [vmem:[#allocation4 + $0x3c] sm:$0xff]
        %v3543 = vld [vmem:[#allocation4 + $0x44] sm:$0xf]
        %v3544 = vld [vmem:[#allocation4 + $0x48] sm:$0xff]
        %v3545 = vld [vmem:[#allocation4 + $0x50] sm:$0xff]
        %v3546 = vld [vmem:[#allocation4 + $0x58] sm:$0xff]
        %v3547 = vld [vmem:[#allocation4 + $0x60] sm:$0xff]
        %v3548 = vld [vmem:[#allocation4 + $0x68] sm:$0xf]
        %v3549 = vld [vmem:[#allocation4 + $0x6c] sm:$0xff]
        %v3550 = vld [vmem:[#allocation4 + $0x74] sm:$0xff]
        %v3551 = vld [vmem:[#allocation4 + $0x7c] sm:$0xff]
        %v3552 = vld [vmem:[#allocation4 + $0x84] sm:$0xff]
        %v3553 = vld [vmem:[#allocation4 + $0x8c] sm:$0xf]
        %v3554 = vld [vmem:[#allocation4 + $0x90] sm:$0xff]
        %v3555 = vld [vmem:[#allocation4 + $0x98] sm:$0xff]
        %v3556 = vld [vmem:[#allocation4 + $0xa0] sm:$0xff]
        %v3557 = vld [vmem:[#allocation4 + $0xa8] sm:$0xff]
        %v3558 = vld [vmem:[#allocation4 + $0xb0] sm:$0xf]
        %v3559 = vld [vmem:[#allocation4 + $0xb4] sm:$0xff]
        %v3560 = vld [vmem:[#allocation4 + $0xbc] sm:$0xff]
        %v3561 = vld [vmem:[#allocation4 + $0xc4] sm:$0xff]
        %v3562 = vld [vmem:[#allocation4 + $0xcc] sm:$0xff]
        %v3563 = vld [vmem:[#allocation4 + $0xd4] sm:$0xf]
        %v3564 = vld [vmem:[#allocation4 + $0xd8] sm:$0xff]
        %v3565 = vld [vmem:[#allocation4 + $0xe0] sm:$0xff]
        %v3566 = vld [vmem:[#allocation4 + $0xe8] sm:$0xff]
        %v3567 = vld [vmem:[#allocation4 + $0xf0] sm:$0xff]
        %v3568 = vld [vmem:[#allocation4 + $0xf8] sm:$0xf]
        %v3569 = vld [vmem:[#allocation4 + $0xfc] sm:$0xff]
        %v3570 = vld [vmem:[#allocation4 + $0x104] sm:$0xff]
        %v3571 = vld [vmem:[#allocation4 + $0x10c] sm:$0xff]
        %v3572 = vld [vmem:[#allocation4 + $0x114] sm:$0xff]
        %v3573 = vld [vmem:[#allocation4 + $0x11c] sm:$0xf]
        %v3574 = vld [vmem:[#allocation4 + $0x120] sm:$0xff]
        %v3575 = vld [vmem:[#allocation4 + $0x128] sm:$0xff]
        %v3576 = vld [vmem:[#allocation4 + $0x130] sm:$0xff]
        %v3577 = vld [vmem:[#allocation4 + $0x138] sm:$0xff]
        %v3578 = vld [vmem:[#allocation4 + $0x140] sm:$0xf]
        %v3579 = vld [vmem:[#allocation4 + $0x144] sm:$0xff]
        %v3580 = vld [vmem:[#allocation4 + $0x14c] sm:$0xff]
        %v3581 = vld [vmem:[#allocation4 + $0x154] sm:$0xff]
        %v3582 = vld [vmem:[#allocation4 + $0x15c] sm:$0xff]
        %v3583 = vld [vmem:[#allocation4 + $0x164] sm:$0xf]
        %v3584 = vld [vmem:[#allocation4 + $0x168] sm:$0xff]
        %v3585 = vld [vmem:[#allocation4 + $0x170] sm:$0xff]
        %v3586 = vld [vmem:[#allocation4 + $0x178] sm:$0xff]
        %v3587 = vld [vmem:[#allocation4 + $0x180] sm:$0xff]
        %v3588 = vld [vmem:[#allocation4 + $0x188] sm:$0xf]
        %v3589 = vld [vmem:[#allocation4 + $0x18c] sm:$0xff]
        %v3590 = vld [vmem:[#allocation4 + $0x194] sm:$0xff]
        %v3591 = vld [vmem:[#allocation4 + $0x19c] sm:$0xff]
        %v3592 = vld [vmem:[#allocation4 + $0x1a4] sm:$0xff]
        %v3593 = vld [vmem:[#allocation4 + $0x1ac] sm:$0xf]
        %v3594 = vld [vmem:[#allocation4 + $0x1b0] sm:$0xff]
        %v3595 = vld [vmem:[#allocation4 + $0x1b8] sm:$0xff]
        %v3596 = vld [vmem:[#allocation4 + $0x1c0] sm:$0xff]
        %v3597 = vld [vmem:[#allocation4 + $0x1c8] sm:$0xff]
        %v3598 = vld [vmem:[#allocation4 + $0x1d0] sm:$0xf]
        %v3599 = vld [vmem:[#allocation4 + $0x1d4] sm:$0xff]
        %v3600 = vld [vmem:[#allocation4 + $0x1dc] sm:$0xff]
        %v3601 = vld [vmem:[#allocation4 + $0x1e4] sm:$0xff]
        %v3602 = vld [vmem:[#allocation4 + $0x1ec] sm:$0xff]
        %v3603 = vld [vmem:[#allocation4 + $0x1f4] sm:$0xf]
        %v3604 = vld [vmem:[#allocation4 + $0x1f8] sm:$0xff]
        %v3605 = vld [vmem:[#allocation4 + $0x200] sm:$0xff]
        %v3606 = vld [vmem:[#allocation4 + $0x208] sm:$0xff]
        %v3607 = vld [vmem:[#allocation4 + $0x210] sm:$0xff]
        %v3608 = vld [vmem:[#allocation4 + $0x218] sm:$0xf]
        %v3609 = vld [vmem:[#allocation4 + $0x21c] sm:$0xff]
        %v3610 = vld [vmem:[#allocation4 + $0x224] sm:$0xff]
        %v3611 = vld [vmem:[#allocation4 + $0x22c] sm:$0xff]
        %v3612 = vld [vmem:[#allocation4 + $0x234] sm:$0xff]
        %v3613 = vld [vmem:[#allocation4 + $0x23c] sm:$0xf]
        %v3614 = vld [vmem:[#allocation4 + $0x240] sm:$0xff]
        %v3615 = vld [vmem:[#allocation4 + $0x248] sm:$0xff]
        %v3616 = vld [vmem:[#allocation4 + $0x250] sm:$0xff]
        %v3617 = vld [vmem:[#allocation4 + $0x258] sm:$0xff]
        %v3618 = vld [vmem:[#allocation4 + $0x260] sm:$0xf]
        %v3619 = vld [vmem:[#allocation4 + $0x264] sm:$0xff]
        %v3620 = vld [vmem:[#allocation4 + $0x26c] sm:$0xff]
        %v3621 = vld [vmem:[#allocation4 + $0x274] sm:$0xff]
        %v3622 = vld [vmem:[#allocation4 + $0x27c] sm:$0xff]
        %v3623 = vld [vmem:[#allocation4 + $0x284] sm:$0xf]
        %v3624 = vld [vmem:[#allocation4 + $0x288] sm:$0xff]
        %v3625 = vld [vmem:[#allocation4 + $0x290] sm:$0xff]
        %v3626 = vld [vmem:[#allocation4 + $0x298] sm:$0xff]
        %v3627 = vld [vmem:[#allocation4 + $0x2a0] sm:$0xff]
        %v3628 = vld [vmem:[#allocation4 + $0x2a8] sm:$0xf]
        %v3629 = vld [vmem:[#allocation4 + $0x2ac] sm:$0xff]
        %v3630 = vld [vmem:[#allocation4 + $0x2b4] sm:$0xff]
        %v3631 = vld [vmem:[#allocation4 + $0x2bc] sm:$0xff]
        %v3632 = vld [vmem:[#allocation4 + $0x2c4] sm:$0xff]
        %v3633 = vld [vmem:[#allocation4 + $0x2cc] sm:$0xf]
        %v3634 = vld [vmem:[#allocation4 + $0x2d0] sm:$0xff]
        %v3635 = vld [vmem:[#allocation4 + $0x2d8] sm:$0xff]
        %v3636 = vld [vmem:[#allocation4 + $0x2e0] sm:$0xff]
        %v3637 = vld [vmem:[#allocation4 + $0x2e8] sm:$0xff]
        %v3638 = vld [vmem:[#allocation4 + $0x2f0] sm:$0xf]
        %v3639 = vld [vmem:[#allocation4 + $0x2f4] sm:$0xff]
        %v3640 = vld [vmem:[#allocation4 + $0x2fc] sm:$0xff]
        %v3641 = vld [vmem:[#allocation4 + $0x304] sm:$0xff]
        %v3642 = vld [vmem:[#allocation4 + $0x30c] sm:$0xff]
        %v3643 = vld [vmem:[#allocation4 + $0x314] sm:$0xf]
        %v3644 = vld [vmem:[#allocation4 + $0x318] sm:$0xff]
        %v3645 = vld [vmem:[#allocation4 + $0x320] sm:$0xff]
        %v3646 = vld [vmem:[#allocation4 + $0x328] sm:$0xff]
        %v3647 = vld [vmem:[#allocation4 + $0x330] sm:$0xff]
        %v3648 = vld [vmem:[#allocation4 + $0x338] sm:$0xf]
        %v3649 = vld [vmem:[#allocation4 + $0x33c] sm:$0xff]
        %v3650 = vld [vmem:[#allocation4 + $0x344] sm:$0xff]
        %v3651 = vld [vmem:[#allocation4 + $0x34c] sm:$0xff]
        %v3652 = vld [vmem:[#allocation4 + $0x354] sm:$0xff]
        %v3653 = vld [vmem:[#allocation4 + $0x35c] sm:$0xf]
        %v3654 = vld [vmem:[#allocation4 + $0x360] sm:$0xff]
        %v3655 = vld [vmem:[#allocation4 + $0x368] sm:$0xff]
        %v3656 = vld [vmem:[#allocation4 + $0x370] sm:$0xff]
        %v3657 = vld [vmem:[#allocation4 + $0x378] sm:$0xff]
        %v3658 = vld [vmem:[#allocation4 + $0x380] sm:$0xf]
        %v3659 = vld [vmem:[#allocation4 + $0x384] sm:$0xff]
        %v3660 = vld [vmem:[#allocation4 + $0x38c] sm:$0xff]
        %v3661 = vld [vmem:[#allocation4 + $0x394] sm:$0xff]
        %v3662 = vld [vmem:[#allocation4 + $0x39c] sm:$0xff]
        %v3663 = vld [vmem:[#allocation4 + $0x3a4] sm:$0xf]
        %v3664 = vld [vmem:[#allocation4 + $0x3a8] sm:$0xff]
        %v3665 = vld [vmem:[#allocation4 + $0x3b0] sm:$0xff]
        %v3666 = vld [vmem:[#allocation4 + $0x3b8] sm:$0xff]
        %v3667 = vld [vmem:[#allocation4 + $0x3c0] sm:$0xff]
        %v3668 = vld [vmem:[#allocation4 + $0x3c8] sm:$0xf]
        %v3669 = vld [vmem:[#allocation4 + $0x3cc] sm:$0xff]
        %v3670 = vld [vmem:[#allocation4 + $0x3d4] sm:$0xff]
        %v3671 = vld [vmem:[#allocation4 + $0x3dc] sm:$0xff]
        %v3672 = vld [vmem:[#allocation4 + $0x3e4] sm:$0xff]
        %v3673 = vld [vmem:[#allocation4 + $0x3ec] sm:$0xf]
        %v3674 = vld [vmem:[#allocation4 + $0x3f0] sm:$0xff]
        %v3675 = vld [vmem:[#allocation4 + $0x3f8] sm:$0xff]
        %v3676 = vld [vmem:[#allocation4 + $0x400] sm:$0xff]
        %v3677 = vld [vmem:[#allocation4 + $0x408] sm:$0xff]
        %v3678 = vld [vmem:[#allocation4 + $0x410] sm:$0xf]
        %v3679 = vld [vmem:[#allocation4 + $0x414] sm:$0xff]
        %v3680 = vld [vmem:[#allocation4 + $0x41c] sm:$0xff]
        %v3681 = vld [vmem:[#allocation4 + $0x424] sm:$0xff]
        %v3682 = vld [vmem:[#allocation4 + $0x42c] sm:$0xff]
        %v3683 = vld [vmem:[#allocation4 + $0x434] sm:$0xf]
        %v3684 = vld [vmem:[#allocation4 + $0x438] sm:$0xff]
        %v3685 = vld [vmem:[#allocation4 + $0x440] sm:$0xff]
        %v3686 = vld [vmem:[#allocation4 + $0x448] sm:$0xff]
        %v3687 = vld [vmem:[#allocation4 + $0x450] sm:$0xff]
        %v3688 = vld [vmem:[#allocation4 + $0x458] sm:$0xf]
        %v3689 = vld [vmem:[#allocation4 + $0x45c] sm:$0xff]
        %v3690 = vld [vmem:[#allocation4 + $0x464] sm:$0xff]
        %v3691 = vld [vmem:[#allocation4 + $0x46c] sm:$0xff]
        %v3692 = vld [vmem:[#allocation4 + $0x474] sm:$0xff]
        %v3693 = vld [vmem:[#allocation4 + $0x47c] sm:$0xf]
        %v3694 = vld [vmem:[#allocation8] sm:$0xf]
        %v3695 = vld [vmem:[#allocation8 + $0x4] sm:$0xf]
        %v3696 = vld [vmem:[#allocation8 + $0x8] sm:$0xf]
        %v3697 = vld [vmem:[#allocation8 + $0xc] sm:$0xf]
        %v3698 = vld [vmem:[#allocation8 + $0x10] sm:$0xf]
        %v3699 = vld [vmem:[#allocation8 + $0x14] sm:$0xf]
        %v3700 = vld [vmem:[#allocation8 + $0x18] sm:$0xf]
        %v3701 = vld [vmem:[#allocation8 + $0x1c] sm:$0xf]
        %v3702 = vld [vmem:[#allocation8 + $0x20] sm:$0xf]
        %v3703 = vld [vmem:[#allocation8 + $0x24] sm:$0xf]
        %v3704 = vld [vmem:[#allocation8 + $0x28] sm:$0xf]
        %v3705 = vld [vmem:[#allocation8 + $0x2c] sm:$0xf]
        %v3706 = vld [vmem:[#allocation8 + $0x30] sm:$0xf]
        %v3707 = vld [vmem:[#allocation8 + $0x34] sm:$0xf]
        %v3708 = vld [vmem:[#allocation8 + $0x38] sm:$0xf]
        %v3709 = vld [vmem:[#allocation8 + $0x3c] sm:$0xf]
        %v3710 = vld [vmem:[#allocation8 + $0x40] sm:$0xf]
        %v3711 = vld [vmem:[#allocation8 + $0x44] sm:$0xf]
        %v3712 = vld [vmem:[#allocation8 + $0x48] sm:$0xf]
        %v3713 = vld [vmem:[#allocation8 + $0x4c] sm:$0xf]
        %v3714 = vld [vmem:[#allocation8 + $0x50] sm:$0xf]
        %v3715 = vld [vmem:[#allocation8 + $0x54] sm:$0xf]
        %v3716 = vld [vmem:[#allocation8 + $0x58] sm:$0xf]
        %v3717 = vld [vmem:[#allocation8 + $0x5c] sm:$0xf]
        %v3718 = vld [vmem:[#allocation8 + $0x60] sm:$0xf]
        %v3719 = vld [vmem:[#allocation8 + $0x64] sm:$0xf]
        %v3720 = vld [vmem:[#allocation8 + $0x68] sm:$0xf]
        %v3721 = vld [vmem:[#allocation8 + $0x6c] sm:$0xf]
        %v3722 = vld [vmem:[#allocation8 + $0x70] sm:$0xf]
        %v3723 = vld [vmem:[#allocation8 + $0x74] sm:$0xf]
        %v3724 = vld [vmem:[#allocation8 + $0x78] sm:$0xf]
        %v3725 = vld [vmem:[#allocation8 + $0x7c] sm:$0xf]
        %v3726 = vld [vmem:[#allocation8 + $0x80] sm:$0xf]
        %v3727 = vld [vmem:[#allocation8 + $0x84] sm:$0xf]
        %v3728 = vld [vmem:[#allocation8 + $0x88] sm:$0xf]
        %v3729 = vld [vmem:[#allocation8 + $0x8c] sm:$0xf]
        %v3730 = vld [vmem:[#allocation8 + $0x90] sm:$0xf]
        %v3731 = vld [vmem:[#allocation8 + $0x94] sm:$0xf]
        %v3732 = vld [vmem:[#allocation8 + $0x98] sm:$0xf]
        %v3733 = vld [vmem:[#allocation8 + $0x9c] sm:$0xf]
        %v3734 = vld [vmem:[#allocation8 + $0xa0] sm:$0xf]
        %v3735 = vld [vmem:[#allocation8 + $0xa4] sm:$0xf]
        %v3736 = vld [vmem:[#allocation8 + $0xa8] sm:$0xf]
        %v3737 = vld [vmem:[#allocation8 + $0xac] sm:$0xf]
        %v3738 = vld [vmem:[#allocation8 + $0xb0] sm:$0xf]
        %v3739 = vld [vmem:[#allocation8 + $0xb4] sm:$0xf]
        %v3740 = vld [vmem:[#allocation8 + $0xb8] sm:$0xf]
        %v3741 = vld [vmem:[#allocation8 + $0xbc] sm:$0xf]
        %v3742 = vld [vmem:[#allocation8 + $0xc0] sm:$0xf]
        %v3743 = vld [vmem:[#allocation8 + $0xc4] sm:$0xf]
        %v3744 = vld [vmem:[#allocation8 + $0xc8] sm:$0xf]
        %v3745 = vld [vmem:[#allocation8 + $0xcc] sm:$0xf]
        %v3746 = vld [vmem:[#allocation8 + $0xd0] sm:$0xf]
        %v3747 = vld [vmem:[#allocation8 + $0xd4] sm:$0xf]
        %v3748 = vld [vmem:[#allocation8 + $0xd8] sm:$0xf]
        %v3749 = vld [vmem:[#allocation8 + $0xdc] sm:$0xf]
        %v3750 = vld [vmem:[#allocation8 + $0xe0] sm:$0xf]
        %v3751 = vld [vmem:[#allocation8 + $0xe4] sm:$0xf]
        %v3752 = vld [vmem:[#allocation8 + $0xe8] sm:$0xf]
        %v3753 = vld [vmem:[#allocation8 + $0xec] sm:$0xf]
        %v3754 = vld [vmem:[#allocation8 + $0xf0] sm:$0xf]
        %v3755 = vld [vmem:[#allocation8 + $0xf4] sm:$0xf]
        %v3756 = vld [vmem:[#allocation8 + $0xf8] sm:$0xf]
        %v3757 = vld [vmem:[#allocation8 + $0xfc] sm:$0xf]
        %v3758 = vld [vmem:[#allocation8 + $0x100] sm:$0xf]
        %v3759 = vld [vmem:[#allocation8 + $0x104] sm:$0xf]
        %v3760 = vld [vmem:[#allocation8 + $0x108] sm:$0xf]
        %v3761 = vld [vmem:[#allocation8 + $0x10c] sm:$0xf]
        %v3762 = vld [vmem:[#allocation8 + $0x110] sm:$0xf]
        %v3763 = vld [vmem:[#allocation8 + $0x114] sm:$0xf]
        %v3764 = vld [vmem:[#allocation8 + $0x118] sm:$0xf]
        %v3765 = vld [vmem:[#allocation8 + $0x11c] sm:$0xf]
        %v3766 = vld [vmem:[#allocation8 + $0x120] sm:$0xf]
        %v3767 = vld [vmem:[#allocation8 + $0x124] sm:$0xf]
        %v3768 = vld [vmem:[#allocation8 + $0x128] sm:$0xf]
        %v3769 = vld [vmem:[#allocation8 + $0x12c] sm:$0xf]
        %v3770 = vld [vmem:[#allocation8 + $0x130] sm:$0xf]
        %v3771 = vld [vmem:[#allocation8 + $0x134] sm:$0xf]
        %v3772 = vld [vmem:[#allocation8 + $0x138] sm:$0xf]
        %v3773 = vld [vmem:[#allocation8 + $0x13c] sm:$0xf]
        %v3774 = vld [vmem:[#allocation8 + $0x140] sm:$0xf]
        %v3775 = vld [vmem:[#allocation8 + $0x144] sm:$0xf]
        %v3776 = vld [vmem:[#allocation8 + $0x148] sm:$0xf]
        %v3777 = vld [vmem:[#allocation8 + $0x14c] sm:$0xf]
        %v3778 = vld [vmem:[#allocation8 + $0x150] sm:$0xf]
        %v3779 = vld [vmem:[#allocation8 + $0x154] sm:$0xf]
        %v3780 = vld [vmem:[#allocation8 + $0x158] sm:$0xf]
        %v3781 = vld [vmem:[#allocation8 + $0x15c] sm:$0xf]
        %v3782 = vld [vmem:[#allocation8 + $0x160] sm:$0xf]
        %v3783 = vld [vmem:[#allocation8 + $0x164] sm:$0xf]
        %v3784 = vld [vmem:[#allocation8 + $0x168] sm:$0xf]
        %v3785 = vld [vmem:[#allocation8 + $0x16c] sm:$0xf]
        %v3786 = vld [vmem:[#allocation8 + $0x170] sm:$0xf]
        %v3787 = vld [vmem:[#allocation8 + $0x174] sm:$0xf]
        %v3788 = vld [vmem:[#allocation8 + $0x178] sm:$0xf]
        %v3789 = vld [vmem:[#allocation8 + $0x17c] sm:$0xf]
        %v3790 = vld [vmem:[#allocation8 + $0x180] sm:$0xf]
        %v3791 = vld [vmem:[#allocation8 + $0x184] sm:$0xf]
        %v3792 = vld [vmem:[#allocation8 + $0x188] sm:$0xf]
        %v3793 = vld [vmem:[#allocation8 + $0x18c] sm:$0xf]
        %v3794 = vld [vmem:[#allocation8 + $0x190] sm:$0xf]
        %v3795 = vld [vmem:[#allocation8 + $0x194] sm:$0xf]
        %v3796 = vld [vmem:[#allocation8 + $0x198] sm:$0xf]
        %v3797 = vld [vmem:[#allocation8 + $0x19c] sm:$0xf]
        %v3798 = vld [vmem:[#allocation8 + $0x1a0] sm:$0xf]
        %v3799 = vld [vmem:[#allocation8 + $0x1a4] sm:$0xf]
        %v3800 = vld [vmem:[#allocation8 + $0x1a8] sm:$0xf]
        %v3801 = vld [vmem:[#allocation8 + $0x1ac] sm:$0xf]
        %v3802 = vld [vmem:[#allocation8 + $0x1b0] sm:$0xf]
        %v3803 = vld [vmem:[#allocation8 + $0x1b4] sm:$0xf]
        %v3804 = vld [vmem:[#allocation8 + $0x1b8] sm:$0xf]
        %v3805 = vld [vmem:[#allocation8 + $0x1bc] sm:$0xf]
        %v3806 = vld [vmem:[#allocation8 + $0x1c0] sm:$0xf]
        %v3807 = vld [vmem:[#allocation8 + $0x1c4] sm:$0xf]
        %v3808 = vld [vmem:[#allocation8 + $0x1c8] sm:$0xf]
        %v3809 = vld [vmem:[#allocation8 + $0x1cc] sm:$0xf]
        %v3810 = vld [vmem:[#allocation8 + $0x1d0] sm:$0xf]
        %v3811 = vld [vmem:[#allocation8 + $0x1d4] sm:$0xf]
        %v3812 = vld [vmem:[#allocation8 + $0x1d8] sm:$0xf]
        %v3813 = vld [vmem:[#allocation8 + $0x1dc] sm:$0xf]
        %v3814 = vld [vmem:[#allocation8 + $0x1e0] sm:$0xf]
        %v3815 = vld [vmem:[#allocation8 + $0x1e4] sm:$0xf]
        %v3816 = vld [vmem:[#allocation8 + $0x1e8] sm:$0xf]
        %v3817 = vld [vmem:[#allocation8 + $0x1ec] sm:$0xf]
        %v3818 = vld [vmem:[#allocation8 + $0x1f0] sm:$0xf]
        %v3819 = vld [vmem:[#allocation8 + $0x1f4] sm:$0xf]
        %v3820 = vld [vmem:[#allocation8 + $0x1f8] sm:$0xf]
        %v3821 = vld [vmem:[#allocation8 + $0x1fc] sm:$0xf]
        %v3822 = vld [vmem:[#allocation8 + $0x200] sm:$0xf]
        %v3823 = vld [vmem:[#allocation8 + $0x204] sm:$0xf]
        %v3824 = vld [vmem:[#allocation8 + $0x208] sm:$0xf]
        %v3825 = vld [vmem:[#allocation8 + $0x20c] sm:$0xf]
        %v3826 = vld [vmem:[#allocation8 + $0x210] sm:$0xf]
        %v3827 = vld [vmem:[#allocation8 + $0x214] sm:$0xf]
        %v3828 = vld [vmem:[#allocation8 + $0x218] sm:$0xf]
        %v3829 = vld [vmem:[#allocation8 + $0x21c] sm:$0xf]
        %v3830 = vld [vmem:[#allocation8 + $0x220] sm:$0xf]
        %v3831 = vld [vmem:[#allocation8 + $0x224] sm:$0xf]
        %v3832 = vld [vmem:[#allocation8 + $0x228] sm:$0xf]
        %v3833 = vld [vmem:[#allocation8 + $0x22c] sm:$0xf]
        %v3834 = vld [vmem:[#allocation8 + $0x230] sm:$0xf]
        %v3835 = vld [vmem:[#allocation8 + $0x234] sm:$0xf]
        %v3836 = vld [vmem:[#allocation8 + $0x238] sm:$0xf]
        %v3837 = vld [vmem:[#allocation8 + $0x23c] sm:$0xf]
        %v3998 = vunpack.c.l.b16 %v3534
        %v3999 = vunpack.c.h.b16 %v3534
        %v4000 = vunpack.c.l.b16 %v3535
        %v4001 = vunpack.c.h.b16 %v3535
        %v4002 = vunpack.c.l.b16 %v3536
        %v4003 = vunpack.c.h.b16 %v3536
        %v4004 = vunpack.c.l.b16 %v3537
        %v4005 = vunpack.c.h.b16 %v3537
        %v4006 = vunpack.c.l.b16 %v3538
        %v4007 = vunpack.c.l.b16 %v3539
        %v4008 = vunpack.c.h.b16 %v3539
        %v4009 = vunpack.c.l.b16 %v3540
        %v4010 = vunpack.c.h.b16 %v3540
        %v4011 = vunpack.c.l.b16 %v3541
        %v4012 = vunpack.c.h.b16 %v3541
        %v4013 = vunpack.c.l.b16 %v3542
        %v4014 = vunpack.c.h.b16 %v3542
        %v4015 = vunpack.c.l.b16 %v3543
        %v4016 = vunpack.c.l.b16 %v3544
        %v4017 = vunpack.c.h.b16 %v3544
        %v4018 = vunpack.c.l.b16 %v3545
        %v4019 = vunpack.c.h.b16 %v3545
        %v4020 = vunpack.c.l.b16 %v3546
        %v4021 = vunpack.c.h.b16 %v3546
        %v4022 = vunpack.c.l.b16 %v3547
        %v4023 = vunpack.c.h.b16 %v3547
        %v4024 = vunpack.c.l.b16 %v3548
        %v4025 = vunpack.c.l.b16 %v3549
        %v4026 = vunpack.c.h.b16 %v3549
        %v4027 = vunpack.c.l.b16 %v3550
        %v4028 = vunpack.c.h.b16 %v3550
        %v4029 = vunpack.c.l.b16 %v3551
        %v4030 = vunpack.c.h.b16 %v3551
        %v4031 = vunpack.c.l.b16 %v3552
        %v4032 = vunpack.c.h.b16 %v3552
        %v4033 = vunpack.c.l.b16 %v3553
        %v4034 = vunpack.c.l.b16 %v3554
        %v4035 = vunpack.c.h.b16 %v3554
        %v4036 = vunpack.c.l.b16 %v3555
        %v4037 = vunpack.c.h.b16 %v3555
        %v4038 = vunpack.c.l.b16 %v3556
        %v4039 = vunpack.c.h.b16 %v3556
        %v4040 = vunpack.c.l.b16 %v3557
        %v4041 = vunpack.c.h.b16 %v3557
        %v4042 = vunpack.c.l.b16 %v3558
        %v4043 = vunpack.c.l.b16 %v3559
        %v4044 = vunpack.c.h.b16 %v3559
        %v4045 = vunpack.c.l.b16 %v3560
        %v4046 = vunpack.c.h.b16 %v3560
        %v4047 = vunpack.c.l.b16 %v3561
        %v4048 = vunpack.c.h.b16 %v3561
        %v4049 = vunpack.c.l.b16 %v3562
        %v4050 = vunpack.c.h.b16 %v3562
        %v4051 = vunpack.c.l.b16 %v3563
        %v4052 = vunpack.c.l.b16 %v3564
        %v4053 = vunpack.c.h.b16 %v3564
        %v4054 = vunpack.c.l.b16 %v3565
        %v4055 = vunpack.c.h.b16 %v3565
        %v4056 = vunpack.c.l.b16 %v3566
        %v4057 = vunpack.c.h.b16 %v3566
        %v4058 = vunpack.c.l.b16 %v3567
        %v4059 = vunpack.c.h.b16 %v3567
        %v4060 = vunpack.c.l.b16 %v3568
        %v4061 = vunpack.c.l.b16 %v3569
        %v4062 = vunpack.c.h.b16 %v3569
        %v4063 = vunpack.c.l.b16 %v3570
        %v4064 = vunpack.c.h.b16 %v3570
        %v4065 = vunpack.c.l.b16 %v3571
        %v4066 = vunpack.c.h.b16 %v3571
        %v4067 = vunpack.c.l.b16 %v3572
        %v4068 = vunpack.c.h.b16 %v3572
        %v4069 = vunpack.c.l.b16 %v3573
        %v4070 = vunpack.c.l.b16 %v3574
        %v4071 = vunpack.c.h.b16 %v3574
        %v4072 = vunpack.c.l.b16 %v3575
        %v4073 = vunpack.c.h.b16 %v3575
        %v4074 = vunpack.c.l.b16 %v3576
        %v4075 = vunpack.c.h.b16 %v3576
        %v4076 = vunpack.c.l.b16 %v3577
        %v4077 = vunpack.c.h.b16 %v3577
        %v4078 = vunpack.c.l.b16 %v3578
        %v4079 = vunpack.c.l.b16 %v3579
        %v4080 = vunpack.c.h.b16 %v3579
        %v4081 = vunpack.c.l.b16 %v3580
        %v4082 = vunpack.c.h.b16 %v3580
        %v4083 = vunpack.c.l.b16 %v3581
        %v4084 = vunpack.c.h.b16 %v3581
        %v4085 = vunpack.c.l.b16 %v3582
        %v4086 = vunpack.c.h.b16 %v3582
        %v4087 = vunpack.c.l.b16 %v3583
        %v4088 = vunpack.c.l.b16 %v3584
        %v4089 = vunpack.c.h.b16 %v3584
        %v4090 = vunpack.c.l.b16 %v3585
        %v4091 = vunpack.c.h.b16 %v3585
        %v4092 = vunpack.c.l.b16 %v3586
        %v4093 = vunpack.c.h.b16 %v3586
        %v4094 = vunpack.c.l.b16 %v3587
        %v4095 = vunpack.c.h.b16 %v3587
        %v4096 = vunpack.c.l.b16 %v3588
        %v4097 = vunpack.c.l.b16 %v3589
        %v4098 = vunpack.c.h.b16 %v3589
        %v4099 = vunpack.c.l.b16 %v3590
        %v4100 = vunpack.c.h.b16 %v3590
        %v4101 = vunpack.c.l.b16 %v3591
        %v4102 = vunpack.c.h.b16 %v3591
        %v4103 = vunpack.c.l.b16 %v3592
        %v4104 = vunpack.c.h.b16 %v3592
        %v4105 = vunpack.c.l.b16 %v3593
        %v4106 = vunpack.c.l.b16 %v3594
        %v4107 = vunpack.c.h.b16 %v3594
        %v4108 = vunpack.c.l.b16 %v3595
        %v4109 = vunpack.c.h.b16 %v3595
        %v4110 = vunpack.c.l.b16 %v3596
        %v4111 = vunpack.c.h.b16 %v3596
        %v4112 = vunpack.c.l.b16 %v3597
        %v4113 = vunpack.c.h.b16 %v3597
        %v4114 = vunpack.c.l.b16 %v3598
        %v4115 = vunpack.c.l.b16 %v3599
        %v4116 = vunpack.c.h.b16 %v3599
        %v4117 = vunpack.c.l.b16 %v3600
        %v4118 = vunpack.c.h.b16 %v3600
        %v4119 = vunpack.c.l.b16 %v3601
        %v4120 = vunpack.c.h.b16 %v3601
        %v4121 = vunpack.c.l.b16 %v3602
        %v4122 = vunpack.c.h.b16 %v3602
        %v4123 = vunpack.c.l.b16 %v3603
        %v4124 = vunpack.c.l.b16 %v3604
        %v4125 = vunpack.c.h.b16 %v3604
        %v4126 = vunpack.c.l.b16 %v3605
        %v4127 = vunpack.c.h.b16 %v3605
        %v4128 = vunpack.c.l.b16 %v3606
        %v4129 = vunpack.c.h.b16 %v3606
        %v4130 = vunpack.c.l.b16 %v3607
        %v4131 = vunpack.c.h.b16 %v3607
        %v4132 = vunpack.c.l.b16 %v3608
        %v4133 = vunpack.c.l.b16 %v3609
        %v4134 = vunpack.c.h.b16 %v3609
        %v4135 = vunpack.c.l.b16 %v3610
        %v4136 = vunpack.c.h.b16 %v3610
        %v4137 = vunpack.c.l.b16 %v3611
        %v4138 = vunpack.c.h.b16 %v3611
        %v4139 = vunpack.c.l.b16 %v3612
        %v4140 = vunpack.c.h.b16 %v3612
        %v4141 = vunpack.c.l.b16 %v3613
        %v4142 = vunpack.c.l.b16 %v3614
        %v4143 = vunpack.c.h.b16 %v3614
        %v4144 = vunpack.c.l.b16 %v3615
        %v4145 = vunpack.c.h.b16 %v3615
        %v4146 = vunpack.c.l.b16 %v3616
        %v4147 = vunpack.c.h.b16 %v3616
        %v4148 = vunpack.c.l.b16 %v3617
        %v4149 = vunpack.c.h.b16 %v3617
        %v4150 = vunpack.c.l.b16 %v3618
        %v4151 = vunpack.c.l.b16 %v3619
        %v4152 = vunpack.c.h.b16 %v3619
        %v4153 = vunpack.c.l.b16 %v3620
        %v4154 = vunpack.c.h.b16 %v3620
        %v4155 = vunpack.c.l.b16 %v3621
        %v4156 = vunpack.c.h.b16 %v3621
        %v4157 = vunpack.c.l.b16 %v3622
        %v4158 = vunpack.c.h.b16 %v3622
        %v4159 = vunpack.c.l.b16 %v3623
        %v4160 = vunpack.c.l.b16 %v3624
        %v4161 = vunpack.c.h.b16 %v3624
        %v4162 = vunpack.c.l.b16 %v3625
        %v4163 = vunpack.c.h.b16 %v3625
        %v4164 = vunpack.c.l.b16 %v3626
        %v4165 = vunpack.c.h.b16 %v3626
        %v4166 = vunpack.c.l.b16 %v3627
        %v4167 = vunpack.c.h.b16 %v3627
        %v4168 = vunpack.c.l.b16 %v3628
        %v4169 = vunpack.c.l.b16 %v3629
        %v4170 = vunpack.c.h.b16 %v3629
        %v4171 = vunpack.c.l.b16 %v3630
        %v4172 = vunpack.c.h.b16 %v3630
        %v4173 = vunpack.c.l.b16 %v3631
        %v4174 = vunpack.c.h.b16 %v3631
        %v4175 = vunpack.c.l.b16 %v3632
        %v4176 = vunpack.c.h.b16 %v3632
        %v4177 = vunpack.c.l.b16 %v3633
        %v4178 = vunpack.c.l.b16 %v3634
        %v4179 = vunpack.c.h.b16 %v3634
        %v4180 = vunpack.c.l.b16 %v3635
        %v4181 = vunpack.c.h.b16 %v3635
        %v4182 = vunpack.c.l.b16 %v3636
        %v4183 = vunpack.c.h.b16 %v3636
        %v4184 = vunpack.c.l.b16 %v3637
        %v4185 = vunpack.c.h.b16 %v3637
        %v4186 = vunpack.c.l.b16 %v3638
        %v4187 = vunpack.c.l.b16 %v3639
        %v4188 = vunpack.c.h.b16 %v3639
        %v4189 = vunpack.c.l.b16 %v3640
        %v4190 = vunpack.c.h.b16 %v3640
        %v4191 = vunpack.c.l.b16 %v3641
        %v4192 = vunpack.c.h.b16 %v3641
        %v4193 = vunpack.c.l.b16 %v3642
        %v4194 = vunpack.c.h.b16 %v3642
        %v4195 = vunpack.c.l.b16 %v3643
        %v4196 = vunpack.c.l.b16 %v3644
        %v4197 = vunpack.c.h.b16 %v3644
        %v4198 = vunpack.c.l.b16 %v3645
        %v4199 = vunpack.c.h.b16 %v3645
        %v4200 = vunpack.c.l.b16 %v3646
        %v4201 = vunpack.c.h.b16 %v3646
        %v4202 = vunpack.c.l.b16 %v3647
        %v4203 = vunpack.c.h.b16 %v3647
        %v4204 = vunpack.c.l.b16 %v3648
        %v4205 = vunpack.c.l.b16 %v3649
        %v4206 = vunpack.c.h.b16 %v3649
        %v4207 = vunpack.c.l.b16 %v3650
        %v4208 = vunpack.c.h.b16 %v3650
        %v4209 = vunpack.c.l.b16 %v3651
        %v4210 = vunpack.c.h.b16 %v3651
        %v4211 = vunpack.c.l.b16 %v3652
        %v4212 = vunpack.c.h.b16 %v3652
        %v4213 = vunpack.c.l.b16 %v3653
        %v4214 = vunpack.c.l.b16 %v3654
        %v4215 = vunpack.c.h.b16 %v3654
        %v4216 = vunpack.c.l.b16 %v3655
        %v4217 = vunpack.c.h.b16 %v3655
        %v4218 = vunpack.c.l.b16 %v3656
        %v4219 = vunpack.c.h.b16 %v3656
        %v4220 = vunpack.c.l.b16 %v3657
        %v4221 = vunpack.c.h.b16 %v3657
        %v4222 = vunpack.c.l.b16 %v3658
        %v4223 = vunpack.c.l.b16 %v3659
        %v4224 = vunpack.c.h.b16 %v3659
        %v4225 = vunpack.c.l.b16 %v3660
        %v4226 = vunpack.c.h.b16 %v3660
        %v4227 = vunpack.c.l.b16 %v3661
        %v4228 = vunpack.c.h.b16 %v3661
        %v4229 = vunpack.c.l.b16 %v3662
        %v4230 = vunpack.c.h.b16 %v3662
        %v4231 = vunpack.c.l.b16 %v3663
        %v4232 = vunpack.c.l.b16 %v3664
        %v4233 = vunpack.c.h.b16 %v3664
        %v4234 = vunpack.c.l.b16 %v3665
        %v4235 = vunpack.c.h.b16 %v3665
        %v4236 = vunpack.c.l.b16 %v3666
        %v4237 = vunpack.c.h.b16 %v3666
        %v4238 = vunpack.c.l.b16 %v3667
        %v4239 = vunpack.c.h.b16 %v3667
        %v4240 = vunpack.c.l.b16 %v3668
        %v4241 = vunpack.c.l.b16 %v3669
        %v4242 = vunpack.c.h.b16 %v3669
        %v4243 = vunpack.c.l.b16 %v3670
        %v4244 = vunpack.c.h.b16 %v3670
        %v4245 = vunpack.c.l.b16 %v3671
        %v4246 = vunpack.c.h.b16 %v3671
        %v4247 = vunpack.c.l.b16 %v3672
        %v4248 = vunpack.c.h.b16 %v3672
        %v4249 = vunpack.c.l.b16 %v3673
        %v4250 = vunpack.c.l.b16 %v3674
        %v4251 = vunpack.c.h.b16 %v3674
        %v4252 = vunpack.c.l.b16 %v3675
        %v4253 = vunpack.c.h.b16 %v3675
        %v4254 = vunpack.c.l.b16 %v3676
        %v4255 = vunpack.c.h.b16 %v3676
        %v4256 = vunpack.c.l.b16 %v3677
        %v4257 = vunpack.c.h.b16 %v3677
        %v4258 = vunpack.c.l.b16 %v3678
        %v4259 = vunpack.c.l.b16 %v3679
        %v4260 = vunpack.c.h.b16 %v3679
        %v4261 = vunpack.c.l.b16 %v3680
        %v4262 = vunpack.c.h.b16 %v3680
        %v4263 = vunpack.c.l.b16 %v3681
        %v4264 = vunpack.c.h.b16 %v3681
        %v4265 = vunpack.c.l.b16 %v3682
        %v4266 = vunpack.c.h.b16 %v3682
        %v4267 = vunpack.c.l.b16 %v3683
        %v4268 = vunpack.c.l.b16 %v3684
        %v4269 = vunpack.c.h.b16 %v3684
        %v4270 = vunpack.c.l.b16 %v3685
        %v4271 = vunpack.c.h.b16 %v3685
        %v4272 = vunpack.c.l.b16 %v3686
        %v4273 = vunpack.c.h.b16 %v3686
        %v4274 = vunpack.c.l.b16 %v3687
        %v4275 = vunpack.c.h.b16 %v3687
        %v4276 = vunpack.c.l.b16 %v3688
        %v4277 = vunpack.c.l.b16 %v3689
        %v4278 = vunpack.c.h.b16 %v3689
        %v4279 = vunpack.c.l.b16 %v3690
        %v4280 = vunpack.c.h.b16 %v3690
        %v4281 = vunpack.c.l.b16 %v3691
        %v4282 = vunpack.c.h.b16 %v3691
        %v4283 = vunpack.c.l.b16 %v3692
        %v4284 = vunpack.c.h.b16 %v3692
        %v4285 = vunpack.c.l.b16 %v3693
        %v4286 = vpack.c.b16 %v4007, %v3998
        %v4287 = vpack.c.b16 %v4008, %v3999
        %v4288 = vpack.c.b16 %v4009, %v4000
        %v4289 = vpack.c.b16 %v4010, %v4001
        %v4290 = vpack.c.b16 %v4011, %v4002
        %v4291 = vpack.c.b16 %v4012, %v4003
        %v4292 = vpack.c.b16 %v4013, %v4004
        %v4293 = vpack.c.b16 %v4014, %v4005
        %v4294 = vpack.c.b16 %v4015, %v4006
        %v4295 = vpack.c.b16 %v4025, %v4016
        %v4296 = vpack.c.b16 %v4026, %v4017
        %v4297 = vpack.c.b16 %v4027, %v4018
        %v4298 = vpack.c.b16 %v4028, %v4019
        %v4299 = vpack.c.b16 %v4029, %v4020
        %v4300 = vpack.c.b16 %v4030, %v4021
        %v4301 = vpack.c.b16 %v4031, %v4022
        %v4302 = vpack.c.b16 %v4032, %v4023
        %v4303 = vpack.c.b16 %v4033, %v4024
        %v4304 = vpack.c.b16 %v4043, %v4034
        %v4305 = vpack.c.b16 %v4044, %v4035
        %v4306 = vpack.c.b16 %v4045, %v4036
        %v4307 = vpack.c.b16 %v4046, %v4037
        %v4308 = vpack.c.b16 %v4047, %v4038
        %v4309 = vpack.c.b16 %v4048, %v4039
        %v4310 = vpack.c.b16 %v4049, %v4040
        %v4311 = vpack.c.b16 %v4050, %v4041
        %v4312 = vpack.c.b16 %v4051, %v4042
        %v4313 = vpack.c.b16 %v4061, %v4052
        %v4314 = vpack.c.b16 %v4062, %v4053
        %v4315 = vpack.c.b16 %v4063, %v4054
        %v4316 = vpack.c.b16 %v4064, %v4055
        %v4317 = vpack.c.b16 %v4065, %v4056
        %v4318 = vpack.c.b16 %v4066, %v4057
        %v4319 = vpack.c.b16 %v4067, %v4058
        %v4320 = vpack.c.b16 %v4068, %v4059
        %v4321 = vpack.c.b16 %v4069, %v4060
        %v4322 = vpack.c.b16 %v4079, %v4070
        %v4323 = vpack.c.b16 %v4080, %v4071
        %v4324 = vpack.c.b16 %v4081, %v4072
        %v4325 = vpack.c.b16 %v4082, %v4073
        %v4326 = vpack.c.b16 %v4083, %v4074
        %v4327 = vpack.c.b16 %v4084, %v4075
        %v4328 = vpack.c.b16 %v4085, %v4076
        %v4329 = vpack.c.b16 %v4086, %v4077
        %v4330 = vpack.c.b16 %v4087, %v4078
        %v4331 = vpack.c.b16 %v4097, %v4088
        %v4332 = vpack.c.b16 %v4098, %v4089
        %v4333 = vpack.c.b16 %v4099, %v4090
        %v4334 = vpack.c.b16 %v4100, %v4091
        %v4335 = vpack.c.b16 %v4101, %v4092
        %v4336 = vpack.c.b16 %v4102, %v4093
        %v4337 = vpack.c.b16 %v4103, %v4094
        %v4338 = vpack.c.b16 %v4104, %v4095
        %v4339 = vpack.c.b16 %v4105, %v4096
        %v4340 = vpack.c.b16 %v4115, %v4106
        %v4341 = vpack.c.b16 %v4116, %v4107
        %v4342 = vpack.c.b16 %v4117, %v4108
        %v4343 = vpack.c.b16 %v4118, %v4109
        %v4344 = vpack.c.b16 %v4119, %v4110
        %v4345 = vpack.c.b16 %v4120, %v4111
        %v4346 = vpack.c.b16 %v4121, %v4112
        %v4347 = vpack.c.b16 %v4122, %v4113
        %v4348 = vpack.c.b16 %v4123, %v4114
        %v4349 = vpack.c.b16 %v4133, %v4124
        %v4350 = vpack.c.b16 %v4134, %v4125
        %v4351 = vpack.c.b16 %v4135, %v4126
        %v4352 = vpack.c.b16 %v4136, %v4127
        %v4353 = vpack.c.b16 %v4137, %v4128
        %v4354 = vpack.c.b16 %v4138, %v4129
        %v4355 = vpack.c.b16 %v4139, %v4130
        %v4356 = vpack.c.b16 %v4140, %v4131
        %v4357 = vpack.c.b16 %v4141, %v4132
        %v4358 = vpack.c.b16 %v4151, %v4142
        %v4359 = vpack.c.b16 %v4152, %v4143
        %v4360 = vpack.c.b16 %v4153, %v4144
        %v4361 = vpack.c.b16 %v4154, %v4145
        %v4362 = vpack.c.b16 %v4155, %v4146
        %v4363 = vpack.c.b16 %v4156, %v4147
        %v4364 = vpack.c.b16 %v4157, %v4148
        %v4365 = vpack.c.b16 %v4158, %v4149
        %v4366 = vpack.c.b16 %v4159, %v4150
        %v4367 = vpack.c.b16 %v4169, %v4160
        %v4368 = vpack.c.b16 %v4170, %v4161
        %v4369 = vpack.c.b16 %v4171, %v4162
        %v4370 = vpack.c.b16 %v4172, %v4163
        %v4371 = vpack.c.b16 %v4173, %v4164
        %v4372 = vpack.c.b16 %v4174, %v4165
        %v4373 = vpack.c.b16 %v4175, %v4166
        %v4374 = vpack.c.b16 %v4176, %v4167
        %v4375 = vpack.c.b16 %v4177, %v4168
        %v4376 = vpack.c.b16 %v4187, %v4178
        %v4377 = vpack.c.b16 %v4188, %v4179
        %v4378 = vpack.c.b16 %v4189, %v4180
        %v4379 = vpack.c.b16 %v4190, %v4181
        %v4380 = vpack.c.b16 %v4191, %v4182
        %v4381 = vpack.c.b16 %v4192, %v4183
        %v4382 = vpack.c.b16 %v4193, %v4184
        %v4383 = vpack.c.b16 %v4194, %v4185
        %v4384 = vpack.c.b16 %v4195, %v4186
        %v4385 = vpack.c.b16 %v4205, %v4196
        %v4386 = vpack.c.b16 %v4206, %v4197
        %v4387 = vpack.c.b16 %v4207, %v4198
        %v4388 = vpack.c.b16 %v4208, %v4199
        %v4389 = vpack.c.b16 %v4209, %v4200
        %v4390 = vpack.c.b16 %v4210, %v4201
        %v4391 = vpack.c.b16 %v4211, %v4202
        %v4392 = vpack.c.b16 %v4212, %v4203
        %v4393 = vpack.c.b16 %v4213, %v4204
        %v4394 = vpack.c.b16 %v4223, %v4214
        %v4395 = vpack.c.b16 %v4224, %v4215
        %v4396 = vpack.c.b16 %v4225, %v4216
        %v4397 = vpack.c.b16 %v4226, %v4217
        %v4398 = vpack.c.b16 %v4227, %v4218
        %v4399 = vpack.c.b16 %v4228, %v4219
        %v4400 = vpack.c.b16 %v4229, %v4220
        %v4401 = vpack.c.b16 %v4230, %v4221
        %v4402 = vpack.c.b16 %v4231, %v4222
        %v4403 = vpack.c.b16 %v4241, %v4232
        %v4404 = vpack.c.b16 %v4242, %v4233
        %v4405 = vpack.c.b16 %v4243, %v4234
        %v4406 = vpack.c.b16 %v4244, %v4235
        %v4407 = vpack.c.b16 %v4245, %v4236
        %v4408 = vpack.c.b16 %v4246, %v4237
        %v4409 = vpack.c.b16 %v4247, %v4238
        %v4410 = vpack.c.b16 %v4248, %v4239
        %v4411 = vpack.c.b16 %v4249, %v4240
        %v4412 = vpack.c.b16 %v4259, %v4250
        %v4413 = vpack.c.b16 %v4260, %v4251
        %v4414 = vpack.c.b16 %v4261, %v4252
        %v4415 = vpack.c.b16 %v4262, %v4253
        %v4416 = vpack.c.b16 %v4263, %v4254
        %v4417 = vpack.c.b16 %v4264, %v4255
        %v4418 = vpack.c.b16 %v4265, %v4256
        %v4419 = vpack.c.b16 %v4266, %v4257
        %v4420 = vpack.c.b16 %v4267, %v4258
        %v4421 = vpack.c.b16 %v4277, %v4268
        %v4422 = vpack.c.b16 %v4278, %v4269
        %v4423 = vpack.c.b16 %v4279, %v4270
        %v4424 = vpack.c.b16 %v4280, %v4271
        %v4425 = vpack.c.b16 %v4281, %v4272
        %v4426 = vpack.c.b16 %v4282, %v4273
        %v4427 = vpack.c.b16 %v4283, %v4274
        %v4428 = vpack.c.b16 %v4284, %v4275
        %v4429 = vpack.c.b16 %v4285, %v4276
        %v4718 = vunpack.c.l.b16 %v3694
        %v4719 = vunpack.c.l.b16 %v3695
        %v4720 = vunpack.c.l.b16 %v3696
        %v4721 = vunpack.c.l.b16 %v3697
        %v4722 = vunpack.c.l.b16 %v3698
        %v4723 = vunpack.c.l.b16 %v3699
        %v4724 = vunpack.c.l.b16 %v3700
        %v4725 = vunpack.c.l.b16 %v3701
        %v4726 = vunpack.c.l.b16 %v3702
        %v4727 = vunpack.c.l.b16 %v3703
        %v4728 = vunpack.c.l.b16 %v3704
        %v4729 = vunpack.c.l.b16 %v3705
        %v4730 = vunpack.c.l.b16 %v3706
        %v4731 = vunpack.c.l.b16 %v3707
        %v4732 = vunpack.c.l.b16 %v3708
        %v4733 = vunpack.c.l.b16 %v3709
        %v4734 = vunpack.c.l.b16 %v3710
        %v4735 = vunpack.c.l.b16 %v3711
        %v4736 = vunpack.c.l.b16 %v3712
        %v4737 = vunpack.c.l.b16 %v3713
        %v4738 = vunpack.c.l.b16 %v3714
        %v4739 = vunpack.c.l.b16 %v3715
        %v4740 = vunpack.c.l.b16 %v3716
        %v4741 = vunpack.c.l.b16 %v3717
        %v4742 = vunpack.c.l.b16 %v3718
        %v4743 = vunpack.c.l.b16 %v3719
        %v4744 = vunpack.c.l.b16 %v3720
        %v4745 = vunpack.c.l.b16 %v3721
        %v4746 = vunpack.c.l.b16 %v3722
        %v4747 = vunpack.c.l.b16 %v3723
        %v4748 = vunpack.c.l.b16 %v3724
        %v4749 = vunpack.c.l.b16 %v3725
        %v4750 = vunpack.c.l.b16 %v3726
        %v4751 = vunpack.c.l.b16 %v3727
        %v4752 = vunpack.c.l.b16 %v3728
        %v4753 = vunpack.c.l.b16 %v3729
        %v4754 = vunpack.c.l.b16 %v3730
        %v4755 = vunpack.c.l.b16 %v3731
        %v4756 = vunpack.c.l.b16 %v3732
        %v4757 = vunpack.c.l.b16 %v3733
        %v4758 = vunpack.c.l.b16 %v3734
        %v4759 = vunpack.c.l.b16 %v3735
        %v4760 = vunpack.c.l.b16 %v3736
        %v4761 = vunpack.c.l.b16 %v3737
        %v4762 = vunpack.c.l.b16 %v3738
        %v4763 = vunpack.c.l.b16 %v3739
        %v4764 = vunpack.c.l.b16 %v3740
        %v4765 = vunpack.c.l.b16 %v3741
        %v4766 = vunpack.c.l.b16 %v3742
        %v4767 = vunpack.c.l.b16 %v3743
        %v4768 = vunpack.c.l.b16 %v3744
        %v4769 = vunpack.c.l.b16 %v3745
        %v4770 = vunpack.c.l.b16 %v3746
        %v4771 = vunpack.c.l.b16 %v3747
        %v4772 = vunpack.c.l.b16 %v3748
        %v4773 = vunpack.c.l.b16 %v3749
        %v4774 = vunpack.c.l.b16 %v3750
        %v4775 = vunpack.c.l.b16 %v3751
        %v4776 = vunpack.c.l.b16 %v3752
        %v4777 = vunpack.c.l.b16 %v3753
        %v4778 = vunpack.c.l.b16 %v3754
        %v4779 = vunpack.c.l.b16 %v3755
        %v4780 = vunpack.c.l.b16 %v3756
        %v4781 = vunpack.c.l.b16 %v3757
        %v4782 = vunpack.c.l.b16 %v3758
        %v4783 = vunpack.c.l.b16 %v3759
        %v4784 = vunpack.c.l.b16 %v3760
        %v4785 = vunpack.c.l.b16 %v3761
        %v4786 = vunpack.c.l.b16 %v3762
        %v4787 = vunpack.c.l.b16 %v3763
        %v4788 = vunpack.c.l.b16 %v3764
        %v4789 = vunpack.c.l.b16 %v3765
        %v4790 = vunpack.c.l.b16 %v3766
        %v4791 = vunpack.c.l.b16 %v3767
        %v4792 = vunpack.c.l.b16 %v3768
        %v4793 = vunpack.c.l.b16 %v3769
        %v4794 = vunpack.c.l.b16 %v3770
        %v4795 = vunpack.c.l.b16 %v3771
        %v4796 = vunpack.c.l.b16 %v3772
        %v4797 = vunpack.c.l.b16 %v3773
        %v4798 = vunpack.c.l.b16 %v3774
        %v4799 = vunpack.c.l.b16 %v3775
        %v4800 = vunpack.c.l.b16 %v3776
        %v4801 = vunpack.c.l.b16 %v3777
        %v4802 = vunpack.c.l.b16 %v3778
        %v4803 = vunpack.c.l.b16 %v3779
        %v4804 = vunpack.c.l.b16 %v3780
        %v4805 = vunpack.c.l.b16 %v3781
        %v4806 = vunpack.c.l.b16 %v3782
        %v4807 = vunpack.c.l.b16 %v3783
        %v4808 = vunpack.c.l.b16 %v3784
        %v4809 = vunpack.c.l.b16 %v3785
        %v4810 = vunpack.c.l.b16 %v3786
        %v4811 = vunpack.c.l.b16 %v3787
        %v4812 = vunpack.c.l.b16 %v3788
        %v4813 = vunpack.c.l.b16 %v3789
        %v4814 = vunpack.c.l.b16 %v3790
        %v4815 = vunpack.c.l.b16 %v3791
        %v4816 = vunpack.c.l.b16 %v3792
        %v4817 = vunpack.c.l.b16 %v3793
        %v4818 = vunpack.c.l.b16 %v3794
        %v4819 = vunpack.c.l.b16 %v3795
        %v4820 = vunpack.c.l.b16 %v3796
        %v4821 = vunpack.c.l.b16 %v3797
        %v4822 = vunpack.c.l.b16 %v3798
        %v4823 = vunpack.c.l.b16 %v3799
        %v4824 = vunpack.c.l.b16 %v3800
        %v4825 = vunpack.c.l.b16 %v3801
        %v4826 = vunpack.c.l.b16 %v3802
        %v4827 = vunpack.c.l.b16 %v3803
        %v4828 = vunpack.c.l.b16 %v3804
        %v4829 = vunpack.c.l.b16 %v3805
        %v4830 = vunpack.c.l.b16 %v3806
        %v4831 = vunpack.c.l.b16 %v3807
        %v4832 = vunpack.c.l.b16 %v3808
        %v4833 = vunpack.c.l.b16 %v3809
        %v4834 = vunpack.c.l.b16 %v3810
        %v4835 = vunpack.c.l.b16 %v3811
        %v4836 = vunpack.c.l.b16 %v3812
        %v4837 = vunpack.c.l.b16 %v3813
        %v4838 = vunpack.c.l.b16 %v3814
        %v4839 = vunpack.c.l.b16 %v3815
        %v4840 = vunpack.c.l.b16 %v3816
        %v4841 = vunpack.c.l.b16 %v3817
        %v4842 = vunpack.c.l.b16 %v3818
        %v4843 = vunpack.c.l.b16 %v3819
        %v4844 = vunpack.c.l.b16 %v3820
        %v4845 = vunpack.c.l.b16 %v3821
        %v4846 = vunpack.c.l.b16 %v3822
        %v4847 = vunpack.c.l.b16 %v3823
        %v4848 = vunpack.c.l.b16 %v3824
        %v4849 = vunpack.c.l.b16 %v3825
        %v4850 = vunpack.c.l.b16 %v3826
        %v4851 = vunpack.c.l.b16 %v3827
        %v4852 = vunpack.c.l.b16 %v3828
        %v4853 = vunpack.c.l.b16 %v3829
        %v4854 = vunpack.c.l.b16 %v3830
        %v4855 = vunpack.c.l.b16 %v3831
        %v4856 = vunpack.c.l.b16 %v3832
        %v4857 = vunpack.c.l.b16 %v3833
        %v4858 = vunpack.c.l.b16 %v3834
        %v4859 = vunpack.c.l.b16 %v3835
        %v4860 = vunpack.c.l.b16 %v3836
        %v4861 = vunpack.c.l.b16 %v3837
        %v4862 = vpack.c.b16 %v4719, %v4718
        %v4863 = vpack.c.b16 %v4721, %v4720
        %v4864 = vpack.c.b16 %v4723, %v4722
        %v4865 = vpack.c.b16 %v4725, %v4724
        %v4866 = vpack.c.b16 %v4727, %v4726
        %v4867 = vpack.c.b16 %v4729, %v4728
        %v4868 = vpack.c.b16 %v4731, %v4730
        %v4869 = vpack.c.b16 %v4733, %v4732
        %v4870 = vpack.c.b16 %v4735, %v4734
        %v4871 = vpack.c.b16 %v4737, %v4736
        %v4872 = vpack.c.b16 %v4739, %v4738
        %v4873 = vpack.c.b16 %v4741, %v4740
        %v4874 = vpack.c.b16 %v4743, %v4742
        %v4875 = vpack.c.b16 %v4745, %v4744
        %v4876 = vpack.c.b16 %v4747, %v4746
        %v4877 = vpack.c.b16 %v4749, %v4748
        %v4878 = vpack.c.b16 %v4751, %v4750
        %v4879 = vpack.c.b16 %v4753, %v4752
        %v4880 = vpack.c.b16 %v4755, %v4754
        %v4881 = vpack.c.b16 %v4757, %v4756
        %v4882 = vpack.c.b16 %v4759, %v4758
        %v4883 = vpack.c.b16 %v4761, %v4760
        %v4884 = vpack.c.b16 %v4763, %v4762
        %v4885 = vpack.c.b16 %v4765, %v4764
        %v4886 = vpack.c.b16 %v4767, %v4766
        %v4887 = vpack.c.b16 %v4769, %v4768
        %v4888 = vpack.c.b16 %v4771, %v4770
        %v4889 = vpack.c.b16 %v4773, %v4772
        %v4890 = vpack.c.b16 %v4775, %v4774
        %v4891 = vpack.c.b16 %v4777, %v4776
        %v4892 = vpack.c.b16 %v4779, %v4778
        %v4893 = vpack.c.b16 %v4781, %v4780
        %v4894 = vpack.c.b16 %v4783, %v4782
        %v4895 = vpack.c.b16 %v4785, %v4784
        %v4896 = vpack.c.b16 %v4787, %v4786
        %v4897 = vpack.c.b16 %v4789, %v4788
        %v4898 = vpack.c.b16 %v4791, %v4790
        %v4899 = vpack.c.b16 %v4793, %v4792
        %v4900 = vpack.c.b16 %v4795, %v4794
        %v4901 = vpack.c.b16 %v4797, %v4796
        %v4902 = vpack.c.b16 %v4799, %v4798
        %v4903 = vpack.c.b16 %v4801, %v4800
        %v4904 = vpack.c.b16 %v4803, %v4802
        %v4905 = vpack.c.b16 %v4805, %v4804
        %v4906 = vpack.c.b16 %v4807, %v4806
        %v4907 = vpack.c.b16 %v4809, %v4808
        %v4908 = vpack.c.b16 %v4811, %v4810
        %v4909 = vpack.c.b16 %v4813, %v4812
        %v4910 = vpack.c.b16 %v4815, %v4814
        %v4911 = vpack.c.b16 %v4817, %v4816
        %v4912 = vpack.c.b16 %v4819, %v4818
        %v4913 = vpack.c.b16 %v4821, %v4820
        %v4914 = vpack.c.b16 %v4823, %v4822
        %v4915 = vpack.c.b16 %v4825, %v4824
        %v4916 = vpack.c.b16 %v4827, %v4826
        %v4917 = vpack.c.b16 %v4829, %v4828
        %v4918 = vpack.c.b16 %v4831, %v4830
        %v4919 = vpack.c.b16 %v4833, %v4832
        %v4920 = vpack.c.b16 %v4835, %v4834
        %v4921 = vpack.c.b16 %v4837, %v4836
        %v4922 = vpack.c.b16 %v4839, %v4838
        %v4923 = vpack.c.b16 %v4841, %v4840
        %v4924 = vpack.c.b16 %v4843, %v4842
        %v4925 = vpack.c.b16 %v4845, %v4844
        %v4926 = vpack.c.b16 %v4847, %v4846
        %v4927 = vpack.c.b16 %v4849, %v4848
        %v4928 = vpack.c.b16 %v4851, %v4850
        %v4929 = vpack.c.b16 %v4853, %v4852
        %v4930 = vpack.c.b16 %v4855, %v4854
        %v4931 = vpack.c.b16 %v4857, %v4856
        %v4932 = vpack.c.b16 %v4859, %v4858
        %v4933 = vpack.c.b16 %v4861, %v4860
        %5006 = vmatprep.subr.bf16.mxu0 0
        %5007 = vmatpush1.bf16.msra.mxu0 %v4869
        %5008 = vmatprep.subr.bf16.mxu0 0
        %5009 = vmatpush1.bf16.msra.mxu0 %v4868
        %5010 = vmatprep.subr.bf16.mxu0 0
        %5011 = vmatpush1.bf16.msra.mxu0 %v4867
        %5012 = vmatprep.subr.bf16.mxu0 0
        %5013 = vmatpush1.bf16.msra.mxu0 %v4866
        %5014 = vmatprep.subr.bf16.mxu0 0
        %5015 = vmatpush1.bf16.msra.mxu0 %v4865
        %5016 = vmatprep.subr.bf16.mxu0 0
        %5017 = vmatpush1.bf16.msra.mxu0 %v4864
        %5018 = vmatprep.subr.bf16.mxu0 0
        %5019 = vmatpush1.bf16.msra.mxu0 %v4863
        %5020 = vmatprep.subr.bf16.mxu0 0
        %5021 = vmatpush1.bf16.msra.mxu0 %v4862
        %5022 = vmatprep.subr.bf16.mxu0 0
        %5023 = vmatpush2.bf16.msra.mxu0 %v4877
        %5024 = vmatprep.subr.bf16.mxu0 0
        %5025 = vmatpush2.bf16.msra.mxu0 %v4876
        %5026 = vmatprep.subr.bf16.mxu0 0
        %5027 = vmatpush2.bf16.msra.mxu0 %v4875
        %5028 = vmatprep.subr.bf16.mxu0 0
        %5029 = vmatpush2.bf16.msra.mxu0 %v4874
        %5030 = vmatprep.subr.bf16.mxu0 0
        %5031 = vmatpush2.bf16.msra.mxu0 %v4873
        %5032 = vmatprep.subr.bf16.mxu0 0
        %5033 = vmatpush2.bf16.msra.mxu0 %v4872
        %5034 = vmatprep.subr.bf16.mxu0 0
        %5035 = vmatpush2.bf16.msra.mxu0 %v4871
        %5036 = vmatprep.subr.bf16.mxu0 0
        %5037 = vmatpush2.bf16.msra.mxu0 %v4870
        %5038 = vmatprep.mubr.bf16.mxu0 %v4287
        %5039 = vmatmul.mubr.bf16.gmra.mxu0 %v4286
        %v5040 = vpop.f32.mrf.mxu0
        %v5041 = vadd.f32 0.0, %v5040
        %v5042 = vpop.f32.mrf.mxu0
        %v5043 = vpop.f32.mrf.mxu0
        %v5044 = vadd.f32 0.0, %v5043
        %v5045 = vpop.f32.mrf.mxu0
        %5046 = vmatprep.mubr.bf16.mxu0 %v4296
        %5047 = vmatmul.mubr.bf16.gmra.mxu0 %v4295
        %v5048 = vpop.f32.mrf.mxu0
        %v5049 = vadd.f32 0.0, %v5048
        %v5050 = vpop.f32.mrf.mxu0
        %v5051 = vpop.f32.mrf.mxu0
        %v5052 = vadd.f32 0.0, %v5051
        %v5053 = vpop.f32.mrf.mxu0
        %5054 = vmatprep.mubr.bf16.mxu0 %v4305
        %5055 = vmatmul.mubr.bf16.gmra.mxu0 %v4304
        %v5056 = vpop.f32.mrf.mxu0
        %v5057 = vadd.f32 0.0, %v5056
        %v5058 = vpop.f32.mrf.mxu0
        %v5059 = vpop.f32.mrf.mxu0
        %v5060 = vadd.f32 0.0, %v5059
        %v5061 = vpop.f32.mrf.mxu0
        %5062 = vmatprep.mubr.bf16.mxu0 %v4314
        %5063 = vmatmul.mubr.bf16.gmra.mxu0 %v4313
        %v5064 = vpop.f32.mrf.mxu0
        %v5065 = vadd.f32 0.0, %v5064
        %v5066 = vpop.f32.mrf.mxu0
        %v5067 = vpop.f32.mrf.mxu0
        %v5068 = vadd.f32 0.0, %v5067
        %v5069 = vpop.f32.mrf.mxu0
        %5070 = vmatprep.mubr.bf16.mxu0 %v4323
        %5071 = vmatmul.mubr.bf16.gmra.mxu0 %v4322
        %v5072 = vpop.f32.mrf.mxu0
        %v5073 = vadd.f32 0.0, %v5072
        %v5074 = vpop.f32.mrf.mxu0
        %v5075 = vpop.f32.mrf.mxu0
        %v5076 = vadd.f32 0.0, %v5075
        %v5077 = vpop.f32.mrf.mxu0
        %5078 = vmatprep.mubr.bf16.mxu0 %v4332
        %5079 = vmatmul.mubr.bf16.gmra.mxu0 %v4331
        %v5080 = vpop.f32.mrf.mxu0
        %v5081 = vadd.f32 0.0, %v5080
        %v5082 = vpop.f32.mrf.mxu0
        %v5083 = vpop.f32.mrf.mxu0
        %v5084 = vadd.f32 0.0, %v5083
        %v5085 = vpop.f32.mrf.mxu0
        %5086 = vmatprep.mubr.bf16.mxu0 %v4341
        %5087 = vmatmul.mubr.bf16.gmra.mxu0 %v4340
        %v5088 = vpop.f32.mrf.mxu0
        %v5089 = vadd.f32 0.0, %v5088
        %v5090 = vpop.f32.mrf.mxu0
        %v5091 = vpop.f32.mrf.mxu0
        %v5092 = vadd.f32 0.0, %v5091
        %v5093 = vpop.f32.mrf.mxu0
        %5094 = vmatprep.mubr.bf16.mxu0 %v4350
        %5095 = vmatmul.mubr.bf16.gmra.mxu0 %v4349
        %v5096 = vpop.f32.mrf.mxu0
        %v5097 = vadd.f32 0.0, %v5096
        %v5098 = vpop.f32.mrf.mxu0
        %v5099 = vpop.f32.mrf.mxu0
        %v5100 = vadd.f32 0.0, %v5099
        %v5101 = vpop.f32.mrf.mxu0
        %5102 = vmatprep.mubr.bf16.mxu0 %v4359
        %5103 = vmatmul.mubr.bf16.gmra.mxu0 %v4358
        %v5104 = vpop.f32.mrf.mxu0
        %v5105 = vadd.f32 0.0, %v5104
        %v5106 = vpop.f32.mrf.mxu0
        %v5107 = vpop.f32.mrf.mxu0
        %v5108 = vadd.f32 0.0, %v5107
        %v5109 = vpop.f32.mrf.mxu0
        %5110 = vmatprep.mubr.bf16.mxu0 %v4368
        %5111 = vmatmul.mubr.bf16.gmra.mxu0 %v4367
        %v5112 = vpop.f32.mrf.mxu0
        %v5113 = vadd.f32 0.0, %v5112
        %v5114 = vpop.f32.mrf.mxu0
        %v5115 = vpop.f32.mrf.mxu0
        %v5116 = vadd.f32 0.0, %v5115
        %v5117 = vpop.f32.mrf.mxu0
        %5118 = vmatprep.mubr.bf16.mxu0 %v4377
        %5119 = vmatmul.mubr.bf16.gmra.mxu0 %v4376
        %v5120 = vpop.f32.mrf.mxu0
        %v5121 = vadd.f32 0.0, %v5120
        %v5122 = vpop.f32.mrf.mxu0
        %v5123 = vpop.f32.mrf.mxu0
        %v5124 = vadd.f32 0.0, %v5123
        %v5125 = vpop.f32.mrf.mxu0
        %5126 = vmatprep.mubr.bf16.mxu0 %v4386
        %5127 = vmatmul.mubr.bf16.gmra.mxu0 %v4385
        %v5128 = vpop.f32.mrf.mxu0
        %v5129 = vadd.f32 0.0, %v5128
        %v5130 = vpop.f32.mrf.mxu0
        %v5131 = vpop.f32.mrf.mxu0
        %v5132 = vadd.f32 0.0, %v5131
        %v5133 = vpop.f32.mrf.mxu0
        %5134 = vmatprep.mubr.bf16.mxu0 %v4395
        %5135 = vmatmul.mubr.bf16.gmra.mxu0 %v4394
        %v5136 = vpop.f32.mrf.mxu0
        %v5137 = vadd.f32 0.0, %v5136
        %v5138 = vpop.f32.mrf.mxu0
        %v5139 = vpop.f32.mrf.mxu0
        %v5140 = vadd.f32 0.0, %v5139
        %v5141 = vpop.f32.mrf.mxu0
        %5142 = vmatprep.mubr.bf16.mxu0 %v4404
        %5143 = vmatmul.mubr.bf16.gmra.mxu0 %v4403
        %v5144 = vpop.f32.mrf.mxu0
        %v5145 = vadd.f32 0.0, %v5144
        %v5146 = vpop.f32.mrf.mxu0
        %v5147 = vpop.f32.mrf.mxu0
        %v5148 = vadd.f32 0.0, %v5147
        %v5149 = vpop.f32.mrf.mxu0
        %5150 = vmatprep.mubr.bf16.mxu0 %v4413
        %5151 = vmatmul.mubr.bf16.gmra.mxu0 %v4412
        %v5152 = vpop.f32.mrf.mxu0
        %v5153 = vadd.f32 0.0, %v5152
        %v5154 = vpop.f32.mrf.mxu0
        %v5155 = vpop.f32.mrf.mxu0
        %v5156 = vadd.f32 0.0, %v5155
        %v5157 = vpop.f32.mrf.mxu0
        %5158 = vmatprep.mubr.bf16.mxu0 %v4422
        %5159 = vmatmul.mubr.bf16.gmra.mxu0 %v4421
        %v5160 = vpop.f32.mrf.mxu0
        %v5161 = vadd.f32 0.0, %v5160
        %v5162 = vpop.f32.mrf.mxu0
        %v5163 = vpop.f32.mrf.mxu0
        %v5164 = vadd.f32 0.0, %v5163
        %v5165 = vpop.f32.mrf.mxu0
        %5166 = vdwg.mxu0
        %5167 = vmatprep.subr.bf16.mxu0 0
        %5168 = vmatpush1.bf16.msra.mxu0 %v4885
        %5169 = vmatprep.subr.bf16.mxu0 0
        %5170 = vmatpush1.bf16.msra.mxu0 %v4884
        %5171 = vmatprep.subr.bf16.mxu0 0
        %5172 = vmatpush1.bf16.msra.mxu0 %v4883
        %5173 = vmatprep.subr.bf16.mxu0 0
        %5174 = vmatpush1.bf16.msra.mxu0 %v4882
        %5175 = vmatprep.subr.bf16.mxu0 0
        %5176 = vmatpush1.bf16.msra.mxu0 %v4881
        %5177 = vmatprep.subr.bf16.mxu0 0
        %5178 = vmatpush1.bf16.msra.mxu0 %v4880
        %5179 = vmatprep.subr.bf16.mxu0 0
        %5180 = vmatpush1.bf16.msra.mxu0 %v4879
        %5181 = vmatprep.subr.bf16.mxu0 0
        %5182 = vmatpush1.bf16.msra.mxu0 %v4878
        %5183 = vmatprep.subr.bf16.mxu0 0
        %5184 = vmatpush2.bf16.msra.mxu0 %v4893
        %5185 = vmatprep.subr.bf16.mxu0 0
        %5186 = vmatpush2.bf16.msra.mxu0 %v4892
        %5187 = vmatprep.subr.bf16.mxu0 0
        %5188 = vmatpush2.bf16.msra.mxu0 %v4891
        %5189 = vmatprep.subr.bf16.mxu0 0
        %5190 = vmatpush2.bf16.msra.mxu0 %v4890
        %5191 = vmatprep.subr.bf16.mxu0 0
        %5192 = vmatpush2.bf16.msra.mxu0 %v4889
        %5193 = vmatprep.subr.bf16.mxu0 0
        %5194 = vmatpush2.bf16.msra.mxu0 %v4888
        %5195 = vmatprep.subr.bf16.mxu0 0
        %5196 = vmatpush2.bf16.msra.mxu0 %v4887
        %5197 = vmatprep.subr.bf16.mxu0 0
        %5198 = vmatpush2.bf16.msra.mxu0 %v4886
        %5199 = vmatprep.mubr.bf16.mxu0 %v4289
        %5200 = vmatmul.mubr.bf16.gmra.mxu0 %v4288
        %v5201 = vpop.f32.mrf.mxu0
        %v5202 = vadd.f32 %v5041, %v5201
        %v5203 = vpop.f32.mrf.mxu0
        %v5204 = vpop.f32.mrf.mxu0
        %v5205 = vadd.f32 %v5044, %v5204
        %v5206 = vpop.f32.mrf.mxu0
        %5207 = vmatprep.mubr.bf16.mxu0 %v4298
        %5208 = vmatmul.mubr.bf16.gmra.mxu0 %v4297
        %v5209 = vpop.f32.mrf.mxu0
        %v5210 = vadd.f32 %v5049, %v5209
        %v5211 = vpop.f32.mrf.mxu0
        %v5212 = vpop.f32.mrf.mxu0
        %v5213 = vadd.f32 %v5052, %v5212
        %v5214 = vpop.f32.mrf.mxu0
        %5215 = vmatprep.mubr.bf16.mxu0 %v4307
        %5216 = vmatmul.mubr.bf16.gmra.mxu0 %v4306
        %v5217 = vpop.f32.mrf.mxu0
        %v5218 = vadd.f32 %v5057, %v5217
        %v5219 = vpop.f32.mrf.mxu0
        %v5220 = vpop.f32.mrf.mxu0
        %v5221 = vadd.f32 %v5060, %v5220
        %v5222 = vpop.f32.mrf.mxu0
        %5223 = vmatprep.mubr.bf16.mxu0 %v4316
        %5224 = vmatmul.mubr.bf16.gmra.mxu0 %v4315
        %v5225 = vpop.f32.mrf.mxu0
        %v5226 = vadd.f32 %v5065, %v5225
        %v5227 = vpop.f32.mrf.mxu0
        %v5228 = vpop.f32.mrf.mxu0
        %v5229 = vadd.f32 %v5068, %v5228
        %v5230 = vpop.f32.mrf.mxu0
        %5231 = vmatprep.mubr.bf16.mxu0 %v4325
        %5232 = vmatmul.mubr.bf16.gmra.mxu0 %v4324
        %v5233 = vpop.f32.mrf.mxu0
        %v5234 = vadd.f32 %v5073, %v5233
        %v5235 = vpop.f32.mrf.mxu0
        %v5236 = vpop.f32.mrf.mxu0
        %v5237 = vadd.f32 %v5076, %v5236
        %v5238 = vpop.f32.mrf.mxu0
        %5239 = vmatprep.mubr.bf16.mxu0 %v4334
        %5240 = vmatmul.mubr.bf16.gmra.mxu0 %v4333
        %v5241 = vpop.f32.mrf.mxu0
        %v5242 = vadd.f32 %v5081, %v5241
        %v5243 = vpop.f32.mrf.mxu0
        %v5244 = vpop.f32.mrf.mxu0
        %v5245 = vadd.f32 %v5084, %v5244
        %v5246 = vpop.f32.mrf.mxu0
        %5247 = vmatprep.mubr.bf16.mxu0 %v4343
        %5248 = vmatmul.mubr.bf16.gmra.mxu0 %v4342
        %v5249 = vpop.f32.mrf.mxu0
        %v5250 = vadd.f32 %v5089, %v5249
        %v5251 = vpop.f32.mrf.mxu0
        %v5252 = vpop.f32.mrf.mxu0
        %v5253 = vadd.f32 %v5092, %v5252
        %v5254 = vpop.f32.mrf.mxu0
        %5255 = vmatprep.mubr.bf16.mxu0 %v4352
        %5256 = vmatmul.mubr.bf16.gmra.mxu0 %v4351
        %v5257 = vpop.f32.mrf.mxu0
        %v5258 = vadd.f32 %v5097, %v5257
        %v5259 = vpop.f32.mrf.mxu0
        %v5260 = vpop.f32.mrf.mxu0
        %v5261 = vadd.f32 %v5100, %v5260
        %v5262 = vpop.f32.mrf.mxu0
        %5263 = vmatprep.mubr.bf16.mxu0 %v4361
        %5264 = vmatmul.mubr.bf16.gmra.mxu0 %v4360
        %v5265 = vpop.f32.mrf.mxu0
        %v5266 = vadd.f32 %v5105, %v5265
        %v5267 = vpop.f32.mrf.mxu0
        %v5268 = vpop.f32.mrf.mxu0
        %v5269 = vadd.f32 %v5108, %v5268
        %v5270 = vpop.f32.mrf.mxu0
        %5271 = vmatprep.mubr.bf16.mxu0 %v4370
        %5272 = vmatmul.mubr.bf16.gmra.mxu0 %v4369
        %v5273 = vpop.f32.mrf.mxu0
        %v5274 = vadd.f32 %v5113, %v5273
        %v5275 = vpop.f32.mrf.mxu0
        %v5276 = vpop.f32.mrf.mxu0
        %v5277 = vadd.f32 %v5116, %v5276
        %v5278 = vpop.f32.mrf.mxu0
        %5279 = vmatprep.mubr.bf16.mxu0 %v4379
        %5280 = vmatmul.mubr.bf16.gmra.mxu0 %v4378
        %v5281 = vpop.f32.mrf.mxu0
        %v5282 = vadd.f32 %v5121, %v5281
        %v5283 = vpop.f32.mrf.mxu0
        %v5284 = vpop.f32.mrf.mxu0
        %v5285 = vadd.f32 %v5124, %v5284
        %v5286 = vpop.f32.mrf.mxu0
        %5287 = vmatprep.mubr.bf16.mxu0 %v4388
        %5288 = vmatmul.mubr.bf16.gmra.mxu0 %v4387
        %v5289 = vpop.f32.mrf.mxu0
        %v5290 = vadd.f32 %v5129, %v5289
        %v5291 = vpop.f32.mrf.mxu0
        %v5292 = vpop.f32.mrf.mxu0
        %v5293 = vadd.f32 %v5132, %v5292
        %v5294 = vpop.f32.mrf.mxu0
        %5295 = vmatprep.mubr.bf16.mxu0 %v4397
        %5296 = vmatmul.mubr.bf16.gmra.mxu0 %v4396
        %v5297 = vpop.f32.mrf.mxu0
        %v5298 = vadd.f32 %v5137, %v5297
        %v5299 = vpop.f32.mrf.mxu0
        %v5300 = vpop.f32.mrf.mxu0
        %v5301 = vadd.f32 %v5140, %v5300
        %v5302 = vpop.f32.mrf.mxu0
        %5303 = vmatprep.mubr.bf16.mxu0 %v4406
        %5304 = vmatmul.mubr.bf16.gmra.mxu0 %v4405
        %v5305 = vpop.f32.mrf.mxu0
        %v5306 = vadd.f32 %v5145, %v5305
        %v5307 = vpop.f32.mrf.mxu0
        %v5308 = vpop.f32.mrf.mxu0
        %v5309 = vadd.f32 %v5148, %v5308
        %v5310 = vpop.f32.mrf.mxu0
        %5311 = vmatprep.mubr.bf16.mxu0 %v4415
        %5312 = vmatmul.mubr.bf16.gmra.mxu0 %v4414
        %v5313 = vpop.f32.mrf.mxu0
        %v5314 = vadd.f32 %v5153, %v5313
        %v5315 = vpop.f32.mrf.mxu0
        %v5316 = vpop.f32.mrf.mxu0
        %v5317 = vadd.f32 %v5156, %v5316
        %v5318 = vpop.f32.mrf.mxu0
        %5319 = vmatprep.mubr.bf16.mxu0 %v4424
        %5320 = vmatmul.mubr.bf16.gmra.mxu0 %v4423
        %v5321 = vpop.f32.mrf.mxu0
        %v5322 = vadd.f32 %v5161, %v5321
        %v5323 = vpop.f32.mrf.mxu0
        %v5324 = vpop.f32.mrf.mxu0
        %v5325 = vadd.f32 %v5164, %v5324
        %v5326 = vpop.f32.mrf.mxu0
        %5327 = vdwg.mxu0
        %5328 = vmatprep.subr.bf16.mxu0 0
        %5329 = vmatpush1.bf16.msra.mxu0 %v4901
        %5330 = vmatprep.subr.bf16.mxu0 0
        %5331 = vmatpush1.bf16.msra.mxu0 %v4900
        %5332 = vmatprep.subr.bf16.mxu0 0
        %5333 = vmatpush1.bf16.msra.mxu0 %v4899
        %5334 = vmatprep.subr.bf16.mxu0 0
        %5335 = vmatpush1.bf16.msra.mxu0 %v4898
        %5336 = vmatprep.subr.bf16.mxu0 0
        %5337 = vmatpush1.bf16.msra.mxu0 %v4897
        %5338 = vmatprep.subr.bf16.mxu0 0
        %5339 = vmatpush1.bf16.msra.mxu0 %v4896
        %5340 = vmatprep.subr.bf16.mxu0 0
        %5341 = vmatpush1.bf16.msra.mxu0 %v4895
        %5342 = vmatprep.subr.bf16.mxu0 0
        %5343 = vmatpush1.bf16.msra.mxu0 %v4894
        %5344 = vmatprep.subr.bf16.mxu0 0
        %5345 = vmatpush2.bf16.msra.mxu0 %v4909
        %5346 = vmatprep.subr.bf16.mxu0 0
        %5347 = vmatpush2.bf16.msra.mxu0 %v4908
        %5348 = vmatprep.subr.bf16.mxu0 0
        %5349 = vmatpush2.bf16.msra.mxu0 %v4907
        %5350 = vmatprep.subr.bf16.mxu0 0
        %5351 = vmatpush2.bf16.msra.mxu0 %v4906
        %5352 = vmatprep.subr.bf16.mxu0 0
        %5353 = vmatpush2.bf16.msra.mxu0 %v4905
        %5354 = vmatprep.subr.bf16.mxu0 0
        %5355 = vmatpush2.bf16.msra.mxu0 %v4904
        %5356 = vmatprep.subr.bf16.mxu0 0
        %5357 = vmatpush2.bf16.msra.mxu0 %v4903
        %5358 = vmatprep.subr.bf16.mxu0 0
        %5359 = vmatpush2.bf16.msra.mxu0 %v4902
        %5360 = vmatprep.mubr.bf16.mxu0 %v4291
        %5361 = vmatmul.mubr.bf16.gmra.mxu0 %v4290
        %v5362 = vpop.f32.mrf.mxu0
        %v5363 = vadd.f32 %v5202, %v5362
        %v5364 = vpop.f32.mrf.mxu0
        %v5365 = vpop.f32.mrf.mxu0
        %v5366 = vadd.f32 %v5205, %v5365
        %v5367 = vpop.f32.mrf.mxu0
        %5368 = vmatprep.mubr.bf16.mxu0 %v4300
        %5369 = vmatmul.mubr.bf16.gmra.mxu0 %v4299
        %v5370 = vpop.f32.mrf.mxu0
        %v5371 = vadd.f32 %v5210, %v5370
        %v5372 = vpop.f32.mrf.mxu0
        %v5373 = vpop.f32.mrf.mxu0
        %v5374 = vadd.f32 %v5213, %v5373
        %v5375 = vpop.f32.mrf.mxu0
        %5376 = vmatprep.mubr.bf16.mxu0 %v4309
        %5377 = vmatmul.mubr.bf16.gmra.mxu0 %v4308
        %v5378 = vpop.f32.mrf.mxu0
        %v5379 = vadd.f32 %v5218, %v5378
        %v5380 = vpop.f32.mrf.mxu0
        %v5381 = vpop.f32.mrf.mxu0
        %v5382 = vadd.f32 %v5221, %v5381
        %v5383 = vpop.f32.mrf.mxu0
        %5384 = vmatprep.mubr.bf16.mxu0 %v4318
        %5385 = vmatmul.mubr.bf16.gmra.mxu0 %v4317
        %v5386 = vpop.f32.mrf.mxu0
        %v5387 = vadd.f32 %v5226, %v5386
        %v5388 = vpop.f32.mrf.mxu0
        %v5389 = vpop.f32.mrf.mxu0
        %v5390 = vadd.f32 %v5229, %v5389
        %v5391 = vpop.f32.mrf.mxu0
        %5392 = vmatprep.mubr.bf16.mxu0 %v4327
        %5393 = vmatmul.mubr.bf16.gmra.mxu0 %v4326
        %v5394 = vpop.f32.mrf.mxu0
        %v5395 = vadd.f32 %v5234, %v5394
        %v5396 = vpop.f32.mrf.mxu0
        %v5397 = vpop.f32.mrf.mxu0
        %v5398 = vadd.f32 %v5237, %v5397
        %v5399 = vpop.f32.mrf.mxu0
        %5400 = vmatprep.mubr.bf16.mxu0 %v4336
        %5401 = vmatmul.mubr.bf16.gmra.mxu0 %v4335
        %v5402 = vpop.f32.mrf.mxu0
        %v5403 = vadd.f32 %v5242, %v5402
        %v5404 = vpop.f32.mrf.mxu0
        %v5405 = vpop.f32.mrf.mxu0
        %v5406 = vadd.f32 %v5245, %v5405
        %v5407 = vpop.f32.mrf.mxu0
        %5408 = vmatprep.mubr.bf16.mxu0 %v4345
        %5409 = vmatmul.mubr.bf16.gmra.mxu0 %v4344
        %v5410 = vpop.f32.mrf.mxu0
        %v5411 = vadd.f32 %v5250, %v5410
        %v5412 = vpop.f32.mrf.mxu0
        %v5413 = vpop.f32.mrf.mxu0
        %v5414 = vadd.f32 %v5253, %v5413
        %v5415 = vpop.f32.mrf.mxu0
        %5416 = vmatprep.mubr.bf16.mxu0 %v4354
        %5417 = vmatmul.mubr.bf16.gmra.mxu0 %v4353
        %v5418 = vpop.f32.mrf.mxu0
        %v5419 = vadd.f32 %v5258, %v5418
        %v5420 = vpop.f32.mrf.mxu0
        %v5421 = vpop.f32.mrf.mxu0
        %v5422 = vadd.f32 %v5261, %v5421
        %v5423 = vpop.f32.mrf.mxu0
        %5424 = vmatprep.mubr.bf16.mxu0 %v4363
        %5425 = vmatmul.mubr.bf16.gmra.mxu0 %v4362
        %v5426 = vpop.f32.mrf.mxu0
        %v5427 = vadd.f32 %v5266, %v5426
        %v5428 = vpop.f32.mrf.mxu0
        %v5429 = vpop.f32.mrf.mxu0
        %v5430 = vadd.f32 %v5269, %v5429
        %v5431 = vpop.f32.mrf.mxu0
        %5432 = vmatprep.mubr.bf16.mxu0 %v4372
        %5433 = vmatmul.mubr.bf16.gmra.mxu0 %v4371
        %v5434 = vpop.f32.mrf.mxu0
        %v5435 = vadd.f32 %v5274, %v5434
        %v5436 = vpop.f32.mrf.mxu0
        %v5437 = vpop.f32.mrf.mxu0
        %v5438 = vadd.f32 %v5277, %v5437
        %v5439 = vpop.f32.mrf.mxu0
        %5440 = vmatprep.mubr.bf16.mxu0 %v4381
        %5441 = vmatmul.mubr.bf16.gmra.mxu0 %v4380
        %v5442 = vpop.f32.mrf.mxu0
        %v5443 = vadd.f32 %v5282, %v5442
        %v5444 = vpop.f32.mrf.mxu0
        %v5445 = vpop.f32.mrf.mxu0
        %v5446 = vadd.f32 %v5285, %v5445
        %v5447 = vpop.f32.mrf.mxu0
        %5448 = vmatprep.mubr.bf16.mxu0 %v4390
        %5449 = vmatmul.mubr.bf16.gmra.mxu0 %v4389
        %v5450 = vpop.f32.mrf.mxu0
        %v5451 = vadd.f32 %v5290, %v5450
        %v5452 = vpop.f32.mrf.mxu0
        %v5453 = vpop.f32.mrf.mxu0
        %v5454 = vadd.f32 %v5293, %v5453
        %v5455 = vpop.f32.mrf.mxu0
        %5456 = vmatprep.mubr.bf16.mxu0 %v4399
        %5457 = vmatmul.mubr.bf16.gmra.mxu0 %v4398
        %v5458 = vpop.f32.mrf.mxu0
        %v5459 = vadd.f32 %v5298, %v5458
        %v5460 = vpop.f32.mrf.mxu0
        %v5461 = vpop.f32.mrf.mxu0
        %v5462 = vadd.f32 %v5301, %v5461
        %v5463 = vpop.f32.mrf.mxu0
        %5464 = vmatprep.mubr.bf16.mxu0 %v4408
        %5465 = vmatmul.mubr.bf16.gmra.mxu0 %v4407
        %v5466 = vpop.f32.mrf.mxu0
        %v5467 = vadd.f32 %v5306, %v5466
        %v5468 = vpop.f32.mrf.mxu0
        %v5469 = vpop.f32.mrf.mxu0
        %v5470 = vadd.f32 %v5309, %v5469
        %v5471 = vpop.f32.mrf.mxu0
        %5472 = vmatprep.mubr.bf16.mxu0 %v4417
        %5473 = vmatmul.mubr.bf16.gmra.mxu0 %v4416
        %v5474 = vpop.f32.mrf.mxu0
        %v5475 = vadd.f32 %v5314, %v5474
        %v5476 = vpop.f32.mrf.mxu0
        %v5477 = vpop.f32.mrf.mxu0
        %v5478 = vadd.f32 %v5317, %v5477
        %v5479 = vpop.f32.mrf.mxu0
        %5480 = vmatprep.mubr.bf16.mxu0 %v4426
        %5481 = vmatmul.mubr.bf16.gmra.mxu0 %v4425
        %v5482 = vpop.f32.mrf.mxu0
        %v5483 = vadd.f32 %v5322, %v5482
        %v5484 = vpop.f32.mrf.mxu0
        %v5485 = vpop.f32.mrf.mxu0
        %v5486 = vadd.f32 %v5325, %v5485
        %v5487 = vpop.f32.mrf.mxu0
        %5488 = vdwg.mxu0
        %5489 = vmatprep.subr.bf16.mxu0 0
        %5490 = vmatpush1.bf16.msra.mxu0 %v4917
        %5491 = vmatprep.subr.bf16.mxu0 0
        %5492 = vmatpush1.bf16.msra.mxu0 %v4916
        %5493 = vmatprep.subr.bf16.mxu0 0
        %5494 = vmatpush1.bf16.msra.mxu0 %v4915
        %5495 = vmatprep.subr.bf16.mxu0 0
        %5496 = vmatpush1.bf16.msra.mxu0 %v4914
        %5497 = vmatprep.subr.bf16.mxu0 0
        %5498 = vmatpush1.bf16.msra.mxu0 %v4913
        %5499 = vmatprep.subr.bf16.mxu0 0
        %5500 = vmatpush1.bf16.msra.mxu0 %v4912
        %5501 = vmatprep.subr.bf16.mxu0 0
        %5502 = vmatpush1.bf16.msra.mxu0 %v4911
        %5503 = vmatprep.subr.bf16.mxu0 0
        %5504 = vmatpush1.bf16.msra.mxu0 %v4910
        %5505 = vmatprep.subr.bf16.mxu0 0
        %5506 = vmatpush2.bf16.msra.mxu0 %v4925
        %5507 = vmatprep.subr.bf16.mxu0 0
        %5508 = vmatpush2.bf16.msra.mxu0 %v4924
        %5509 = vmatprep.subr.bf16.mxu0 0
        %5510 = vmatpush2.bf16.msra.mxu0 %v4923
        %5511 = vmatprep.subr.bf16.mxu0 0
        %5512 = vmatpush2.bf16.msra.mxu0 %v4922
        %5513 = vmatprep.subr.bf16.mxu0 0
        %5514 = vmatpush2.bf16.msra.mxu0 %v4921
        %5515 = vmatprep.subr.bf16.mxu0 0
        %5516 = vmatpush2.bf16.msra.mxu0 %v4920
        %5517 = vmatprep.subr.bf16.mxu0 0
        %5518 = vmatpush2.bf16.msra.mxu0 %v4919
        %5519 = vmatprep.subr.bf16.mxu0 0
        %5520 = vmatpush2.bf16.msra.mxu0 %v4918
        %5521 = vmatprep.mubr.bf16.mxu0 %v4293
        %5522 = vmatmul.mubr.bf16.gmra.mxu0 %v4292
        %v5523 = vpop.f32.mrf.mxu0
        %v5524 = vadd.f32 %v5363, %v5523
        %v5525 = vpop.f32.mrf.mxu0
        %v5526 = vpop.f32.mrf.mxu0
        %v5527 = vadd.f32 %v5366, %v5526
        %v5528 = vpop.f32.mrf.mxu0
        %5529 = vmatprep.mubr.bf16.mxu0 %v4302
        %5530 = vmatmul.mubr.bf16.gmra.mxu0 %v4301
        %v5531 = vpop.f32.mrf.mxu0
        %v5532 = vadd.f32 %v5371, %v5531
        %v5533 = vpop.f32.mrf.mxu0
        %v5534 = vpop.f32.mrf.mxu0
        %v5535 = vadd.f32 %v5374, %v5534
        %v5536 = vpop.f32.mrf.mxu0
        %5537 = vmatprep.mubr.bf16.mxu0 %v4311
        %5538 = vmatmul.mubr.bf16.gmra.mxu0 %v4310
        %v5539 = vpop.f32.mrf.mxu0
        %v5540 = vadd.f32 %v5379, %v5539
        %v5541 = vpop.f32.mrf.mxu0
        %v5542 = vpop.f32.mrf.mxu0
        %v5543 = vadd.f32 %v5382, %v5542
        %v5544 = vpop.f32.mrf.mxu0
        %5545 = vmatprep.mubr.bf16.mxu0 %v4320
        %5546 = vmatmul.mubr.bf16.gmra.mxu0 %v4319
        %v5547 = vpop.f32.mrf.mxu0
        %v5548 = vadd.f32 %v5387, %v5547
        %v5549 = vpop.f32.mrf.mxu0
        %v5550 = vpop.f32.mrf.mxu0
        %v5551 = vadd.f32 %v5390, %v5550
        %v5552 = vpop.f32.mrf.mxu0
        %5553 = vmatprep.mubr.bf16.mxu0 %v4329
        %5554 = vmatmul.mubr.bf16.gmra.mxu0 %v4328
        %v5555 = vpop.f32.mrf.mxu0
        %v5556 = vadd.f32 %v5395, %v5555
        %v5557 = vpop.f32.mrf.mxu0
        %v5558 = vpop.f32.mrf.mxu0
        %v5559 = vadd.f32 %v5398, %v5558
        %v5560 = vpop.f32.mrf.mxu0
        %5561 = vmatprep.mubr.bf16.mxu0 %v4338
        %5562 = vmatmul.mubr.bf16.gmra.mxu0 %v4337
        %v5563 = vpop.f32.mrf.mxu0
        %v5564 = vadd.f32 %v5403, %v5563
        %v5565 = vpop.f32.mrf.mxu0
        %v5566 = vpop.f32.mrf.mxu0
        %v5567 = vadd.f32 %v5406, %v5566
        %v5568 = vpop.f32.mrf.mxu0
        %5569 = vmatprep.mubr.bf16.mxu0 %v4347
        %5570 = vmatmul.mubr.bf16.gmra.mxu0 %v4346
        %v5571 = vpop.f32.mrf.mxu0
        %v5572 = vadd.f32 %v5411, %v5571
        %v5573 = vpop.f32.mrf.mxu0
        %v5574 = vpop.f32.mrf.mxu0
        %v5575 = vadd.f32 %v5414, %v5574
        %v5576 = vpop.f32.mrf.mxu0
        %5577 = vmatprep.mubr.bf16.mxu0 %v4356
        %5578 = vmatmul.mubr.bf16.gmra.mxu0 %v4355
        %v5579 = vpop.f32.mrf.mxu0
        %v5580 = vadd.f32 %v5419, %v5579
        %v5581 = vpop.f32.mrf.mxu0
        %v5582 = vpop.f32.mrf.mxu0
        %v5583 = vadd.f32 %v5422, %v5582
        %v5584 = vpop.f32.mrf.mxu0
        %5585 = vmatprep.mubr.bf16.mxu0 %v4365
        %5586 = vmatmul.mubr.bf16.gmra.mxu0 %v4364
        %v5587 = vpop.f32.mrf.mxu0
        %v5588 = vadd.f32 %v5427, %v5587
        %v5589 = vpop.f32.mrf.mxu0
        %v5590 = vpop.f32.mrf.mxu0
        %v5591 = vadd.f32 %v5430, %v5590
        %v5592 = vpop.f32.mrf.mxu0
        %5593 = vmatprep.mubr.bf16.mxu0 %v4374
        %5594 = vmatmul.mubr.bf16.gmra.mxu0 %v4373
        %v5595 = vpop.f32.mrf.mxu0
        %v5596 = vadd.f32 %v5435, %v5595
        %v5597 = vpop.f32.mrf.mxu0
        %v5598 = vpop.f32.mrf.mxu0
        %v5599 = vadd.f32 %v5438, %v5598
        %v5600 = vpop.f32.mrf.mxu0
        %5601 = vmatprep.mubr.bf16.mxu0 %v4383
        %5602 = vmatmul.mubr.bf16.gmra.mxu0 %v4382
        %v5603 = vpop.f32.mrf.mxu0
        %v5604 = vadd.f32 %v5443, %v5603
        %v5605 = vpop.f32.mrf.mxu0
        %v5606 = vpop.f32.mrf.mxu0
        %v5607 = vadd.f32 %v5446, %v5606
        %v5608 = vpop.f32.mrf.mxu0
        %5609 = vmatprep.mubr.bf16.mxu0 %v4392
        %5610 = vmatmul.mubr.bf16.gmra.mxu0 %v4391
        %v5611 = vpop.f32.mrf.mxu0
        %v5612 = vadd.f32 %v5451, %v5611
        %v5613 = vpop.f32.mrf.mxu0
        %v5614 = vpop.f32.mrf.mxu0
        %v5615 = vadd.f32 %v5454, %v5614
        %v5616 = vpop.f32.mrf.mxu0
        %5617 = vmatprep.mubr.bf16.mxu0 %v4401
        %5618 = vmatmul.mubr.bf16.gmra.mxu0 %v4400
        %v5619 = vpop.f32.mrf.mxu0
        %v5620 = vadd.f32 %v5459, %v5619
        %v5621 = vpop.f32.mrf.mxu0
        %v5622 = vpop.f32.mrf.mxu0
        %v5623 = vadd.f32 %v5462, %v5622
        %v5624 = vpop.f32.mrf.mxu0
        %5625 = vmatprep.mubr.bf16.mxu0 %v4410
        %5626 = vmatmul.mubr.bf16.gmra.mxu0 %v4409
        %v5627 = vpop.f32.mrf.mxu0
        %v5628 = vadd.f32 %v5467, %v5627
        %v5629 = vpop.f32.mrf.mxu0
        %v5630 = vpop.f32.mrf.mxu0
        %v5631 = vadd.f32 %v5470, %v5630
        %v5632 = vpop.f32.mrf.mxu0
        %5633 = vmatprep.mubr.bf16.mxu0 %v4419
        %5634 = vmatmul.mubr.bf16.gmra.mxu0 %v4418
        %v5635 = vpop.f32.mrf.mxu0
        %v5636 = vadd.f32 %v5475, %v5635
        %v5637 = vpop.f32.mrf.mxu0
        %v5638 = vpop.f32.mrf.mxu0
        %v5639 = vadd.f32 %v5478, %v5638
        %v5640 = vpop.f32.mrf.mxu0
        %5641 = vmatprep.mubr.bf16.mxu0 %v4428
        %5642 = vmatmul.mubr.bf16.gmra.mxu0 %v4427
        %v5643 = vpop.f32.mrf.mxu0
        %v5644 = vadd.f32 %v5483, %v5643
        %v5645 = vpop.f32.mrf.mxu0
        %v5646 = vpop.f32.mrf.mxu0
        %v5647 = vadd.f32 %v5486, %v5646
        %v5648 = vpop.f32.mrf.mxu0
        %5649 = vdwg.mxu0
        %5650 = vmatprep.subr.bf16.mxu0 0
        %5651 = vmatpush1.bf16.msra.mxu0 %v4933
        %5652 = vmatprep.subr.bf16.mxu0 0
        %5653 = vmatpush1.bf16.msra.mxu0 %v4932
        %5654 = vmatprep.subr.bf16.mxu0 0
        %5655 = vmatpush1.bf16.msra.mxu0 %v4931
        %5656 = vmatprep.subr.bf16.mxu0 0
        %5657 = vmatpush1.bf16.msra.mxu0 %v4930
        %5658 = vmatprep.subr.bf16.mxu0 0
        %5659 = vmatpush1.bf16.msra.mxu0 %v4929
        %5660 = vmatprep.subr.bf16.mxu0 0
        %5661 = vmatpush1.bf16.msra.mxu0 %v4928
        %5662 = vmatprep.subr.bf16.mxu0 0
        %5663 = vmatpush1.bf16.msra.mxu0 %v4927
        %5664 = vmatprep.subr.bf16.mxu0 0
        %5665 = vmatpush1.bf16.msra.mxu0 %v4926
        %5666 = vmatprep.subr.bf16.mxu0 0
        %5667 = vmatpush2.bf16.msra.mxu0 0
        %5668 = vmatprep.subr.bf16.mxu0 0
        %5669 = vmatpush2.bf16.msra.mxu0 0
        %5670 = vmatprep.subr.bf16.mxu0 0
        %5671 = vmatpush2.bf16.msra.mxu0 0
        %5672 = vmatprep.subr.bf16.mxu0 0
        %5673 = vmatpush2.bf16.msra.mxu0 0
        %5674 = vmatprep.subr.bf16.mxu0 0
        %5675 = vmatpush2.bf16.msra.mxu0 0
        %5676 = vmatprep.subr.bf16.mxu0 0
        %5677 = vmatpush2.bf16.msra.mxu0 0
        %5678 = vmatprep.subr.bf16.mxu0 0
        %5679 = vmatpush2.bf16.msra.mxu0 0
        %5680 = vmatprep.subr.bf16.mxu0 0
        %5681 = vmatpush2.bf16.msra.mxu0 0
        %5682 = vmatprep.mubr.bf16.mxu0 0
        %5683 = vmatmul.mubr.bf16.gmra.mxu0 %v4294
        %v5684 = vpop.f32.mrf.mxu0
        %v5685 = vadd.f32 %v5524, %v5684
        %v5686 = vpop.f32.mrf.mxu0
        %v5687 = vpop.f32.mrf.mxu0
        %v5688 = vadd.f32 %v5527, %v5687
        %v5689 = vpop.f32.mrf.mxu0
        %5690 = vmatprep.mubr.bf16.mxu0 0
        %5691 = vmatmul.mubr.bf16.gmra.mxu0 %v4303
        %v5692 = vpop.f32.mrf.mxu0
        %v5693 = vadd.f32 %v5532, %v5692
        %v5694 = vpop.f32.mrf.mxu0
        %v5695 = vpop.f32.mrf.mxu0
        %v5696 = vadd.f32 %v5535, %v5695
        %v5697 = vpop.f32.mrf.mxu0
        %5698 = vmatprep.mubr.bf16.mxu0 0
        %5699 = vmatmul.mubr.bf16.gmra.mxu0 %v4312
        %v5700 = vpop.f32.mrf.mxu0
        %v5701 = vadd.f32 %v5540, %v5700
        %v5702 = vpop.f32.mrf.mxu0
        %v5703 = vpop.f32.mrf.mxu0
        %v5704 = vadd.f32 %v5543, %v5703
        %v5705 = vpop.f32.mrf.mxu0
        %5706 = vmatprep.mubr.bf16.mxu0 0
        %5707 = vmatmul.mubr.bf16.gmra.mxu0 %v4321
        %v5708 = vpop.f32.mrf.mxu0
        %v5709 = vadd.f32 %v5548, %v5708
        %v5710 = vpop.f32.mrf.mxu0
        %v5711 = vpop.f32.mrf.mxu0
        %v5712 = vadd.f32 %v5551, %v5711
        %v5713 = vpop.f32.mrf.mxu0
        %5714 = vmatprep.mubr.bf16.mxu0 0
        %5715 = vmatmul.mubr.bf16.gmra.mxu0 %v4330
        %v5716 = vpop.f32.mrf.mxu0
        %v5717 = vadd.f32 %v5556, %v5716
        %v5718 = vpop.f32.mrf.mxu0
        %v5719 = vpop.f32.mrf.mxu0
        %v5720 = vadd.f32 %v5559, %v5719
        %v5721 = vpop.f32.mrf.mxu0
        %5722 = vmatprep.mubr.bf16.mxu0 0
        %5723 = vmatmul.mubr.bf16.gmra.mxu0 %v4339
        %v5724 = vpop.f32.mrf.mxu0
        %v5725 = vadd.f32 %v5564, %v5724
        %v5726 = vpop.f32.mrf.mxu0
        %v5727 = vpop.f32.mrf.mxu0
        %v5728 = vadd.f32 %v5567, %v5727
        %v5729 = vpop.f32.mrf.mxu0
        %5730 = vmatprep.mubr.bf16.mxu0 0
        %5731 = vmatmul.mubr.bf16.gmra.mxu0 %v4348
        %v5732 = vpop.f32.mrf.mxu0
        %v5733 = vadd.f32 %v5572, %v5732
        %v5734 = vpop.f32.mrf.mxu0
        %v5735 = vpop.f32.mrf.mxu0
        %v5736 = vadd.f32 %v5575, %v5735
        %v5737 = vpop.f32.mrf.mxu0
        %5738 = vmatprep.mubr.bf16.mxu0 0
        %5739 = vmatmul.mubr.bf16.gmra.mxu0 %v4357
        %v5740 = vpop.f32.mrf.mxu0
        %v5741 = vadd.f32 %v5580, %v5740
        %v5742 = vpop.f32.mrf.mxu0
        %v5743 = vpop.f32.mrf.mxu0
        %v5744 = vadd.f32 %v5583, %v5743
        %v5745 = vpop.f32.mrf.mxu0
        %5746 = vmatprep.mubr.bf16.mxu0 0
        %5747 = vmatmul.mubr.bf16.gmra.mxu0 %v4366
        %v5748 = vpop.f32.mrf.mxu0
        %v5749 = vadd.f32 %v5588, %v5748
        %v5750 = vpop.f32.mrf.mxu0
        %v5751 = vpop.f32.mrf.mxu0
        %v5752 = vadd.f32 %v5591, %v5751
        %v5753 = vpop.f32.mrf.mxu0
        %5754 = vmatprep.mubr.bf16.mxu0 0
        %5755 = vmatmul.mubr.bf16.gmra.mxu0 %v4375
        %v5756 = vpop.f32.mrf.mxu0
        %v5757 = vadd.f32 %v5596, %v5756
        %v5758 = vpop.f32.mrf.mxu0
        %v5759 = vpop.f32.mrf.mxu0
        %v5760 = vadd.f32 %v5599, %v5759
        %v5761 = vpop.f32.mrf.mxu0
        %5762 = vmatprep.mubr.bf16.mxu0 0
        %5763 = vmatmul.mubr.bf16.gmra.mxu0 %v4384
        %v5764 = vpop.f32.mrf.mxu0
        %v5765 = vadd.f32 %v5604, %v5764
        %v5766 = vpop.f32.mrf.mxu0
        %v5767 = vpop.f32.mrf.mxu0
        %v5768 = vadd.f32 %v5607, %v5767
        %v5769 = vpop.f32.mrf.mxu0
        %5770 = vmatprep.mubr.bf16.mxu0 0
        %5771 = vmatmul.mubr.bf16.gmra.mxu0 %v4393
        %v5772 = vpop.f32.mrf.mxu0
        %v5773 = vadd.f32 %v5612, %v5772
        %v5774 = vpop.f32.mrf.mxu0
        %v5775 = vpop.f32.mrf.mxu0
        %v5776 = vadd.f32 %v5615, %v5775
        %v5777 = vpop.f32.mrf.mxu0
        %5778 = vmatprep.mubr.bf16.mxu0 0
        %5779 = vmatmul.mubr.bf16.gmra.mxu0 %v4402
        %v5780 = vpop.f32.mrf.mxu0
        %v5781 = vadd.f32 %v5620, %v5780
        %v5782 = vpop.f32.mrf.mxu0
        %v5783 = vpop.f32.mrf.mxu0
        %v5784 = vadd.f32 %v5623, %v5783
        %v5785 = vpop.f32.mrf.mxu0
        %5786 = vmatprep.mubr.bf16.mxu0 0
        %5787 = vmatmul.mubr.bf16.gmra.mxu0 %v4411
        %v5788 = vpop.f32.mrf.mxu0
        %v5789 = vadd.f32 %v5628, %v5788
        %v5790 = vpop.f32.mrf.mxu0
        %v5791 = vpop.f32.mrf.mxu0
        %v5792 = vadd.f32 %v5631, %v5791
        %v5793 = vpop.f32.mrf.mxu0
        %5794 = vmatprep.mubr.bf16.mxu0 0
        %5795 = vmatmul.mubr.bf16.gmra.mxu0 %v4420
        %v5796 = vpop.f32.mrf.mxu0
        %v5797 = vadd.f32 %v5636, %v5796
        %v5798 = vpop.f32.mrf.mxu0
        %v5799 = vpop.f32.mrf.mxu0
        %v5800 = vadd.f32 %v5639, %v5799
        %v5801 = vpop.f32.mrf.mxu0
        %5802 = vmatprep.mubr.bf16.mxu0 0
        %5803 = vmatmul.mubr.bf16.gmra.mxu0 %v4429
        %v5804 = vpop.f32.mrf.mxu0
        %v5805 = vadd.f32 %v5644, %v5804
        %v5806 = vpop.f32.mrf.mxu0
        %v5807 = vpop.f32.mrf.mxu0
        %v5808 = vadd.f32 %v5647, %v5807
        %v5809 = vpop.f32.mrf.mxu0
        %5810 = vdwg.mxu0
        %v5811 = vld [vmem:[%s2] sm:$0x1]
        %v5813 = vlaneseq
        %v5814 = vshrl.u32 %v5813, 7
        %v5815 = vsub.s32 0, %v5814
        %v5816 = vrot.slane %v5811, %v5815
        %v5818 = vmul.f32 %v5685, %v5816
        %v5819 = vmul.f32 %v5688, %v5816
        %v5820 = vmul.f32 %v5693, %v5816
        %v5821 = vmul.f32 %v5696, %v5816
        %v5822 = vmul.f32 %v5701, %v5816
        %v5823 = vmul.f32 %v5704, %v5816
        %v5824 = vmul.f32 %v5709, %v5816
        %v5825 = vmul.f32 %v5712, %v5816
        %v5826 = vmul.f32 %v5717, %v5816
        %v5827 = vmul.f32 %v5720, %v5816
        %v5828 = vmul.f32 %v5725, %v5816
        %v5829 = vmul.f32 %v5728, %v5816
        %v5830 = vmul.f32 %v5733, %v5816
        %v5831 = vmul.f32 %v5736, %v5816
        %v5832 = vmul.f32 %v5741, %v5816
        %v5833 = vmul.f32 %v5744, %v5816
        %v5834 = vmul.f32 %v5749, %v5816
        %v5835 = vmul.f32 %v5752, %v5816
        %v5836 = vmul.f32 %v5757, %v5816
        %v5837 = vmul.f32 %v5760, %v5816
        %v5838 = vmul.f32 %v5765, %v5816
        %v5839 = vmul.f32 %v5768, %v5816
        %v5840 = vmul.f32 %v5773, %v5816
        %v5841 = vmul.f32 %v5776, %v5816
        %v5842 = vmul.f32 %v5781, %v5816
        %v5843 = vmul.f32 %v5784, %v5816
        %v5844 = vmul.f32 %v5789, %v5816
        %v5845 = vmul.f32 %v5792, %v5816
        %v5846 = vmul.f32 %v5797, %v5816
        %v5847 = vmul.f32 %v5800, %v5816
        %v5848 = vmul.f32 %v5805, %v5816
        %v5849 = vmul.f32 %v5808, %v5816
        %v5850 = vld [vmem:[%s3] sm:$0x1]
        %v5852 = vlaneseq
        %v5853 = vshrl.u32 %v5852, 7
        %v5854 = vsub.s32 0, %v5853
        %v5855 = vrot.slane %v5850, %v5854
        %v5857 = vadd.f32 %v5818, %v5855
        %v5858 = vadd.f32 %v5819, %v5855
        %v5859 = vadd.f32 %v5820, %v5855
        %v5860 = vadd.f32 %v5821, %v5855
        %v5861 = vadd.f32 %v5822, %v5855
        %v5862 = vadd.f32 %v5823, %v5855
        %v5863 = vadd.f32 %v5824, %v5855
        %v5864 = vadd.f32 %v5825, %v5855
        %v5865 = vadd.f32 %v5826, %v5855
        %v5866 = vadd.f32 %v5827, %v5855
        %v5867 = vadd.f32 %v5828, %v5855
        %v5868 = vadd.f32 %v5829, %v5855
        %v5869 = vadd.f32 %v5830, %v5855
        %v5870 = vadd.f32 %v5831, %v5855
        %v5871 = vadd.f32 %v5832, %v5855
        %v5872 = vadd.f32 %v5833, %v5855
        %v5873 = vadd.f32 %v5834, %v5855
        %v5874 = vadd.f32 %v5835, %v5855
        %v5875 = vadd.f32 %v5836, %v5855
        %v5876 = vadd.f32 %v5837, %v5855
        %v5877 = vadd.f32 %v5838, %v5855
        %v5878 = vadd.f32 %v5839, %v5855
        %v5879 = vadd.f32 %v5840, %v5855
        %v5880 = vadd.f32 %v5841, %v5855
        %v5881 = vadd.f32 %v5842, %v5855
        %v5882 = vadd.f32 %v5843, %v5855
        %v5883 = vadd.f32 %v5844, %v5855
        %v5884 = vadd.f32 %v5845, %v5855
        %v5885 = vadd.f32 %v5846, %v5855
        %v5886 = vadd.f32 %v5847, %v5855
        %v5887 = vadd.f32 %v5848, %v5855
        %v5888 = vadd.f32 %v5849, %v5855
        %v5889 = vmax.f32 %v5857, 0.0
        %v5890 = vmax.f32 %v5858, 0.0
        %v5891 = vmax.f32 %v5859, 0.0
        %v5892 = vmax.f32 %v5860, 0.0
        %v5893 = vmax.f32 %v5861, 0.0
        %v5894 = vmax.f32 %v5862, 0.0
        %v5895 = vmax.f32 %v5863, 0.0
        %v5896 = vmax.f32 %v5864, 0.0
        %v5897 = vmax.f32 %v5865, 0.0
        %v5898 = vmax.f32 %v5866, 0.0
        %v5899 = vmax.f32 %v5867, 0.0
        %v5900 = vmax.f32 %v5868, 0.0
        %v5901 = vmax.f32 %v5869, 0.0
        %v5902 = vmax.f32 %v5870, 0.0
        %v5903 = vmax.f32 %v5871, 0.0
        %v5904 = vmax.f32 %v5872, 0.0
        %v5905 = vmax.f32 %v5873, 0.0
        %v5906 = vmax.f32 %v5874, 0.0
        %v5907 = vmax.f32 %v5875, 0.0
        %v5908 = vmax.f32 %v5876, 0.0
        %v5909 = vmax.f32 %v5877, 0.0
        %v5910 = vmax.f32 %v5878, 0.0
        %v5911 = vmax.f32 %v5879, 0.0
        %v5912 = vmax.f32 %v5880, 0.0
        %v5913 = vmax.f32 %v5881, 0.0
        %v5914 = vmax.f32 %v5882, 0.0
        %v5915 = vmax.f32 %v5883, 0.0
        %v5916 = vmax.f32 %v5884, 0.0
        %v5917 = vmax.f32 %v5885, 0.0
        %v5918 = vmax.f32 %v5886, 0.0
        %v5919 = vmax.f32 %v5887, 0.0
        %v5920 = vmax.f32 %v5888, 0.0
        %v5921 = vpack.c.bf16 %v5890, %v5889
        %v5922 = vpack.c.bf16 %v5892, %v5891
        %v5923 = vpack.c.bf16 %v5894, %v5893
        %v5924 = vpack.c.bf16 %v5896, %v5895
        %v5925 = vpack.c.bf16 %v5898, %v5897
        %v5926 = vpack.c.bf16 %v5900, %v5899
        %v5927 = vpack.c.bf16 %v5902, %v5901
        %v5928 = vpack.c.bf16 %v5904, %v5903
        %v5929 = vpack.c.bf16 %v5906, %v5905
        %v5930 = vpack.c.bf16 %v5908, %v5907
        %v5931 = vpack.c.bf16 %v5910, %v5909
        %v5932 = vpack.c.bf16 %v5912, %v5911
        %v5933 = vpack.c.bf16 %v5914, %v5913
        %v5934 = vpack.c.bf16 %v5916, %v5915
        %v5935 = vpack.c.bf16 %v5918, %v5917
        %v5936 = vpack.c.bf16 %v5920, %v5919
        %v5953 = vunpack.c.l.b16 %v5921
        %v5954 = vunpack.c.h.b16 %v5921
        %v5955 = vunpack.c.l.b16 %v5922
        %v5956 = vunpack.c.h.b16 %v5922
        %v5957 = vunpack.c.l.b16 %v5923
        %v5958 = vunpack.c.h.b16 %v5923
        %v5959 = vunpack.c.l.b16 %v5924
        %v5960 = vunpack.c.h.b16 %v5924
        %v5961 = vunpack.c.l.b16 %v5925
        %v5962 = vunpack.c.h.b16 %v5925
        %v5963 = vunpack.c.l.b16 %v5926
        %v5964 = vunpack.c.h.b16 %v5926
        %v5965 = vunpack.c.l.b16 %v5927
        %v5966 = vunpack.c.h.b16 %v5927
        %v5967 = vunpack.c.l.b16 %v5928
        %v5968 = vunpack.c.h.b16 %v5928
        %v5969 = vunpack.c.l.b16 %v5929
        %v5970 = vunpack.c.h.b16 %v5929
        %v5971 = vunpack.c.l.b16 %v5930
        %v5972 = vunpack.c.h.b16 %v5930
        %v5973 = vunpack.c.l.b16 %v5931
        %v5974 = vunpack.c.h.b16 %v5931
        %v5975 = vunpack.c.l.b16 %v5932
        %v5976 = vunpack.c.h.b16 %v5932
        %v5977 = vunpack.c.l.b16 %v5933
        %v5978 = vunpack.c.h.b16 %v5933
        %v5979 = vunpack.c.l.b16 %v5934
        %v5980 = vunpack.c.h.b16 %v5934
        %v5981 = vunpack.c.l.b16 %v5935
        %v5982 = vunpack.c.h.b16 %v5935
        %v5983 = vunpack.c.l.b16 %v5936
        %v5984 = vunpack.c.h.b16 %v5936
        %v5985 = vpack.c.b16 %v5953, %v5953
        %v5986 = vpack.c.b16 %v5954, %v5954
        %v5987 = vpack.c.b16 %v5955, %v5955
        %v5988 = vpack.c.b16 %v5956, %v5956
        %v5989 = vpack.c.b16 %v5957, %v5957
        %v5990 = vpack.c.b16 %v5958, %v5958
        %v5991 = vpack.c.b16 %v5959, %v5959
        %v5992 = vpack.c.b16 %v5960, %v5960
        %v5993 = vpack.c.b16 %v5961, %v5961
        %v5994 = vpack.c.b16 %v5962, %v5962
        %v5995 = vpack.c.b16 %v5963, %v5963
        %v5996 = vpack.c.b16 %v5964, %v5964
        %v5997 = vpack.c.b16 %v5965, %v5965
        %v5998 = vpack.c.b16 %v5966, %v5966
        %v5999 = vpack.c.b16 %v5967, %v5967
        %v6000 = vpack.c.b16 %v5968, %v5968
        %v6001 = vpack.c.b16 %v5969, %v5969
        %v6002 = vpack.c.b16 %v5970, %v5970
        %v6003 = vpack.c.b16 %v5971, %v5971
        %v6004 = vpack.c.b16 %v5972, %v5972
        %v6005 = vpack.c.b16 %v5973, %v5973
        %v6006 = vpack.c.b16 %v5974, %v5974
        %v6007 = vpack.c.b16 %v5975, %v5975
        %v6008 = vpack.c.b16 %v5976, %v5976
        %v6009 = vpack.c.b16 %v5977, %v5977
        %v6010 = vpack.c.b16 %v5978, %v5978
        %v6011 = vpack.c.b16 %v5979, %v5979
        %v6012 = vpack.c.b16 %v5980, %v5980
        %v6013 = vpack.c.b16 %v5981, %v5981
        %v6014 = vpack.c.b16 %v5982, %v5982
        %v6015 = vpack.c.b16 %v5983, %v5983
        %v6016 = vpack.c.b16 %v5984, %v5984
        %v6018 = vshrl.u32 %v5985, 16
        %v6020 = vrot.slane %v6018, 7
        %v6021 = vshll.u32 %v5985, 16
        %v6023 = vor.u32 %v6020, %v6021
        %v6024 = vrot.slane %v6020, 4
        %v6026 = vshrl.u32 %v5986, 16
        %v6028 = vrot.slane %v6026, 7
        %v6029 = vshll.u32 %v5986, 16
        %v6031 = vor.u32 %v6028, %v6029
        %v6032 = vsel %vm595, %v6024, %v6031
        %v6033 = vrot.slane %v6028, 4
        %v6035 = vshrl.u32 %v5987, 16
        %v6037 = vrot.slane %v6035, 7
        %v6038 = vshll.u32 %v5987, 16
        %v6040 = vor.u32 %v6037, %v6038
        %v6041 = vrot.slane %v6037, 4
        %v6043 = vshrl.u32 %v5988, 16
        %v6045 = vrot.slane %v6043, 7
        %v6046 = vshll.u32 %v5988, 16
        %v6048 = vor.u32 %v6045, %v6046
        %v6049 = vsel %vm595, %v6041, %v6048
        %v6050 = vrot.slane %v6045, 4
        %v6052 = vshrl.u32 %v5989, 16
        %v6054 = vrot.slane %v6052, 7
        %v6055 = vshll.u32 %v5989, 16
        %v6057 = vor.u32 %v6054, %v6055
        %v6058 = vrot.slane %v6054, 4
        %v6060 = vshrl.u32 %v5990, 16
        %v6062 = vrot.slane %v6060, 7
        %v6063 = vshll.u32 %v5990, 16
        %v6065 = vor.u32 %v6062, %v6063
        %v6066 = vsel %vm595, %v6058, %v6065
        %v6067 = vrot.slane %v6062, 4
        %v6069 = vshrl.u32 %v5991, 16
        %v6071 = vrot.slane %v6069, 7
        %v6072 = vshll.u32 %v5991, 16
        %v6074 = vor.u32 %v6071, %v6072
        %v6075 = vrot.slane %v6071, 4
        %v6077 = vshrl.u32 %v5992, 16
        %v6079 = vrot.slane %v6077, 7
        %v6080 = vshll.u32 %v5992, 16
        %v6082 = vor.u32 %v6079, %v6080
        %v6083 = vsel %vm595, %v6075, %v6082
        %v6084 = vrot.slane %v6079, 4
        %v6086 = vshrl.u32 %v5993, 16
        %v6088 = vrot.slane %v6086, 7
        %v6089 = vshll.u32 %v5993, 16
        %v6091 = vor.u32 %v6088, %v6089
        %v6092 = vrot.slane %v6088, 4
        %v6094 = vshrl.u32 %v5994, 16
        %v6096 = vrot.slane %v6094, 7
        %v6097 = vshll.u32 %v5994, 16
        %v6099 = vor.u32 %v6096, %v6097
        %v6100 = vsel %vm595, %v6092, %v6099
        %v6101 = vrot.slane %v6096, 4
        %v6103 = vshrl.u32 %v5995, 16
        %v6105 = vrot.slane %v6103, 7
        %v6106 = vshll.u32 %v5995, 16
        %v6108 = vor.u32 %v6105, %v6106
        %v6109 = vrot.slane %v6105, 4
        %v6111 = vshrl.u32 %v5996, 16
        %v6113 = vrot.slane %v6111, 7
        %v6114 = vshll.u32 %v5996, 16
        %v6116 = vor.u32 %v6113, %v6114
        %v6117 = vsel %vm595, %v6109, %v6116
        %v6118 = vrot.slane %v6113, 4
        %v6120 = vshrl.u32 %v5997, 16
        %v6122 = vrot.slane %v6120, 7
        %v6123 = vshll.u32 %v5997, 16
        %v6125 = vor.u32 %v6122, %v6123
        %v6126 = vrot.slane %v6122, 4
        %v6128 = vshrl.u32 %v5998, 16
        %v6130 = vrot.slane %v6128, 7
        %v6131 = vshll.u32 %v5998, 16
        %v6133 = vor.u32 %v6130, %v6131
        %v6134 = vsel %vm595, %v6126, %v6133
        %v6135 = vrot.slane %v6130, 4
        %v6137 = vshrl.u32 %v5999, 16
        %v6139 = vrot.slane %v6137, 7
        %v6140 = vshll.u32 %v5999, 16
        %v6142 = vor.u32 %v6139, %v6140
        %v6143 = vrot.slane %v6139, 4
        %v6145 = vshrl.u32 %v6000, 16
        %v6147 = vrot.slane %v6145, 7
        %v6148 = vshll.u32 %v6000, 16
        %v6150 = vor.u32 %v6147, %v6148
        %v6151 = vsel %vm595, %v6143, %v6150
        %v6152 = vrot.slane %v6147, 4
        %v6154 = vshrl.u32 %v6001, 16
        %v6156 = vrot.slane %v6154, 7
        %v6157 = vshll.u32 %v6001, 16
        %v6159 = vor.u32 %v6156, %v6157
        %v6160 = vrot.slane %v6156, 4
        %v6162 = vshrl.u32 %v6002, 16
        %v6164 = vrot.slane %v6162, 7
        %v6165 = vshll.u32 %v6002, 16
        %v6167 = vor.u32 %v6164, %v6165
        %v6168 = vsel %vm595, %v6160, %v6167
        %v6169 = vrot.slane %v6164, 4
        %v6171 = vshrl.u32 %v6003, 16
        %v6173 = vrot.slane %v6171, 7
        %v6174 = vshll.u32 %v6003, 16
        %v6176 = vor.u32 %v6173, %v6174
        %v6177 = vrot.slane %v6173, 4
        %v6179 = vshrl.u32 %v6004, 16
        %v6181 = vrot.slane %v6179, 7
        %v6182 = vshll.u32 %v6004, 16
        %v6184 = vor.u32 %v6181, %v6182
        %v6185 = vsel %vm595, %v6177, %v6184
        %v6186 = vrot.slane %v6181, 4
        %v6188 = vshrl.u32 %v6005, 16
        %v6190 = vrot.slane %v6188, 7
        %v6191 = vshll.u32 %v6005, 16
        %v6193 = vor.u32 %v6190, %v6191
        %v6194 = vrot.slane %v6190, 4
        %v6196 = vshrl.u32 %v6006, 16
        %v6198 = vrot.slane %v6196, 7
        %v6199 = vshll.u32 %v6006, 16
        %v6201 = vor.u32 %v6198, %v6199
        %v6202 = vsel %vm595, %v6194, %v6201
        %v6203 = vrot.slane %v6198, 4
        %v6205 = vshrl.u32 %v6007, 16
        %v6207 = vrot.slane %v6205, 7
        %v6208 = vshll.u32 %v6007, 16
        %v6210 = vor.u32 %v6207, %v6208
        %v6211 = vrot.slane %v6207, 4
        %v6213 = vshrl.u32 %v6008, 16
        %v6215 = vrot.slane %v6213, 7
        %v6216 = vshll.u32 %v6008, 16
        %v6218 = vor.u32 %v6215, %v6216
        %v6219 = vsel %vm595, %v6211, %v6218
        %v6220 = vrot.slane %v6215, 4
        %v6222 = vshrl.u32 %v6009, 16
        %v6224 = vrot.slane %v6222, 7
        %v6225 = vshll.u32 %v6009, 16
        %v6227 = vor.u32 %v6224, %v6225
        %v6228 = vrot.slane %v6224, 4
        %v6230 = vshrl.u32 %v6010, 16
        %v6232 = vrot.slane %v6230, 7
        %v6233 = vshll.u32 %v6010, 16
        %v6235 = vor.u32 %v6232, %v6233
        %v6236 = vsel %vm595, %v6228, %v6235
        %v6237 = vrot.slane %v6232, 4
        %v6239 = vshrl.u32 %v6011, 16
        %v6241 = vrot.slane %v6239, 7
        %v6242 = vshll.u32 %v6011, 16
        %v6244 = vor.u32 %v6241, %v6242
        %v6245 = vrot.slane %v6241, 4
        %v6247 = vshrl.u32 %v6012, 16
        %v6249 = vrot.slane %v6247, 7
        %v6250 = vshll.u32 %v6012, 16
        %v6252 = vor.u32 %v6249, %v6250
        %v6253 = vsel %vm595, %v6245, %v6252
        %v6254 = vrot.slane %v6249, 4
        %v6256 = vshrl.u32 %v6013, 16
        %v6258 = vrot.slane %v6256, 7
        %v6259 = vshll.u32 %v6013, 16
        %v6261 = vor.u32 %v6258, %v6259
        %v6262 = vrot.slane %v6258, 4
        %v6264 = vshrl.u32 %v6014, 16
        %v6266 = vrot.slane %v6264, 7
        %v6267 = vshll.u32 %v6014, 16
        %v6269 = vor.u32 %v6266, %v6267
        %v6270 = vsel %vm595, %v6262, %v6269
        %v6271 = vrot.slane %v6266, 4
        %v6273 = vshrl.u32 %v6015, 16
        %v6275 = vrot.slane %v6273, 7
        %v6276 = vshll.u32 %v6015, 16
        %v6278 = vor.u32 %v6275, %v6276
        %v6279 = vrot.slane %v6275, 4
        %v6281 = vshrl.u32 %v6016, 16
        %v6283 = vrot.slane %v6281, 7
        %v6284 = vshll.u32 %v6016, 16
        %v6286 = vor.u32 %v6283, %v6284
        %v6287 = vsel %vm595, %v6279, %v6286
        %v6288 = vrot.slane %v6283, 4
        %s6337 = scalar_lea.vmem [#allocation3], 12
        %v6338 = vld [vmem:[%s6337] sm:$0xf]
        %v6339 = vsel %vm918, %v6023, %v6338
        %6340 = vst [vmem:[%s6337] sm:$0xf] %v6339
        %6341 = vst [vmem:[%s6337 + $0x4] sm:$0xf] %v6032
        %v6342 = vld [vmem:[%s6337 + $0x8] sm:$0x1]
        %v6343 = vsel %vm336, %v6033, %v6342
        %6344 = vst [vmem:[%s6337 + $0x8] sm:$0x1] %v6343
        %v6345 = vld [vmem:[%s6337 + $0xc] sm:$0xf]
        %v6346 = vsel %vm918, %v6040, %v6345
        %6347 = vst [vmem:[%s6337 + $0xc] sm:$0xf] %v6346
        %6348 = vst [vmem:[%s6337 + $0x10] sm:$0xf] %v6049
        %v6349 = vld [vmem:[%s6337 + $0x14] sm:$0x1]
        %v6350 = vsel %vm336, %v6050, %v6349
        %6351 = vst [vmem:[%s6337 + $0x14] sm:$0x1] %v6350
        %v6352 = vld [vmem:[%s6337 + $0x18] sm:$0xf]
        %v6353 = vsel %vm918, %v6057, %v6352
        %6354 = vst [vmem:[%s6337 + $0x18] sm:$0xf] %v6353
        %6355 = vst [vmem:[%s6337 + $0x1c] sm:$0xf] %v6066
        %v6356 = vld [vmem:[%s6337 + $0x20] sm:$0x1]
        %v6357 = vsel %vm336, %v6067, %v6356
        %6358 = vst [vmem:[%s6337 + $0x20] sm:$0x1] %v6357
        %v6359 = vld [vmem:[%s6337 + $0x24] sm:$0xf]
        %v6360 = vsel %vm918, %v6074, %v6359
        %6361 = vst [vmem:[%s6337 + $0x24] sm:$0xf] %v6360
        %6362 = vst [vmem:[%s6337 + $0x28] sm:$0xf] %v6083
        %v6363 = vld [vmem:[%s6337 + $0x2c] sm:$0x1]
        %v6364 = vsel %vm336, %v6084, %v6363
        %6365 = vst [vmem:[%s6337 + $0x2c] sm:$0x1] %v6364
        %v6366 = vld [vmem:[%s6337 + $0x30] sm:$0xf]
        %v6367 = vsel %vm918, %v6091, %v6366
        %6368 = vst [vmem:[%s6337 + $0x30] sm:$0xf] %v6367
        %6369 = vst [vmem:[%s6337 + $0x34] sm:$0xf] %v6100
        %v6370 = vld [vmem:[%s6337 + $0x38] sm:$0x1]
        %v6371 = vsel %vm336, %v6101, %v6370
        %6372 = vst [vmem:[%s6337 + $0x38] sm:$0x1] %v6371
        %v6373 = vld [vmem:[%s6337 + $0x3c] sm:$0xf]
        %v6374 = vsel %vm918, %v6108, %v6373
        %6375 = vst [vmem:[%s6337 + $0x3c] sm:$0xf] %v6374
        %6376 = vst [vmem:[%s6337 + $0x40] sm:$0xf] %v6117
        %v6377 = vld [vmem:[%s6337 + $0x44] sm:$0x1]
        %v6378 = vsel %vm336, %v6118, %v6377
        %6379 = vst [vmem:[%s6337 + $0x44] sm:$0x1] %v6378
        %v6380 = vld [vmem:[%s6337 + $0x48] sm:$0xf]
        %v6381 = vsel %vm918, %v6125, %v6380
        %6382 = vst [vmem:[%s6337 + $0x48] sm:$0xf] %v6381
        %6383 = vst [vmem:[%s6337 + $0x4c] sm:$0xf] %v6134
        %v6384 = vld [vmem:[%s6337 + $0x50] sm:$0x1]
        %v6385 = vsel %vm336, %v6135, %v6384
        %6386 = vst [vmem:[%s6337 + $0x50] sm:$0x1] %v6385
        %v6387 = vld [vmem:[%s6337 + $0x54] sm:$0xf]
        %v6388 = vsel %vm918, %v6142, %v6387
        %6389 = vst [vmem:[%s6337 + $0x54] sm:$0xf] %v6388
        %6390 = vst [vmem:[%s6337 + $0x58] sm:$0xf] %v6151
        %v6391 = vld [vmem:[%s6337 + $0x5c] sm:$0x1]
        %v6392 = vsel %vm336, %v6152, %v6391
        %6393 = vst [vmem:[%s6337 + $0x5c] sm:$0x1] %v6392
        %v6394 = vld [vmem:[%s6337 + $0x60] sm:$0xf]
        %v6395 = vsel %vm918, %v6159, %v6394
        %6396 = vst [vmem:[%s6337 + $0x60] sm:$0xf] %v6395
        %6397 = vst [vmem:[%s6337 + $0x64] sm:$0xf] %v6168
        %v6398 = vld [vmem:[%s6337 + $0x68] sm:$0x1]
        %v6399 = vsel %vm336, %v6169, %v6398
        %6400 = vst [vmem:[%s6337 + $0x68] sm:$0x1] %v6399
        %v6401 = vld [vmem:[%s6337 + $0x6c] sm:$0xf]
        %v6402 = vsel %vm918, %v6176, %v6401
        %6403 = vst [vmem:[%s6337 + $0x6c] sm:$0xf] %v6402
        %6404 = vst [vmem:[%s6337 + $0x70] sm:$0xf] %v6185
        %v6405 = vld [vmem:[%s6337 + $0x74] sm:$0x1]
        %v6406 = vsel %vm336, %v6186, %v6405
        %6407 = vst [vmem:[%s6337 + $0x74] sm:$0x1] %v6406
        %v6408 = vld [vmem:[%s6337 + $0x78] sm:$0xf]
        %v6409 = vsel %vm918, %v6193, %v6408
        %6410 = vst [vmem:[%s6337 + $0x78] sm:$0xf] %v6409
        %6411 = vst [vmem:[%s6337 + $0x7c] sm:$0xf] %v6202
        %v6412 = vld [vmem:[%s6337 + $0x80] sm:$0x1]
        %v6413 = vsel %vm336, %v6203, %v6412
        %6414 = vst [vmem:[%s6337 + $0x80] sm:$0x1] %v6413
        %v6415 = vld [vmem:[%s6337 + $0x84] sm:$0xf]
        %v6416 = vsel %vm918, %v6210, %v6415
        %6417 = vst [vmem:[%s6337 + $0x84] sm:$0xf] %v6416
        %6418 = vst [vmem:[%s6337 + $0x88] sm:$0xf] %v6219
        %v6419 = vld [vmem:[%s6337 + $0x8c] sm:$0x1]
        %v6420 = vsel %vm336, %v6220, %v6419
        %6421 = vst [vmem:[%s6337 + $0x8c] sm:$0x1] %v6420
        %v6422 = vld [vmem:[%s6337 + $0x90] sm:$0xf]
        %v6423 = vsel %vm918, %v6227, %v6422
        %6424 = vst [vmem:[%s6337 + $0x90] sm:$0xf] %v6423
        %6425 = vst [vmem:[%s6337 + $0x94] sm:$0xf] %v6236
        %v6426 = vld [vmem:[%s6337 + $0x98] sm:$0x1]
        %v6427 = vsel %vm336, %v6237, %v6426
        %6428 = vst [vmem:[%s6337 + $0x98] sm:$0x1] %v6427
        %v6429 = vld [vmem:[%s6337 + $0x9c] sm:$0xf]
        %v6430 = vsel %vm918, %v6244, %v6429
        %6431 = vst [vmem:[%s6337 + $0x9c] sm:$0xf] %v6430
        %6432 = vst [vmem:[%s6337 + $0xa0] sm:$0xf] %v6253
        %v6433 = vld [vmem:[%s6337 + $0xa4] sm:$0x1]
        %v6434 = vsel %vm336, %v6254, %v6433
        %6435 = vst [vmem:[%s6337 + $0xa4] sm:$0x1] %v6434
        %v6436 = vld [vmem:[%s6337 + $0xa8] sm:$0xf]
        %v6437 = vsel %vm918, %v6261, %v6436
        %6438 = vst [vmem:[%s6337 + $0xa8] sm:$0xf] %v6437
        %6439 = vst [vmem:[%s6337 + $0xac] sm:$0xf] %v6270
        %v6440 = vld [vmem:[%s6337 + $0xb0] sm:$0x1]
        %v6441 = vsel %vm336, %v6271, %v6440
        %6442 = vst [vmem:[%s6337 + $0xb0] sm:$0x1] %v6441
        %v6443 = vld [vmem:[%s6337 + $0xb4] sm:$0xf]
        %v6444 = vsel %vm918, %v6278, %v6443
        %6445 = vst [vmem:[%s6337 + $0xb4] sm:$0xf] %v6444
        %6446 = vst [vmem:[%s6337 + $0xb8] sm:$0xf] %v6287
        %v6447 = vld [vmem:[%s6337 + $0xbc] sm:$0x1]
        %v6448 = vsel %vm336, %v6288, %v6447
        %6449 = vst [vmem:[%s6337 + $0xbc] sm:$0x1] %v6448
        %v6450 = vld [vmem:[#allocation3] sm:$0xf]
        %v6451 = vld [vmem:[#allocation3 + $0x4] sm:$0xf]
        %v6452 = vld [vmem:[#allocation3 + $0xc] sm:$0xf]
        %v6453 = vld [vmem:[#allocation3 + $0x10] sm:$0xf]
        %v6454 = vld [vmem:[#allocation3 + $0x18] sm:$0xf]
        %v6455 = vld [vmem:[#allocation3 + $0x1c] sm:$0xf]
        %v6456 = vld [vmem:[#allocation3 + $0x24] sm:$0xf]
        %v6457 = vld [vmem:[#allocation3 + $0x28] sm:$0xf]
        %v6458 = vld [vmem:[#allocation3 + $0x30] sm:$0xf]
        %v6459 = vld [vmem:[#allocation3 + $0x34] sm:$0xf]
        %v6460 = vld [vmem:[#allocation3 + $0x3c] sm:$0xf]
        %v6461 = vld [vmem:[#allocation3 + $0x40] sm:$0xf]
        %v6462 = vld [vmem:[#allocation3 + $0x48] sm:$0xf]
        %v6463 = vld [vmem:[#allocation3 + $0x4c] sm:$0xf]
        %v6464 = vld [vmem:[#allocation3 + $0x54] sm:$0xf]
        %v6465 = vld [vmem:[#allocation3 + $0x58] sm:$0xf]
        %v6466 = vld [vmem:[#allocation3 + $0x60] sm:$0xf]
        %v6467 = vld [vmem:[#allocation3 + $0x64] sm:$0xf]
        %v6468 = vld [vmem:[#allocation3 + $0x6c] sm:$0xf]
        %v6469 = vld [vmem:[#allocation3 + $0x70] sm:$0xf]
        %v6470 = vld [vmem:[#allocation3 + $0x78] sm:$0xf]
        %v6471 = vld [vmem:[#allocation3 + $0x7c] sm:$0xf]
        %v6472 = vld [vmem:[#allocation3 + $0x84] sm:$0xf]
        %v6473 = vld [vmem:[#allocation3 + $0x88] sm:$0xf]
        %v6474 = vld [vmem:[#allocation3 + $0x90] sm:$0xf]
        %v6475 = vld [vmem:[#allocation3 + $0x94] sm:$0xf]
        %v6476 = vld [vmem:[#allocation3 + $0x9c] sm:$0xf]
        %v6477 = vld [vmem:[#allocation3 + $0xa0] sm:$0xf]
        %v6478 = vld [vmem:[#allocation3 + $0xa8] sm:$0xf]
        %v6479 = vld [vmem:[#allocation3 + $0xac] sm:$0xf]
        %v6480 = vld [vmem:[#allocation3 + $0xb4] sm:$0xf]
        %v6481 = vld [vmem:[#allocation3 + $0xb8] sm:$0xf]
        %6482 = vst [vmem:[#allocation4] sm:$0xf] %v6450
        %6483 = vst [vmem:[#allocation4 + $0x24] sm:$0xf] %v6451
        %6484 = vst [vmem:[#allocation4 + $0x48] sm:$0xf] %v6452
        %6485 = vst [vmem:[#allocation4 + $0x6c] sm:$0xf] %v6453
        %6486 = vst [vmem:[#allocation4 + $0x90] sm:$0xf] %v6454
        %6487 = vst [vmem:[#allocation4 + $0xb4] sm:$0xf] %v6455
        %6488 = vst [vmem:[#allocation4 + $0xd8] sm:$0xf] %v6456
        %6489 = vst [vmem:[#allocation4 + $0xfc] sm:$0xf] %v6457
        %6490 = vst [vmem:[#allocation4 + $0x120] sm:$0xf] %v6458
        %6491 = vst [vmem:[#allocation4 + $0x144] sm:$0xf] %v6459
        %6492 = vst [vmem:[#allocation4 + $0x168] sm:$0xf] %v6460
        %6493 = vst [vmem:[#allocation4 + $0x18c] sm:$0xf] %v6461
        %6494 = vst [vmem:[#allocation4 + $0x1b0] sm:$0xf] %v6462
        %6495 = vst [vmem:[#allocation4 + $0x1d4] sm:$0xf] %v6463
        %6496 = vst [vmem:[#allocation4 + $0x1f8] sm:$0xf] %v6464
        %6497 = vst [vmem:[#allocation4 + $0x21c] sm:$0xf] %v6465
        %6498 = vst [vmem:[#allocation4 + $0x240] sm:$0xf] %v6466
        %6499 = vst [vmem:[#allocation4 + $0x264] sm:$0xf] %v6467
        %6500 = vst [vmem:[#allocation4 + $0x288] sm:$0xf] %v6468
        %6501 = vst [vmem:[#allocation4 + $0x2ac] sm:$0xf] %v6469
        %6502 = vst [vmem:[#allocation4 + $0x2d0] sm:$0xf] %v6470
        %6503 = vst [vmem:[#allocation4 + $0x2f4] sm:$0xf] %v6471
        %6504 = vst [vmem:[#allocation4 + $0x318] sm:$0xf] %v6472
        %6505 = vst [vmem:[#allocation4 + $0x33c] sm:$0xf] %v6473
        %6506 = vst [vmem:[#allocation4 + $0x360] sm:$0xf] %v6474
        %6507 = vst [vmem:[#allocation4 + $0x384] sm:$0xf] %v6475
        %6508 = vst [vmem:[#allocation4 + $0x3a8] sm:$0xf] %v6476
        %6509 = vst [vmem:[#allocation4 + $0x3cc] sm:$0xf] %v6477
        %6510 = vst [vmem:[#allocation4 + $0x3f0] sm:$0xf] %v6478
        %6511 = vst [vmem:[#allocation4 + $0x414] sm:$0xf] %v6479
        %6512 = vst [vmem:[#allocation4 + $0x438] sm:$0xf] %v6480
        %6513 = vst [vmem:[#allocation4 + $0x45c] sm:$0xf] %v6481
        %v6514 = vld [vmem:[#allocation3] sm:$0xf]
        %v6515 = vld [vmem:[#allocation3 + $0x4] sm:$0xf]
        %v6516 = vld [vmem:[#allocation3 + $0x8] sm:$0x1]
        %v6517 = vld [vmem:[#allocation3 + $0xc] sm:$0xf]
        %v6518 = vld [vmem:[#allocation3 + $0x10] sm:$0xf]
        %v6519 = vld [vmem:[#allocation3 + $0x14] sm:$0x1]
        %v6520 = vld [vmem:[#allocation3 + $0x18] sm:$0xf]
        %v6521 = vld [vmem:[#allocation3 + $0x1c] sm:$0xf]
        %v6522 = vld [vmem:[#allocation3 + $0x20] sm:$0x1]
        %v6523 = vld [vmem:[#allocation3 + $0x24] sm:$0xf]
        %v6524 = vld [vmem:[#allocation3 + $0x28] sm:$0xf]
        %v6525 = vld [vmem:[#allocation3 + $0x2c] sm:$0x1]
        %v6526 = vld [vmem:[#allocation3 + $0x30] sm:$0xf]
        %v6527 = vld [vmem:[#allocation3 + $0x34] sm:$0xf]
        %v6528 = vld [vmem:[#allocation3 + $0x38] sm:$0x1]
        %v6529 = vld [vmem:[#allocation3 + $0x3c] sm:$0xf]
        %v6530 = vld [vmem:[#allocation3 + $0x40] sm:$0xf]
        %v6531 = vld [vmem:[#allocation3 + $0x44] sm:$0x1]
        %v6532 = vld [vmem:[#allocation3 + $0x48] sm:$0xf]
        %v6533 = vld [vmem:[#allocation3 + $0x4c] sm:$0xf]
        %v6534 = vld [vmem:[#allocation3 + $0x50] sm:$0x1]
        %v6535 = vld [vmem:[#allocation3 + $0x54] sm:$0xf]
        %v6536 = vld [vmem:[#allocation3 + $0x58] sm:$0xf]
        %v6537 = vld [vmem:[#allocation3 + $0x5c] sm:$0x1]
        %v6538 = vld [vmem:[#allocation3 + $0x60] sm:$0xf]
        %v6539 = vld [vmem:[#allocation3 + $0x64] sm:$0xf]
        %v6540 = vld [vmem:[#allocation3 + $0x68] sm:$0x1]
        %v6541 = vld [vmem:[#allocation3 + $0x6c] sm:$0xf]
        %v6542 = vld [vmem:[#allocation3 + $0x70] sm:$0xf]
        %v6543 = vld [vmem:[#allocation3 + $0x74] sm:$0x1]
        %v6544 = vld [vmem:[#allocation3 + $0x78] sm:$0xf]
        %v6545 = vld [vmem:[#allocation3 + $0x7c] sm:$0xf]
        %v6546 = vld [vmem:[#allocation3 + $0x80] sm:$0x1]
        %v6547 = vld [vmem:[#allocation3 + $0x84] sm:$0xf]
        %v6548 = vld [vmem:[#allocation3 + $0x88] sm:$0xf]
        %v6549 = vld [vmem:[#allocation3 + $0x8c] sm:$0x1]
        %v6550 = vld [vmem:[#allocation3 + $0x90] sm:$0xf]
        %v6551 = vld [vmem:[#allocation3 + $0x94] sm:$0xf]
        %v6552 = vld [vmem:[#allocation3 + $0x98] sm:$0x1]
        %v6553 = vld [vmem:[#allocation3 + $0x9c] sm:$0xf]
        %v6554 = vld [vmem:[#allocation3 + $0xa0] sm:$0xf]
        %v6555 = vld [vmem:[#allocation3 + $0xa4] sm:$0x1]
        %v6556 = vld [vmem:[#allocation3 + $0xa8] sm:$0xf]
        %v6557 = vld [vmem:[#allocation3 + $0xac] sm:$0xf]
        %v6558 = vld [vmem:[#allocation3 + $0xb0] sm:$0x1]
        %v6559 = vld [vmem:[#allocation3 + $0xb4] sm:$0xf]
        %v6560 = vld [vmem:[#allocation3 + $0xb8] sm:$0xf]
        %v6561 = vld [vmem:[#allocation3 + $0xbc] sm:$0x1]
        %v6563 = vshrl.u32 %v6514, 16
        %v6565 = vrot.slane %v6563, 4
        %v6566 = vshll.u32 %v6514, 16
        %v6568 = vrot.slane %v6566, 5
        %v6569 = vor.u32 %v6565, %v6568
        %v6570 = vrot.slane %v6569, 4
        %v6572 = vshll.u32 %v6515, 16
        %v6574 = vrot.slane %v6572, 5
        %v6575 = vsel %vm1145, %v6570, %v6574
        %v6576 = vshrl.u32 %v6515, 16
        %v6578 = vrot.slane %v6576, 4
        %v6579 = vor.u32 %v6578, %v6574
        %v6580 = vrot.slane %v6579, 4
        %v6582 = vshll.u32 %v6516, 16
        %v6584 = vrot.slane %v6582, 5
        %v6585 = vsel %vm1145, %v6580, %v6584
        %v6587 = vshrl.u32 %v6517, 16
        %v6589 = vrot.slane %v6587, 4
        %v6590 = vshll.u32 %v6517, 16
        %v6592 = vrot.slane %v6590, 5
        %v6593 = vor.u32 %v6589, %v6592
        %v6594 = vrot.slane %v6593, 4
        %v6596 = vshll.u32 %v6518, 16
        %v6598 = vrot.slane %v6596, 5
        %v6599 = vsel %vm1145, %v6594, %v6598
        %v6600 = vshrl.u32 %v6518, 16
        %v6602 = vrot.slane %v6600, 4
        %v6603 = vor.u32 %v6602, %v6598
        %v6604 = vrot.slane %v6603, 4
        %v6606 = vshll.u32 %v6519, 16
        %v6608 = vrot.slane %v6606, 5
        %v6609 = vsel %vm1145, %v6604, %v6608
        %v6611 = vshrl.u32 %v6520, 16
        %v6613 = vrot.slane %v6611, 4
        %v6614 = vshll.u32 %v6520, 16
        %v6616 = vrot.slane %v6614, 5
        %v6617 = vor.u32 %v6613, %v6616
        %v6618 = vrot.slane %v6617, 4
        %v6620 = vshll.u32 %v6521, 16
        %v6622 = vrot.slane %v6620, 5
        %v6623 = vsel %vm1145, %v6618, %v6622
        %v6624 = vshrl.u32 %v6521, 16
        %v6626 = vrot.slane %v6624, 4
        %v6627 = vor.u32 %v6626, %v6622
        %v6628 = vrot.slane %v6627, 4
        %v6630 = vshll.u32 %v6522, 16
        %v6632 = vrot.slane %v6630, 5
        %v6633 = vsel %vm1145, %v6628, %v6632
        %v6635 = vshrl.u32 %v6523, 16
        %v6637 = vrot.slane %v6635, 4
        %v6638 = vshll.u32 %v6523, 16
        %v6640 = vrot.slane %v6638, 5
        %v6641 = vor.u32 %v6637, %v6640
        %v6642 = vrot.slane %v6641, 4
        %v6644 = vshll.u32 %v6524, 16
        %v6646 = vrot.slane %v6644, 5
        %v6647 = vsel %vm1145, %v6642, %v6646
        %v6648 = vshrl.u32 %v6524, 16
        %v6650 = vrot.slane %v6648, 4
        %v6651 = vor.u32 %v6650, %v6646
        %v6652 = vrot.slane %v6651, 4
        %v6654 = vshll.u32 %v6525, 16
        %v6656 = vrot.slane %v6654, 5
        %v6657 = vsel %vm1145, %v6652, %v6656
        %v6659 = vshrl.u32 %v6526, 16
        %v6661 = vrot.slane %v6659, 4
        %v6662 = vshll.u32 %v6526, 16
        %v6664 = vrot.slane %v6662, 5
        %v6665 = vor.u32 %v6661, %v6664
        %v6666 = vrot.slane %v6665, 4
        %v6668 = vshll.u32 %v6527, 16
        %v6670 = vrot.slane %v6668, 5
        %v6671 = vsel %vm1145, %v6666, %v6670
        %v6672 = vshrl.u32 %v6527, 16
        %v6674 = vrot.slane %v6672, 4
        %v6675 = vor.u32 %v6674, %v6670
        %v6676 = vrot.slane %v6675, 4
        %v6678 = vshll.u32 %v6528, 16
        %v6680 = vrot.slane %v6678, 5
        %v6681 = vsel %vm1145, %v6676, %v6680
        %v6683 = vshrl.u32 %v6529, 16
        %v6685 = vrot.slane %v6683, 4
        %v6686 = vshll.u32 %v6529, 16
        %v6688 = vrot.slane %v6686, 5
        %v6689 = vor.u32 %v6685, %v6688
        %v6690 = vrot.slane %v6689, 4
        %v6692 = vshll.u32 %v6530, 16
        %v6694 = vrot.slane %v6692, 5
        %v6695 = vsel %vm1145, %v6690, %v6694
        %v6696 = vshrl.u32 %v6530, 16
        %v6698 = vrot.slane %v6696, 4
        %v6699 = vor.u32 %v6698, %v6694
        %v6700 = vrot.slane %v6699, 4
        %v6702 = vshll.u32 %v6531, 16
        %v6704 = vrot.slane %v6702, 5
        %v6705 = vsel %vm1145, %v6700, %v6704
        %v6707 = vshrl.u32 %v6532, 16
        %v6709 = vrot.slane %v6707, 4
        %v6710 = vshll.u32 %v6532, 16
        %v6712 = vrot.slane %v6710, 5
        %v6713 = vor.u32 %v6709, %v6712
        %v6714 = vrot.slane %v6713, 4
        %v6716 = vshll.u32 %v6533, 16
        %v6718 = vrot.slane %v6716, 5
        %v6719 = vsel %vm1145, %v6714, %v6718
        %v6720 = vshrl.u32 %v6533, 16
        %v6722 = vrot.slane %v6720, 4
        %v6723 = vor.u32 %v6722, %v6718
        %v6724 = vrot.slane %v6723, 4
        %v6726 = vshll.u32 %v6534, 16
        %v6728 = vrot.slane %v6726, 5
        %v6729 = vsel %vm1145, %v6724, %v6728
        %v6731 = vshrl.u32 %v6535, 16
        %v6733 = vrot.slane %v6731, 4
        %v6734 = vshll.u32 %v6535, 16
        %v6736 = vrot.slane %v6734, 5
        %v6737 = vor.u32 %v6733, %v6736
        %v6738 = vrot.slane %v6737, 4
        %v6740 = vshll.u32 %v6536, 16
        %v6742 = vrot.slane %v6740, 5
        %v6743 = vsel %vm1145, %v6738, %v6742
        %v6744 = vshrl.u32 %v6536, 16
        %v6746 = vrot.slane %v6744, 4
        %v6747 = vor.u32 %v6746, %v6742
        %v6748 = vrot.slane %v6747, 4
        %v6750 = vshll.u32 %v6537, 16
        %v6752 = vrot.slane %v6750, 5
        %v6753 = vsel %vm1145, %v6748, %v6752
        %v6755 = vshrl.u32 %v6538, 16
        %v6757 = vrot.slane %v6755, 4
        %v6758 = vshll.u32 %v6538, 16
        %v6760 = vrot.slane %v6758, 5
        %v6761 = vor.u32 %v6757, %v6760
        %v6762 = vrot.slane %v6761, 4
        %v6764 = vshll.u32 %v6539, 16
        %v6766 = vrot.slane %v6764, 5
        %v6767 = vsel %vm1145, %v6762, %v6766
        %v6768 = vshrl.u32 %v6539, 16
        %v6770 = vrot.slane %v6768, 4
        %v6771 = vor.u32 %v6770, %v6766
        %v6772 = vrot.slane %v6771, 4
        %v6774 = vshll.u32 %v6540, 16
        %v6776 = vrot.slane %v6774, 5
        %v6777 = vsel %vm1145, %v6772, %v6776
        %v6779 = vshrl.u32 %v6541, 16
        %v6781 = vrot.slane %v6779, 4
        %v6782 = vshll.u32 %v6541, 16
        %v6784 = vrot.slane %v6782, 5
        %v6785 = vor.u32 %v6781, %v6784
        %v6786 = vrot.slane %v6785, 4
        %v6788 = vshll.u32 %v6542, 16
        %v6790 = vrot.slane %v6788, 5
        %v6791 = vsel %vm1145, %v6786, %v6790
        %v6792 = vshrl.u32 %v6542, 16
        %v6794 = vrot.slane %v6792, 4
        %v6795 = vor.u32 %v6794, %v6790
        %v6796 = vrot.slane %v6795, 4
        %v6798 = vshll.u32 %v6543, 16
        %v6800 = vrot.slane %v6798, 5
        %v6801 = vsel %vm1145, %v6796, %v6800
        %v6803 = vshrl.u32 %v6544, 16
        %v6805 = vrot.slane %v6803, 4
        %v6806 = vshll.u32 %v6544, 16
        %v6808 = vrot.slane %v6806, 5
        %v6809 = vor.u32 %v6805, %v6808
        %v6810 = vrot.slane %v6809, 4
        %v6812 = vshll.u32 %v6545, 16
        %v6814 = vrot.slane %v6812, 5
        %v6815 = vsel %vm1145, %v6810, %v6814
        %v6816 = vshrl.u32 %v6545, 16
        %v6818 = vrot.slane %v6816, 4
        %v6819 = vor.u32 %v6818, %v6814
        %v6820 = vrot.slane %v6819, 4
        %v6822 = vshll.u32 %v6546, 16
        %v6824 = vrot.slane %v6822, 5
        %v6825 = vsel %vm1145, %v6820, %v6824
        %v6827 = vshrl.u32 %v6547, 16
        %v6829 = vrot.slane %v6827, 4
        %v6830 = vshll.u32 %v6547, 16
        %v6832 = vrot.slane %v6830, 5
        %v6833 = vor.u32 %v6829, %v6832
        %v6834 = vrot.slane %v6833, 4
        %v6836 = vshll.u32 %v6548, 16
        %v6838 = vrot.slane %v6836, 5
        %v6839 = vsel %vm1145, %v6834, %v6838
        %v6840 = vshrl.u32 %v6548, 16
        %v6842 = vrot.slane %v6840, 4
        %v6843 = vor.u32 %v6842, %v6838
        %v6844 = vrot.slane %v6843, 4
        %v6846 = vshll.u32 %v6549, 16
        %v6848 = vrot.slane %v6846, 5
        %v6849 = vsel %vm1145, %v6844, %v6848
        %v6851 = vshrl.u32 %v6550, 16
        %v6853 = vrot.slane %v6851, 4
        %v6854 = vshll.u32 %v6550, 16
        %v6856 = vrot.slane %v6854, 5
        %v6857 = vor.u32 %v6853, %v6856
        %v6858 = vrot.slane %v6857, 4
        %v6860 = vshll.u32 %v6551, 16
        %v6862 = vrot.slane %v6860, 5
        %v6863 = vsel %vm1145, %v6858, %v6862
        %v6864 = vshrl.u32 %v6551, 16
        %v6866 = vrot.slane %v6864, 4
        %v6867 = vor.u32 %v6866, %v6862
        %v6868 = vrot.slane %v6867, 4
        %v6870 = vshll.u32 %v6552, 16
        %v6872 = vrot.slane %v6870, 5
        %v6873 = vsel %vm1145, %v6868, %v6872
        %v6875 = vshrl.u32 %v6553, 16
        %v6877 = vrot.slane %v6875, 4
        %v6878 = vshll.u32 %v6553, 16
        %v6880 = vrot.slane %v6878, 5
        %v6881 = vor.u32 %v6877, %v6880
        %v6882 = vrot.slane %v6881, 4
        %v6884 = vshll.u32 %v6554, 16
        %v6886 = vrot.slane %v6884, 5
        %v6887 = vsel %vm1145, %v6882, %v6886
        %v6888 = vshrl.u32 %v6554, 16
        %v6890 = vrot.slane %v6888, 4
        %v6891 = vor.u32 %v6890, %v6886
        %v6892 = vrot.slane %v6891, 4
        %v6894 = vshll.u32 %v6555, 16
        %v6896 = vrot.slane %v6894, 5
        %v6897 = vsel %vm1145, %v6892, %v6896
        %v6899 = vshrl.u32 %v6556, 16
        %v6901 = vrot.slane %v6899, 4
        %v6902 = vshll.u32 %v6556, 16
        %v6904 = vrot.slane %v6902, 5
        %v6905 = vor.u32 %v6901, %v6904
        %v6906 = vrot.slane %v6905, 4
        %v6908 = vshll.u32 %v6557, 16
        %v6910 = vrot.slane %v6908, 5
        %v6911 = vsel %vm1145, %v6906, %v6910
        %v6912 = vshrl.u32 %v6557, 16
        %v6914 = vrot.slane %v6912, 4
        %v6915 = vor.u32 %v6914, %v6910
        %v6916 = vrot.slane %v6915, 4
        %v6918 = vshll.u32 %v6558, 16
        %v6920 = vrot.slane %v6918, 5
        %v6921 = vsel %vm1145, %v6916, %v6920
        %v6923 = vshrl.u32 %v6559, 16
        %v6925 = vrot.slane %v6923, 4
        %v6926 = vshll.u32 %v6559, 16
        %v6928 = vrot.slane %v6926, 5
        %v6929 = vor.u32 %v6925, %v6928
        %v6930 = vrot.slane %v6929, 4
        %v6932 = vshll.u32 %v6560, 16
        %v6934 = vrot.slane %v6932, 5
        %v6935 = vsel %vm1145, %v6930, %v6934
        %v6936 = vshrl.u32 %v6560, 16
        %v6938 = vrot.slane %v6936, 4
        %v6939 = vor.u32 %v6938, %v6934
        %v6940 = vrot.slane %v6939, 4
        %v6942 = vshll.u32 %v6561, 16
        %v6944 = vrot.slane %v6942, 5
        %v6945 = vsel %vm1145, %v6940, %v6944
        %6978 = vst [vmem:[#allocation4 + $0x4] sm:$0xf] %v6575
        %6979 = vst [vmem:[#allocation4 + $0x28] sm:$0xf] %v6585
        %6980 = vst [vmem:[#allocation4 + $0x4c] sm:$0xf] %v6599
        %6981 = vst [vmem:[#allocation4 + $0x70] sm:$0xf] %v6609
        %6982 = vst [vmem:[#allocation4 + $0x94] sm:$0xf] %v6623
        %6983 = vst [vmem:[#allocation4 + $0xb8] sm:$0xf] %v6633
        %6984 = vst [vmem:[#allocation4 + $0xdc] sm:$0xf] %v6647
        %6985 = vst [vmem:[#allocation4 + $0x100] sm:$0xf] %v6657
        %6986 = vst [vmem:[#allocation4 + $0x124] sm:$0xf] %v6671
        %6987 = vst [vmem:[#allocation4 + $0x148] sm:$0xf] %v6681
        %6988 = vst [vmem:[#allocation4 + $0x16c] sm:$0xf] %v6695
        %6989 = vst [vmem:[#allocation4 + $0x190] sm:$0xf] %v6705
        %6990 = vst [vmem:[#allocation4 + $0x1b4] sm:$0xf] %v6719
        %6991 = vst [vmem:[#allocation4 + $0x1d8] sm:$0xf] %v6729
        %6992 = vst [vmem:[#allocation4 + $0x1fc] sm:$0xf] %v6743
        %6993 = vst [vmem:[#allocation4 + $0x220] sm:$0xf] %v6753
        %6994 = vst [vmem:[#allocation4 + $0x244] sm:$0xf] %v6767
        %6995 = vst [vmem:[#allocation4 + $0x268] sm:$0xf] %v6777
        %6996 = vst [vmem:[#allocation4 + $0x28c] sm:$0xf] %v6791
        %6997 = vst [vmem:[#allocation4 + $0x2b0] sm:$0xf] %v6801
        %6998 = vst [vmem:[#allocation4 + $0x2d4] sm:$0xf] %v6815
        %6999 = vst [vmem:[#allocation4 + $0x2f8] sm:$0xf] %v6825
        %7000 = vst [vmem:[#allocation4 + $0x31c] sm:$0xf] %v6839
        %7001 = vst [vmem:[#allocation4 + $0x340] sm:$0xf] %v6849
        %7002 = vst [vmem:[#allocation4 + $0x364] sm:$0xf] %v6863
        %7003 = vst [vmem:[#allocation4 + $0x388] sm:$0xf] %v6873
        %7004 = vst [vmem:[#allocation4 + $0x3ac] sm:$0xf] %v6887
        %7005 = vst [vmem:[#allocation4 + $0x3d0] sm:$0xf] %v6897
        %7006 = vst [vmem:[#allocation4 + $0x3f4] sm:$0xf] %v6911
        %7007 = vst [vmem:[#allocation4 + $0x418] sm:$0xf] %v6921
        %7008 = vst [vmem:[#allocation4 + $0x43c] sm:$0xf] %v6935
        %7009 = vst [vmem:[#allocation4 + $0x460] sm:$0xf] %v6945
        %v7010 = vld [vmem:[#allocation3] sm:$0xe]
        %v7011 = vld [vmem:[#allocation3 + $0x4] sm:$0xf]
        %v7012 = vld [vmem:[#allocation3 + $0x8] sm:$0x1]
        %v7013 = vld [vmem:[#allocation3 + $0xc] sm:$0xe]
        %v7014 = vld [vmem:[#allocation3 + $0x10] sm:$0xf]
        %v7015 = vld [vmem:[#allocation3 + $0x14] sm:$0x1]
        %v7016 = vld [vmem:[#allocation3 + $0x18] sm:$0xe]
        %v7017 = vld [vmem:[#allocation3 + $0x1c] sm:$0xf]
        %v7018 = vld [vmem:[#allocation3 + $0x20] sm:$0x1]
        %v7019 = vld [vmem:[#allocation3 + $0x24] sm:$0xe]
        %v7020 = vld [vmem:[#allocation3 + $0x28] sm:$0xf]
        %v7021 = vld [vmem:[#allocation3 + $0x2c] sm:$0x1]
        %v7022 = vld [vmem:[#allocation3 + $0x30] sm:$0xe]
        %v7023 = vld [vmem:[#allocation3 + $0x34] sm:$0xf]
        %v7024 = vld [vmem:[#allocation3 + $0x38] sm:$0x1]
        %v7025 = vld [vmem:[#allocation3 + $0x3c] sm:$0xe]
        %v7026 = vld [vmem:[#allocation3 + $0x40] sm:$0xf]
        %v7027 = vld [vmem:[#allocation3 + $0x44] sm:$0x1]
        %v7028 = vld [vmem:[#allocation3 + $0x48] sm:$0xe]
        %v7029 = vld [vmem:[#allocation3 + $0x4c] sm:$0xf]
        %v7030 = vld [vmem:[#allocation3 + $0x50] sm:$0x1]
        %v7031 = vld [vmem:[#allocation3 + $0x54] sm:$0xe]
        %v7032 = vld [vmem:[#allocation3 + $0x58] sm:$0xf]
        %v7033 = vld [vmem:[#allocation3 + $0x5c] sm:$0x1]
        %v7034 = vld [vmem:[#allocation3 + $0x60] sm:$0xe]
        %v7035 = vld [vmem:[#allocation3 + $0x64] sm:$0xf]
        %v7036 = vld [vmem:[#allocation3 + $0x68] sm:$0x1]
        %v7037 = vld [vmem:[#allocation3 + $0x6c] sm:$0xe]
        %v7038 = vld [vmem:[#allocation3 + $0x70] sm:$0xf]
        %v7039 = vld [vmem:[#allocation3 + $0x74] sm:$0x1]
        %v7040 = vld [vmem:[#allocation3 + $0x78] sm:$0xe]
        %v7041 = vld [vmem:[#allocation3 + $0x7c] sm:$0xf]
        %v7042 = vld [vmem:[#allocation3 + $0x80] sm:$0x1]
        %v7043 = vld [vmem:[#allocation3 + $0x84] sm:$0xe]
        %v7044 = vld [vmem:[#allocation3 + $0x88] sm:$0xf]
        %v7045 = vld [vmem:[#allocation3 + $0x8c] sm:$0x1]
        %v7046 = vld [vmem:[#allocation3 + $0x90] sm:$0xe]
        %v7047 = vld [vmem:[#allocation3 + $0x94] sm:$0xf]
        %v7048 = vld [vmem:[#allocation3 + $0x98] sm:$0x1]
        %v7049 = vld [vmem:[#allocation3 + $0x9c] sm:$0xe]
        %v7050 = vld [vmem:[#allocation3 + $0xa0] sm:$0xf]
        %v7051 = vld [vmem:[#allocation3 + $0xa4] sm:$0x1]
        %v7052 = vld [vmem:[#allocation3 + $0xa8] sm:$0xe]
        %v7053 = vld [vmem:[#allocation3 + $0xac] sm:$0xf]
        %v7054 = vld [vmem:[#allocation3 + $0xb0] sm:$0x1]
        %v7055 = vld [vmem:[#allocation3 + $0xb4] sm:$0xe]
        %v7056 = vld [vmem:[#allocation3 + $0xb8] sm:$0xf]
        %v7057 = vld [vmem:[#allocation3 + $0xbc] sm:$0x1]
        %v7106 = vrot.slane %v7010, 5
        %v7107 = vrot.slane %v7106, 4
        %v7108 = vrot.slane %v7011, 5
        %v7109 = vsel %vm1692, %v7107, %v7108
        %v7110 = vrot.slane %v7108, 4
        %v7111 = vrot.slane %v7012, 5
        %v7112 = vsel %vm1692, %v7110, %v7111
        %v7113 = vrot.slane %v7013, 5
        %v7114 = vrot.slane %v7113, 4
        %v7115 = vrot.slane %v7014, 5
        %v7116 = vsel %vm1692, %v7114, %v7115
        %v7117 = vrot.slane %v7115, 4
        %v7118 = vrot.slane %v7015, 5
        %v7119 = vsel %vm1692, %v7117, %v7118
        %v7120 = vrot.slane %v7016, 5
        %v7121 = vrot.slane %v7120, 4
        %v7122 = vrot.slane %v7017, 5
        %v7123 = vsel %vm1692, %v7121, %v7122
        %v7124 = vrot.slane %v7122, 4
        %v7125 = vrot.slane %v7018, 5
        %v7126 = vsel %vm1692, %v7124, %v7125
        %v7127 = vrot.slane %v7019, 5
        %v7128 = vrot.slane %v7127, 4
        %v7129 = vrot.slane %v7020, 5
        %v7130 = vsel %vm1692, %v7128, %v7129
        %v7131 = vrot.slane %v7129, 4
        %v7132 = vrot.slane %v7021, 5
        %v7133 = vsel %vm1692, %v7131, %v7132
        %v7134 = vrot.slane %v7022, 5
        %v7135 = vrot.slane %v7134, 4
        %v7136 = vrot.slane %v7023, 5
        %v7137 = vsel %vm1692, %v7135, %v7136
        %v7138 = vrot.slane %v7136, 4
        %v7139 = vrot.slane %v7024, 5
        %v7140 = vsel %vm1692, %v7138, %v7139
        %v7141 = vrot.slane %v7025, 5
        %v7142 = vrot.slane %v7141, 4
        %v7143 = vrot.slane %v7026, 5
        %v7144 = vsel %vm1692, %v7142, %v7143
        %v7145 = vrot.slane %v7143, 4
        %v7146 = vrot.slane %v7027, 5
        %v7147 = vsel %vm1692, %v7145, %v7146
        %v7148 = vrot.slane %v7028, 5
        %v7149 = vrot.slane %v7148, 4
        %v7150 = vrot.slane %v7029, 5
        %v7151 = vsel %vm1692, %v7149, %v7150
        %v7152 = vrot.slane %v7150, 4
        %v7153 = vrot.slane %v7030, 5
        %v7154 = vsel %vm1692, %v7152, %v7153
        %v7155 = vrot.slane %v7031, 5
        %v7156 = vrot.slane %v7155, 4
        %v7157 = vrot.slane %v7032, 5
        %v7158 = vsel %vm1692, %v7156, %v7157
        %v7159 = vrot.slane %v7157, 4
        %v7160 = vrot.slane %v7033, 5
        %v7161 = vsel %vm1692, %v7159, %v7160
        %v7162 = vrot.slane %v7034, 5
        %v7163 = vrot.slane %v7162, 4
        %v7164 = vrot.slane %v7035, 5
        %v7165 = vsel %vm1692, %v7163, %v7164
        %v7166 = vrot.slane %v7164, 4
        %v7167 = vrot.slane %v7036, 5
        %v7168 = vsel %vm1692, %v7166, %v7167
        %v7169 = vrot.slane %v7037, 5
        %v7170 = vrot.slane %v7169, 4
        %v7171 = vrot.slane %v7038, 5
        %v7172 = vsel %vm1692, %v7170, %v7171
        %v7173 = vrot.slane %v7171, 4
        %v7174 = vrot.slane %v7039, 5
        %v7175 = vsel %vm1692, %v7173, %v7174
        %v7176 = vrot.slane %v7040, 5
        %v7177 = vrot.slane %v7176, 4
        %v7178 = vrot.slane %v7041, 5
        %v7179 = vsel %vm1692, %v7177, %v7178
        %v7180 = vrot.slane %v7178, 4
        %v7181 = vrot.slane %v7042, 5
        %v7182 = vsel %vm1692, %v7180, %v7181
        %v7183 = vrot.slane %v7043, 5
        %v7184 = vrot.slane %v7183, 4
        %v7185 = vrot.slane %v7044, 5
        %v7186 = vsel %vm1692, %v7184, %v7185
        %v7187 = vrot.slane %v7185, 4
        %v7188 = vrot.slane %v7045, 5
        %v7189 = vsel %vm1692, %v7187, %v7188
        %v7190 = vrot.slane %v7046, 5
        %v7191 = vrot.slane %v7190, 4
        %v7192 = vrot.slane %v7047, 5
        %v7193 = vsel %vm1692, %v7191, %v7192
        %v7194 = vrot.slane %v7192, 4
        %v7195 = vrot.slane %v7048, 5
        %v7196 = vsel %vm1692, %v7194, %v7195
        %v7197 = vrot.slane %v7049, 5
        %v7198 = vrot.slane %v7197, 4
        %v7199 = vrot.slane %v7050, 5
        %v7200 = vsel %vm1692, %v7198, %v7199
        %v7201 = vrot.slane %v7199, 4
        %v7202 = vrot.slane %v7051, 5
        %v7203 = vsel %vm1692, %v7201, %v7202
        %v7204 = vrot.slane %v7052, 5
        %v7205 = vrot.slane %v7204, 4
        %v7206 = vrot.slane %v7053, 5
        %v7207 = vsel %vm1692, %v7205, %v7206
        %v7208 = vrot.slane %v7206, 4
        %v7209 = vrot.slane %v7054, 5
        %v7210 = vsel %vm1692, %v7208, %v7209
        %v7211 = vrot.slane %v7055, 5
        %v7212 = vrot.slane %v7211, 4
        %v7213 = vrot.slane %v7056, 5
        %v7214 = vsel %vm1692, %v7212, %v7213
        %v7215 = vrot.slane %v7213, 4
        %v7216 = vrot.slane %v7057, 5
        %v7217 = vsel %vm1692, %v7215, %v7216
        %7250 = vst [vmem:[#allocation4 + $0x8] sm:$0xf] %v7109
        %7251 = vst [vmem:[#allocation4 + $0x2c] sm:$0xf] %v7112
        %7252 = vst [vmem:[#allocation4 + $0x50] sm:$0xf] %v7116
        %7253 = vst [vmem:[#allocation4 + $0x74] sm:$0xf] %v7119
        %7254 = vst [vmem:[#allocation4 + $0x98] sm:$0xf] %v7123
        %7255 = vst [vmem:[#allocation4 + $0xbc] sm:$0xf] %v7126
        %7256 = vst [vmem:[#allocation4 + $0xe0] sm:$0xf] %v7130
        %7257 = vst [vmem:[#allocation4 + $0x104] sm:$0xf] %v7133
        %7258 = vst [vmem:[#allocation4 + $0x128] sm:$0xf] %v7137
        %7259 = vst [vmem:[#allocation4 + $0x14c] sm:$0xf] %v7140
        %7260 = vst [vmem:[#allocation4 + $0x170] sm:$0xf] %v7144
        %7261 = vst [vmem:[#allocation4 + $0x194] sm:$0xf] %v7147
        %7262 = vst [vmem:[#allocation4 + $0x1b8] sm:$0xf] %v7151
        %7263 = vst [vmem:[#allocation4 + $0x1dc] sm:$0xf] %v7154
        %7264 = vst [vmem:[#allocation4 + $0x200] sm:$0xf] %v7158
        %7265 = vst [vmem:[#allocation4 + $0x224] sm:$0xf] %v7161
        %7266 = vst [vmem:[#allocation4 + $0x248] sm:$0xf] %v7165
        %7267 = vst [vmem:[#allocation4 + $0x26c] sm:$0xf] %v7168
        %7268 = vst [vmem:[#allocation4 + $0x290] sm:$0xf] %v7172
        %7269 = vst [vmem:[#allocation4 + $0x2b4] sm:$0xf] %v7175
        %7270 = vst [vmem:[#allocation4 + $0x2d8] sm:$0xf] %v7179
        %7271 = vst [vmem:[#allocation4 + $0x2fc] sm:$0xf] %v7182
        %7272 = vst [vmem:[#allocation4 + $0x320] sm:$0xf] %v7186
        %7273 = vst [vmem:[#allocation4 + $0x344] sm:$0xf] %v7189
        %7274 = vst [vmem:[#allocation4 + $0x368] sm:$0xf] %v7193
        %7275 = vst [vmem:[#allocation4 + $0x38c] sm:$0xf] %v7196
        %7276 = vst [vmem:[#allocation4 + $0x3b0] sm:$0xf] %v7200
        %7277 = vst [vmem:[#allocation4 + $0x3d4] sm:$0xf] %v7203
        %7278 = vst [vmem:[#allocation4 + $0x3f8] sm:$0xf] %v7207
        %7279 = vst [vmem:[#allocation4 + $0x41c] sm:$0xf] %v7210
        %7280 = vst [vmem:[#allocation4 + $0x440] sm:$0xf] %v7214
        %7281 = vst [vmem:[#allocation4 + $0x464] sm:$0xf] %v7217
        %v7282 = vld [vmem:[%s6337] sm:$0xf]
        %v7283 = vld [vmem:[%s6337 + $0x4] sm:$0xf]
        %v7284 = vld [vmem:[%s6337 + $0xc] sm:$0xf]
        %v7285 = vld [vmem:[%s6337 + $0x10] sm:$0xf]
        %v7286 = vld [vmem:[%s6337 + $0x18] sm:$0xf]
        %v7287 = vld [vmem:[%s6337 + $0x1c] sm:$0xf]
        %v7288 = vld [vmem:[%s6337 + $0x24] sm:$0xf]
        %v7289 = vld [vmem:[%s6337 + $0x28] sm:$0xf]
        %v7290 = vld [vmem:[%s6337 + $0x30] sm:$0xf]
        %v7291 = vld [vmem:[%s6337 + $0x34] sm:$0xf]
        %v7292 = vld [vmem:[%s6337 + $0x3c] sm:$0xf]
        %v7293 = vld [vmem:[%s6337 + $0x40] sm:$0xf]
        %v7294 = vld [vmem:[%s6337 + $0x48] sm:$0xf]
        %v7295 = vld [vmem:[%s6337 + $0x4c] sm:$0xf]
        %v7296 = vld [vmem:[%s6337 + $0x54] sm:$0xf]
        %v7297 = vld [vmem:[%s6337 + $0x58] sm:$0xf]
        %v7298 = vld [vmem:[%s6337 + $0x60] sm:$0xf]
        %v7299 = vld [vmem:[%s6337 + $0x64] sm:$0xf]
        %v7300 = vld [vmem:[%s6337 + $0x6c] sm:$0xf]
        %v7301 = vld [vmem:[%s6337 + $0x70] sm:$0xf]
        %v7302 = vld [vmem:[%s6337 + $0x78] sm:$0xf]
        %v7303 = vld [vmem:[%s6337 + $0x7c] sm:$0xf]
        %v7304 = vld [vmem:[%s6337 + $0x84] sm:$0xf]
        %v7305 = vld [vmem:[%s6337 + $0x88] sm:$0xf]
        %v7306 = vld [vmem:[%s6337 + $0x90] sm:$0xf]
        %v7307 = vld [vmem:[%s6337 + $0x94] sm:$0xf]
        %v7308 = vld [vmem:[%s6337 + $0x9c] sm:$0xf]
        %v7309 = vld [vmem:[%s6337 + $0xa0] sm:$0xf]
        %v7310 = vld [vmem:[%s6337 + $0xa8] sm:$0xf]
        %v7311 = vld [vmem:[%s6337 + $0xac] sm:$0xf]
        %v7312 = vld [vmem:[%s6337 + $0xb4] sm:$0xf]
        %v7313 = vld [vmem:[%s6337 + $0xb8] sm:$0xf]
        %7314 = vst [vmem:[#allocation4 + $0xc] sm:$0xf] %v7282
        %7315 = vst [vmem:[#allocation4 + $0x30] sm:$0xf] %v7283
        %7316 = vst [vmem:[#allocation4 + $0x54] sm:$0xf] %v7284
        %7317 = vst [vmem:[#allocation4 + $0x78] sm:$0xf] %v7285
        %7318 = vst [vmem:[#allocation4 + $0x9c] sm:$0xf] %v7286
        %7319 = vst [vmem:[#allocation4 + $0xc0] sm:$0xf] %v7287
        %7320 = vst [vmem:[#allocation4 + $0xe4] sm:$0xf] %v7288
        %7321 = vst [vmem:[#allocation4 + $0x108] sm:$0xf] %v7289
        %7322 = vst [vmem:[#allocation4 + $0x12c] sm:$0xf] %v7290
        %7323 = vst [vmem:[#allocation4 + $0x150] sm:$0xf] %v7291
        %7324 = vst [vmem:[#allocation4 + $0x174] sm:$0xf] %v7292
        %7325 = vst [vmem:[#allocation4 + $0x198] sm:$0xf] %v7293
        %7326 = vst [vmem:[#allocation4 + $0x1bc] sm:$0xf] %v7294
        %7327 = vst [vmem:[#allocation4 + $0x1e0] sm:$0xf] %v7295
        %7328 = vst [vmem:[#allocation4 + $0x204] sm:$0xf] %v7296
        %7329 = vst [vmem:[#allocation4 + $0x228] sm:$0xf] %v7297
        %7330 = vst [vmem:[#allocation4 + $0x24c] sm:$0xf] %v7298
        %7331 = vst [vmem:[#allocation4 + $0x270] sm:$0xf] %v7299
        %7332 = vst [vmem:[#allocation4 + $0x294] sm:$0xf] %v7300
        %7333 = vst [vmem:[#allocation4 + $0x2b8] sm:$0xf] %v7301
        %7334 = vst [vmem:[#allocation4 + $0x2dc] sm:$0xf] %v7302
        %7335 = vst [vmem:[#allocation4 + $0x300] sm:$0xf] %v7303
        %7336 = vst [vmem:[#allocation4 + $0x324] sm:$0xf] %v7304
        %7337 = vst [vmem:[#allocation4 + $0x348] sm:$0xf] %v7305
        %7338 = vst [vmem:[#allocation4 + $0x36c] sm:$0xf] %v7306
        %7339 = vst [vmem:[#allocation4 + $0x390] sm:$0xf] %v7307
        %7340 = vst [vmem:[#allocation4 + $0x3b4] sm:$0xf] %v7308
        %7341 = vst [vmem:[#allocation4 + $0x3d8] sm:$0xf] %v7309
        %7342 = vst [vmem:[#allocation4 + $0x3fc] sm:$0xf] %v7310
        %7343 = vst [vmem:[#allocation4 + $0x420] sm:$0xf] %v7311
        %7344 = vst [vmem:[#allocation4 + $0x444] sm:$0xf] %v7312
        %7345 = vst [vmem:[#allocation4 + $0x468] sm:$0xf] %v7313
        %v7346 = vld [vmem:[%s6337] sm:$0xf]
        %v7347 = vld [vmem:[%s6337 + $0x4] sm:$0xf]
        %v7348 = vld [vmem:[%s6337 + $0x8] sm:$0x1]
        %v7349 = vld [vmem:[%s6337 + $0xc] sm:$0xf]
        %v7350 = vld [vmem:[%s6337 + $0x10] sm:$0xf]
        %v7351 = vld [vmem:[%s6337 + $0x14] sm:$0x1]
        %v7352 = vld [vmem:[%s6337 + $0x18] sm:$0xf]
        %v7353 = vld [vmem:[%s6337 + $0x1c] sm:$0xf]
        %v7354 = vld [vmem:[%s6337 + $0x20] sm:$0x1]
        %v7355 = vld [vmem:[%s6337 + $0x24] sm:$0xf]
        %v7356 = vld [vmem:[%s6337 + $0x28] sm:$0xf]
        %v7357 = vld [vmem:[%s6337 + $0x2c] sm:$0x1]
        %v7358 = vld [vmem:[%s6337 + $0x30] sm:$0xf]
        %v7359 = vld [vmem:[%s6337 + $0x34] sm:$0xf]
        %v7360 = vld [vmem:[%s6337 + $0x38] sm:$0x1]
        %v7361 = vld [vmem:[%s6337 + $0x3c] sm:$0xf]
        %v7362 = vld [vmem:[%s6337 + $0x40] sm:$0xf]
        %v7363 = vld [vmem:[%s6337 + $0x44] sm:$0x1]
        %v7364 = vld [vmem:[%s6337 + $0x48] sm:$0xf]
        %v7365 = vld [vmem:[%s6337 + $0x4c] sm:$0xf]
        %v7366 = vld [vmem:[%s6337 + $0x50] sm:$0x1]
        %v7367 = vld [vmem:[%s6337 + $0x54] sm:$0xf]
        %v7368 = vld [vmem:[%s6337 + $0x58] sm:$0xf]
        %v7369 = vld [vmem:[%s6337 + $0x5c] sm:$0x1]
        %v7370 = vld [vmem:[%s6337 + $0x60] sm:$0xf]
        %v7371 = vld [vmem:[%s6337 + $0x64] sm:$0xf]
        %v7372 = vld [vmem:[%s6337 + $0x68] sm:$0x1]
        %v7373 = vld [vmem:[%s6337 + $0x6c] sm:$0xf]
        %v7374 = vld [vmem:[%s6337 + $0x70] sm:$0xf]
        %v7375 = vld [vmem:[%s6337 + $0x74] sm:$0x1]
        %v7376 = vld [vmem:[%s6337 + $0x78] sm:$0xf]
        %v7377 = vld [vmem:[%s6337 + $0x7c] sm:$0xf]
        %v7378 = vld [vmem:[%s6337 + $0x80] sm:$0x1]
        %v7379 = vld [vmem:[%s6337 + $0x84] sm:$0xf]
        %v7380 = vld [vmem:[%s6337 + $0x88] sm:$0xf]
        %v7381 = vld [vmem:[%s6337 + $0x8c] sm:$0x1]
        %v7382 = vld [vmem:[%s6337 + $0x90] sm:$0xf]
        %v7383 = vld [vmem:[%s6337 + $0x94] sm:$0xf]
        %v7384 = vld [vmem:[%s6337 + $0x98] sm:$0x1]
        %v7385 = vld [vmem:[%s6337 + $0x9c] sm:$0xf]
        %v7386 = vld [vmem:[%s6337 + $0xa0] sm:$0xf]
        %v7387 = vld [vmem:[%s6337 + $0xa4] sm:$0x1]
        %v7388 = vld [vmem:[%s6337 + $0xa8] sm:$0xf]
        %v7389 = vld [vmem:[%s6337 + $0xac] sm:$0xf]
        %v7390 = vld [vmem:[%s6337 + $0xb0] sm:$0x1]
        %v7391 = vld [vmem:[%s6337 + $0xb4] sm:$0xf]
        %v7392 = vld [vmem:[%s6337 + $0xb8] sm:$0xf]
        %v7393 = vld [vmem:[%s6337 + $0xbc] sm:$0x1]
        %v7395 = vshrl.u32 %v7346, 16
        %v7397 = vrot.slane %v7395, 4
        %v7398 = vshll.u32 %v7346, 16
        %v7400 = vrot.slane %v7398, 5
        %v7401 = vor.u32 %v7397, %v7400
        %v7402 = vrot.slane %v7401, 4
        %v7404 = vshll.u32 %v7347, 16
        %v7406 = vrot.slane %v7404, 5
        %v7407 = vsel %vm1145, %v7402, %v7406
        %v7408 = vshrl.u32 %v7347, 16
        %v7410 = vrot.slane %v7408, 4
        %v7411 = vor.u32 %v7410, %v7406
        %v7412 = vrot.slane %v7411, 4
        %v7414 = vshll.u32 %v7348, 16
        %v7416 = vrot.slane %v7414, 5
        %v7417 = vsel %vm1145, %v7412, %v7416
        %v7419 = vshrl.u32 %v7349, 16
        %v7421 = vrot.slane %v7419, 4
        %v7422 = vshll.u32 %v7349, 16
        %v7424 = vrot.slane %v7422, 5
        %v7425 = vor.u32 %v7421, %v7424
        %v7426 = vrot.slane %v7425, 4
        %v7428 = vshll.u32 %v7350, 16
        %v7430 = vrot.slane %v7428, 5
        %v7431 = vsel %vm1145, %v7426, %v7430
        %v7432 = vshrl.u32 %v7350, 16
        %v7434 = vrot.slane %v7432, 4
        %v7435 = vor.u32 %v7434, %v7430
        %v7436 = vrot.slane %v7435, 4
        %v7438 = vshll.u32 %v7351, 16
        %v7440 = vrot.slane %v7438, 5
        %v7441 = vsel %vm1145, %v7436, %v7440
        %v7443 = vshrl.u32 %v7352, 16
        %v7445 = vrot.slane %v7443, 4
        %v7446 = vshll.u32 %v7352, 16
        %v7448 = vrot.slane %v7446, 5
        %v7449 = vor.u32 %v7445, %v7448
        %v7450 = vrot.slane %v7449, 4
        %v7452 = vshll.u32 %v7353, 16
        %v7454 = vrot.slane %v7452, 5
        %v7455 = vsel %vm1145, %v7450, %v7454
        %v7456 = vshrl.u32 %v7353, 16
        %v7458 = vrot.slane %v7456, 4
        %v7459 = vor.u32 %v7458, %v7454
        %v7460 = vrot.slane %v7459, 4
        %v7462 = vshll.u32 %v7354, 16
        %v7464 = vrot.slane %v7462, 5
        %v7465 = vsel %vm1145, %v7460, %v7464
        %v7467 = vshrl.u32 %v7355, 16
        %v7469 = vrot.slane %v7467, 4
        %v7470 = vshll.u32 %v7355, 16
        %v7472 = vrot.slane %v7470, 5
        %v7473 = vor.u32 %v7469, %v7472
        %v7474 = vrot.slane %v7473, 4
        %v7476 = vshll.u32 %v7356, 16
        %v7478 = vrot.slane %v7476, 5
        %v7479 = vsel %vm1145, %v7474, %v7478
        %v7480 = vshrl.u32 %v7356, 16
        %v7482 = vrot.slane %v7480, 4
        %v7483 = vor.u32 %v7482, %v7478
        %v7484 = vrot.slane %v7483, 4
        %v7486 = vshll.u32 %v7357, 16
        %v7488 = vrot.slane %v7486, 5
        %v7489 = vsel %vm1145, %v7484, %v7488
        %v7491 = vshrl.u32 %v7358, 16
        %v7493 = vrot.slane %v7491, 4
        %v7494 = vshll.u32 %v7358, 16
        %v7496 = vrot.slane %v7494, 5
        %v7497 = vor.u32 %v7493, %v7496
        %v7498 = vrot.slane %v7497, 4
        %v7500 = vshll.u32 %v7359, 16
        %v7502 = vrot.slane %v7500, 5
        %v7503 = vsel %vm1145, %v7498, %v7502
        %v7504 = vshrl.u32 %v7359, 16
        %v7506 = vrot.slane %v7504, 4
        %v7507 = vor.u32 %v7506, %v7502
        %v7508 = vrot.slane %v7507, 4
        %v7510 = vshll.u32 %v7360, 16
        %v7512 = vrot.slane %v7510, 5
        %v7513 = vsel %vm1145, %v7508, %v7512
        %v7515 = vshrl.u32 %v7361, 16
        %v7517 = vrot.slane %v7515, 4
        %v7518 = vshll.u32 %v7361, 16
        %v7520 = vrot.slane %v7518, 5
        %v7521 = vor.u32 %v7517, %v7520
        %v7522 = vrot.slane %v7521, 4
        %v7524 = vshll.u32 %v7362, 16
        %v7526 = vrot.slane %v7524, 5
        %v7527 = vsel %vm1145, %v7522, %v7526
        %v7528 = vshrl.u32 %v7362, 16
        %v7530 = vrot.slane %v7528, 4
        %v7531 = vor.u32 %v7530, %v7526
        %v7532 = vrot.slane %v7531, 4
        %v7534 = vshll.u32 %v7363, 16
        %v7536 = vrot.slane %v7534, 5
        %v7537 = vsel %vm1145, %v7532, %v7536
        %v7539 = vshrl.u32 %v7364, 16
        %v7541 = vrot.slane %v7539, 4
        %v7542 = vshll.u32 %v7364, 16
        %v7544 = vrot.slane %v7542, 5
        %v7545 = vor.u32 %v7541, %v7544
        %v7546 = vrot.slane %v7545, 4
        %v7548 = vshll.u32 %v7365, 16
        %v7550 = vrot.slane %v7548, 5
        %v7551 = vsel %vm1145, %v7546, %v7550
        %v7552 = vshrl.u32 %v7365, 16
        %v7554 = vrot.slane %v7552, 4
        %v7555 = vor.u32 %v7554, %v7550
        %v7556 = vrot.slane %v7555, 4
        %v7558 = vshll.u32 %v7366, 16
        %v7560 = vrot.slane %v7558, 5
        %v7561 = vsel %vm1145, %v7556, %v7560
        %v7563 = vshrl.u32 %v7367, 16
        %v7565 = vrot.slane %v7563, 4
        %v7566 = vshll.u32 %v7367, 16
        %v7568 = vrot.slane %v7566, 5
        %v7569 = vor.u32 %v7565, %v7568
        %v7570 = vrot.slane %v7569, 4
        %v7572 = vshll.u32 %v7368, 16
        %v7574 = vrot.slane %v7572, 5
        %v7575 = vsel %vm1145, %v7570, %v7574
        %v7576 = vshrl.u32 %v7368, 16
        %v7578 = vrot.slane %v7576, 4
        %v7579 = vor.u32 %v7578, %v7574
        %v7580 = vrot.slane %v7579, 4
        %v7582 = vshll.u32 %v7369, 16
        %v7584 = vrot.slane %v7582, 5
        %v7585 = vsel %vm1145, %v7580, %v7584
        %v7587 = vshrl.u32 %v7370, 16
        %v7589 = vrot.slane %v7587, 4
        %v7590 = vshll.u32 %v7370, 16
        %v7592 = vrot.slane %v7590, 5
        %v7593 = vor.u32 %v7589, %v7592
        %v7594 = vrot.slane %v7593, 4
        %v7596 = vshll.u32 %v7371, 16
        %v7598 = vrot.slane %v7596, 5
        %v7599 = vsel %vm1145, %v7594, %v7598
        %v7600 = vshrl.u32 %v7371, 16
        %v7602 = vrot.slane %v7600, 4
        %v7603 = vor.u32 %v7602, %v7598
        %v7604 = vrot.slane %v7603, 4
        %v7606 = vshll.u32 %v7372, 16
        %v7608 = vrot.slane %v7606, 5
        %v7609 = vsel %vm1145, %v7604, %v7608
        %v7611 = vshrl.u32 %v7373, 16
        %v7613 = vrot.slane %v7611, 4
        %v7614 = vshll.u32 %v7373, 16
        %v7616 = vrot.slane %v7614, 5
        %v7617 = vor.u32 %v7613, %v7616
        %v7618 = vrot.slane %v7617, 4
        %v7620 = vshll.u32 %v7374, 16
        %v7622 = vrot.slane %v7620, 5
        %v7623 = vsel %vm1145, %v7618, %v7622
        %v7624 = vshrl.u32 %v7374, 16
        %v7626 = vrot.slane %v7624, 4
        %v7627 = vor.u32 %v7626, %v7622
        %v7628 = vrot.slane %v7627, 4
        %v7630 = vshll.u32 %v7375, 16
        %v7632 = vrot.slane %v7630, 5
        %v7633 = vsel %vm1145, %v7628, %v7632
        %v7635 = vshrl.u32 %v7376, 16
        %v7637 = vrot.slane %v7635, 4
        %v7638 = vshll.u32 %v7376, 16
        %v7640 = vrot.slane %v7638, 5
        %v7641 = vor.u32 %v7637, %v7640
        %v7642 = vrot.slane %v7641, 4
        %v7644 = vshll.u32 %v7377, 16
        %v7646 = vrot.slane %v7644, 5
        %v7647 = vsel %vm1145, %v7642, %v7646
        %v7648 = vshrl.u32 %v7377, 16
        %v7650 = vrot.slane %v7648, 4
        %v7651 = vor.u32 %v7650, %v7646
        %v7652 = vrot.slane %v7651, 4
        %v7654 = vshll.u32 %v7378, 16
        %v7656 = vrot.slane %v7654, 5
        %v7657 = vsel %vm1145, %v7652, %v7656
        %v7659 = vshrl.u32 %v7379, 16
        %v7661 = vrot.slane %v7659, 4
        %v7662 = vshll.u32 %v7379, 16
        %v7664 = vrot.slane %v7662, 5
        %v7665 = vor.u32 %v7661, %v7664
        %v7666 = vrot.slane %v7665, 4
        %v7668 = vshll.u32 %v7380, 16
        %v7670 = vrot.slane %v7668, 5
        %v7671 = vsel %vm1145, %v7666, %v7670
        %v7672 = vshrl.u32 %v7380, 16
        %v7674 = vrot.slane %v7672, 4
        %v7675 = vor.u32 %v7674, %v7670
        %v7676 = vrot.slane %v7675, 4
        %v7678 = vshll.u32 %v7381, 16
        %v7680 = vrot.slane %v7678, 5
        %v7681 = vsel %vm1145, %v7676, %v7680
        %v7683 = vshrl.u32 %v7382, 16
        %v7685 = vrot.slane %v7683, 4
        %v7686 = vshll.u32 %v7382, 16
        %v7688 = vrot.slane %v7686, 5
        %v7689 = vor.u32 %v7685, %v7688
        %v7690 = vrot.slane %v7689, 4
        %v7692 = vshll.u32 %v7383, 16
        %v7694 = vrot.slane %v7692, 5
        %v7695 = vsel %vm1145, %v7690, %v7694
        %v7696 = vshrl.u32 %v7383, 16
        %v7698 = vrot.slane %v7696, 4
        %v7699 = vor.u32 %v7698, %v7694
        %v7700 = vrot.slane %v7699, 4
        %v7702 = vshll.u32 %v7384, 16
        %v7704 = vrot.slane %v7702, 5
        %v7705 = vsel %vm1145, %v7700, %v7704
        %v7707 = vshrl.u32 %v7385, 16
        %v7709 = vrot.slane %v7707, 4
        %v7710 = vshll.u32 %v7385, 16
        %v7712 = vrot.slane %v7710, 5
        %v7713 = vor.u32 %v7709, %v7712
        %v7714 = vrot.slane %v7713, 4
        %v7716 = vshll.u32 %v7386, 16
        %v7718 = vrot.slane %v7716, 5
        %v7719 = vsel %vm1145, %v7714, %v7718
        %v7720 = vshrl.u32 %v7386, 16
        %v7722 = vrot.slane %v7720, 4
        %v7723 = vor.u32 %v7722, %v7718
        %v7724 = vrot.slane %v7723, 4
        %v7726 = vshll.u32 %v7387, 16
        %v7728 = vrot.slane %v7726, 5
        %v7729 = vsel %vm1145, %v7724, %v7728
        %v7731 = vshrl.u32 %v7388, 16
        %v7733 = vrot.slane %v7731, 4
        %v7734 = vshll.u32 %v7388, 16
        %v7736 = vrot.slane %v7734, 5
        %v7737 = vor.u32 %v7733, %v7736
        %v7738 = vrot.slane %v7737, 4
        %v7740 = vshll.u32 %v7389, 16
        %v7742 = vrot.slane %v7740, 5
        %v7743 = vsel %vm1145, %v7738, %v7742
        %v7744 = vshrl.u32 %v7389, 16
        %v7746 = vrot.slane %v7744, 4
        %v7747 = vor.u32 %v7746, %v7742
        %v7748 = vrot.slane %v7747, 4
        %v7750 = vshll.u32 %v7390, 16
        %v7752 = vrot.slane %v7750, 5
        %v7753 = vsel %vm1145, %v7748, %v7752
        %v7755 = vshrl.u32 %v7391, 16
        %v7757 = vrot.slane %v7755, 4
        %v7758 = vshll.u32 %v7391, 16
        %v7760 = vrot.slane %v7758, 5
        %v7761 = vor.u32 %v7757, %v7760
        %v7762 = vrot.slane %v7761, 4
        %v7764 = vshll.u32 %v7392, 16
        %v7766 = vrot.slane %v7764, 5
        %v7767 = vsel %vm1145, %v7762, %v7766
        %v7768 = vshrl.u32 %v7392, 16
        %v7770 = vrot.slane %v7768, 4
        %v7771 = vor.u32 %v7770, %v7766
        %v7772 = vrot.slane %v7771, 4
        %v7774 = vshll.u32 %v7393, 16
        %v7776 = vrot.slane %v7774, 5
        %v7777 = vsel %vm1145, %v7772, %v7776
        %7810 = vst [vmem:[#allocation4 + $0x10] sm:$0xf] %v7407
        %7811 = vst [vmem:[#allocation4 + $0x34] sm:$0xf] %v7417
        %7812 = vst [vmem:[#allocation4 + $0x58] sm:$0xf] %v7431
        %7813 = vst [vmem:[#allocation4 + $0x7c] sm:$0xf] %v7441
        %7814 = vst [vmem:[#allocation4 + $0xa0] sm:$0xf] %v7455
        %7815 = vst [vmem:[#allocation4 + $0xc4] sm:$0xf] %v7465
        %7816 = vst [vmem:[#allocation4 + $0xe8] sm:$0xf] %v7479
        %7817 = vst [vmem:[#allocation4 + $0x10c] sm:$0xf] %v7489
        %7818 = vst [vmem:[#allocation4 + $0x130] sm:$0xf] %v7503
        %7819 = vst [vmem:[#allocation4 + $0x154] sm:$0xf] %v7513
        %7820 = vst [vmem:[#allocation4 + $0x178] sm:$0xf] %v7527
        %7821 = vst [vmem:[#allocation4 + $0x19c] sm:$0xf] %v7537
        %7822 = vst [vmem:[#allocation4 + $0x1c0] sm:$0xf] %v7551
        %7823 = vst [vmem:[#allocation4 + $0x1e4] sm:$0xf] %v7561
        %7824 = vst [vmem:[#allocation4 + $0x208] sm:$0xf] %v7575
        %7825 = vst [vmem:[#allocation4 + $0x22c] sm:$0xf] %v7585
        %7826 = vst [vmem:[#allocation4 + $0x250] sm:$0xf] %v7599
        %7827 = vst [vmem:[#allocation4 + $0x274] sm:$0xf] %v7609
        %7828 = vst [vmem:[#allocation4 + $0x298] sm:$0xf] %v7623
        %7829 = vst [vmem:[#allocation4 + $0x2bc] sm:$0xf] %v7633
        %7830 = vst [vmem:[#allocation4 + $0x2e0] sm:$0xf] %v7647
        %7831 = vst [vmem:[#allocation4 + $0x304] sm:$0xf] %v7657
        %7832 = vst [vmem:[#allocation4 + $0x328] sm:$0xf] %v7671
        %7833 = vst [vmem:[#allocation4 + $0x34c] sm:$0xf] %v7681
        %7834 = vst [vmem:[#allocation4 + $0x370] sm:$0xf] %v7695
        %7835 = vst [vmem:[#allocation4 + $0x394] sm:$0xf] %v7705
        %7836 = vst [vmem:[#allocation4 + $0x3b8] sm:$0xf] %v7719
        %7837 = vst [vmem:[#allocation4 + $0x3dc] sm:$0xf] %v7729
        %7838 = vst [vmem:[#allocation4 + $0x400] sm:$0xf] %v7743
        %7839 = vst [vmem:[#allocation4 + $0x424] sm:$0xf] %v7753
        %7840 = vst [vmem:[#allocation4 + $0x448] sm:$0xf] %v7767
        %7841 = vst [vmem:[#allocation4 + $0x46c] sm:$0xf] %v7777
        %v7842 = vld [vmem:[%s6337] sm:$0xe]
        %v7843 = vld [vmem:[%s6337 + $0x4] sm:$0xf]
        %v7844 = vld [vmem:[%s6337 + $0x8] sm:$0x1]
        %v7845 = vld [vmem:[%s6337 + $0xc] sm:$0xe]
        %v7846 = vld [vmem:[%s6337 + $0x10] sm:$0xf]
        %v7847 = vld [vmem:[%s6337 + $0x14] sm:$0x1]
        %v7848 = vld [vmem:[%s6337 + $0x18] sm:$0xe]
        %v7849 = vld [vmem:[%s6337 + $0x1c] sm:$0xf]
        %v7850 = vld [vmem:[%s6337 + $0x20] sm:$0x1]
        %v7851 = vld [vmem:[%s6337 + $0x24] sm:$0xe]
        %v7852 = vld [vmem:[%s6337 + $0x28] sm:$0xf]
        %v7853 = vld [vmem:[%s6337 + $0x2c] sm:$0x1]
        %v7854 = vld [vmem:[%s6337 + $0x30] sm:$0xe]
        %v7855 = vld [vmem:[%s6337 + $0x34] sm:$0xf]
        %v7856 = vld [vmem:[%s6337 + $0x38] sm:$0x1]
        %v7857 = vld [vmem:[%s6337 + $0x3c] sm:$0xe]
        %v7858 = vld [vmem:[%s6337 + $0x40] sm:$0xf]
        %v7859 = vld [vmem:[%s6337 + $0x44] sm:$0x1]
        %v7860 = vld [vmem:[%s6337 + $0x48] sm:$0xe]
        %v7861 = vld [vmem:[%s6337 + $0x4c] sm:$0xf]
        %v7862 = vld [vmem:[%s6337 + $0x50] sm:$0x1]
        %v7863 = vld [vmem:[%s6337 + $0x54] sm:$0xe]
        %v7864 = vld [vmem:[%s6337 + $0x58] sm:$0xf]
        %v7865 = vld [vmem:[%s6337 + $0x5c] sm:$0x1]
        %v7866 = vld [vmem:[%s6337 + $0x60] sm:$0xe]
        %v7867 = vld [vmem:[%s6337 + $0x64] sm:$0xf]
        %v7868 = vld [vmem:[%s6337 + $0x68] sm:$0x1]
        %v7869 = vld [vmem:[%s6337 + $0x6c] sm:$0xe]
        %v7870 = vld [vmem:[%s6337 + $0x70] sm:$0xf]
        %v7871 = vld [vmem:[%s6337 + $0x74] sm:$0x1]
        %v7872 = vld [vmem:[%s6337 + $0x78] sm:$0xe]
        %v7873 = vld [vmem:[%s6337 + $0x7c] sm:$0xf]
        %v7874 = vld [vmem:[%s6337 + $0x80] sm:$0x1]
        %v7875 = vld [vmem:[%s6337 + $0x84] sm:$0xe]
        %v7876 = vld [vmem:[%s6337 + $0x88] sm:$0xf]
        %v7877 = vld [vmem:[%s6337 + $0x8c] sm:$0x1]
        %v7878 = vld [vmem:[%s6337 + $0x90] sm:$0xe]
        %v7879 = vld [vmem:[%s6337 + $0x94] sm:$0xf]
        %v7880 = vld [vmem:[%s6337 + $0x98] sm:$0x1]
        %v7881 = vld [vmem:[%s6337 + $0x9c] sm:$0xe]
        %v7882 = vld [vmem:[%s6337 + $0xa0] sm:$0xf]
        %v7883 = vld [vmem:[%s6337 + $0xa4] sm:$0x1]
        %v7884 = vld [vmem:[%s6337 + $0xa8] sm:$0xe]
        %v7885 = vld [vmem:[%s6337 + $0xac] sm:$0xf]
        %v7886 = vld [vmem:[%s6337 + $0xb0] sm:$0x1]
        %v7887 = vld [vmem:[%s6337 + $0xb4] sm:$0xe]
        %v7888 = vld [vmem:[%s6337 + $0xb8] sm:$0xf]
        %v7889 = vld [vmem:[%s6337 + $0xbc] sm:$0x1]
        %v7938 = vrot.slane %v7842, 5
        %v7939 = vrot.slane %v7938, 4
        %v7940 = vrot.slane %v7843, 5
        %v7941 = vsel %vm1692, %v7939, %v7940
        %v7942 = vrot.slane %v7940, 4
        %v7943 = vrot.slane %v7844, 5
        %v7944 = vsel %vm1692, %v7942, %v7943
        %v7945 = vrot.slane %v7845, 5
        %v7946 = vrot.slane %v7945, 4
        %v7947 = vrot.slane %v7846, 5
        %v7948 = vsel %vm1692, %v7946, %v7947
        %v7949 = vrot.slane %v7947, 4
        %v7950 = vrot.slane %v7847, 5
        %v7951 = vsel %vm1692, %v7949, %v7950
        %v7952 = vrot.slane %v7848, 5
        %v7953 = vrot.slane %v7952, 4
        %v7954 = vrot.slane %v7849, 5
        %v7955 = vsel %vm1692, %v7953, %v7954
        %v7956 = vrot.slane %v7954, 4
        %v7957 = vrot.slane %v7850, 5
        %v7958 = vsel %vm1692, %v7956, %v7957
        %v7959 = vrot.slane %v7851, 5
        %v7960 = vrot.slane %v7959, 4
        %v7961 = vrot.slane %v7852, 5
        %v7962 = vsel %vm1692, %v7960, %v7961
        %v7963 = vrot.slane %v7961, 4
        %v7964 = vrot.slane %v7853, 5
        %v7965 = vsel %vm1692, %v7963, %v7964
        %v7966 = vrot.slane %v7854, 5
        %v7967 = vrot.slane %v7966, 4
        %v7968 = vrot.slane %v7855, 5
        %v7969 = vsel %vm1692, %v7967, %v7968
        %v7970 = vrot.slane %v7968, 4
        %v7971 = vrot.slane %v7856, 5
        %v7972 = vsel %vm1692, %v7970, %v7971
        %v7973 = vrot.slane %v7857, 5
        %v7974 = vrot.slane %v7973, 4
        %v7975 = vrot.slane %v7858, 5
        %v7976 = vsel %vm1692, %v7974, %v7975
        %v7977 = vrot.slane %v7975, 4
        %v7978 = vrot.slane %v7859, 5
        %v7979 = vsel %vm1692, %v7977, %v7978
        %v7980 = vrot.slane %v7860, 5
        %v7981 = vrot.slane %v7980, 4
        %v7982 = vrot.slane %v7861, 5
        %v7983 = vsel %vm1692, %v7981, %v7982
        %v7984 = vrot.slane %v7982, 4
        %v7985 = vrot.slane %v7862, 5
        %v7986 = vsel %vm1692, %v7984, %v7985
        %v7987 = vrot.slane %v7863, 5
        %v7988 = vrot.slane %v7987, 4
        %v7989 = vrot.slane %v7864, 5
        %v7990 = vsel %vm1692, %v7988, %v7989
        %v7991 = vrot.slane %v7989, 4
        %v7992 = vrot.slane %v7865, 5
        %v7993 = vsel %vm1692, %v7991, %v7992
        %v7994 = vrot.slane %v7866, 5
        %v7995 = vrot.slane %v7994, 4
        %v7996 = vrot.slane %v7867, 5
        %v7997 = vsel %vm1692, %v7995, %v7996
        %v7998 = vrot.slane %v7996, 4
        %v7999 = vrot.slane %v7868, 5
        %v8000 = vsel %vm1692, %v7998, %v7999
        %v8001 = vrot.slane %v7869, 5
        %v8002 = vrot.slane %v8001, 4
        %v8003 = vrot.slane %v7870, 5
        %v8004 = vsel %vm1692, %v8002, %v8003
        %v8005 = vrot.slane %v8003, 4
        %v8006 = vrot.slane %v7871, 5
        %v8007 = vsel %vm1692, %v8005, %v8006
        %v8008 = vrot.slane %v7872, 5
        %v8009 = vrot.slane %v8008, 4
        %v8010 = vrot.slane %v7873, 5
        %v8011 = vsel %vm1692, %v8009, %v8010
        %v8012 = vrot.slane %v8010, 4
        %v8013 = vrot.slane %v7874, 5
        %v8014 = vsel %vm1692, %v8012, %v8013
        %v8015 = vrot.slane %v7875, 5
        %v8016 = vrot.slane %v8015, 4
        %v8017 = vrot.slane %v7876, 5
        %v8018 = vsel %vm1692, %v8016, %v8017
        %v8019 = vrot.slane %v8017, 4
        %v8020 = vrot.slane %v7877, 5
        %v8021 = vsel %vm1692, %v8019, %v8020
        %v8022 = vrot.slane %v7878, 5
        %v8023 = vrot.slane %v8022, 4
        %v8024 = vrot.slane %v7879, 5
        %v8025 = vsel %vm1692, %v8023, %v8024
        %v8026 = vrot.slane %v8024, 4
        %v8027 = vrot.slane %v7880, 5
        %v8028 = vsel %vm1692, %v8026, %v8027
        %v8029 = vrot.slane %v7881, 5
        %v8030 = vrot.slane %v8029, 4
        %v8031 = vrot.slane %v7882, 5
        %v8032 = vsel %vm1692, %v8030, %v8031
        %v8033 = vrot.slane %v8031, 4
        %v8034 = vrot.slane %v7883, 5
        %v8035 = vsel %vm1692, %v8033, %v8034
        %v8036 = vrot.slane %v7884, 5
        %v8037 = vrot.slane %v8036, 4
        %v8038 = vrot.slane %v7885, 5
        %v8039 = vsel %vm1692, %v8037, %v8038
        %v8040 = vrot.slane %v8038, 4
        %v8041 = vrot.slane %v7886, 5
        %v8042 = vsel %vm1692, %v8040, %v8041
        %v8043 = vrot.slane %v7887, 5
        %v8044 = vrot.slane %v8043, 4
        %v8045 = vrot.slane %v7888, 5
        %v8046 = vsel %vm1692, %v8044, %v8045
        %v8047 = vrot.slane %v8045, 4
        %v8048 = vrot.slane %v7889, 5
        %v8049 = vsel %vm1692, %v8047, %v8048
        %8082 = vst [vmem:[#allocation4 + $0x14] sm:$0xf] %v7941
        %8083 = vst [vmem:[#allocation4 + $0x38] sm:$0xf] %v7944
        %8084 = vst [vmem:[#allocation4 + $0x5c] sm:$0xf] %v7948
        %8085 = vst [vmem:[#allocation4 + $0x80] sm:$0xf] %v7951
        %8086 = vst [vmem:[#allocation4 + $0xa4] sm:$0xf] %v7955
        %8087 = vst [vmem:[#allocation4 + $0xc8] sm:$0xf] %v7958
        %8088 = vst [vmem:[#allocation4 + $0xec] sm:$0xf] %v7962
        %8089 = vst [vmem:[#allocation4 + $0x110] sm:$0xf] %v7965
        %8090 = vst [vmem:[#allocation4 + $0x134] sm:$0xf] %v7969
        %8091 = vst [vmem:[#allocation4 + $0x158] sm:$0xf] %v7972
        %8092 = vst [vmem:[#allocation4 + $0x17c] sm:$0xf] %v7976
        %8093 = vst [vmem:[#allocation4 + $0x1a0] sm:$0xf] %v7979
        %8094 = vst [vmem:[#allocation4 + $0x1c4] sm:$0xf] %v7983
        %8095 = vst [vmem:[#allocation4 + $0x1e8] sm:$0xf] %v7986
        %8096 = vst [vmem:[#allocation4 + $0x20c] sm:$0xf] %v7990
        %8097 = vst [vmem:[#allocation4 + $0x230] sm:$0xf] %v7993
        %8098 = vst [vmem:[#allocation4 + $0x254] sm:$0xf] %v7997
        %8099 = vst [vmem:[#allocation4 + $0x278] sm:$0xf] %v8000
        %8100 = vst [vmem:[#allocation4 + $0x29c] sm:$0xf] %v8004
        %8101 = vst [vmem:[#allocation4 + $0x2c0] sm:$0xf] %v8007
        %8102 = vst [vmem:[#allocation4 + $0x2e4] sm:$0xf] %v8011
        %8103 = vst [vmem:[#allocation4 + $0x308] sm:$0xf] %v8014
        %8104 = vst [vmem:[#allocation4 + $0x32c] sm:$0xf] %v8018
        %8105 = vst [vmem:[#allocation4 + $0x350] sm:$0xf] %v8021
        %8106 = vst [vmem:[#allocation4 + $0x374] sm:$0xf] %v8025
        %8107 = vst [vmem:[#allocation4 + $0x398] sm:$0xf] %v8028
        %8108 = vst [vmem:[#allocation4 + $0x3bc] sm:$0xf] %v8032
        %8109 = vst [vmem:[#allocation4 + $0x3e0] sm:$0xf] %v8035
        %8110 = vst [vmem:[#allocation4 + $0x404] sm:$0xf] %v8039
        %8111 = vst [vmem:[#allocation4 + $0x428] sm:$0xf] %v8042
        %8112 = vst [vmem:[#allocation4 + $0x44c] sm:$0xf] %v8046
        %8113 = vst [vmem:[#allocation4 + $0x470] sm:$0xf] %v8049
        %s8114 = scalar_lea.vmem [#allocation3], 24
        %v8115 = vld [vmem:[%s8114] sm:$0xf]
        %v8116 = vld [vmem:[%s8114 + $0x4] sm:$0xf]
        %v8117 = vld [vmem:[%s8114 + $0xc] sm:$0xf]
        %v8118 = vld [vmem:[%s8114 + $0x10] sm:$0xf]
        %v8119 = vld [vmem:[%s8114 + $0x18] sm:$0xf]
        %v8120 = vld [vmem:[%s8114 + $0x1c] sm:$0xf]
        %v8121 = vld [vmem:[%s8114 + $0x24] sm:$0xf]
        %v8122 = vld [vmem:[%s8114 + $0x28] sm:$0xf]
        %v8123 = vld [vmem:[%s8114 + $0x30] sm:$0xf]
        %v8124 = vld [vmem:[%s8114 + $0x34] sm:$0xf]
        %v8125 = vld [vmem:[%s8114 + $0x3c] sm:$0xf]
        %v8126 = vld [vmem:[%s8114 + $0x40] sm:$0xf]
        %v8127 = vld [vmem:[%s8114 + $0x48] sm:$0xf]
        %v8128 = vld [vmem:[%s8114 + $0x4c] sm:$0xf]
        %v8129 = vld [vmem:[%s8114 + $0x54] sm:$0xf]
        %v8130 = vld [vmem:[%s8114 + $0x58] sm:$0xf]
        %v8131 = vld [vmem:[%s8114 + $0x60] sm:$0xf]
        %v8132 = vld [vmem:[%s8114 + $0x64] sm:$0xf]
        %v8133 = vld [vmem:[%s8114 + $0x6c] sm:$0xf]
        %v8134 = vld [vmem:[%s8114 + $0x70] sm:$0xf]
        %v8135 = vld [vmem:[%s8114 + $0x78] sm:$0xf]
        %v8136 = vld [vmem:[%s8114 + $0x7c] sm:$0xf]
        %v8137 = vld [vmem:[%s8114 + $0x84] sm:$0xf]
        %v8138 = vld [vmem:[%s8114 + $0x88] sm:$0xf]
        %v8139 = vld [vmem:[%s8114 + $0x90] sm:$0xf]
        %v8140 = vld [vmem:[%s8114 + $0x94] sm:$0xf]
        %v8141 = vld [vmem:[%s8114 + $0x9c] sm:$0xf]
        %v8142 = vld [vmem:[%s8114 + $0xa0] sm:$0xf]
        %v8143 = vld [vmem:[%s8114 + $0xa8] sm:$0xf]
        %v8144 = vld [vmem:[%s8114 + $0xac] sm:$0xf]
        %v8145 = vld [vmem:[%s8114 + $0xb4] sm:$0xf]
        %v8146 = vld [vmem:[%s8114 + $0xb8] sm:$0xf]
        %8147 = vst [vmem:[#allocation4 + $0x18] sm:$0xf] %v8115
        %8148 = vst [vmem:[#allocation4 + $0x3c] sm:$0xf] %v8116
        %8149 = vst [vmem:[#allocation4 + $0x60] sm:$0xf] %v8117
        %8150 = vst [vmem:[#allocation4 + $0x84] sm:$0xf] %v8118
        %8151 = vst [vmem:[#allocation4 + $0xa8] sm:$0xf] %v8119
        %8152 = vst [vmem:[#allocation4 + $0xcc] sm:$0xf] %v8120
        %8153 = vst [vmem:[#allocation4 + $0xf0] sm:$0xf] %v8121
        %8154 = vst [vmem:[#allocation4 + $0x114] sm:$0xf] %v8122
        %8155 = vst [vmem:[#allocation4 + $0x138] sm:$0xf] %v8123
        %8156 = vst [vmem:[#allocation4 + $0x15c] sm:$0xf] %v8124
        %8157 = vst [vmem:[#allocation4 + $0x180] sm:$0xf] %v8125
        %8158 = vst [vmem:[#allocation4 + $0x1a4] sm:$0xf] %v8126
        %8159 = vst [vmem:[#allocation4 + $0x1c8] sm:$0xf] %v8127
        %8160 = vst [vmem:[#allocation4 + $0x1ec] sm:$0xf] %v8128
        %8161 = vst [vmem:[#allocation4 + $0x210] sm:$0xf] %v8129
        %8162 = vst [vmem:[#allocation4 + $0x234] sm:$0xf] %v8130
        %8163 = vst [vmem:[#allocation4 + $0x258] sm:$0xf] %v8131
        %8164 = vst [vmem:[#allocation4 + $0x27c] sm:$0xf] %v8132
        %8165 = vst [vmem:[#allocation4 + $0x2a0] sm:$0xf] %v8133
        %8166 = vst [vmem:[#allocation4 + $0x2c4] sm:$0xf] %v8134
        %8167 = vst [vmem:[#allocation4 + $0x2e8] sm:$0xf] %v8135
        %8168 = vst [vmem:[#allocation4 + $0x30c] sm:$0xf] %v8136
        %8169 = vst [vmem:[#allocation4 + $0x330] sm:$0xf] %v8137
        %8170 = vst [vmem:[#allocation4 + $0x354] sm:$0xf] %v8138
        %8171 = vst [vmem:[#allocation4 + $0x378] sm:$0xf] %v8139
        %8172 = vst [vmem:[#allocation4 + $0x39c] sm:$0xf] %v8140
        %8173 = vst [vmem:[#allocation4 + $0x3c0] sm:$0xf] %v8141
        %8174 = vst [vmem:[#allocation4 + $0x3e4] sm:$0xf] %v8142
        %8175 = vst [vmem:[#allocation4 + $0x408] sm:$0xf] %v8143
        %8176 = vst [vmem:[#allocation4 + $0x42c] sm:$0xf] %v8144
        %8177 = vst [vmem:[#allocation4 + $0x450] sm:$0xf] %v8145
        %8178 = vst [vmem:[#allocation4 + $0x474] sm:$0xf] %v8146
        %v8179 = vld [vmem:[%s8114] sm:$0xf]
        %v8180 = vld [vmem:[%s8114 + $0x4] sm:$0xf]
        %v8181 = vld [vmem:[%s8114 + $0x8] sm:$0x1]
        %v8182 = vld [vmem:[%s8114 + $0xc] sm:$0xf]
        %v8183 = vld [vmem:[%s8114 + $0x10] sm:$0xf]
        %v8184 = vld [vmem:[%s8114 + $0x14] sm:$0x1]
        %v8185 = vld [vmem:[%s8114 + $0x18] sm:$0xf]
        %v8186 = vld [vmem:[%s8114 + $0x1c] sm:$0xf]
        %v8187 = vld [vmem:[%s8114 + $0x20] sm:$0x1]
        %v8188 = vld [vmem:[%s8114 + $0x24] sm:$0xf]
        %v8189 = vld [vmem:[%s8114 + $0x28] sm:$0xf]
        %v8190 = vld [vmem:[%s8114 + $0x2c] sm:$0x1]
        %v8191 = vld [vmem:[%s8114 + $0x30] sm:$0xf]
        %v8192 = vld [vmem:[%s8114 + $0x34] sm:$0xf]
        %v8193 = vld [vmem:[%s8114 + $0x38] sm:$0x1]
        %v8194 = vld [vmem:[%s8114 + $0x3c] sm:$0xf]
        %v8195 = vld [vmem:[%s8114 + $0x40] sm:$0xf]
        %v8196 = vld [vmem:[%s8114 + $0x44] sm:$0x1]
        %v8197 = vld [vmem:[%s8114 + $0x48] sm:$0xf]
        %v8198 = vld [vmem:[%s8114 + $0x4c] sm:$0xf]
        %v8199 = vld [vmem:[%s8114 + $0x50] sm:$0x1]
        %v8200 = vld [vmem:[%s8114 + $0x54] sm:$0xf]
        %v8201 = vld [vmem:[%s8114 + $0x58] sm:$0xf]
        %v8202 = vld [vmem:[%s8114 + $0x5c] sm:$0x1]
        %v8203 = vld [vmem:[%s8114 + $0x60] sm:$0xf]
        %v8204 = vld [vmem:[%s8114 + $0x64] sm:$0xf]
        %v8205 = vld [vmem:[%s8114 + $0x68] sm:$0x1]
        %v8206 = vld [vmem:[%s8114 + $0x6c] sm:$0xf]
        %v8207 = vld [vmem:[%s8114 + $0x70] sm:$0xf]
        %v8208 = vld [vmem:[%s8114 + $0x74] sm:$0x1]
        %v8209 = vld [vmem:[%s8114 + $0x78] sm:$0xf]
        %v8210 = vld [vmem:[%s8114 + $0x7c] sm:$0xf]
        %v8211 = vld [vmem:[%s8114 + $0x80] sm:$0x1]
        %v8212 = vld [vmem:[%s8114 + $0x84] sm:$0xf]
        %v8213 = vld [vmem:[%s8114 + $0x88] sm:$0xf]
        %v8214 = vld [vmem:[%s8114 + $0x8c] sm:$0x1]
        %v8215 = vld [vmem:[%s8114 + $0x90] sm:$0xf]
        %v8216 = vld [vmem:[%s8114 + $0x94] sm:$0xf]
        %v8217 = vld [vmem:[%s8114 + $0x98] sm:$0x1]
        %v8218 = vld [vmem:[%s8114 + $0x9c] sm:$0xf]
        %v8219 = vld [vmem:[%s8114 + $0xa0] sm:$0xf]
        %v8220 = vld [vmem:[%s8114 + $0xa4] sm:$0x1]
        %v8221 = vld [vmem:[%s8114 + $0xa8] sm:$0xf]
        %v8222 = vld [vmem:[%s8114 + $0xac] sm:$0xf]
        %v8223 = vld [vmem:[%s8114 + $0xb0] sm:$0x1]
        %v8224 = vld [vmem:[%s8114 + $0xb4] sm:$0xf]
        %v8225 = vld [vmem:[%s8114 + $0xb8] sm:$0xf]
        %v8226 = vld [vmem:[%s8114 + $0xbc] sm:$0x1]
        %v8228 = vshrl.u32 %v8179, 16
        %v8230 = vrot.slane %v8228, 4
        %v8231 = vshll.u32 %v8179, 16
        %v8233 = vrot.slane %v8231, 5
        %v8234 = vor.u32 %v8230, %v8233
        %v8235 = vrot.slane %v8234, 4
        %v8237 = vshll.u32 %v8180, 16
        %v8239 = vrot.slane %v8237, 5
        %v8240 = vsel %vm1145, %v8235, %v8239
        %v8241 = vshrl.u32 %v8180, 16
        %v8243 = vrot.slane %v8241, 4
        %v8244 = vor.u32 %v8243, %v8239
        %v8245 = vrot.slane %v8244, 4
        %v8247 = vshll.u32 %v8181, 16
        %v8249 = vrot.slane %v8247, 5
        %v8250 = vsel %vm1145, %v8245, %v8249
        %v8252 = vshrl.u32 %v8182, 16
        %v8254 = vrot.slane %v8252, 4
        %v8255 = vshll.u32 %v8182, 16
        %v8257 = vrot.slane %v8255, 5
        %v8258 = vor.u32 %v8254, %v8257
        %v8259 = vrot.slane %v8258, 4
        %v8261 = vshll.u32 %v8183, 16
        %v8263 = vrot.slane %v8261, 5
        %v8264 = vsel %vm1145, %v8259, %v8263
        %v8265 = vshrl.u32 %v8183, 16
        %v8267 = vrot.slane %v8265, 4
        %v8268 = vor.u32 %v8267, %v8263
        %v8269 = vrot.slane %v8268, 4
        %v8271 = vshll.u32 %v8184, 16
        %v8273 = vrot.slane %v8271, 5
        %v8274 = vsel %vm1145, %v8269, %v8273
        %v8276 = vshrl.u32 %v8185, 16
        %v8278 = vrot.slane %v8276, 4
        %v8279 = vshll.u32 %v8185, 16
        %v8281 = vrot.slane %v8279, 5
        %v8282 = vor.u32 %v8278, %v8281
        %v8283 = vrot.slane %v8282, 4
        %v8285 = vshll.u32 %v8186, 16
        %v8287 = vrot.slane %v8285, 5
        %v8288 = vsel %vm1145, %v8283, %v8287
        %v8289 = vshrl.u32 %v8186, 16
        %v8291 = vrot.slane %v8289, 4
        %v8292 = vor.u32 %v8291, %v8287
        %v8293 = vrot.slane %v8292, 4
        %v8295 = vshll.u32 %v8187, 16
        %v8297 = vrot.slane %v8295, 5
        %v8298 = vsel %vm1145, %v8293, %v8297
        %v8300 = vshrl.u32 %v8188, 16
        %v8302 = vrot.slane %v8300, 4
        %v8303 = vshll.u32 %v8188, 16
        %v8305 = vrot.slane %v8303, 5
        %v8306 = vor.u32 %v8302, %v8305
        %v8307 = vrot.slane %v8306, 4
        %v8309 = vshll.u32 %v8189, 16
        %v8311 = vrot.slane %v8309, 5
        %v8312 = vsel %vm1145, %v8307, %v8311
        %v8313 = vshrl.u32 %v8189, 16
        %v8315 = vrot.slane %v8313, 4
        %v8316 = vor.u32 %v8315, %v8311
        %v8317 = vrot.slane %v8316, 4
        %v8319 = vshll.u32 %v8190, 16
        %v8321 = vrot.slane %v8319, 5
        %v8322 = vsel %vm1145, %v8317, %v8321
        %v8324 = vshrl.u32 %v8191, 16
        %v8326 = vrot.slane %v8324, 4
        %v8327 = vshll.u32 %v8191, 16
        %v8329 = vrot.slane %v8327, 5
        %v8330 = vor.u32 %v8326, %v8329
        %v8331 = vrot.slane %v8330, 4
        %v8333 = vshll.u32 %v8192, 16
        %v8335 = vrot.slane %v8333, 5
        %v8336 = vsel %vm1145, %v8331, %v8335
        %v8337 = vshrl.u32 %v8192, 16
        %v8339 = vrot.slane %v8337, 4
        %v8340 = vor.u32 %v8339, %v8335
        %v8341 = vrot.slane %v8340, 4
        %v8343 = vshll.u32 %v8193, 16
        %v8345 = vrot.slane %v8343, 5
        %v8346 = vsel %vm1145, %v8341, %v8345
        %v8348 = vshrl.u32 %v8194, 16
        %v8350 = vrot.slane %v8348, 4
        %v8351 = vshll.u32 %v8194, 16
        %v8353 = vrot.slane %v8351, 5
        %v8354 = vor.u32 %v8350, %v8353
        %v8355 = vrot.slane %v8354, 4
        %v8357 = vshll.u32 %v8195, 16
        %v8359 = vrot.slane %v8357, 5
        %v8360 = vsel %vm1145, %v8355, %v8359
        %v8361 = vshrl.u32 %v8195, 16
        %v8363 = vrot.slane %v8361, 4
        %v8364 = vor.u32 %v8363, %v8359
        %v8365 = vrot.slane %v8364, 4
        %v8367 = vshll.u32 %v8196, 16
        %v8369 = vrot.slane %v8367, 5
        %v8370 = vsel %vm1145, %v8365, %v8369
        %v8372 = vshrl.u32 %v8197, 16
        %v8374 = vrot.slane %v8372, 4
        %v8375 = vshll.u32 %v8197, 16
        %v8377 = vrot.slane %v8375, 5
        %v8378 = vor.u32 %v8374, %v8377
        %v8379 = vrot.slane %v8378, 4
        %v8381 = vshll.u32 %v8198, 16
        %v8383 = vrot.slane %v8381, 5
        %v8384 = vsel %vm1145, %v8379, %v8383
        %v8385 = vshrl.u32 %v8198, 16
        %v8387 = vrot.slane %v8385, 4
        %v8388 = vor.u32 %v8387, %v8383
        %v8389 = vrot.slane %v8388, 4
        %v8391 = vshll.u32 %v8199, 16
        %v8393 = vrot.slane %v8391, 5
        %v8394 = vsel %vm1145, %v8389, %v8393
        %v8396 = vshrl.u32 %v8200, 16
        %v8398 = vrot.slane %v8396, 4
        %v8399 = vshll.u32 %v8200, 16
        %v8401 = vrot.slane %v8399, 5
        %v8402 = vor.u32 %v8398, %v8401
        %v8403 = vrot.slane %v8402, 4
        %v8405 = vshll.u32 %v8201, 16
        %v8407 = vrot.slane %v8405, 5
        %v8408 = vsel %vm1145, %v8403, %v8407
        %v8409 = vshrl.u32 %v8201, 16
        %v8411 = vrot.slane %v8409, 4
        %v8412 = vor.u32 %v8411, %v8407
        %v8413 = vrot.slane %v8412, 4
        %v8415 = vshll.u32 %v8202, 16
        %v8417 = vrot.slane %v8415, 5
        %v8418 = vsel %vm1145, %v8413, %v8417
        %v8420 = vshrl.u32 %v8203, 16
        %v8422 = vrot.slane %v8420, 4
        %v8423 = vshll.u32 %v8203, 16
        %v8425 = vrot.slane %v8423, 5
        %v8426 = vor.u32 %v8422, %v8425
        %v8427 = vrot.slane %v8426, 4
        %v8429 = vshll.u32 %v8204, 16
        %v8431 = vrot.slane %v8429, 5
        %v8432 = vsel %vm1145, %v8427, %v8431
        %v8433 = vshrl.u32 %v8204, 16
        %v8435 = vrot.slane %v8433, 4
        %v8436 = vor.u32 %v8435, %v8431
        %v8437 = vrot.slane %v8436, 4
        %v8439 = vshll.u32 %v8205, 16
        %v8441 = vrot.slane %v8439, 5
        %v8442 = vsel %vm1145, %v8437, %v8441
        %v8444 = vshrl.u32 %v8206, 16
        %v8446 = vrot.slane %v8444, 4
        %v8447 = vshll.u32 %v8206, 16
        %v8449 = vrot.slane %v8447, 5
        %v8450 = vor.u32 %v8446, %v8449
        %v8451 = vrot.slane %v8450, 4
        %v8453 = vshll.u32 %v8207, 16
        %v8455 = vrot.slane %v8453, 5
        %v8456 = vsel %vm1145, %v8451, %v8455
        %v8457 = vshrl.u32 %v8207, 16
        %v8459 = vrot.slane %v8457, 4
        %v8460 = vor.u32 %v8459, %v8455
        %v8461 = vrot.slane %v8460, 4
        %v8463 = vshll.u32 %v8208, 16
        %v8465 = vrot.slane %v8463, 5
        %v8466 = vsel %vm1145, %v8461, %v8465
        %v8468 = vshrl.u32 %v8209, 16
        %v8470 = vrot.slane %v8468, 4
        %v8471 = vshll.u32 %v8209, 16
        %v8473 = vrot.slane %v8471, 5
        %v8474 = vor.u32 %v8470, %v8473
        %v8475 = vrot.slane %v8474, 4
        %v8477 = vshll.u32 %v8210, 16
        %v8479 = vrot.slane %v8477, 5
        %v8480 = vsel %vm1145, %v8475, %v8479
        %v8481 = vshrl.u32 %v8210, 16
        %v8483 = vrot.slane %v8481, 4
        %v8484 = vor.u32 %v8483, %v8479
        %v8485 = vrot.slane %v8484, 4
        %v8487 = vshll.u32 %v8211, 16
        %v8489 = vrot.slane %v8487, 5
        %v8490 = vsel %vm1145, %v8485, %v8489
        %v8492 = vshrl.u32 %v8212, 16
        %v8494 = vrot.slane %v8492, 4
        %v8495 = vshll.u32 %v8212, 16
        %v8497 = vrot.slane %v8495, 5
        %v8498 = vor.u32 %v8494, %v8497
        %v8499 = vrot.slane %v8498, 4
        %v8501 = vshll.u32 %v8213, 16
        %v8503 = vrot.slane %v8501, 5
        %v8504 = vsel %vm1145, %v8499, %v8503
        %v8505 = vshrl.u32 %v8213, 16
        %v8507 = vrot.slane %v8505, 4
        %v8508 = vor.u32 %v8507, %v8503
        %v8509 = vrot.slane %v8508, 4
        %v8511 = vshll.u32 %v8214, 16
        %v8513 = vrot.slane %v8511, 5
        %v8514 = vsel %vm1145, %v8509, %v8513
        %v8516 = vshrl.u32 %v8215, 16
        %v8518 = vrot.slane %v8516, 4
        %v8519 = vshll.u32 %v8215, 16
        %v8521 = vrot.slane %v8519, 5
        %v8522 = vor.u32 %v8518, %v8521
        %v8523 = vrot.slane %v8522, 4
        %v8525 = vshll.u32 %v8216, 16
        %v8527 = vrot.slane %v8525, 5
        %v8528 = vsel %vm1145, %v8523, %v8527
        %v8529 = vshrl.u32 %v8216, 16
        %v8531 = vrot.slane %v8529, 4
        %v8532 = vor.u32 %v8531, %v8527
        %v8533 = vrot.slane %v8532, 4
        %v8535 = vshll.u32 %v8217, 16
        %v8537 = vrot.slane %v8535, 5
        %v8538 = vsel %vm1145, %v8533, %v8537
        %v8540 = vshrl.u32 %v8218, 16
        %v8542 = vrot.slane %v8540, 4
        %v8543 = vshll.u32 %v8218, 16
        %v8545 = vrot.slane %v8543, 5
        %v8546 = vor.u32 %v8542, %v8545
        %v8547 = vrot.slane %v8546, 4
        %v8549 = vshll.u32 %v8219, 16
        %v8551 = vrot.slane %v8549, 5
        %v8552 = vsel %vm1145, %v8547, %v8551
        %v8553 = vshrl.u32 %v8219, 16
        %v8555 = vrot.slane %v8553, 4
        %v8556 = vor.u32 %v8555, %v8551
        %v8557 = vrot.slane %v8556, 4
        %v8559 = vshll.u32 %v8220, 16
        %v8561 = vrot.slane %v8559, 5
        %v8562 = vsel %vm1145, %v8557, %v8561
        %v8564 = vshrl.u32 %v8221, 16
        %v8566 = vrot.slane %v8564, 4
        %v8567 = vshll.u32 %v8221, 16
        %v8569 = vrot.slane %v8567, 5
        %v8570 = vor.u32 %v8566, %v8569
        %v8571 = vrot.slane %v8570, 4
        %v8573 = vshll.u32 %v8222, 16
        %v8575 = vrot.slane %v8573, 5
        %v8576 = vsel %vm1145, %v8571, %v8575
        %v8577 = vshrl.u32 %v8222, 16
        %v8579 = vrot.slane %v8577, 4
        %v8580 = vor.u32 %v8579, %v8575
        %v8581 = vrot.slane %v8580, 4
        %v8583 = vshll.u32 %v8223, 16
        %v8585 = vrot.slane %v8583, 5
        %v8586 = vsel %vm1145, %v8581, %v8585
        %v8588 = vshrl.u32 %v8224, 16
        %v8590 = vrot.slane %v8588, 4
        %v8591 = vshll.u32 %v8224, 16
        %v8593 = vrot.slane %v8591, 5
        %v8594 = vor.u32 %v8590, %v8593
        %v8595 = vrot.slane %v8594, 4
        %v8597 = vshll.u32 %v8225, 16
        %v8599 = vrot.slane %v8597, 5
        %v8600 = vsel %vm1145, %v8595, %v8599
        %v8601 = vshrl.u32 %v8225, 16
        %v8603 = vrot.slane %v8601, 4
        %v8604 = vor.u32 %v8603, %v8599
        %v8605 = vrot.slane %v8604, 4
        %v8607 = vshll.u32 %v8226, 16
        %v8609 = vrot.slane %v8607, 5
        %v8610 = vsel %vm1145, %v8605, %v8609
        %8643 = vst [vmem:[#allocation4 + $0x1c] sm:$0xf] %v8240
        %8644 = vst [vmem:[#allocation4 + $0x40] sm:$0xf] %v8250
        %8645 = vst [vmem:[#allocation4 + $0x64] sm:$0xf] %v8264
        %8646 = vst [vmem:[#allocation4 + $0x88] sm:$0xf] %v8274
        %8647 = vst [vmem:[#allocation4 + $0xac] sm:$0xf] %v8288
        %8648 = vst [vmem:[#allocation4 + $0xd0] sm:$0xf] %v8298
        %8649 = vst [vmem:[#allocation4 + $0xf4] sm:$0xf] %v8312
        %8650 = vst [vmem:[#allocation4 + $0x118] sm:$0xf] %v8322
        %8651 = vst [vmem:[#allocation4 + $0x13c] sm:$0xf] %v8336
        %8652 = vst [vmem:[#allocation4 + $0x160] sm:$0xf] %v8346
        %8653 = vst [vmem:[#allocation4 + $0x184] sm:$0xf] %v8360
        %8654 = vst [vmem:[#allocation4 + $0x1a8] sm:$0xf] %v8370
        %8655 = vst [vmem:[#allocation4 + $0x1cc] sm:$0xf] %v8384
        %8656 = vst [vmem:[#allocation4 + $0x1f0] sm:$0xf] %v8394
        %8657 = vst [vmem:[#allocation4 + $0x214] sm:$0xf] %v8408
        %8658 = vst [vmem:[#allocation4 + $0x238] sm:$0xf] %v8418
        %8659 = vst [vmem:[#allocation4 + $0x25c] sm:$0xf] %v8432
        %8660 = vst [vmem:[#allocation4 + $0x280] sm:$0xf] %v8442
        %8661 = vst [vmem:[#allocation4 + $0x2a4] sm:$0xf] %v8456
        %8662 = vst [vmem:[#allocation4 + $0x2c8] sm:$0xf] %v8466
        %8663 = vst [vmem:[#allocation4 + $0x2ec] sm:$0xf] %v8480
        %8664 = vst [vmem:[#allocation4 + $0x310] sm:$0xf] %v8490
        %8665 = vst [vmem:[#allocation4 + $0x334] sm:$0xf] %v8504
        %8666 = vst [vmem:[#allocation4 + $0x358] sm:$0xf] %v8514
        %8667 = vst [vmem:[#allocation4 + $0x37c] sm:$0xf] %v8528
        %8668 = vst [vmem:[#allocation4 + $0x3a0] sm:$0xf] %v8538
        %8669 = vst [vmem:[#allocation4 + $0x3c4] sm:$0xf] %v8552
        %8670 = vst [vmem:[#allocation4 + $0x3e8] sm:$0xf] %v8562
        %8671 = vst [vmem:[#allocation4 + $0x40c] sm:$0xf] %v8576
        %8672 = vst [vmem:[#allocation4 + $0x430] sm:$0xf] %v8586
        %8673 = vst [vmem:[#allocation4 + $0x454] sm:$0xf] %v8600
        %8674 = vst [vmem:[#allocation4 + $0x478] sm:$0xf] %v8610
        %v8675 = vld [vmem:[%s8114] sm:$0xe]
        %v8676 = vld [vmem:[%s8114 + $0x4] sm:$0xf]
        %v8677 = vld [vmem:[%s8114 + $0x8] sm:$0x1]
        %v8678 = vld [vmem:[%s8114 + $0xc] sm:$0xe]
        %v8679 = vld [vmem:[%s8114 + $0x10] sm:$0xf]
        %v8680 = vld [vmem:[%s8114 + $0x14] sm:$0x1]
        %v8681 = vld [vmem:[%s8114 + $0x18] sm:$0xe]
        %v8682 = vld [vmem:[%s8114 + $0x1c] sm:$0xf]
        %v8683 = vld [vmem:[%s8114 + $0x20] sm:$0x1]
        %v8684 = vld [vmem:[%s8114 + $0x24] sm:$0xe]
        %v8685 = vld [vmem:[%s8114 + $0x28] sm:$0xf]
        %v8686 = vld [vmem:[%s8114 + $0x2c] sm:$0x1]
        %v8687 = vld [vmem:[%s8114 + $0x30] sm:$0xe]
        %v8688 = vld [vmem:[%s8114 + $0x34] sm:$0xf]
        %v8689 = vld [vmem:[%s8114 + $0x38] sm:$0x1]
        %v8690 = vld [vmem:[%s8114 + $0x3c] sm:$0xe]
        %v8691 = vld [vmem:[%s8114 + $0x40] sm:$0xf]
        %v8692 = vld [vmem:[%s8114 + $0x44] sm:$0x1]
        %v8693 = vld [vmem:[%s8114 + $0x48] sm:$0xe]
        %v8694 = vld [vmem:[%s8114 + $0x4c] sm:$0xf]
        %v8695 = vld [vmem:[%s8114 + $0x50] sm:$0x1]
        %v8696 = vld [vmem:[%s8114 + $0x54] sm:$0xe]
        %v8697 = vld [vmem:[%s8114 + $0x58] sm:$0xf]
        %v8698 = vld [vmem:[%s8114 + $0x5c] sm:$0x1]
        %v8699 = vld [vmem:[%s8114 + $0x60] sm:$0xe]
        %v8700 = vld [vmem:[%s8114 + $0x64] sm:$0xf]
        %v8701 = vld [vmem:[%s8114 + $0x68] sm:$0x1]
        %v8702 = vld [vmem:[%s8114 + $0x6c] sm:$0xe]
        %v8703 = vld [vmem:[%s8114 + $0x70] sm:$0xf]
        %v8704 = vld [vmem:[%s8114 + $0x74] sm:$0x1]
        %v8705 = vld [vmem:[%s8114 + $0x78] sm:$0xe]
        %v8706 = vld [vmem:[%s8114 + $0x7c] sm:$0xf]
        %v8707 = vld [vmem:[%s8114 + $0x80] sm:$0x1]
        %v8708 = vld [vmem:[%s8114 + $0x84] sm:$0xe]
        %v8709 = vld [vmem:[%s8114 + $0x88] sm:$0xf]
        %v8710 = vld [vmem:[%s8114 + $0x8c] sm:$0x1]
        %v8711 = vld [vmem:[%s8114 + $0x90] sm:$0xe]
        %v8712 = vld [vmem:[%s8114 + $0x94] sm:$0xf]
        %v8713 = vld [vmem:[%s8114 + $0x98] sm:$0x1]
        %v8714 = vld [vmem:[%s8114 + $0x9c] sm:$0xe]
        %v8715 = vld [vmem:[%s8114 + $0xa0] sm:$0xf]
        %v8716 = vld [vmem:[%s8114 + $0xa4] sm:$0x1]
        %v8717 = vld [vmem:[%s8114 + $0xa8] sm:$0xe]
        %v8718 = vld [vmem:[%s8114 + $0xac] sm:$0xf]
        %v8719 = vld [vmem:[%s8114 + $0xb0] sm:$0x1]
        %v8720 = vld [vmem:[%s8114 + $0xb4] sm:$0xe]
        %v8721 = vld [vmem:[%s8114 + $0xb8] sm:$0xf]
        %v8722 = vld [vmem:[%s8114 + $0xbc] sm:$0x1]
        %v8771 = vrot.slane %v8675, 5
        %v8772 = vrot.slane %v8771, 4
        %v8773 = vrot.slane %v8676, 5
        %v8774 = vsel %vm1692, %v8772, %v8773
        %v8775 = vrot.slane %v8773, 4
        %v8776 = vrot.slane %v8677, 5
        %v8777 = vsel %vm1692, %v8775, %v8776
        %v8778 = vrot.slane %v8678, 5
        %v8779 = vrot.slane %v8778, 4
        %v8780 = vrot.slane %v8679, 5
        %v8781 = vsel %vm1692, %v8779, %v8780
        %v8782 = vrot.slane %v8780, 4
        %v8783 = vrot.slane %v8680, 5
        %v8784 = vsel %vm1692, %v8782, %v8783
        %v8785 = vrot.slane %v8681, 5
        %v8786 = vrot.slane %v8785, 4
        %v8787 = vrot.slane %v8682, 5
        %v8788 = vsel %vm1692, %v8786, %v8787
        %v8789 = vrot.slane %v8787, 4
        %v8790 = vrot.slane %v8683, 5
        %v8791 = vsel %vm1692, %v8789, %v8790
        %v8792 = vrot.slane %v8684, 5
        %v8793 = vrot.slane %v8792, 4
        %v8794 = vrot.slane %v8685, 5
        %v8795 = vsel %vm1692, %v8793, %v8794
        %v8796 = vrot.slane %v8794, 4
        %v8797 = vrot.slane %v8686, 5
        %v8798 = vsel %vm1692, %v8796, %v8797
        %v8799 = vrot.slane %v8687, 5
        %v8800 = vrot.slane %v8799, 4
        %v8801 = vrot.slane %v8688, 5
        %v8802 = vsel %vm1692, %v8800, %v8801
        %v8803 = vrot.slane %v8801, 4
        %v8804 = vrot.slane %v8689, 5
        %v8805 = vsel %vm1692, %v8803, %v8804
        %v8806 = vrot.slane %v8690, 5
        %v8807 = vrot.slane %v8806, 4
        %v8808 = vrot.slane %v8691, 5
        %v8809 = vsel %vm1692, %v8807, %v8808
        %v8810 = vrot.slane %v8808, 4
        %v8811 = vrot.slane %v8692, 5
        %v8812 = vsel %vm1692, %v8810, %v8811
        %v8813 = vrot.slane %v8693, 5
        %v8814 = vrot.slane %v8813, 4
        %v8815 = vrot.slane %v8694, 5
        %v8816 = vsel %vm1692, %v8814, %v8815
        %v8817 = vrot.slane %v8815, 4
        %v8818 = vrot.slane %v8695, 5
        %v8819 = vsel %vm1692, %v8817, %v8818
        %v8820 = vrot.slane %v8696, 5
        %v8821 = vrot.slane %v8820, 4
        %v8822 = vrot.slane %v8697, 5
        %v8823 = vsel %vm1692, %v8821, %v8822
        %v8824 = vrot.slane %v8822, 4
        %v8825 = vrot.slane %v8698, 5
        %v8826 = vsel %vm1692, %v8824, %v8825
        %v8827 = vrot.slane %v8699, 5
        %v8828 = vrot.slane %v8827, 4
        %v8829 = vrot.slane %v8700, 5
        %v8830 = vsel %vm1692, %v8828, %v8829
        %v8831 = vrot.slane %v8829, 4
        %v8832 = vrot.slane %v8701, 5
        %v8833 = vsel %vm1692, %v8831, %v8832
        %v8834 = vrot.slane %v8702, 5
        %v8835 = vrot.slane %v8834, 4
        %v8836 = vrot.slane %v8703, 5
        %v8837 = vsel %vm1692, %v8835, %v8836
        %v8838 = vrot.slane %v8836, 4
        %v8839 = vrot.slane %v8704, 5
        %v8840 = vsel %vm1692, %v8838, %v8839
        %v8841 = vrot.slane %v8705, 5
        %v8842 = vrot.slane %v8841, 4
        %v8843 = vrot.slane %v8706, 5
        %v8844 = vsel %vm1692, %v8842, %v8843
        %v8845 = vrot.slane %v8843, 4
        %v8846 = vrot.slane %v8707, 5
        %v8847 = vsel %vm1692, %v8845, %v8846
        %v8848 = vrot.slane %v8708, 5
        %v8849 = vrot.slane %v8848, 4
        %v8850 = vrot.slane %v8709, 5
        %v8851 = vsel %vm1692, %v8849, %v8850
        %v8852 = vrot.slane %v8850, 4
        %v8853 = vrot.slane %v8710, 5
        %v8854 = vsel %vm1692, %v8852, %v8853
        %v8855 = vrot.slane %v8711, 5
        %v8856 = vrot.slane %v8855, 4
        %v8857 = vrot.slane %v8712, 5
        %v8858 = vsel %vm1692, %v8856, %v8857
        %v8859 = vrot.slane %v8857, 4
        %v8860 = vrot.slane %v8713, 5
        %v8861 = vsel %vm1692, %v8859, %v8860
        %v8862 = vrot.slane %v8714, 5
        %v8863 = vrot.slane %v8862, 4
        %v8864 = vrot.slane %v8715, 5
        %v8865 = vsel %vm1692, %v8863, %v8864
        %v8866 = vrot.slane %v8864, 4
        %v8867 = vrot.slane %v8716, 5
        %v8868 = vsel %vm1692, %v8866, %v8867
        %v8869 = vrot.slane %v8717, 5
        %v8870 = vrot.slane %v8869, 4
        %v8871 = vrot.slane %v8718, 5
        %v8872 = vsel %vm1692, %v8870, %v8871
        %v8873 = vrot.slane %v8871, 4
        %v8874 = vrot.slane %v8719, 5
        %v8875 = vsel %vm1692, %v8873, %v8874
        %v8876 = vrot.slane %v8720, 5
        %v8877 = vrot.slane %v8876, 4
        %v8878 = vrot.slane %v8721, 5
        %v8879 = vsel %vm1692, %v8877, %v8878
        %v8880 = vrot.slane %v8878, 4
        %v8881 = vrot.slane %v8722, 5
        %v8882 = vsel %vm1692, %v8880, %v8881
        %8915 = vst [vmem:[#allocation4 + $0x20] sm:$0xf] %v8774
        %8916 = vst [vmem:[#allocation4 + $0x44] sm:$0xf] %v8777
        %8917 = vst [vmem:[#allocation4 + $0x68] sm:$0xf] %v8781
        %8918 = vst [vmem:[#allocation4 + $0x8c] sm:$0xf] %v8784
        %8919 = vst [vmem:[#allocation4 + $0xb0] sm:$0xf] %v8788
        %8920 = vst [vmem:[#allocation4 + $0xd4] sm:$0xf] %v8791
        %8921 = vst [vmem:[#allocation4 + $0xf8] sm:$0xf] %v8795
        %8922 = vst [vmem:[#allocation4 + $0x11c] sm:$0xf] %v8798
        %8923 = vst [vmem:[#allocation4 + $0x140] sm:$0xf] %v8802
        %8924 = vst [vmem:[#allocation4 + $0x164] sm:$0xf] %v8805
        %8925 = vst [vmem:[#allocation4 + $0x188] sm:$0xf] %v8809
        %8926 = vst [vmem:[#allocation4 + $0x1ac] sm:$0xf] %v8812
        %8927 = vst [vmem:[#allocation4 + $0x1d0] sm:$0xf] %v8816
        %8928 = vst [vmem:[#allocation4 + $0x1f4] sm:$0xf] %v8819
        %8929 = vst [vmem:[#allocation4 + $0x218] sm:$0xf] %v8823
        %8930 = vst [vmem:[#allocation4 + $0x23c] sm:$0xf] %v8826
        %8931 = vst [vmem:[#allocation4 + $0x260] sm:$0xf] %v8830
        %8932 = vst [vmem:[#allocation4 + $0x284] sm:$0xf] %v8833
        %8933 = vst [vmem:[#allocation4 + $0x2a8] sm:$0xf] %v8837
        %8934 = vst [vmem:[#allocation4 + $0x2cc] sm:$0xf] %v8840
        %8935 = vst [vmem:[#allocation4 + $0x2f0] sm:$0xf] %v8844
        %8936 = vst [vmem:[#allocation4 + $0x314] sm:$0xf] %v8847
        %8937 = vst [vmem:[#allocation4 + $0x338] sm:$0xf] %v8851
        %8938 = vst [vmem:[#allocation4 + $0x35c] sm:$0xf] %v8854
        %8939 = vst [vmem:[#allocation4 + $0x380] sm:$0xf] %v8858
        %8940 = vst [vmem:[#allocation4 + $0x3a4] sm:$0xf] %v8861
        %8941 = vst [vmem:[#allocation4 + $0x3c8] sm:$0xf] %v8865
        %8942 = vst [vmem:[#allocation4 + $0x3ec] sm:$0xf] %v8868
        %8943 = vst [vmem:[#allocation4 + $0x410] sm:$0xf] %v8872
        %8944 = vst [vmem:[#allocation4 + $0x434] sm:$0xf] %v8875
        %8945 = vst [vmem:[#allocation4 + $0x458] sm:$0xf] %v8879
        %8946 = vst [vmem:[#allocation4 + $0x47c] sm:$0xf] %v8882
        %v8947 = vld [vmem:[#allocation4] sm:$0xff]
        %v8948 = vld [vmem:[#allocation4 + $0x8] sm:$0xff]
        %v8949 = vld [vmem:[#allocation4 + $0x10] sm:$0xff]
        %v8950 = vld [vmem:[#allocation4 + $0x18] sm:$0xff]
        %v8951 = vld [vmem:[#allocation4 + $0x20] sm:$0xf]
        %v8952 = vld [vmem:[#allocation4 + $0x24] sm:$0xff]
        %v8953 = vld [vmem:[#allocation4 + $0x2c] sm:$0xff]
        %v8954 = vld [vmem:[#allocation4 + $0x34] sm:$0xff]
        %v8955 = vld [vmem:[#allocation4 + $0x3c] sm:$0xff]
        %v8956 = vld [vmem:[#allocation4 + $0x44] sm:$0xf]
        %v8957 = vld [vmem:[#allocation4 + $0x48] sm:$0xff]
        %v8958 = vld [vmem:[#allocation4 + $0x50] sm:$0xff]
        %v8959 = vld [vmem:[#allocation4 + $0x58] sm:$0xff]
        %v8960 = vld [vmem:[#allocation4 + $0x60] sm:$0xff]
        %v8961 = vld [vmem:[#allocation4 + $0x68] sm:$0xf]
        %v8962 = vld [vmem:[#allocation4 + $0x6c] sm:$0xff]
        %v8963 = vld [vmem:[#allocation4 + $0x74] sm:$0xff]
        %v8964 = vld [vmem:[#allocation4 + $0x7c] sm:$0xff]
        %v8965 = vld [vmem:[#allocation4 + $0x84] sm:$0xff]
        %v8966 = vld [vmem:[#allocation4 + $0x8c] sm:$0xf]
        %v8967 = vld [vmem:[#allocation4 + $0x90] sm:$0xff]
        %v8968 = vld [vmem:[#allocation4 + $0x98] sm:$0xff]
        %v8969 = vld [vmem:[#allocation4 + $0xa0] sm:$0xff]
        %v8970 = vld [vmem:[#allocation4 + $0xa8] sm:$0xff]
        %v8971 = vld [vmem:[#allocation4 + $0xb0] sm:$0xf]
        %v8972 = vld [vmem:[#allocation4 + $0xb4] sm:$0xff]
        %v8973 = vld [vmem:[#allocation4 + $0xbc] sm:$0xff]
        %v8974 = vld [vmem:[#allocation4 + $0xc4] sm:$0xff]
        %v8975 = vld [vmem:[#allocation4 + $0xcc] sm:$0xff]
        %v8976 = vld [vmem:[#allocation4 + $0xd4] sm:$0xf]
        %v8977 = vld [vmem:[#allocation4 + $0xd8] sm:$0xff]
        %v8978 = vld [vmem:[#allocation4 + $0xe0] sm:$0xff]
        %v8979 = vld [vmem:[#allocation4 + $0xe8] sm:$0xff]
        %v8980 = vld [vmem:[#allocation4 + $0xf0] sm:$0xff]
        %v8981 = vld [vmem:[#allocation4 + $0xf8] sm:$0xf]
        %v8982 = vld [vmem:[#allocation4 + $0xfc] sm:$0xff]
        %v8983 = vld [vmem:[#allocation4 + $0x104] sm:$0xff]
        %v8984 = vld [vmem:[#allocation4 + $0x10c] sm:$0xff]
        %v8985 = vld [vmem:[#allocation4 + $0x114] sm:$0xff]
        %v8986 = vld [vmem:[#allocation4 + $0x11c] sm:$0xf]
        %v8987 = vld [vmem:[#allocation4 + $0x120] sm:$0xff]
        %v8988 = vld [vmem:[#allocation4 + $0x128] sm:$0xff]
        %v8989 = vld [vmem:[#allocation4 + $0x130] sm:$0xff]
        %v8990 = vld [vmem:[#allocation4 + $0x138] sm:$0xff]
        %v8991 = vld [vmem:[#allocation4 + $0x140] sm:$0xf]
        %v8992 = vld [vmem:[#allocation4 + $0x144] sm:$0xff]
        %v8993 = vld [vmem:[#allocation4 + $0x14c] sm:$0xff]
        %v8994 = vld [vmem:[#allocation4 + $0x154] sm:$0xff]
        %v8995 = vld [vmem:[#allocation4 + $0x15c] sm:$0xff]
        %v8996 = vld [vmem:[#allocation4 + $0x164] sm:$0xf]
        %v8997 = vld [vmem:[#allocation4 + $0x168] sm:$0xff]
        %v8998 = vld [vmem:[#allocation4 + $0x170] sm:$0xff]
        %v8999 = vld [vmem:[#allocation4 + $0x178] sm:$0xff]
        %v9000 = vld [vmem:[#allocation4 + $0x180] sm:$0xff]
        %v9001 = vld [vmem:[#allocation4 + $0x188] sm:$0xf]
        %v9002 = vld [vmem:[#allocation4 + $0x18c] sm:$0xff]
        %v9003 = vld [vmem:[#allocation4 + $0x194] sm:$0xff]
        %v9004 = vld [vmem:[#allocation4 + $0x19c] sm:$0xff]
        %v9005 = vld [vmem:[#allocation4 + $0x1a4] sm:$0xff]
        %v9006 = vld [vmem:[#allocation4 + $0x1ac] sm:$0xf]
        %v9007 = vld [vmem:[#allocation4 + $0x1b0] sm:$0xff]
        %v9008 = vld [vmem:[#allocation4 + $0x1b8] sm:$0xff]
        %v9009 = vld [vmem:[#allocation4 + $0x1c0] sm:$0xff]
        %v9010 = vld [vmem:[#allocation4 + $0x1c8] sm:$0xff]
        %v9011 = vld [vmem:[#allocation4 + $0x1d0] sm:$0xf]
        %v9012 = vld [vmem:[#allocation4 + $0x1d4] sm:$0xff]
        %v9013 = vld [vmem:[#allocation4 + $0x1dc] sm:$0xff]
        %v9014 = vld [vmem:[#allocation4 + $0x1e4] sm:$0xff]
        %v9015 = vld [vmem:[#allocation4 + $0x1ec] sm:$0xff]
        %v9016 = vld [vmem:[#allocation4 + $0x1f4] sm:$0xf]
        %v9017 = vld [vmem:[#allocation4 + $0x1f8] sm:$0xff]
        %v9018 = vld [vmem:[#allocation4 + $0x200] sm:$0xff]
        %v9019 = vld [vmem:[#allocation4 + $0x208] sm:$0xff]
        %v9020 = vld [vmem:[#allocation4 + $0x210] sm:$0xff]
        %v9021 = vld [vmem:[#allocation4 + $0x218] sm:$0xf]
        %v9022 = vld [vmem:[#allocation4 + $0x21c] sm:$0xff]
        %v9023 = vld [vmem:[#allocation4 + $0x224] sm:$0xff]
        %v9024 = vld [vmem:[#allocation4 + $0x22c] sm:$0xff]
        %v9025 = vld [vmem:[#allocation4 + $0x234] sm:$0xff]
        %v9026 = vld [vmem:[#allocation4 + $0x23c] sm:$0xf]
        %v9027 = vld [vmem:[#allocation4 + $0x240] sm:$0xff]
        %v9028 = vld [vmem:[#allocation4 + $0x248] sm:$0xff]
        %v9029 = vld [vmem:[#allocation4 + $0x250] sm:$0xff]
        %v9030 = vld [vmem:[#allocation4 + $0x258] sm:$0xff]
        %v9031 = vld [vmem:[#allocation4 + $0x260] sm:$0xf]
        %v9032 = vld [vmem:[#allocation4 + $0x264] sm:$0xff]
        %v9033 = vld [vmem:[#allocation4 + $0x26c] sm:$0xff]
        %v9034 = vld [vmem:[#allocation4 + $0x274] sm:$0xff]
        %v9035 = vld [vmem:[#allocation4 + $0x27c] sm:$0xff]
        %v9036 = vld [vmem:[#allocation4 + $0x284] sm:$0xf]
        %v9037 = vld [vmem:[#allocation4 + $0x288] sm:$0xff]
        %v9038 = vld [vmem:[#allocation4 + $0x290] sm:$0xff]
        %v9039 = vld [vmem:[#allocation4 + $0x298] sm:$0xff]
        %v9040 = vld [vmem:[#allocation4 + $0x2a0] sm:$0xff]
        %v9041 = vld [vmem:[#allocation4 + $0x2a8] sm:$0xf]
        %v9042 = vld [vmem:[#allocation4 + $0x2ac] sm:$0xff]
        %v9043 = vld [vmem:[#allocation4 + $0x2b4] sm:$0xff]
        %v9044 = vld [vmem:[#allocation4 + $0x2bc] sm:$0xff]
        %v9045 = vld [vmem:[#allocation4 + $0x2c4] sm:$0xff]
        %v9046 = vld [vmem:[#allocation4 + $0x2cc] sm:$0xf]
        %v9047 = vld [vmem:[#allocation4 + $0x2d0] sm:$0xff]
        %v9048 = vld [vmem:[#allocation4 + $0x2d8] sm:$0xff]
        %v9049 = vld [vmem:[#allocation4 + $0x2e0] sm:$0xff]
        %v9050 = vld [vmem:[#allocation4 + $0x2e8] sm:$0xff]
        %v9051 = vld [vmem:[#allocation4 + $0x2f0] sm:$0xf]
        %v9052 = vld [vmem:[#allocation4 + $0x2f4] sm:$0xff]
        %v9053 = vld [vmem:[#allocation4 + $0x2fc] sm:$0xff]
        %v9054 = vld [vmem:[#allocation4 + $0x304] sm:$0xff]
        %v9055 = vld [vmem:[#allocation4 + $0x30c] sm:$0xff]
        %v9056 = vld [vmem:[#allocation4 + $0x314] sm:$0xf]
        %v9057 = vld [vmem:[#allocation4 + $0x318] sm:$0xff]
        %v9058 = vld [vmem:[#allocation4 + $0x320] sm:$0xff]
        %v9059 = vld [vmem:[#allocation4 + $0x328] sm:$0xff]
        %v9060 = vld [vmem:[#allocation4 + $0x330] sm:$0xff]
        %v9061 = vld [vmem:[#allocation4 + $0x338] sm:$0xf]
        %v9062 = vld [vmem:[#allocation4 + $0x33c] sm:$0xff]
        %v9063 = vld [vmem:[#allocation4 + $0x344] sm:$0xff]
        %v9064 = vld [vmem:[#allocation4 + $0x34c] sm:$0xff]
        %v9065 = vld [vmem:[#allocation4 + $0x354] sm:$0xff]
        %v9066 = vld [vmem:[#allocation4 + $0x35c] sm:$0xf]
        %v9067 = vld [vmem:[#allocation4 + $0x360] sm:$0xff]
        %v9068 = vld [vmem:[#allocation4 + $0x368] sm:$0xff]
        %v9069 = vld [vmem:[#allocation4 + $0x370] sm:$0xff]
        %v9070 = vld [vmem:[#allocation4 + $0x378] sm:$0xff]
        %v9071 = vld [vmem:[#allocation4 + $0x380] sm:$0xf]
        %v9072 = vld [vmem:[#allocation4 + $0x384] sm:$0xff]
        %v9073 = vld [vmem:[#allocation4 + $0x38c] sm:$0xff]
        %v9074 = vld [vmem:[#allocation4 + $0x394] sm:$0xff]
        %v9075 = vld [vmem:[#allocation4 + $0x39c] sm:$0xff]
        %v9076 = vld [vmem:[#allocation4 + $0x3a4] sm:$0xf]
        %v9077 = vld [vmem:[#allocation4 + $0x3a8] sm:$0xff]
        %v9078 = vld [vmem:[#allocation4 + $0x3b0] sm:$0xff]
        %v9079 = vld [vmem:[#allocation4 + $0x3b8] sm:$0xff]
        %v9080 = vld [vmem:[#allocation4 + $0x3c0] sm:$0xff]
        %v9081 = vld [vmem:[#allocation4 + $0x3c8] sm:$0xf]
        %v9082 = vld [vmem:[#allocation4 + $0x3cc] sm:$0xff]
        %v9083 = vld [vmem:[#allocation4 + $0x3d4] sm:$0xff]
        %v9084 = vld [vmem:[#allocation4 + $0x3dc] sm:$0xff]
        %v9085 = vld [vmem:[#allocation4 + $0x3e4] sm:$0xff]
        %v9086 = vld [vmem:[#allocation4 + $0x3ec] sm:$0xf]
        %v9087 = vld [vmem:[#allocation4 + $0x3f0] sm:$0xff]
        %v9088 = vld [vmem:[#allocation4 + $0x3f8] sm:$0xff]
        %v9089 = vld [vmem:[#allocation4 + $0x400] sm:$0xff]
        %v9090 = vld [vmem:[#allocation4 + $0x408] sm:$0xff]
        %v9091 = vld [vmem:[#allocation4 + $0x410] sm:$0xf]
        %v9092 = vld [vmem:[#allocation4 + $0x414] sm:$0xff]
        %v9093 = vld [vmem:[#allocation4 + $0x41c] sm:$0xff]
        %v9094 = vld [vmem:[#allocation4 + $0x424] sm:$0xff]
        %v9095 = vld [vmem:[#allocation4 + $0x42c] sm:$0xff]
        %v9096 = vld [vmem:[#allocation4 + $0x434] sm:$0xf]
        %v9097 = vld [vmem:[#allocation4 + $0x438] sm:$0xff]
        %v9098 = vld [vmem:[#allocation4 + $0x440] sm:$0xff]
        %v9099 = vld [vmem:[#allocation4 + $0x448] sm:$0xff]
        %v9100 = vld [vmem:[#allocation4 + $0x450] sm:$0xff]
        %v9101 = vld [vmem:[#allocation4 + $0x458] sm:$0xf]
        %v9102 = vld [vmem:[#allocation4 + $0x45c] sm:$0xff]
        %v9103 = vld [vmem:[#allocation4 + $0x464] sm:$0xff]
        %v9104 = vld [vmem:[#allocation4 + $0x46c] sm:$0xff]
        %v9105 = vld [vmem:[#allocation4 + $0x474] sm:$0xff]
        %v9106 = vld [vmem:[#allocation4 + $0x47c] sm:$0xf]
        %v9107 = vld [vmem:[#allocation10] sm:$0xf]
        %v9108 = vld [vmem:[#allocation10 + $0x4] sm:$0xf]
        %v9109 = vld [vmem:[#allocation10 + $0x8] sm:$0xf]
        %v9110 = vld [vmem:[#allocation10 + $0xc] sm:$0xf]
        %v9111 = vld [vmem:[#allocation10 + $0x10] sm:$0xf]
        %v9112 = vld [vmem:[#allocation10 + $0x14] sm:$0xf]
        %v9113 = vld [vmem:[#allocation10 + $0x18] sm:$0xf]
        %v9114 = vld [vmem:[#allocation10 + $0x1c] sm:$0xf]
        %v9115 = vld [vmem:[#allocation10 + $0x20] sm:$0xf]
        %v9116 = vld [vmem:[#allocation10 + $0x24] sm:$0xf]
        %v9117 = vld [vmem:[#allocation10 + $0x28] sm:$0xf]
        %v9118 = vld [vmem:[#allocation10 + $0x2c] sm:$0xf]
        %v9119 = vld [vmem:[#allocation10 + $0x30] sm:$0xf]
        %v9120 = vld [vmem:[#allocation10 + $0x34] sm:$0xf]
        %v9121 = vld [vmem:[#allocation10 + $0x38] sm:$0xf]
        %v9122 = vld [vmem:[#allocation10 + $0x3c] sm:$0xf]
        %v9123 = vld [vmem:[#allocation10 + $0x40] sm:$0xf]
        %v9124 = vld [vmem:[#allocation10 + $0x44] sm:$0xf]
        %v9125 = vld [vmem:[#allocation10 + $0x48] sm:$0xf]
        %v9126 = vld [vmem:[#allocation10 + $0x4c] sm:$0xf]
        %v9127 = vld [vmem:[#allocation10 + $0x50] sm:$0xf]
        %v9128 = vld [vmem:[#allocation10 + $0x54] sm:$0xf]
        %v9129 = vld [vmem:[#allocation10 + $0x58] sm:$0xf]
        %v9130 = vld [vmem:[#allocation10 + $0x5c] sm:$0xf]
        %v9131 = vld [vmem:[#allocation10 + $0x60] sm:$0xf]
        %v9132 = vld [vmem:[#allocation10 + $0x64] sm:$0xf]
        %v9133 = vld [vmem:[#allocation10 + $0x68] sm:$0xf]
        %v9134 = vld [vmem:[#allocation10 + $0x6c] sm:$0xf]
        %v9135 = vld [vmem:[#allocation10 + $0x70] sm:$0xf]
        %v9136 = vld [vmem:[#allocation10 + $0x74] sm:$0xf]
        %v9137 = vld [vmem:[#allocation10 + $0x78] sm:$0xf]
        %v9138 = vld [vmem:[#allocation10 + $0x7c] sm:$0xf]
        %v9139 = vld [vmem:[#allocation10 + $0x80] sm:$0xf]
        %v9140 = vld [vmem:[#allocation10 + $0x84] sm:$0xf]
        %v9141 = vld [vmem:[#allocation10 + $0x88] sm:$0xf]
        %v9142 = vld [vmem:[#allocation10 + $0x8c] sm:$0xf]
        %v9143 = vld [vmem:[#allocation10 + $0x90] sm:$0xf]
        %v9144 = vld [vmem:[#allocation10 + $0x94] sm:$0xf]
        %v9145 = vld [vmem:[#allocation10 + $0x98] sm:$0xf]
        %v9146 = vld [vmem:[#allocation10 + $0x9c] sm:$0xf]
        %v9147 = vld [vmem:[#allocation10 + $0xa0] sm:$0xf]
        %v9148 = vld [vmem:[#allocation10 + $0xa4] sm:$0xf]
        %v9149 = vld [vmem:[#allocation10 + $0xa8] sm:$0xf]
        %v9150 = vld [vmem:[#allocation10 + $0xac] sm:$0xf]
        %v9151 = vld [vmem:[#allocation10 + $0xb0] sm:$0xf]
        %v9152 = vld [vmem:[#allocation10 + $0xb4] sm:$0xf]
        %v9153 = vld [vmem:[#allocation10 + $0xb8] sm:$0xf]
        %v9154 = vld [vmem:[#allocation10 + $0xbc] sm:$0xf]
        %v9155 = vld [vmem:[#allocation10 + $0xc0] sm:$0xf]
        %v9156 = vld [vmem:[#allocation10 + $0xc4] sm:$0xf]
        %v9157 = vld [vmem:[#allocation10 + $0xc8] sm:$0xf]
        %v9158 = vld [vmem:[#allocation10 + $0xcc] sm:$0xf]
        %v9159 = vld [vmem:[#allocation10 + $0xd0] sm:$0xf]
        %v9160 = vld [vmem:[#allocation10 + $0xd4] sm:$0xf]
        %v9161 = vld [vmem:[#allocation10 + $0xd8] sm:$0xf]
        %v9162 = vld [vmem:[#allocation10 + $0xdc] sm:$0xf]
        %v9163 = vld [vmem:[#allocation10 + $0xe0] sm:$0xf]
        %v9164 = vld [vmem:[#allocation10 + $0xe4] sm:$0xf]
        %v9165 = vld [vmem:[#allocation10 + $0xe8] sm:$0xf]
        %v9166 = vld [vmem:[#allocation10 + $0xec] sm:$0xf]
        %v9167 = vld [vmem:[#allocation10 + $0xf0] sm:$0xf]
        %v9168 = vld [vmem:[#allocation10 + $0xf4] sm:$0xf]
        %v9169 = vld [vmem:[#allocation10 + $0xf8] sm:$0xf]
        %v9170 = vld [vmem:[#allocation10 + $0xfc] sm:$0xf]
        %v9171 = vld [vmem:[#allocation10 + $0x100] sm:$0xf]
        %v9172 = vld [vmem:[#allocation10 + $0x104] sm:$0xf]
        %v9173 = vld [vmem:[#allocation10 + $0x108] sm:$0xf]
        %v9174 = vld [vmem:[#allocation10 + $0x10c] sm:$0xf]
        %v9175 = vld [vmem:[#allocation10 + $0x110] sm:$0xf]
        %v9176 = vld [vmem:[#allocation10 + $0x114] sm:$0xf]
        %v9177 = vld [vmem:[#allocation10 + $0x118] sm:$0xf]
        %v9178 = vld [vmem:[#allocation10 + $0x11c] sm:$0xf]
        %v9179 = vld [vmem:[#allocation10 + $0x120] sm:$0xf]
        %v9180 = vld [vmem:[#allocation10 + $0x124] sm:$0xf]
        %v9181 = vld [vmem:[#allocation10 + $0x128] sm:$0xf]
        %v9182 = vld [vmem:[#allocation10 + $0x12c] sm:$0xf]
        %v9183 = vld [vmem:[#allocation10 + $0x130] sm:$0xf]
        %v9184 = vld [vmem:[#allocation10 + $0x134] sm:$0xf]
        %v9185 = vld [vmem:[#allocation10 + $0x138] sm:$0xf]
        %v9186 = vld [vmem:[#allocation10 + $0x13c] sm:$0xf]
        %v9187 = vld [vmem:[#allocation10 + $0x140] sm:$0xf]
        %v9188 = vld [vmem:[#allocation10 + $0x144] sm:$0xf]
        %v9189 = vld [vmem:[#allocation10 + $0x148] sm:$0xf]
        %v9190 = vld [vmem:[#allocation10 + $0x14c] sm:$0xf]
        %v9191 = vld [vmem:[#allocation10 + $0x150] sm:$0xf]
        %v9192 = vld [vmem:[#allocation10 + $0x154] sm:$0xf]
        %v9193 = vld [vmem:[#allocation10 + $0x158] sm:$0xf]
        %v9194 = vld [vmem:[#allocation10 + $0x15c] sm:$0xf]
        %v9195 = vld [vmem:[#allocation10 + $0x160] sm:$0xf]
        %v9196 = vld [vmem:[#allocation10 + $0x164] sm:$0xf]
        %v9197 = vld [vmem:[#allocation10 + $0x168] sm:$0xf]
        %v9198 = vld [vmem:[#allocation10 + $0x16c] sm:$0xf]
        %v9199 = vld [vmem:[#allocation10 + $0x170] sm:$0xf]
        %v9200 = vld [vmem:[#allocation10 + $0x174] sm:$0xf]
        %v9201 = vld [vmem:[#allocation10 + $0x178] sm:$0xf]
        %v9202 = vld [vmem:[#allocation10 + $0x17c] sm:$0xf]
        %v9203 = vld [vmem:[#allocation10 + $0x180] sm:$0xf]
        %v9204 = vld [vmem:[#allocation10 + $0x184] sm:$0xf]
        %v9205 = vld [vmem:[#allocation10 + $0x188] sm:$0xf]
        %v9206 = vld [vmem:[#allocation10 + $0x18c] sm:$0xf]
        %v9207 = vld [vmem:[#allocation10 + $0x190] sm:$0xf]
        %v9208 = vld [vmem:[#allocation10 + $0x194] sm:$0xf]
        %v9209 = vld [vmem:[#allocation10 + $0x198] sm:$0xf]
        %v9210 = vld [vmem:[#allocation10 + $0x19c] sm:$0xf]
        %v9211 = vld [vmem:[#allocation10 + $0x1a0] sm:$0xf]
        %v9212 = vld [vmem:[#allocation10 + $0x1a4] sm:$0xf]
        %v9213 = vld [vmem:[#allocation10 + $0x1a8] sm:$0xf]
        %v9214 = vld [vmem:[#allocation10 + $0x1ac] sm:$0xf]
        %v9215 = vld [vmem:[#allocation10 + $0x1b0] sm:$0xf]
        %v9216 = vld [vmem:[#allocation10 + $0x1b4] sm:$0xf]
        %v9217 = vld [vmem:[#allocation10 + $0x1b8] sm:$0xf]
        %v9218 = vld [vmem:[#allocation10 + $0x1bc] sm:$0xf]
        %v9219 = vld [vmem:[#allocation10 + $0x1c0] sm:$0xf]
        %v9220 = vld [vmem:[#allocation10 + $0x1c4] sm:$0xf]
        %v9221 = vld [vmem:[#allocation10 + $0x1c8] sm:$0xf]
        %v9222 = vld [vmem:[#allocation10 + $0x1cc] sm:$0xf]
        %v9223 = vld [vmem:[#allocation10 + $0x1d0] sm:$0xf]
        %v9224 = vld [vmem:[#allocation10 + $0x1d4] sm:$0xf]
        %v9225 = vld [vmem:[#allocation10 + $0x1d8] sm:$0xf]
        %v9226 = vld [vmem:[#allocation10 + $0x1dc] sm:$0xf]
        %v9227 = vld [vmem:[#allocation10 + $0x1e0] sm:$0xf]
        %v9228 = vld [vmem:[#allocation10 + $0x1e4] sm:$0xf]
        %v9229 = vld [vmem:[#allocation10 + $0x1e8] sm:$0xf]
        %v9230 = vld [vmem:[#allocation10 + $0x1ec] sm:$0xf]
        %v9231 = vld [vmem:[#allocation10 + $0x1f0] sm:$0xf]
        %v9232 = vld [vmem:[#allocation10 + $0x1f4] sm:$0xf]
        %v9233 = vld [vmem:[#allocation10 + $0x1f8] sm:$0xf]
        %v9234 = vld [vmem:[#allocation10 + $0x1fc] sm:$0xf]
        %v9235 = vld [vmem:[#allocation10 + $0x200] sm:$0xf]
        %v9236 = vld [vmem:[#allocation10 + $0x204] sm:$0xf]
        %v9237 = vld [vmem:[#allocation10 + $0x208] sm:$0xf]
        %v9238 = vld [vmem:[#allocation10 + $0x20c] sm:$0xf]
        %v9239 = vld [vmem:[#allocation10 + $0x210] sm:$0xf]
        %v9240 = vld [vmem:[#allocation10 + $0x214] sm:$0xf]
        %v9241 = vld [vmem:[#allocation10 + $0x218] sm:$0xf]
        %v9242 = vld [vmem:[#allocation10 + $0x21c] sm:$0xf]
        %v9243 = vld [vmem:[#allocation10 + $0x220] sm:$0xf]
        %v9244 = vld [vmem:[#allocation10 + $0x224] sm:$0xf]
        %v9245 = vld [vmem:[#allocation10 + $0x228] sm:$0xf]
        %v9246 = vld [vmem:[#allocation10 + $0x22c] sm:$0xf]
        %v9247 = vld [vmem:[#allocation10 + $0x230] sm:$0xf]
        %v9248 = vld [vmem:[#allocation10 + $0x234] sm:$0xf]
        %v9249 = vld [vmem:[#allocation10 + $0x238] sm:$0xf]
        %v9250 = vld [vmem:[#allocation10 + $0x23c] sm:$0xf]
        %v9411 = vunpack.c.l.b16 %v8947
        %v9412 = vunpack.c.h.b16 %v8947
        %v9413 = vunpack.c.l.b16 %v8948
        %v9414 = vunpack.c.h.b16 %v8948
        %v9415 = vunpack.c.l.b16 %v8949
        %v9416 = vunpack.c.h.b16 %v8949
        %v9417 = vunpack.c.l.b16 %v8950
        %v9418 = vunpack.c.h.b16 %v8950
        %v9419 = vunpack.c.l.b16 %v8951
        %v9420 = vunpack.c.l.b16 %v8952
        %v9421 = vunpack.c.h.b16 %v8952
        %v9422 = vunpack.c.l.b16 %v8953
        %v9423 = vunpack.c.h.b16 %v8953
        %v9424 = vunpack.c.l.b16 %v8954
        %v9425 = vunpack.c.h.b16 %v8954
        %v9426 = vunpack.c.l.b16 %v8955
        %v9427 = vunpack.c.h.b16 %v8955
        %v9428 = vunpack.c.l.b16 %v8956
        %v9429 = vunpack.c.l.b16 %v8957
        %v9430 = vunpack.c.h.b16 %v8957
        %v9431 = vunpack.c.l.b16 %v8958
        %v9432 = vunpack.c.h.b16 %v8958
        %v9433 = vunpack.c.l.b16 %v8959
        %v9434 = vunpack.c.h.b16 %v8959
        %v9435 = vunpack.c.l.b16 %v8960
        %v9436 = vunpack.c.h.b16 %v8960
        %v9437 = vunpack.c.l.b16 %v8961
        %v9438 = vunpack.c.l.b16 %v8962
        %v9439 = vunpack.c.h.b16 %v8962
        %v9440 = vunpack.c.l.b16 %v8963
        %v9441 = vunpack.c.h.b16 %v8963
        %v9442 = vunpack.c.l.b16 %v8964
        %v9443 = vunpack.c.h.b16 %v8964
        %v9444 = vunpack.c.l.b16 %v8965
        %v9445 = vunpack.c.h.b16 %v8965
        %v9446 = vunpack.c.l.b16 %v8966
        %v9447 = vunpack.c.l.b16 %v8967
        %v9448 = vunpack.c.h.b16 %v8967
        %v9449 = vunpack.c.l.b16 %v8968
        %v9450 = vunpack.c.h.b16 %v8968
        %v9451 = vunpack.c.l.b16 %v8969
        %v9452 = vunpack.c.h.b16 %v8969
        %v9453 = vunpack.c.l.b16 %v8970
        %v9454 = vunpack.c.h.b16 %v8970
        %v9455 = vunpack.c.l.b16 %v8971
        %v9456 = vunpack.c.l.b16 %v8972
        %v9457 = vunpack.c.h.b16 %v8972
        %v9458 = vunpack.c.l.b16 %v8973
        %v9459 = vunpack.c.h.b16 %v8973
        %v9460 = vunpack.c.l.b16 %v8974
        %v9461 = vunpack.c.h.b16 %v8974
        %v9462 = vunpack.c.l.b16 %v8975
        %v9463 = vunpack.c.h.b16 %v8975
        %v9464 = vunpack.c.l.b16 %v8976
        %v9465 = vunpack.c.l.b16 %v8977
        %v9466 = vunpack.c.h.b16 %v8977
        %v9467 = vunpack.c.l.b16 %v8978
        %v9468 = vunpack.c.h.b16 %v8978
        %v9469 = vunpack.c.l.b16 %v8979
        %v9470 = vunpack.c.h.b16 %v8979
        %v9471 = vunpack.c.l.b16 %v8980
        %v9472 = vunpack.c.h.b16 %v8980
        %v9473 = vunpack.c.l.b16 %v8981
        %v9474 = vunpack.c.l.b16 %v8982
        %v9475 = vunpack.c.h.b16 %v8982
        %v9476 = vunpack.c.l.b16 %v8983
        %v9477 = vunpack.c.h.b16 %v8983
        %v9478 = vunpack.c.l.b16 %v8984
        %v9479 = vunpack.c.h.b16 %v8984
        %v9480 = vunpack.c.l.b16 %v8985
        %v9481 = vunpack.c.h.b16 %v8985
        %v9482 = vunpack.c.l.b16 %v8986
        %v9483 = vunpack.c.l.b16 %v8987
        %v9484 = vunpack.c.h.b16 %v8987
        %v9485 = vunpack.c.l.b16 %v8988
        %v9486 = vunpack.c.h.b16 %v8988
        %v9487 = vunpack.c.l.b16 %v8989
        %v9488 = vunpack.c.h.b16 %v8989
        %v9489 = vunpack.c.l.b16 %v8990
        %v9490 = vunpack.c.h.b16 %v8990
        %v9491 = vunpack.c.l.b16 %v8991
        %v9492 = vunpack.c.l.b16 %v8992
        %v9493 = vunpack.c.h.b16 %v8992
        %v9494 = vunpack.c.l.b16 %v8993
        %v9495 = vunpack.c.h.b16 %v8993
        %v9496 = vunpack.c.l.b16 %v8994
        %v9497 = vunpack.c.h.b16 %v8994
        %v9498 = vunpack.c.l.b16 %v8995
        %v9499 = vunpack.c.h.b16 %v8995
        %v9500 = vunpack.c.l.b16 %v8996
        %v9501 = vunpack.c.l.b16 %v8997
        %v9502 = vunpack.c.h.b16 %v8997
        %v9503 = vunpack.c.l.b16 %v8998
        %v9504 = vunpack.c.h.b16 %v8998
        %v9505 = vunpack.c.l.b16 %v8999
        %v9506 = vunpack.c.h.b16 %v8999
        %v9507 = vunpack.c.l.b16 %v9000
        %v9508 = vunpack.c.h.b16 %v9000
        %v9509 = vunpack.c.l.b16 %v9001
        %v9510 = vunpack.c.l.b16 %v9002
        %v9511 = vunpack.c.h.b16 %v9002
        %v9512 = vunpack.c.l.b16 %v9003
        %v9513 = vunpack.c.h.b16 %v9003
        %v9514 = vunpack.c.l.b16 %v9004
        %v9515 = vunpack.c.h.b16 %v9004
        %v9516 = vunpack.c.l.b16 %v9005
        %v9517 = vunpack.c.h.b16 %v9005
        %v9518 = vunpack.c.l.b16 %v9006
        %v9519 = vunpack.c.l.b16 %v9007
        %v9520 = vunpack.c.h.b16 %v9007
        %v9521 = vunpack.c.l.b16 %v9008
        %v9522 = vunpack.c.h.b16 %v9008
        %v9523 = vunpack.c.l.b16 %v9009
        %v9524 = vunpack.c.h.b16 %v9009
        %v9525 = vunpack.c.l.b16 %v9010
        %v9526 = vunpack.c.h.b16 %v9010
        %v9527 = vunpack.c.l.b16 %v9011
        %v9528 = vunpack.c.l.b16 %v9012
        %v9529 = vunpack.c.h.b16 %v9012
        %v9530 = vunpack.c.l.b16 %v9013
        %v9531 = vunpack.c.h.b16 %v9013
        %v9532 = vunpack.c.l.b16 %v9014
        %v9533 = vunpack.c.h.b16 %v9014
        %v9534 = vunpack.c.l.b16 %v9015
        %v9535 = vunpack.c.h.b16 %v9015
        %v9536 = vunpack.c.l.b16 %v9016
        %v9537 = vunpack.c.l.b16 %v9017
        %v9538 = vunpack.c.h.b16 %v9017
        %v9539 = vunpack.c.l.b16 %v9018
        %v9540 = vunpack.c.h.b16 %v9018
        %v9541 = vunpack.c.l.b16 %v9019
        %v9542 = vunpack.c.h.b16 %v9019
        %v9543 = vunpack.c.l.b16 %v9020
        %v9544 = vunpack.c.h.b16 %v9020
        %v9545 = vunpack.c.l.b16 %v9021
        %v9546 = vunpack.c.l.b16 %v9022
        %v9547 = vunpack.c.h.b16 %v9022
        %v9548 = vunpack.c.l.b16 %v9023
        %v9549 = vunpack.c.h.b16 %v9023
        %v9550 = vunpack.c.l.b16 %v9024
        %v9551 = vunpack.c.h.b16 %v9024
        %v9552 = vunpack.c.l.b16 %v9025
        %v9553 = vunpack.c.h.b16 %v9025
        %v9554 = vunpack.c.l.b16 %v9026
        %v9555 = vunpack.c.l.b16 %v9027
        %v9556 = vunpack.c.h.b16 %v9027
        %v9557 = vunpack.c.l.b16 %v9028
        %v9558 = vunpack.c.h.b16 %v9028
        %v9559 = vunpack.c.l.b16 %v9029
        %v9560 = vunpack.c.h.b16 %v9029
        %v9561 = vunpack.c.l.b16 %v9030
        %v9562 = vunpack.c.h.b16 %v9030
        %v9563 = vunpack.c.l.b16 %v9031
        %v9564 = vunpack.c.l.b16 %v9032
        %v9565 = vunpack.c.h.b16 %v9032
        %v9566 = vunpack.c.l.b16 %v9033
        %v9567 = vunpack.c.h.b16 %v9033
        %v9568 = vunpack.c.l.b16 %v9034
        %v9569 = vunpack.c.h.b16 %v9034
        %v9570 = vunpack.c.l.b16 %v9035
        %v9571 = vunpack.c.h.b16 %v9035
        %v9572 = vunpack.c.l.b16 %v9036
        %v9573 = vunpack.c.l.b16 %v9037
        %v9574 = vunpack.c.h.b16 %v9037
        %v9575 = vunpack.c.l.b16 %v9038
        %v9576 = vunpack.c.h.b16 %v9038
        %v9577 = vunpack.c.l.b16 %v9039
        %v9578 = vunpack.c.h.b16 %v9039
        %v9579 = vunpack.c.l.b16 %v9040
        %v9580 = vunpack.c.h.b16 %v9040
        %v9581 = vunpack.c.l.b16 %v9041
        %v9582 = vunpack.c.l.b16 %v9042
        %v9583 = vunpack.c.h.b16 %v9042
        %v9584 = vunpack.c.l.b16 %v9043
        %v9585 = vunpack.c.h.b16 %v9043
        %v9586 = vunpack.c.l.b16 %v9044
        %v9587 = vunpack.c.h.b16 %v9044
        %v9588 = vunpack.c.l.b16 %v9045
        %v9589 = vunpack.c.h.b16 %v9045
        %v9590 = vunpack.c.l.b16 %v9046
        %v9591 = vunpack.c.l.b16 %v9047
        %v9592 = vunpack.c.h.b16 %v9047
        %v9593 = vunpack.c.l.b16 %v9048
        %v9594 = vunpack.c.h.b16 %v9048
        %v9595 = vunpack.c.l.b16 %v9049
        %v9596 = vunpack.c.h.b16 %v9049
        %v9597 = vunpack.c.l.b16 %v9050
        %v9598 = vunpack.c.h.b16 %v9050
        %v9599 = vunpack.c.l.b16 %v9051
        %v9600 = vunpack.c.l.b16 %v9052
        %v9601 = vunpack.c.h.b16 %v9052
        %v9602 = vunpack.c.l.b16 %v9053
        %v9603 = vunpack.c.h.b16 %v9053
        %v9604 = vunpack.c.l.b16 %v9054
        %v9605 = vunpack.c.h.b16 %v9054
        %v9606 = vunpack.c.l.b16 %v9055
        %v9607 = vunpack.c.h.b16 %v9055
        %v9608 = vunpack.c.l.b16 %v9056
        %v9609 = vunpack.c.l.b16 %v9057
        %v9610 = vunpack.c.h.b16 %v9057
        %v9611 = vunpack.c.l.b16 %v9058
        %v9612 = vunpack.c.h.b16 %v9058
        %v9613 = vunpack.c.l.b16 %v9059
        %v9614 = vunpack.c.h.b16 %v9059
        %v9615 = vunpack.c.l.b16 %v9060
        %v9616 = vunpack.c.h.b16 %v9060
        %v9617 = vunpack.c.l.b16 %v9061
        %v9618 = vunpack.c.l.b16 %v9062
        %v9619 = vunpack.c.h.b16 %v9062
        %v9620 = vunpack.c.l.b16 %v9063
        %v9621 = vunpack.c.h.b16 %v9063
        %v9622 = vunpack.c.l.b16 %v9064
        %v9623 = vunpack.c.h.b16 %v9064
        %v9624 = vunpack.c.l.b16 %v9065
        %v9625 = vunpack.c.h.b16 %v9065
        %v9626 = vunpack.c.l.b16 %v9066
        %v9627 = vunpack.c.l.b16 %v9067
        %v9628 = vunpack.c.h.b16 %v9067
        %v9629 = vunpack.c.l.b16 %v9068
        %v9630 = vunpack.c.h.b16 %v9068
        %v9631 = vunpack.c.l.b16 %v9069
        %v9632 = vunpack.c.h.b16 %v9069
        %v9633 = vunpack.c.l.b16 %v9070
        %v9634 = vunpack.c.h.b16 %v9070
        %v9635 = vunpack.c.l.b16 %v9071
        %v9636 = vunpack.c.l.b16 %v9072
        %v9637 = vunpack.c.h.b16 %v9072
        %v9638 = vunpack.c.l.b16 %v9073
        %v9639 = vunpack.c.h.b16 %v9073
        %v9640 = vunpack.c.l.b16 %v9074
        %v9641 = vunpack.c.h.b16 %v9074
        %v9642 = vunpack.c.l.b16 %v9075
        %v9643 = vunpack.c.h.b16 %v9075
        %v9644 = vunpack.c.l.b16 %v9076
        %v9645 = vunpack.c.l.b16 %v9077
        %v9646 = vunpack.c.h.b16 %v9077
        %v9647 = vunpack.c.l.b16 %v9078
        %v9648 = vunpack.c.h.b16 %v9078
        %v9649 = vunpack.c.l.b16 %v9079
        %v9650 = vunpack.c.h.b16 %v9079
        %v9651 = vunpack.c.l.b16 %v9080
        %v9652 = vunpack.c.h.b16 %v9080
        %v9653 = vunpack.c.l.b16 %v9081
        %v9654 = vunpack.c.l.b16 %v9082
        %v9655 = vunpack.c.h.b16 %v9082
        %v9656 = vunpack.c.l.b16 %v9083
        %v9657 = vunpack.c.h.b16 %v9083
        %v9658 = vunpack.c.l.b16 %v9084
        %v9659 = vunpack.c.h.b16 %v9084
        %v9660 = vunpack.c.l.b16 %v9085
        %v9661 = vunpack.c.h.b16 %v9085
        %v9662 = vunpack.c.l.b16 %v9086
        %v9663 = vunpack.c.l.b16 %v9087
        %v9664 = vunpack.c.h.b16 %v9087
        %v9665 = vunpack.c.l.b16 %v9088
        %v9666 = vunpack.c.h.b16 %v9088
        %v9667 = vunpack.c.l.b16 %v9089
        %v9668 = vunpack.c.h.b16 %v9089
        %v9669 = vunpack.c.l.b16 %v9090
        %v9670 = vunpack.c.h.b16 %v9090
        %v9671 = vunpack.c.l.b16 %v9091
        %v9672 = vunpack.c.l.b16 %v9092
        %v9673 = vunpack.c.h.b16 %v9092
        %v9674 = vunpack.c.l.b16 %v9093
        %v9675 = vunpack.c.h.b16 %v9093
        %v9676 = vunpack.c.l.b16 %v9094
        %v9677 = vunpack.c.h.b16 %v9094
        %v9678 = vunpack.c.l.b16 %v9095
        %v9679 = vunpack.c.h.b16 %v9095
        %v9680 = vunpack.c.l.b16 %v9096
        %v9681 = vunpack.c.l.b16 %v9097
        %v9682 = vunpack.c.h.b16 %v9097
        %v9683 = vunpack.c.l.b16 %v9098
        %v9684 = vunpack.c.h.b16 %v9098
        %v9685 = vunpack.c.l.b16 %v9099
        %v9686 = vunpack.c.h.b16 %v9099
        %v9687 = vunpack.c.l.b16 %v9100
        %v9688 = vunpack.c.h.b16 %v9100
        %v9689 = vunpack.c.l.b16 %v9101
        %v9690 = vunpack.c.l.b16 %v9102
        %v9691 = vunpack.c.h.b16 %v9102
        %v9692 = vunpack.c.l.b16 %v9103
        %v9693 = vunpack.c.h.b16 %v9103
        %v9694 = vunpack.c.l.b16 %v9104
        %v9695 = vunpack.c.h.b16 %v9104
        %v9696 = vunpack.c.l.b16 %v9105
        %v9697 = vunpack.c.h.b16 %v9105
        %v9698 = vunpack.c.l.b16 %v9106
        %v9699 = vpack.c.b16 %v9420, %v9411
        %v9700 = vpack.c.b16 %v9421, %v9412
        %v9701 = vpack.c.b16 %v9422, %v9413
        %v9702 = vpack.c.b16 %v9423, %v9414
        %v9703 = vpack.c.b16 %v9424, %v9415
        %v9704 = vpack.c.b16 %v9425, %v9416
        %v9705 = vpack.c.b16 %v9426, %v9417
        %v9706 = vpack.c.b16 %v9427, %v9418
        %v9707 = vpack.c.b16 %v9428, %v9419
        %v9708 = vpack.c.b16 %v9438, %v9429
        %v9709 = vpack.c.b16 %v9439, %v9430
        %v9710 = vpack.c.b16 %v9440, %v9431
        %v9711 = vpack.c.b16 %v9441, %v9432
        %v9712 = vpack.c.b16 %v9442, %v9433
        %v9713 = vpack.c.b16 %v9443, %v9434
        %v9714 = vpack.c.b16 %v9444, %v9435
        %v9715 = vpack.c.b16 %v9445, %v9436
        %v9716 = vpack.c.b16 %v9446, %v9437
        %v9717 = vpack.c.b16 %v9456, %v9447
        %v9718 = vpack.c.b16 %v9457, %v9448
        %v9719 = vpack.c.b16 %v9458, %v9449
        %v9720 = vpack.c.b16 %v9459, %v9450
        %v9721 = vpack.c.b16 %v9460, %v9451
        %v9722 = vpack.c.b16 %v9461, %v9452
        %v9723 = vpack.c.b16 %v9462, %v9453
        %v9724 = vpack.c.b16 %v9463, %v9454
        %v9725 = vpack.c.b16 %v9464, %v9455
        %v9726 = vpack.c.b16 %v9474, %v9465
        %v9727 = vpack.c.b16 %v9475, %v9466
        %v9728 = vpack.c.b16 %v9476, %v9467
        %v9729 = vpack.c.b16 %v9477, %v9468
        %v9730 = vpack.c.b16 %v9478, %v9469
        %v9731 = vpack.c.b16 %v9479, %v9470
        %v9732 = vpack.c.b16 %v9480, %v9471
        %v9733 = vpack.c.b16 %v9481, %v9472
        %v9734 = vpack.c.b16 %v9482, %v9473
        %v9735 = vpack.c.b16 %v9492, %v9483
        %v9736 = vpack.c.b16 %v9493, %v9484
        %v9737 = vpack.c.b16 %v9494, %v9485
        %v9738 = vpack.c.b16 %v9495, %v9486
        %v9739 = vpack.c.b16 %v9496, %v9487
        %v9740 = vpack.c.b16 %v9497, %v9488
        %v9741 = vpack.c.b16 %v9498, %v9489
        %v9742 = vpack.c.b16 %v9499, %v9490
        %v9743 = vpack.c.b16 %v9500, %v9491
        %v9744 = vpack.c.b16 %v9510, %v9501
        %v9745 = vpack.c.b16 %v9511, %v9502
        %v9746 = vpack.c.b16 %v9512, %v9503
        %v9747 = vpack.c.b16 %v9513, %v9504
        %v9748 = vpack.c.b16 %v9514, %v9505
        %v9749 = vpack.c.b16 %v9515, %v9506
        %v9750 = vpack.c.b16 %v9516, %v9507
        %v9751 = vpack.c.b16 %v9517, %v9508
        %v9752 = vpack.c.b16 %v9518, %v9509
        %v9753 = vpack.c.b16 %v9528, %v9519
        %v9754 = vpack.c.b16 %v9529, %v9520
        %v9755 = vpack.c.b16 %v9530, %v9521
        %v9756 = vpack.c.b16 %v9531, %v9522
        %v9757 = vpack.c.b16 %v9532, %v9523
        %v9758 = vpack.c.b16 %v9533, %v9524
        %v9759 = vpack.c.b16 %v9534, %v9525
        %v9760 = vpack.c.b16 %v9535, %v9526
        %v9761 = vpack.c.b16 %v9536, %v9527
        %v9762 = vpack.c.b16 %v9546, %v9537
        %v9763 = vpack.c.b16 %v9547, %v9538
        %v9764 = vpack.c.b16 %v9548, %v9539
        %v9765 = vpack.c.b16 %v9549, %v9540
        %v9766 = vpack.c.b16 %v9550, %v9541
        %v9767 = vpack.c.b16 %v9551, %v9542
        %v9768 = vpack.c.b16 %v9552, %v9543
        %v9769 = vpack.c.b16 %v9553, %v9544
        %v9770 = vpack.c.b16 %v9554, %v9545
        %v9771 = vpack.c.b16 %v9564, %v9555
        %v9772 = vpack.c.b16 %v9565, %v9556
        %v9773 = vpack.c.b16 %v9566, %v9557
        %v9774 = vpack.c.b16 %v9567, %v9558
        %v9775 = vpack.c.b16 %v9568, %v9559
        %v9776 = vpack.c.b16 %v9569, %v9560
        %v9777 = vpack.c.b16 %v9570, %v9561
        %v9778 = vpack.c.b16 %v9571, %v9562
        %v9779 = vpack.c.b16 %v9572, %v9563
        %v9780 = vpack.c.b16 %v9582, %v9573
        %v9781 = vpack.c.b16 %v9583, %v9574
        %v9782 = vpack.c.b16 %v9584, %v9575
        %v9783 = vpack.c.b16 %v9585, %v9576
        %v9784 = vpack.c.b16 %v9586, %v9577
        %v9785 = vpack.c.b16 %v9587, %v9578
        %v9786 = vpack.c.b16 %v9588, %v9579
        %v9787 = vpack.c.b16 %v9589, %v9580
        %v9788 = vpack.c.b16 %v9590, %v9581
        %v9789 = vpack.c.b16 %v9600, %v9591
        %v9790 = vpack.c.b16 %v9601, %v9592
        %v9791 = vpack.c.b16 %v9602, %v9593
        %v9792 = vpack.c.b16 %v9603, %v9594
        %v9793 = vpack.c.b16 %v9604, %v9595
        %v9794 = vpack.c.b16 %v9605, %v9596
        %v9795 = vpack.c.b16 %v9606, %v9597
        %v9796 = vpack.c.b16 %v9607, %v9598
        %v9797 = vpack.c.b16 %v9608, %v9599
        %v9798 = vpack.c.b16 %v9618, %v9609
        %v9799 = vpack.c.b16 %v9619, %v9610
        %v9800 = vpack.c.b16 %v9620, %v9611
        %v9801 = vpack.c.b16 %v9621, %v9612
        %v9802 = vpack.c.b16 %v9622, %v9613
        %v9803 = vpack.c.b16 %v9623, %v9614
        %v9804 = vpack.c.b16 %v9624, %v9615
        %v9805 = vpack.c.b16 %v9625, %v9616
        %v9806 = vpack.c.b16 %v9626, %v9617
        %v9807 = vpack.c.b16 %v9636, %v9627
        %v9808 = vpack.c.b16 %v9637, %v9628
        %v9809 = vpack.c.b16 %v9638, %v9629
        %v9810 = vpack.c.b16 %v9639, %v9630
        %v9811 = vpack.c.b16 %v9640, %v9631
        %v9812 = vpack.c.b16 %v9641, %v9632
        %v9813 = vpack.c.b16 %v9642, %v9633
        %v9814 = vpack.c.b16 %v9643, %v9634
        %v9815 = vpack.c.b16 %v9644, %v9635
        %v9816 = vpack.c.b16 %v9654, %v9645
        %v9817 = vpack.c.b16 %v9655, %v9646
        %v9818 = vpack.c.b16 %v9656, %v9647
        %v9819 = vpack.c.b16 %v9657, %v9648
        %v9820 = vpack.c.b16 %v9658, %v9649
        %v9821 = vpack.c.b16 %v9659, %v9650
        %v9822 = vpack.c.b16 %v9660, %v9651
        %v9823 = vpack.c.b16 %v9661, %v9652
        %v9824 = vpack.c.b16 %v9662, %v9653
        %v9825 = vpack.c.b16 %v9672, %v9663
        %v9826 = vpack.c.b16 %v9673, %v9664
        %v9827 = vpack.c.b16 %v9674, %v9665
        %v9828 = vpack.c.b16 %v9675, %v9666
        %v9829 = vpack.c.b16 %v9676, %v9667
        %v9830 = vpack.c.b16 %v9677, %v9668
        %v9831 = vpack.c.b16 %v9678, %v9669
        %v9832 = vpack.c.b16 %v9679, %v9670
        %v9833 = vpack.c.b16 %v9680, %v9671
        %v9834 = vpack.c.b16 %v9690, %v9681
        %v9835 = vpack.c.b16 %v9691, %v9682
        %v9836 = vpack.c.b16 %v9692, %v9683
        %v9837 = vpack.c.b16 %v9693, %v9684
        %v9838 = vpack.c.b16 %v9694, %v9685
        %v9839 = vpack.c.b16 %v9695, %v9686
        %v9840 = vpack.c.b16 %v9696, %v9687
        %v9841 = vpack.c.b16 %v9697, %v9688
        %v9842 = vpack.c.b16 %v9698, %v9689
        %v10131 = vunpack.c.l.b16 %v9107
        %v10132 = vunpack.c.l.b16 %v9108
        %v10133 = vunpack.c.l.b16 %v9109
        %v10134 = vunpack.c.l.b16 %v9110
        %v10135 = vunpack.c.l.b16 %v9111
        %v10136 = vunpack.c.l.b16 %v9112
        %v10137 = vunpack.c.l.b16 %v9113
        %v10138 = vunpack.c.l.b16 %v9114
        %v10139 = vunpack.c.l.b16 %v9115
        %v10140 = vunpack.c.l.b16 %v9116
        %v10141 = vunpack.c.l.b16 %v9117
        %v10142 = vunpack.c.l.b16 %v9118
        %v10143 = vunpack.c.l.b16 %v9119
        %v10144 = vunpack.c.l.b16 %v9120
        %v10145 = vunpack.c.l.b16 %v9121
        %v10146 = vunpack.c.l.b16 %v9122
        %v10147 = vunpack.c.l.b16 %v9123
        %v10148 = vunpack.c.l.b16 %v9124
        %v10149 = vunpack.c.l.b16 %v9125
        %v10150 = vunpack.c.l.b16 %v9126
        %v10151 = vunpack.c.l.b16 %v9127
        %v10152 = vunpack.c.l.b16 %v9128
        %v10153 = vunpack.c.l.b16 %v9129
        %v10154 = vunpack.c.l.b16 %v9130
        %v10155 = vunpack.c.l.b16 %v9131
        %v10156 = vunpack.c.l.b16 %v9132
        %v10157 = vunpack.c.l.b16 %v9133
        %v10158 = vunpack.c.l.b16 %v9134
        %v10159 = vunpack.c.l.b16 %v9135
        %v10160 = vunpack.c.l.b16 %v9136
        %v10161 = vunpack.c.l.b16 %v9137
        %v10162 = vunpack.c.l.b16 %v9138
        %v10163 = vunpack.c.l.b16 %v9139
        %v10164 = vunpack.c.l.b16 %v9140
        %v10165 = vunpack.c.l.b16 %v9141
        %v10166 = vunpack.c.l.b16 %v9142
        %v10167 = vunpack.c.l.b16 %v9143
        %v10168 = vunpack.c.l.b16 %v9144
        %v10169 = vunpack.c.l.b16 %v9145
        %v10170 = vunpack.c.l.b16 %v9146
        %v10171 = vunpack.c.l.b16 %v9147
        %v10172 = vunpack.c.l.b16 %v9148
        %v10173 = vunpack.c.l.b16 %v9149
        %v10174 = vunpack.c.l.b16 %v9150
        %v10175 = vunpack.c.l.b16 %v9151
        %v10176 = vunpack.c.l.b16 %v9152
        %v10177 = vunpack.c.l.b16 %v9153
        %v10178 = vunpack.c.l.b16 %v9154
        %v10179 = vunpack.c.l.b16 %v9155
        %v10180 = vunpack.c.l.b16 %v9156
        %v10181 = vunpack.c.l.b16 %v9157
        %v10182 = vunpack.c.l.b16 %v9158
        %v10183 = vunpack.c.l.b16 %v9159
        %v10184 = vunpack.c.l.b16 %v9160
        %v10185 = vunpack.c.l.b16 %v9161
        %v10186 = vunpack.c.l.b16 %v9162
        %v10187 = vunpack.c.l.b16 %v9163
        %v10188 = vunpack.c.l.b16 %v9164
        %v10189 = vunpack.c.l.b16 %v9165
        %v10190 = vunpack.c.l.b16 %v9166
        %v10191 = vunpack.c.l.b16 %v9167
        %v10192 = vunpack.c.l.b16 %v9168
        %v10193 = vunpack.c.l.b16 %v9169
        %v10194 = vunpack.c.l.b16 %v9170
        %v10195 = vunpack.c.l.b16 %v9171
        %v10196 = vunpack.c.l.b16 %v9172
        %v10197 = vunpack.c.l.b16 %v9173
        %v10198 = vunpack.c.l.b16 %v9174
        %v10199 = vunpack.c.l.b16 %v9175
        %v10200 = vunpack.c.l.b16 %v9176
        %v10201 = vunpack.c.l.b16 %v9177
        %v10202 = vunpack.c.l.b16 %v9178
        %v10203 = vunpack.c.l.b16 %v9179
        %v10204 = vunpack.c.l.b16 %v9180
        %v10205 = vunpack.c.l.b16 %v9181
        %v10206 = vunpack.c.l.b16 %v9182
        %v10207 = vunpack.c.l.b16 %v9183
        %v10208 = vunpack.c.l.b16 %v9184
        %v10209 = vunpack.c.l.b16 %v9185
        %v10210 = vunpack.c.l.b16 %v9186
        %v10211 = vunpack.c.l.b16 %v9187
        %v10212 = vunpack.c.l.b16 %v9188
        %v10213 = vunpack.c.l.b16 %v9189
        %v10214 = vunpack.c.l.b16 %v9190
        %v10215 = vunpack.c.l.b16 %v9191
        %v10216 = vunpack.c.l.b16 %v9192
        %v10217 = vunpack.c.l.b16 %v9193
        %v10218 = vunpack.c.l.b16 %v9194
        %v10219 = vunpack.c.l.b16 %v9195
        %v10220 = vunpack.c.l.b16 %v9196
        %v10221 = vunpack.c.l.b16 %v9197
        %v10222 = vunpack.c.l.b16 %v9198
        %v10223 = vunpack.c.l.b16 %v9199
        %v10224 = vunpack.c.l.b16 %v9200
        %v10225 = vunpack.c.l.b16 %v9201
        %v10226 = vunpack.c.l.b16 %v9202
        %v10227 = vunpack.c.l.b16 %v9203
        %v10228 = vunpack.c.l.b16 %v9204
        %v10229 = vunpack.c.l.b16 %v9205
        %v10230 = vunpack.c.l.b16 %v9206
        %v10231 = vunpack.c.l.b16 %v9207
        %v10232 = vunpack.c.l.b16 %v9208
        %v10233 = vunpack.c.l.b16 %v9209
        %v10234 = vunpack.c.l.b16 %v9210
        %v10235 = vunpack.c.l.b16 %v9211
        %v10236 = vunpack.c.l.b16 %v9212
        %v10237 = vunpack.c.l.b16 %v9213
        %v10238 = vunpack.c.l.b16 %v9214
        %v10239 = vunpack.c.l.b16 %v9215
        %v10240 = vunpack.c.l.b16 %v9216
        %v10241 = vunpack.c.l.b16 %v9217
        %v10242 = vunpack.c.l.b16 %v9218
        %v10243 = vunpack.c.l.b16 %v9219
        %v10244 = vunpack.c.l.b16 %v9220
        %v10245 = vunpack.c.l.b16 %v9221
        %v10246 = vunpack.c.l.b16 %v9222
        %v10247 = vunpack.c.l.b16 %v9223
        %v10248 = vunpack.c.l.b16 %v9224
        %v10249 = vunpack.c.l.b16 %v9225
        %v10250 = vunpack.c.l.b16 %v9226
        %v10251 = vunpack.c.l.b16 %v9227
        %v10252 = vunpack.c.l.b16 %v9228
        %v10253 = vunpack.c.l.b16 %v9229
        %v10254 = vunpack.c.l.b16 %v9230
        %v10255 = vunpack.c.l.b16 %v9231
        %v10256 = vunpack.c.l.b16 %v9232
        %v10257 = vunpack.c.l.b16 %v9233
        %v10258 = vunpack.c.l.b16 %v9234
        %v10259 = vunpack.c.l.b16 %v9235
        %v10260 = vunpack.c.l.b16 %v9236
        %v10261 = vunpack.c.l.b16 %v9237
        %v10262 = vunpack.c.l.b16 %v9238
        %v10263 = vunpack.c.l.b16 %v9239
        %v10264 = vunpack.c.l.b16 %v9240
        %v10265 = vunpack.c.l.b16 %v9241
        %v10266 = vunpack.c.l.b16 %v9242
        %v10267 = vunpack.c.l.b16 %v9243
        %v10268 = vunpack.c.l.b16 %v9244
        %v10269 = vunpack.c.l.b16 %v9245
        %v10270 = vunpack.c.l.b16 %v9246
        %v10271 = vunpack.c.l.b16 %v9247
        %v10272 = vunpack.c.l.b16 %v9248
        %v10273 = vunpack.c.l.b16 %v9249
        %v10274 = vunpack.c.l.b16 %v9250
        %v10275 = vpack.c.b16 %v10132, %v10131
        %v10276 = vpack.c.b16 %v10134, %v10133
        %v10277 = vpack.c.b16 %v10136, %v10135
        %v10278 = vpack.c.b16 %v10138, %v10137
        %v10279 = vpack.c.b16 %v10140, %v10139
        %v10280 = vpack.c.b16 %v10142, %v10141
        %v10281 = vpack.c.b16 %v10144, %v10143
        %v10282 = vpack.c.b16 %v10146, %v10145
        %v10283 = vpack.c.b16 %v10148, %v10147
        %v10284 = vpack.c.b16 %v10150, %v10149
        %v10285 = vpack.c.b16 %v10152, %v10151
        %v10286 = vpack.c.b16 %v10154, %v10153
        %v10287 = vpack.c.b16 %v10156, %v10155
        %v10288 = vpack.c.b16 %v10158, %v10157
        %v10289 = vpack.c.b16 %v10160, %v10159
        %v10290 = vpack.c.b16 %v10162, %v10161
        %v10291 = vpack.c.b16 %v10164, %v10163
        %v10292 = vpack.c.b16 %v10166, %v10165
        %v10293 = vpack.c.b16 %v10168, %v10167
        %v10294 = vpack.c.b16 %v10170, %v10169
        %v10295 = vpack.c.b16 %v10172, %v10171
        %v10296 = vpack.c.b16 %v10174, %v10173
        %v10297 = vpack.c.b16 %v10176, %v10175
        %v10298 = vpack.c.b16 %v10178, %v10177
        %v10299 = vpack.c.b16 %v10180, %v10179
        %v10300 = vpack.c.b16 %v10182, %v10181
        %v10301 = vpack.c.b16 %v10184, %v10183
        %v10302 = vpack.c.b16 %v10186, %v10185
        %v10303 = vpack.c.b16 %v10188, %v10187
        %v10304 = vpack.c.b16 %v10190, %v10189
        %v10305 = vpack.c.b16 %v10192, %v10191
        %v10306 = vpack.c.b16 %v10194, %v10193
        %v10307 = vpack.c.b16 %v10196, %v10195
        %v10308 = vpack.c.b16 %v10198, %v10197
        %v10309 = vpack.c.b16 %v10200, %v10199
        %v10310 = vpack.c.b16 %v10202, %v10201
        %v10311 = vpack.c.b16 %v10204, %v10203
        %v10312 = vpack.c.b16 %v10206, %v10205
        %v10313 = vpack.c.b16 %v10208, %v10207
        %v10314 = vpack.c.b16 %v10210, %v10209
        %v10315 = vpack.c.b16 %v10212, %v10211
        %v10316 = vpack.c.b16 %v10214, %v10213
        %v10317 = vpack.c.b16 %v10216, %v10215
        %v10318 = vpack.c.b16 %v10218, %v10217
        %v10319 = vpack.c.b16 %v10220, %v10219
        %v10320 = vpack.c.b16 %v10222, %v10221
        %v10321 = vpack.c.b16 %v10224, %v10223
        %v10322 = vpack.c.b16 %v10226, %v10225
        %v10323 = vpack.c.b16 %v10228, %v10227
        %v10324 = vpack.c.b16 %v10230, %v10229
        %v10325 = vpack.c.b16 %v10232, %v10231
        %v10326 = vpack.c.b16 %v10234, %v10233
        %v10327 = vpack.c.b16 %v10236, %v10235
        %v10328 = vpack.c.b16 %v10238, %v10237
        %v10329 = vpack.c.b16 %v10240, %v10239
        %v10330 = vpack.c.b16 %v10242, %v10241
        %v10331 = vpack.c.b16 %v10244, %v10243
        %v10332 = vpack.c.b16 %v10246, %v10245
        %v10333 = vpack.c.b16 %v10248, %v10247
        %v10334 = vpack.c.b16 %v10250, %v10249
        %v10335 = vpack.c.b16 %v10252, %v10251
        %v10336 = vpack.c.b16 %v10254, %v10253
        %v10337 = vpack.c.b16 %v10256, %v10255
        %v10338 = vpack.c.b16 %v10258, %v10257
        %v10339 = vpack.c.b16 %v10260, %v10259
        %v10340 = vpack.c.b16 %v10262, %v10261
        %v10341 = vpack.c.b16 %v10264, %v10263
        %v10342 = vpack.c.b16 %v10266, %v10265
        %v10343 = vpack.c.b16 %v10268, %v10267
        %v10344 = vpack.c.b16 %v10270, %v10269
        %v10345 = vpack.c.b16 %v10272, %v10271
        %v10346 = vpack.c.b16 %v10274, %v10273
        %10419 = vmatprep.subr.bf16.mxu0 0
        %10420 = vmatpush1.bf16.msra.mxu0 %v10282
        %10421 = vmatprep.subr.bf16.mxu0 0
        %10422 = vmatpush1.bf16.msra.mxu0 %v10281
        %10423 = vmatprep.subr.bf16.mxu0 0
        %10424 = vmatpush1.bf16.msra.mxu0 %v10280
        %10425 = vmatprep.subr.bf16.mxu0 0
        %10426 = vmatpush1.bf16.msra.mxu0 %v10279
        %10427 = vmatprep.subr.bf16.mxu0 0
        %10428 = vmatpush1.bf16.msra.mxu0 %v10278
        %10429 = vmatprep.subr.bf16.mxu0 0
        %10430 = vmatpush1.bf16.msra.mxu0 %v10277
        %10431 = vmatprep.subr.bf16.mxu0 0
        %10432 = vmatpush1.bf16.msra.mxu0 %v10276
        %10433 = vmatprep.subr.bf16.mxu0 0
        %10434 = vmatpush1.bf16.msra.mxu0 %v10275
        %10435 = vmatprep.subr.bf16.mxu0 0
        %10436 = vmatpush2.bf16.msra.mxu0 %v10290
        %10437 = vmatprep.subr.bf16.mxu0 0
        %10438 = vmatpush2.bf16.msra.mxu0 %v10289
        %10439 = vmatprep.subr.bf16.mxu0 0
        %10440 = vmatpush2.bf16.msra.mxu0 %v10288
        %10441 = vmatprep.subr.bf16.mxu0 0
        %10442 = vmatpush2.bf16.msra.mxu0 %v10287
        %10443 = vmatprep.subr.bf16.mxu0 0
        %10444 = vmatpush2.bf16.msra.mxu0 %v10286
        %10445 = vmatprep.subr.bf16.mxu0 0
        %10446 = vmatpush2.bf16.msra.mxu0 %v10285
        %10447 = vmatprep.subr.bf16.mxu0 0
        %10448 = vmatpush2.bf16.msra.mxu0 %v10284
        %10449 = vmatprep.subr.bf16.mxu0 0
        %10450 = vmatpush2.bf16.msra.mxu0 %v10283
        %10451 = vmatprep.mubr.bf16.mxu0 %v9700
        %10452 = vmatmul.mubr.bf16.gmra.mxu0 %v9699
        %v10453 = vpop.f32.mrf.mxu0
        %v10454 = vadd.f32 0.0, %v10453
        %v10455 = vpop.f32.mrf.mxu0
        %v10456 = vpop.f32.mrf.mxu0
        %v10457 = vadd.f32 0.0, %v10456
        %v10458 = vpop.f32.mrf.mxu0
        %10459 = vmatprep.mubr.bf16.mxu0 %v9709
        %10460 = vmatmul.mubr.bf16.gmra.mxu0 %v9708
        %v10461 = vpop.f32.mrf.mxu0
        %v10462 = vadd.f32 0.0, %v10461
        %v10463 = vpop.f32.mrf.mxu0
        %v10464 = vpop.f32.mrf.mxu0
        %v10465 = vadd.f32 0.0, %v10464
        %v10466 = vpop.f32.mrf.mxu0
        %10467 = vmatprep.mubr.bf16.mxu0 %v9718
        %10468 = vmatmul.mubr.bf16.gmra.mxu0 %v9717
        %v10469 = vpop.f32.mrf.mxu0
        %v10470 = vadd.f32 0.0, %v10469
        %v10471 = vpop.f32.mrf.mxu0
        %v10472 = vpop.f32.mrf.mxu0
        %v10473 = vadd.f32 0.0, %v10472
        %v10474 = vpop.f32.mrf.mxu0
        %10475 = vmatprep.mubr.bf16.mxu0 %v9727
        %10476 = vmatmul.mubr.bf16.gmra.mxu0 %v9726
        %v10477 = vpop.f32.mrf.mxu0
        %v10478 = vadd.f32 0.0, %v10477
        %v10479 = vpop.f32.mrf.mxu0
        %v10480 = vpop.f32.mrf.mxu0
        %v10481 = vadd.f32 0.0, %v10480
        %v10482 = vpop.f32.mrf.mxu0
        %10483 = vmatprep.mubr.bf16.mxu0 %v9736
        %10484 = vmatmul.mubr.bf16.gmra.mxu0 %v9735
        %v10485 = vpop.f32.mrf.mxu0
        %v10486 = vadd.f32 0.0, %v10485
        %v10487 = vpop.f32.mrf.mxu0
        %v10488 = vpop.f32.mrf.mxu0
        %v10489 = vadd.f32 0.0, %v10488
        %v10490 = vpop.f32.mrf.mxu0
        %10491 = vmatprep.mubr.bf16.mxu0 %v9745
        %10492 = vmatmul.mubr.bf16.gmra.mxu0 %v9744
        %v10493 = vpop.f32.mrf.mxu0
        %v10494 = vadd.f32 0.0, %v10493
        %v10495 = vpop.f32.mrf.mxu0
        %v10496 = vpop.f32.mrf.mxu0
        %v10497 = vadd.f32 0.0, %v10496
        %v10498 = vpop.f32.mrf.mxu0
        %10499 = vmatprep.mubr.bf16.mxu0 %v9754
        %10500 = vmatmul.mubr.bf16.gmra.mxu0 %v9753
        %v10501 = vpop.f32.mrf.mxu0
        %v10502 = vadd.f32 0.0, %v10501
        %v10503 = vpop.f32.mrf.mxu0
        %v10504 = vpop.f32.mrf.mxu0
        %v10505 = vadd.f32 0.0, %v10504
        %v10506 = vpop.f32.mrf.mxu0
        %10507 = vmatprep.mubr.bf16.mxu0 %v9763
        %10508 = vmatmul.mubr.bf16.gmra.mxu0 %v9762
        %v10509 = vpop.f32.mrf.mxu0
        %v10510 = vadd.f32 0.0, %v10509
        %v10511 = vpop.f32.mrf.mxu0
        %v10512 = vpop.f32.mrf.mxu0
        %v10513 = vadd.f32 0.0, %v10512
        %v10514 = vpop.f32.mrf.mxu0
        %10515 = vmatprep.mubr.bf16.mxu0 %v9772
        %10516 = vmatmul.mubr.bf16.gmra.mxu0 %v9771
        %v10517 = vpop.f32.mrf.mxu0
        %v10518 = vadd.f32 0.0, %v10517
        %v10519 = vpop.f32.mrf.mxu0
        %v10520 = vpop.f32.mrf.mxu0
        %v10521 = vadd.f32 0.0, %v10520
        %v10522 = vpop.f32.mrf.mxu0
        %10523 = vmatprep.mubr.bf16.mxu0 %v9781
        %10524 = vmatmul.mubr.bf16.gmra.mxu0 %v9780
        %v10525 = vpop.f32.mrf.mxu0
        %v10526 = vadd.f32 0.0, %v10525
        %v10527 = vpop.f32.mrf.mxu0
        %v10528 = vpop.f32.mrf.mxu0
        %v10529 = vadd.f32 0.0, %v10528
        %v10530 = vpop.f32.mrf.mxu0
        %10531 = vmatprep.mubr.bf16.mxu0 %v9790
        %10532 = vmatmul.mubr.bf16.gmra.mxu0 %v9789
        %v10533 = vpop.f32.mrf.mxu0
        %v10534 = vadd.f32 0.0, %v10533
        %v10535 = vpop.f32.mrf.mxu0
        %v10536 = vpop.f32.mrf.mxu0
        %v10537 = vadd.f32 0.0, %v10536
        %v10538 = vpop.f32.mrf.mxu0
        %10539 = vmatprep.mubr.bf16.mxu0 %v9799
        %10540 = vmatmul.mubr.bf16.gmra.mxu0 %v9798
        %v10541 = vpop.f32.mrf.mxu0
        %v10542 = vadd.f32 0.0, %v10541
        %v10543 = vpop.f32.mrf.mxu0
        %v10544 = vpop.f32.mrf.mxu0
        %v10545 = vadd.f32 0.0, %v10544
        %v10546 = vpop.f32.mrf.mxu0
        %10547 = vmatprep.mubr.bf16.mxu0 %v9808
        %10548 = vmatmul.mubr.bf16.gmra.mxu0 %v9807
        %v10549 = vpop.f32.mrf.mxu0
        %v10550 = vadd.f32 0.0, %v10549
        %v10551 = vpop.f32.mrf.mxu0
        %v10552 = vpop.f32.mrf.mxu0
        %v10553 = vadd.f32 0.0, %v10552
        %v10554 = vpop.f32.mrf.mxu0
        %10555 = vmatprep.mubr.bf16.mxu0 %v9817
        %10556 = vmatmul.mubr.bf16.gmra.mxu0 %v9816
        %v10557 = vpop.f32.mrf.mxu0
        %v10558 = vadd.f32 0.0, %v10557
        %v10559 = vpop.f32.mrf.mxu0
        %v10560 = vpop.f32.mrf.mxu0
        %v10561 = vadd.f32 0.0, %v10560
        %v10562 = vpop.f32.mrf.mxu0
        %10563 = vmatprep.mubr.bf16.mxu0 %v9826
        %10564 = vmatmul.mubr.bf16.gmra.mxu0 %v9825
        %v10565 = vpop.f32.mrf.mxu0
        %v10566 = vadd.f32 0.0, %v10565
        %v10567 = vpop.f32.mrf.mxu0
        %v10568 = vpop.f32.mrf.mxu0
        %v10569 = vadd.f32 0.0, %v10568
        %v10570 = vpop.f32.mrf.mxu0
        %10571 = vmatprep.mubr.bf16.mxu0 %v9835
        %10572 = vmatmul.mubr.bf16.gmra.mxu0 %v9834
        %v10573 = vpop.f32.mrf.mxu0
        %v10574 = vadd.f32 0.0, %v10573
        %v10575 = vpop.f32.mrf.mxu0
        %v10576 = vpop.f32.mrf.mxu0
        %v10577 = vadd.f32 0.0, %v10576
        %v10578 = vpop.f32.mrf.mxu0
        %10579 = vdwg.mxu0
        %10580 = vmatprep.subr.bf16.mxu0 0
        %10581 = vmatpush1.bf16.msra.mxu0 %v10298
        %10582 = vmatprep.subr.bf16.mxu0 0
        %10583 = vmatpush1.bf16.msra.mxu0 %v10297
        %10584 = vmatprep.subr.bf16.mxu0 0
        %10585 = vmatpush1.bf16.msra.mxu0 %v10296
        %10586 = vmatprep.subr.bf16.mxu0 0
        %10587 = vmatpush1.bf16.msra.mxu0 %v10295
        %10588 = vmatprep.subr.bf16.mxu0 0
        %10589 = vmatpush1.bf16.msra.mxu0 %v10294
        %10590 = vmatprep.subr.bf16.mxu0 0
        %10591 = vmatpush1.bf16.msra.mxu0 %v10293
        %10592 = vmatprep.subr.bf16.mxu0 0
        %10593 = vmatpush1.bf16.msra.mxu0 %v10292
        %10594 = vmatprep.subr.bf16.mxu0 0
        %10595 = vmatpush1.bf16.msra.mxu0 %v10291
        %10596 = vmatprep.subr.bf16.mxu0 0
        %10597 = vmatpush2.bf16.msra.mxu0 %v10306
        %10598 = vmatprep.subr.bf16.mxu0 0
        %10599 = vmatpush2.bf16.msra.mxu0 %v10305
        %10600 = vmatprep.subr.bf16.mxu0 0
        %10601 = vmatpush2.bf16.msra.mxu0 %v10304
        %10602 = vmatprep.subr.bf16.mxu0 0
        %10603 = vmatpush2.bf16.msra.mxu0 %v10303
        %10604 = vmatprep.subr.bf16.mxu0 0
        %10605 = vmatpush2.bf16.msra.mxu0 %v10302
        %10606 = vmatprep.subr.bf16.mxu0 0
        %10607 = vmatpush2.bf16.msra.mxu0 %v10301
        %10608 = vmatprep.subr.bf16.mxu0 0
        %10609 = vmatpush2.bf16.msra.mxu0 %v10300
        %10610 = vmatprep.subr.bf16.mxu0 0
        %10611 = vmatpush2.bf16.msra.mxu0 %v10299
        %10612 = vmatprep.mubr.bf16.mxu0 %v9702
        %10613 = vmatmul.mubr.bf16.gmra.mxu0 %v9701
        %v10614 = vpop.f32.mrf.mxu0
        %v10615 = vadd.f32 %v10454, %v10614
        %v10616 = vpop.f32.mrf.mxu0
        %v10617 = vpop.f32.mrf.mxu0
        %v10618 = vadd.f32 %v10457, %v10617
        %v10619 = vpop.f32.mrf.mxu0
        %10620 = vmatprep.mubr.bf16.mxu0 %v9711
        %10621 = vmatmul.mubr.bf16.gmra.mxu0 %v9710
        %v10622 = vpop.f32.mrf.mxu0
        %v10623 = vadd.f32 %v10462, %v10622
        %v10624 = vpop.f32.mrf.mxu0
        %v10625 = vpop.f32.mrf.mxu0
        %v10626 = vadd.f32 %v10465, %v10625
        %v10627 = vpop.f32.mrf.mxu0
        %10628 = vmatprep.mubr.bf16.mxu0 %v9720
        %10629 = vmatmul.mubr.bf16.gmra.mxu0 %v9719
        %v10630 = vpop.f32.mrf.mxu0
        %v10631 = vadd.f32 %v10470, %v10630
        %v10632 = vpop.f32.mrf.mxu0
        %v10633 = vpop.f32.mrf.mxu0
        %v10634 = vadd.f32 %v10473, %v10633
        %v10635 = vpop.f32.mrf.mxu0
        %10636 = vmatprep.mubr.bf16.mxu0 %v9729
        %10637 = vmatmul.mubr.bf16.gmra.mxu0 %v9728
        %v10638 = vpop.f32.mrf.mxu0
        %v10639 = vadd.f32 %v10478, %v10638
        %v10640 = vpop.f32.mrf.mxu0
        %v10641 = vpop.f32.mrf.mxu0
        %v10642 = vadd.f32 %v10481, %v10641
        %v10643 = vpop.f32.mrf.mxu0
        %10644 = vmatprep.mubr.bf16.mxu0 %v9738
        %10645 = vmatmul.mubr.bf16.gmra.mxu0 %v9737
        %v10646 = vpop.f32.mrf.mxu0
        %v10647 = vadd.f32 %v10486, %v10646
        %v10648 = vpop.f32.mrf.mxu0
        %v10649 = vpop.f32.mrf.mxu0
        %v10650 = vadd.f32 %v10489, %v10649
        %v10651 = vpop.f32.mrf.mxu0
        %10652 = vmatprep.mubr.bf16.mxu0 %v9747
        %10653 = vmatmul.mubr.bf16.gmra.mxu0 %v9746
        %v10654 = vpop.f32.mrf.mxu0
        %v10655 = vadd.f32 %v10494, %v10654
        %v10656 = vpop.f32.mrf.mxu0
        %v10657 = vpop.f32.mrf.mxu0
        %v10658 = vadd.f32 %v10497, %v10657
        %v10659 = vpop.f32.mrf.mxu0
        %10660 = vmatprep.mubr.bf16.mxu0 %v9756
        %10661 = vmatmul.mubr.bf16.gmra.mxu0 %v9755
        %v10662 = vpop.f32.mrf.mxu0
        %v10663 = vadd.f32 %v10502, %v10662
        %v10664 = vpop.f32.mrf.mxu0
        %v10665 = vpop.f32.mrf.mxu0
        %v10666 = vadd.f32 %v10505, %v10665
        %v10667 = vpop.f32.mrf.mxu0
        %10668 = vmatprep.mubr.bf16.mxu0 %v9765
        %10669 = vmatmul.mubr.bf16.gmra.mxu0 %v9764
        %v10670 = vpop.f32.mrf.mxu0
        %v10671 = vadd.f32 %v10510, %v10670
        %v10672 = vpop.f32.mrf.mxu0
        %v10673 = vpop.f32.mrf.mxu0
        %v10674 = vadd.f32 %v10513, %v10673
        %v10675 = vpop.f32.mrf.mxu0
        %10676 = vmatprep.mubr.bf16.mxu0 %v9774
        %10677 = vmatmul.mubr.bf16.gmra.mxu0 %v9773
        %v10678 = vpop.f32.mrf.mxu0
        %v10679 = vadd.f32 %v10518, %v10678
        %v10680 = vpop.f32.mrf.mxu0
        %v10681 = vpop.f32.mrf.mxu0
        %v10682 = vadd.f32 %v10521, %v10681
        %v10683 = vpop.f32.mrf.mxu0
        %10684 = vmatprep.mubr.bf16.mxu0 %v9783
        %10685 = vmatmul.mubr.bf16.gmra.mxu0 %v9782
        %v10686 = vpop.f32.mrf.mxu0
        %v10687 = vadd.f32 %v10526, %v10686
        %v10688 = vpop.f32.mrf.mxu0
        %v10689 = vpop.f32.mrf.mxu0
        %v10690 = vadd.f32 %v10529, %v10689
        %v10691 = vpop.f32.mrf.mxu0
        %10692 = vmatprep.mubr.bf16.mxu0 %v9792
        %10693 = vmatmul.mubr.bf16.gmra.mxu0 %v9791
        %v10694 = vpop.f32.mrf.mxu0
        %v10695 = vadd.f32 %v10534, %v10694
        %v10696 = vpop.f32.mrf.mxu0
        %v10697 = vpop.f32.mrf.mxu0
        %v10698 = vadd.f32 %v10537, %v10697
        %v10699 = vpop.f32.mrf.mxu0
        %10700 = vmatprep.mubr.bf16.mxu0 %v9801
        %10701 = vmatmul.mubr.bf16.gmra.mxu0 %v9800
        %v10702 = vpop.f32.mrf.mxu0
        %v10703 = vadd.f32 %v10542, %v10702
        %v10704 = vpop.f32.mrf.mxu0
        %v10705 = vpop.f32.mrf.mxu0
        %v10706 = vadd.f32 %v10545, %v10705
        %v10707 = vpop.f32.mrf.mxu0
        %10708 = vmatprep.mubr.bf16.mxu0 %v9810
        %10709 = vmatmul.mubr.bf16.gmra.mxu0 %v9809
        %v10710 = vpop.f32.mrf.mxu0
        %v10711 = vadd.f32 %v10550, %v10710
        %v10712 = vpop.f32.mrf.mxu0
        %v10713 = vpop.f32.mrf.mxu0
        %v10714 = vadd.f32 %v10553, %v10713
        %v10715 = vpop.f32.mrf.mxu0
        %10716 = vmatprep.mubr.bf16.mxu0 %v9819
        %10717 = vmatmul.mubr.bf16.gmra.mxu0 %v9818
        %v10718 = vpop.f32.mrf.mxu0
        %v10719 = vadd.f32 %v10558, %v10718
        %v10720 = vpop.f32.mrf.mxu0
        %v10721 = vpop.f32.mrf.mxu0
        %v10722 = vadd.f32 %v10561, %v10721
        %v10723 = vpop.f32.mrf.mxu0
        %10724 = vmatprep.mubr.bf16.mxu0 %v9828
        %10725 = vmatmul.mubr.bf16.gmra.mxu0 %v9827
        %v10726 = vpop.f32.mrf.mxu0
        %v10727 = vadd.f32 %v10566, %v10726
        %v10728 = vpop.f32.mrf.mxu0
        %v10729 = vpop.f32.mrf.mxu0
        %v10730 = vadd.f32 %v10569, %v10729
        %v10731 = vpop.f32.mrf.mxu0
        %10732 = vmatprep.mubr.bf16.mxu0 %v9837
        %10733 = vmatmul.mubr.bf16.gmra.mxu0 %v9836
        %v10734 = vpop.f32.mrf.mxu0
        %v10735 = vadd.f32 %v10574, %v10734
        %v10736 = vpop.f32.mrf.mxu0
        %v10737 = vpop.f32.mrf.mxu0
        %v10738 = vadd.f32 %v10577, %v10737
        %v10739 = vpop.f32.mrf.mxu0
        %10740 = vdwg.mxu0
        %10741 = vmatprep.subr.bf16.mxu0 0
        %10742 = vmatpush1.bf16.msra.mxu0 %v10314
        %10743 = vmatprep.subr.bf16.mxu0 0
        %10744 = vmatpush1.bf16.msra.mxu0 %v10313
        %10745 = vmatprep.subr.bf16.mxu0 0
        %10746 = vmatpush1.bf16.msra.mxu0 %v10312
        %10747 = vmatprep.subr.bf16.mxu0 0
        %10748 = vmatpush1.bf16.msra.mxu0 %v10311
        %10749 = vmatprep.subr.bf16.mxu0 0
        %10750 = vmatpush1.bf16.msra.mxu0 %v10310
        %10751 = vmatprep.subr.bf16.mxu0 0
        %10752 = vmatpush1.bf16.msra.mxu0 %v10309
        %10753 = vmatprep.subr.bf16.mxu0 0
        %10754 = vmatpush1.bf16.msra.mxu0 %v10308
        %10755 = vmatprep.subr.bf16.mxu0 0
        %10756 = vmatpush1.bf16.msra.mxu0 %v10307
        %10757 = vmatprep.subr.bf16.mxu0 0
        %10758 = vmatpush2.bf16.msra.mxu0 %v10322
        %10759 = vmatprep.subr.bf16.mxu0 0
        %10760 = vmatpush2.bf16.msra.mxu0 %v10321
        %10761 = vmatprep.subr.bf16.mxu0 0
        %10762 = vmatpush2.bf16.msra.mxu0 %v10320
        %10763 = vmatprep.subr.bf16.mxu0 0
        %10764 = vmatpush2.bf16.msra.mxu0 %v10319
        %10765 = vmatprep.subr.bf16.mxu0 0
        %10766 = vmatpush2.bf16.msra.mxu0 %v10318
        %10767 = vmatprep.subr.bf16.mxu0 0
        %10768 = vmatpush2.bf16.msra.mxu0 %v10317
        %10769 = vmatprep.subr.bf16.mxu0 0
        %10770 = vmatpush2.bf16.msra.mxu0 %v10316
        %10771 = vmatprep.subr.bf16.mxu0 0
        %10772 = vmatpush2.bf16.msra.mxu0 %v10315
        %10773 = vmatprep.mubr.bf16.mxu0 %v9704
        %10774 = vmatmul.mubr.bf16.gmra.mxu0 %v9703
        %v10775 = vpop.f32.mrf.mxu0
        %v10776 = vadd.f32 %v10615, %v10775
        %v10777 = vpop.f32.mrf.mxu0
        %v10778 = vpop.f32.mrf.mxu0
        %v10779 = vadd.f32 %v10618, %v10778
        %v10780 = vpop.f32.mrf.mxu0
        %10781 = vmatprep.mubr.bf16.mxu0 %v9713
        %10782 = vmatmul.mubr.bf16.gmra.mxu0 %v9712
        %v10783 = vpop.f32.mrf.mxu0
        %v10784 = vadd.f32 %v10623, %v10783
        %v10785 = vpop.f32.mrf.mxu0
        %v10786 = vpop.f32.mrf.mxu0
        %v10787 = vadd.f32 %v10626, %v10786
        %v10788 = vpop.f32.mrf.mxu0
        %10789 = vmatprep.mubr.bf16.mxu0 %v9722
        %10790 = vmatmul.mubr.bf16.gmra.mxu0 %v9721
        %v10791 = vpop.f32.mrf.mxu0
        %v10792 = vadd.f32 %v10631, %v10791
        %v10793 = vpop.f32.mrf.mxu0
        %v10794 = vpop.f32.mrf.mxu0
        %v10795 = vadd.f32 %v10634, %v10794
        %v10796 = vpop.f32.mrf.mxu0
        %10797 = vmatprep.mubr.bf16.mxu0 %v9731
        %10798 = vmatmul.mubr.bf16.gmra.mxu0 %v9730
        %v10799 = vpop.f32.mrf.mxu0
        %v10800 = vadd.f32 %v10639, %v10799
        %v10801 = vpop.f32.mrf.mxu0
        %v10802 = vpop.f32.mrf.mxu0
        %v10803 = vadd.f32 %v10642, %v10802
        %v10804 = vpop.f32.mrf.mxu0
        %10805 = vmatprep.mubr.bf16.mxu0 %v9740
        %10806 = vmatmul.mubr.bf16.gmra.mxu0 %v9739
        %v10807 = vpop.f32.mrf.mxu0
        %v10808 = vadd.f32 %v10647, %v10807
        %v10809 = vpop.f32.mrf.mxu0
        %v10810 = vpop.f32.mrf.mxu0
        %v10811 = vadd.f32 %v10650, %v10810
        %v10812 = vpop.f32.mrf.mxu0
        %10813 = vmatprep.mubr.bf16.mxu0 %v9749
        %10814 = vmatmul.mubr.bf16.gmra.mxu0 %v9748
        %v10815 = vpop.f32.mrf.mxu0
        %v10816 = vadd.f32 %v10655, %v10815
        %v10817 = vpop.f32.mrf.mxu0
        %v10818 = vpop.f32.mrf.mxu0
        %v10819 = vadd.f32 %v10658, %v10818
        %v10820 = vpop.f32.mrf.mxu0
        %10821 = vmatprep.mubr.bf16.mxu0 %v9758
        %10822 = vmatmul.mubr.bf16.gmra.mxu0 %v9757
        %v10823 = vpop.f32.mrf.mxu0
        %v10824 = vadd.f32 %v10663, %v10823
        %v10825 = vpop.f32.mrf.mxu0
        %v10826 = vpop.f32.mrf.mxu0
        %v10827 = vadd.f32 %v10666, %v10826
        %v10828 = vpop.f32.mrf.mxu0
        %10829 = vmatprep.mubr.bf16.mxu0 %v9767
        %10830 = vmatmul.mubr.bf16.gmra.mxu0 %v9766
        %v10831 = vpop.f32.mrf.mxu0
        %v10832 = vadd.f32 %v10671, %v10831
        %v10833 = vpop.f32.mrf.mxu0
        %v10834 = vpop.f32.mrf.mxu0
        %v10835 = vadd.f32 %v10674, %v10834
        %v10836 = vpop.f32.mrf.mxu0
        %10837 = vmatprep.mubr.bf16.mxu0 %v9776
        %10838 = vmatmul.mubr.bf16.gmra.mxu0 %v9775
        %v10839 = vpop.f32.mrf.mxu0
        %v10840 = vadd.f32 %v10679, %v10839
        %v10841 = vpop.f32.mrf.mxu0
        %v10842 = vpop.f32.mrf.mxu0
        %v10843 = vadd.f32 %v10682, %v10842
        %v10844 = vpop.f32.mrf.mxu0
        %10845 = vmatprep.mubr.bf16.mxu0 %v9785
        %10846 = vmatmul.mubr.bf16.gmra.mxu0 %v9784
        %v10847 = vpop.f32.mrf.mxu0
        %v10848 = vadd.f32 %v10687, %v10847
        %v10849 = vpop.f32.mrf.mxu0
        %v10850 = vpop.f32.mrf.mxu0
        %v10851 = vadd.f32 %v10690, %v10850
        %v10852 = vpop.f32.mrf.mxu0
        %10853 = vmatprep.mubr.bf16.mxu0 %v9794
        %10854 = vmatmul.mubr.bf16.gmra.mxu0 %v9793
        %v10855 = vpop.f32.mrf.mxu0
        %v10856 = vadd.f32 %v10695, %v10855
        %v10857 = vpop.f32.mrf.mxu0
        %v10858 = vpop.f32.mrf.mxu0
        %v10859 = vadd.f32 %v10698, %v10858
        %v10860 = vpop.f32.mrf.mxu0
        %10861 = vmatprep.mubr.bf16.mxu0 %v9803
        %10862 = vmatmul.mubr.bf16.gmra.mxu0 %v9802
        %v10863 = vpop.f32.mrf.mxu0
        %v10864 = vadd.f32 %v10703, %v10863
        %v10865 = vpop.f32.mrf.mxu0
        %v10866 = vpop.f32.mrf.mxu0
        %v10867 = vadd.f32 %v10706, %v10866
        %v10868 = vpop.f32.mrf.mxu0
        %10869 = vmatprep.mubr.bf16.mxu0 %v9812
        %10870 = vmatmul.mubr.bf16.gmra.mxu0 %v9811
        %v10871 = vpop.f32.mrf.mxu0
        %v10872 = vadd.f32 %v10711, %v10871
        %v10873 = vpop.f32.mrf.mxu0
        %v10874 = vpop.f32.mrf.mxu0
        %v10875 = vadd.f32 %v10714, %v10874
        %v10876 = vpop.f32.mrf.mxu0
        %10877 = vmatprep.mubr.bf16.mxu0 %v9821
        %10878 = vmatmul.mubr.bf16.gmra.mxu0 %v9820
        %v10879 = vpop.f32.mrf.mxu0
        %v10880 = vadd.f32 %v10719, %v10879
        %v10881 = vpop.f32.mrf.mxu0
        %v10882 = vpop.f32.mrf.mxu0
        %v10883 = vadd.f32 %v10722, %v10882
        %v10884 = vpop.f32.mrf.mxu0
        %10885 = vmatprep.mubr.bf16.mxu0 %v9830
        %10886 = vmatmul.mubr.bf16.gmra.mxu0 %v9829
        %v10887 = vpop.f32.mrf.mxu0
        %v10888 = vadd.f32 %v10727, %v10887
        %v10889 = vpop.f32.mrf.mxu0
        %v10890 = vpop.f32.mrf.mxu0
        %v10891 = vadd.f32 %v10730, %v10890
        %v10892 = vpop.f32.mrf.mxu0
        %10893 = vmatprep.mubr.bf16.mxu0 %v9839
        %10894 = vmatmul.mubr.bf16.gmra.mxu0 %v9838
        %v10895 = vpop.f32.mrf.mxu0
        %v10896 = vadd.f32 %v10735, %v10895
        %v10897 = vpop.f32.mrf.mxu0
        %v10898 = vpop.f32.mrf.mxu0
        %v10899 = vadd.f32 %v10738, %v10898
        %v10900 = vpop.f32.mrf.mxu0
        %10901 = vdwg.mxu0
        %10902 = vmatprep.subr.bf16.mxu0 0
        %10903 = vmatpush1.bf16.msra.mxu0 %v10330
        %10904 = vmatprep.subr.bf16.mxu0 0
        %10905 = vmatpush1.bf16.msra.mxu0 %v10329
        %10906 = vmatprep.subr.bf16.mxu0 0
        %10907 = vmatpush1.bf16.msra.mxu0 %v10328
        %10908 = vmatprep.subr.bf16.mxu0 0
        %10909 = vmatpush1.bf16.msra.mxu0 %v10327
        %10910 = vmatprep.subr.bf16.mxu0 0
        %10911 = vmatpush1.bf16.msra.mxu0 %v10326
        %10912 = vmatprep.subr.bf16.mxu0 0
        %10913 = vmatpush1.bf16.msra.mxu0 %v10325
        %10914 = vmatprep.subr.bf16.mxu0 0
        %10915 = vmatpush1.bf16.msra.mxu0 %v10324
        %10916 = vmatprep.subr.bf16.mxu0 0
        %10917 = vmatpush1.bf16.msra.mxu0 %v10323
        %10918 = vmatprep.subr.bf16.mxu0 0
        %10919 = vmatpush2.bf16.msra.mxu0 %v10338
        %10920 = vmatprep.subr.bf16.mxu0 0
        %10921 = vmatpush2.bf16.msra.mxu0 %v10337
        %10922 = vmatprep.subr.bf16.mxu0 0
        %10923 = vmatpush2.bf16.msra.mxu0 %v10336
        %10924 = vmatprep.subr.bf16.mxu0 0
        %10925 = vmatpush2.bf16.msra.mxu0 %v10335
        %10926 = vmatprep.subr.bf16.mxu0 0
        %10927 = vmatpush2.bf16.msra.mxu0 %v10334
        %10928 = vmatprep.subr.bf16.mxu0 0
        %10929 = vmatpush2.bf16.msra.mxu0 %v10333
        %10930 = vmatprep.subr.bf16.mxu0 0
        %10931 = vmatpush2.bf16.msra.mxu0 %v10332
        %10932 = vmatprep.subr.bf16.mxu0 0
        %10933 = vmatpush2.bf16.msra.mxu0 %v10331
        %10934 = vmatprep.mubr.bf16.mxu0 %v9706
        %10935 = vmatmul.mubr.bf16.gmra.mxu0 %v9705
        %v10936 = vpop.f32.mrf.mxu0
        %v10937 = vadd.f32 %v10776, %v10936
        %v10938 = vpop.f32.mrf.mxu0
        %v10939 = vpop.f32.mrf.mxu0
        %v10940 = vadd.f32 %v10779, %v10939
        %v10941 = vpop.f32.mrf.mxu0
        %10942 = vmatprep.mubr.bf16.mxu0 %v9715
        %10943 = vmatmul.mubr.bf16.gmra.mxu0 %v9714
        %v10944 = vpop.f32.mrf.mxu0
        %v10945 = vadd.f32 %v10784, %v10944
        %v10946 = vpop.f32.mrf.mxu0
        %v10947 = vpop.f32.mrf.mxu0
        %v10948 = vadd.f32 %v10787, %v10947
        %v10949 = vpop.f32.mrf.mxu0
        %10950 = vmatprep.mubr.bf16.mxu0 %v9724
        %10951 = vmatmul.mubr.bf16.gmra.mxu0 %v9723
        %v10952 = vpop.f32.mrf.mxu0
        %v10953 = vadd.f32 %v10792, %v10952
        %v10954 = vpop.f32.mrf.mxu0
        %v10955 = vpop.f32.mrf.mxu0
        %v10956 = vadd.f32 %v10795, %v10955
        %v10957 = vpop.f32.mrf.mxu0
        %10958 = vmatprep.mubr.bf16.mxu0 %v9733
        %10959 = vmatmul.mubr.bf16.gmra.mxu0 %v9732
        %v10960 = vpop.f32.mrf.mxu0
        %v10961 = vadd.f32 %v10800, %v10960
        %v10962 = vpop.f32.mrf.mxu0
        %v10963 = vpop.f32.mrf.mxu0
        %v10964 = vadd.f32 %v10803, %v10963
        %v10965 = vpop.f32.mrf.mxu0
        %10966 = vmatprep.mubr.bf16.mxu0 %v9742
        %10967 = vmatmul.mubr.bf16.gmra.mxu0 %v9741
        %v10968 = vpop.f32.mrf.mxu0
        %v10969 = vadd.f32 %v10808, %v10968
        %v10970 = vpop.f32.mrf.mxu0
        %v10971 = vpop.f32.mrf.mxu0
        %v10972 = vadd.f32 %v10811, %v10971
        %v10973 = vpop.f32.mrf.mxu0
        %10974 = vmatprep.mubr.bf16.mxu0 %v9751
        %10975 = vmatmul.mubr.bf16.gmra.mxu0 %v9750
        %v10976 = vpop.f32.mrf.mxu0
        %v10977 = vadd.f32 %v10816, %v10976
        %v10978 = vpop.f32.mrf.mxu0
        %v10979 = vpop.f32.mrf.mxu0
        %v10980 = vadd.f32 %v10819, %v10979
        %v10981 = vpop.f32.mrf.mxu0
        %10982 = vmatprep.mubr.bf16.mxu0 %v9760
        %10983 = vmatmul.mubr.bf16.gmra.mxu0 %v9759
        %v10984 = vpop.f32.mrf.mxu0
        %v10985 = vadd.f32 %v10824, %v10984
        %v10986 = vpop.f32.mrf.mxu0
        %v10987 = vpop.f32.mrf.mxu0
        %v10988 = vadd.f32 %v10827, %v10987
        %v10989 = vpop.f32.mrf.mxu0
        %10990 = vmatprep.mubr.bf16.mxu0 %v9769
        %10991 = vmatmul.mubr.bf16.gmra.mxu0 %v9768
        %v10992 = vpop.f32.mrf.mxu0
        %v10993 = vadd.f32 %v10832, %v10992
        %v10994 = vpop.f32.mrf.mxu0
        %v10995 = vpop.f32.mrf.mxu0
        %v10996 = vadd.f32 %v10835, %v10995
        %v10997 = vpop.f32.mrf.mxu0
        %10998 = vmatprep.mubr.bf16.mxu0 %v9778
        %10999 = vmatmul.mubr.bf16.gmra.mxu0 %v9777
        %v11000 = vpop.f32.mrf.mxu0
        %v11001 = vadd.f32 %v10840, %v11000
        %v11002 = vpop.f32.mrf.mxu0
        %v11003 = vpop.f32.mrf.mxu0
        %v11004 = vadd.f32 %v10843, %v11003
        %v11005 = vpop.f32.mrf.mxu0
        %11006 = vmatprep.mubr.bf16.mxu0 %v9787
        %11007 = vmatmul.mubr.bf16.gmra.mxu0 %v9786
        %v11008 = vpop.f32.mrf.mxu0
        %v11009 = vadd.f32 %v10848, %v11008
        %v11010 = vpop.f32.mrf.mxu0
        %v11011 = vpop.f32.mrf.mxu0
        %v11012 = vadd.f32 %v10851, %v11011
        %v11013 = vpop.f32.mrf.mxu0
        %11014 = vmatprep.mubr.bf16.mxu0 %v9796
        %11015 = vmatmul.mubr.bf16.gmra.mxu0 %v9795
        %v11016 = vpop.f32.mrf.mxu0
        %v11017 = vadd.f32 %v10856, %v11016
        %v11018 = vpop.f32.mrf.mxu0
        %v11019 = vpop.f32.mrf.mxu0
        %v11020 = vadd.f32 %v10859, %v11019
        %v11021 = vpop.f32.mrf.mxu0
        %11022 = vmatprep.mubr.bf16.mxu0 %v9805
        %11023 = vmatmul.mubr.bf16.gmra.mxu0 %v9804
        %v11024 = vpop.f32.mrf.mxu0
        %v11025 = vadd.f32 %v10864, %v11024
        %v11026 = vpop.f32.mrf.mxu0
        %v11027 = vpop.f32.mrf.mxu0
        %v11028 = vadd.f32 %v10867, %v11027
        %v11029 = vpop.f32.mrf.mxu0
        %11030 = vmatprep.mubr.bf16.mxu0 %v9814
        %11031 = vmatmul.mubr.bf16.gmra.mxu0 %v9813
        %v11032 = vpop.f32.mrf.mxu0
        %v11033 = vadd.f32 %v10872, %v11032
        %v11034 = vpop.f32.mrf.mxu0
        %v11035 = vpop.f32.mrf.mxu0
        %v11036 = vadd.f32 %v10875, %v11035
        %v11037 = vpop.f32.mrf.mxu0
        %11038 = vmatprep.mubr.bf16.mxu0 %v9823
        %11039 = vmatmul.mubr.bf16.gmra.mxu0 %v9822
        %v11040 = vpop.f32.mrf.mxu0
        %v11041 = vadd.f32 %v10880, %v11040
        %v11042 = vpop.f32.mrf.mxu0
        %v11043 = vpop.f32.mrf.mxu0
        %v11044 = vadd.f32 %v10883, %v11043
        %v11045 = vpop.f32.mrf.mxu0
        %11046 = vmatprep.mubr.bf16.mxu0 %v9832
        %11047 = vmatmul.mubr.bf16.gmra.mxu0 %v9831
        %v11048 = vpop.f32.mrf.mxu0
        %v11049 = vadd.f32 %v10888, %v11048
        %v11050 = vpop.f32.mrf.mxu0
        %v11051 = vpop.f32.mrf.mxu0
        %v11052 = vadd.f32 %v10891, %v11051
        %v11053 = vpop.f32.mrf.mxu0
        %11054 = vmatprep.mubr.bf16.mxu0 %v9841
        %11055 = vmatmul.mubr.bf16.gmra.mxu0 %v9840
        %v11056 = vpop.f32.mrf.mxu0
        %v11057 = vadd.f32 %v10896, %v11056
        %v11058 = vpop.f32.mrf.mxu0
        %v11059 = vpop.f32.mrf.mxu0
        %v11060 = vadd.f32 %v10899, %v11059
        %v11061 = vpop.f32.mrf.mxu0
        %11062 = vdwg.mxu0
        %11063 = vmatprep.subr.bf16.mxu0 0
        %11064 = vmatpush1.bf16.msra.mxu0 %v10346
        %11065 = vmatprep.subr.bf16.mxu0 0
        %11066 = vmatpush1.bf16.msra.mxu0 %v10345
        %11067 = vmatprep.subr.bf16.mxu0 0
        %11068 = vmatpush1.bf16.msra.mxu0 %v10344
        %11069 = vmatprep.subr.bf16.mxu0 0
        %11070 = vmatpush1.bf16.msra.mxu0 %v10343
        %11071 = vmatprep.subr.bf16.mxu0 0
        %11072 = vmatpush1.bf16.msra.mxu0 %v10342
        %11073 = vmatprep.subr.bf16.mxu0 0
        %11074 = vmatpush1.bf16.msra.mxu0 %v10341
        %11075 = vmatprep.subr.bf16.mxu0 0
        %11076 = vmatpush1.bf16.msra.mxu0 %v10340
        %11077 = vmatprep.subr.bf16.mxu0 0
        %11078 = vmatpush1.bf16.msra.mxu0 %v10339
        %11079 = vmatprep.subr.bf16.mxu0 0
        %11080 = vmatpush2.bf16.msra.mxu0 0
        %11081 = vmatprep.subr.bf16.mxu0 0
        %11082 = vmatpush2.bf16.msra.mxu0 0
        %11083 = vmatprep.subr.bf16.mxu0 0
        %11084 = vmatpush2.bf16.msra.mxu0 0
        %11085 = vmatprep.subr.bf16.mxu0 0
        %11086 = vmatpush2.bf16.msra.mxu0 0
        %11087 = vmatprep.subr.bf16.mxu0 0
        %11088 = vmatpush2.bf16.msra.mxu0 0
        %11089 = vmatprep.subr.bf16.mxu0 0
        %11090 = vmatpush2.bf16.msra.mxu0 0
        %11091 = vmatprep.subr.bf16.mxu0 0
        %11092 = vmatpush2.bf16.msra.mxu0 0
        %11093 = vmatprep.subr.bf16.mxu0 0
        %11094 = vmatpush2.bf16.msra.mxu0 0
        %11095 = vmatprep.mubr.bf16.mxu0 0
        %11096 = vmatmul.mubr.bf16.gmra.mxu0 %v9707
        %v11097 = vpop.f32.mrf.mxu0
        %v11098 = vadd.f32 %v10937, %v11097
        %v11099 = vpop.f32.mrf.mxu0
        %v11100 = vpop.f32.mrf.mxu0
        %v11101 = vadd.f32 %v10940, %v11100
        %v11102 = vpop.f32.mrf.mxu0
        %11103 = vmatprep.mubr.bf16.mxu0 0
        %11104 = vmatmul.mubr.bf16.gmra.mxu0 %v9716
        %v11105 = vpop.f32.mrf.mxu0
        %v11106 = vadd.f32 %v10945, %v11105
        %v11107 = vpop.f32.mrf.mxu0
        %v11108 = vpop.f32.mrf.mxu0
        %v11109 = vadd.f32 %v10948, %v11108
        %v11110 = vpop.f32.mrf.mxu0
        %11111 = vmatprep.mubr.bf16.mxu0 0
        %11112 = vmatmul.mubr.bf16.gmra.mxu0 %v9725
        %v11113 = vpop.f32.mrf.mxu0
        %v11114 = vadd.f32 %v10953, %v11113
        %v11115 = vpop.f32.mrf.mxu0
        %v11116 = vpop.f32.mrf.mxu0
        %v11117 = vadd.f32 %v10956, %v11116
        %v11118 = vpop.f32.mrf.mxu0
        %11119 = vmatprep.mubr.bf16.mxu0 0
        %11120 = vmatmul.mubr.bf16.gmra.mxu0 %v9734
        %v11121 = vpop.f32.mrf.mxu0
        %v11122 = vadd.f32 %v10961, %v11121
        %v11123 = vpop.f32.mrf.mxu0
        %v11124 = vpop.f32.mrf.mxu0
        %v11125 = vadd.f32 %v10964, %v11124
        %v11126 = vpop.f32.mrf.mxu0
        %11127 = vmatprep.mubr.bf16.mxu0 0
        %11128 = vmatmul.mubr.bf16.gmra.mxu0 %v9743
        %v11129 = vpop.f32.mrf.mxu0
        %v11130 = vadd.f32 %v10969, %v11129
        %v11131 = vpop.f32.mrf.mxu0
        %v11132 = vpop.f32.mrf.mxu0
        %v11133 = vadd.f32 %v10972, %v11132
        %v11134 = vpop.f32.mrf.mxu0
        %11135 = vmatprep.mubr.bf16.mxu0 0
        %11136 = vmatmul.mubr.bf16.gmra.mxu0 %v9752
        %v11137 = vpop.f32.mrf.mxu0
        %v11138 = vadd.f32 %v10977, %v11137
        %v11139 = vpop.f32.mrf.mxu0
        %v11140 = vpop.f32.mrf.mxu0
        %v11141 = vadd.f32 %v10980, %v11140
        %v11142 = vpop.f32.mrf.mxu0
        %11143 = vmatprep.mubr.bf16.mxu0 0
        %11144 = vmatmul.mubr.bf16.gmra.mxu0 %v9761
        %v11145 = vpop.f32.mrf.mxu0
        %v11146 = vadd.f32 %v10985, %v11145
        %v11147 = vpop.f32.mrf.mxu0
        %v11148 = vpop.f32.mrf.mxu0
        %v11149 = vadd.f32 %v10988, %v11148
        %v11150 = vpop.f32.mrf.mxu0
        %11151 = vmatprep.mubr.bf16.mxu0 0
        %11152 = vmatmul.mubr.bf16.gmra.mxu0 %v9770
        %v11153 = vpop.f32.mrf.mxu0
        %v11154 = vadd.f32 %v10993, %v11153
        %v11155 = vpop.f32.mrf.mxu0
        %v11156 = vpop.f32.mrf.mxu0
        %v11157 = vadd.f32 %v10996, %v11156
        %v11158 = vpop.f32.mrf.mxu0
        %11159 = vmatprep.mubr.bf16.mxu0 0
        %11160 = vmatmul.mubr.bf16.gmra.mxu0 %v9779
        %v11161 = vpop.f32.mrf.mxu0
        %v11162 = vadd.f32 %v11001, %v11161
        %v11163 = vpop.f32.mrf.mxu0
        %v11164 = vpop.f32.mrf.mxu0
        %v11165 = vadd.f32 %v11004, %v11164
        %v11166 = vpop.f32.mrf.mxu0
        %11167 = vmatprep.mubr.bf16.mxu0 0
        %11168 = vmatmul.mubr.bf16.gmra.mxu0 %v9788
        %v11169 = vpop.f32.mrf.mxu0
        %v11170 = vadd.f32 %v11009, %v11169
        %v11171 = vpop.f32.mrf.mxu0
        %v11172 = vpop.f32.mrf.mxu0
        %v11173 = vadd.f32 %v11012, %v11172
        %v11174 = vpop.f32.mrf.mxu0
        %11175 = vmatprep.mubr.bf16.mxu0 0
        %11176 = vmatmul.mubr.bf16.gmra.mxu0 %v9797
        %v11177 = vpop.f32.mrf.mxu0
        %v11178 = vadd.f32 %v11017, %v11177
        %v11179 = vpop.f32.mrf.mxu0
        %v11180 = vpop.f32.mrf.mxu0
        %v11181 = vadd.f32 %v11020, %v11180
        %v11182 = vpop.f32.mrf.mxu0
        %11183 = vmatprep.mubr.bf16.mxu0 0
        %11184 = vmatmul.mubr.bf16.gmra.mxu0 %v9806
        %v11185 = vpop.f32.mrf.mxu0
        %v11186 = vadd.f32 %v11025, %v11185
        %v11187 = vpop.f32.mrf.mxu0
        %v11188 = vpop.f32.mrf.mxu0
        %v11189 = vadd.f32 %v11028, %v11188
        %v11190 = vpop.f32.mrf.mxu0
        %11191 = vmatprep.mubr.bf16.mxu0 0
        %11192 = vmatmul.mubr.bf16.gmra.mxu0 %v9815
        %v11193 = vpop.f32.mrf.mxu0
        %v11194 = vadd.f32 %v11033, %v11193
        %v11195 = vpop.f32.mrf.mxu0
        %v11196 = vpop.f32.mrf.mxu0
        %v11197 = vadd.f32 %v11036, %v11196
        %v11198 = vpop.f32.mrf.mxu0
        %11199 = vmatprep.mubr.bf16.mxu0 0
        %11200 = vmatmul.mubr.bf16.gmra.mxu0 %v9824
        %v11201 = vpop.f32.mrf.mxu0
        %v11202 = vadd.f32 %v11041, %v11201
        %v11203 = vpop.f32.mrf.mxu0
        %v11204 = vpop.f32.mrf.mxu0
        %v11205 = vadd.f32 %v11044, %v11204
        %v11206 = vpop.f32.mrf.mxu0
        %11207 = vmatprep.mubr.bf16.mxu0 0
        %11208 = vmatmul.mubr.bf16.gmra.mxu0 %v9833
        %v11209 = vpop.f32.mrf.mxu0
        %v11210 = vadd.f32 %v11049, %v11209
        %v11211 = vpop.f32.mrf.mxu0
        %v11212 = vpop.f32.mrf.mxu0
        %v11213 = vadd.f32 %v11052, %v11212
        %v11214 = vpop.f32.mrf.mxu0
        %11215 = vmatprep.mubr.bf16.mxu0 0
        %11216 = vmatmul.mubr.bf16.gmra.mxu0 %v9842
        %v11217 = vpop.f32.mrf.mxu0
        %v11218 = vadd.f32 %v11057, %v11217
        %v11219 = vpop.f32.mrf.mxu0
        %v11220 = vpop.f32.mrf.mxu0
        %v11221 = vadd.f32 %v11060, %v11220
        %v11222 = vpop.f32.mrf.mxu0
        %11223 = vdwg.mxu0
        %v11224 = vld [vmem:[%s5] sm:$0x1]
        %v11226 = vlaneseq
        %v11227 = vshrl.u32 %v11226, 7
        %v11228 = vsub.s32 0, %v11227
        %v11229 = vrot.slane %v11224, %v11228
        %v11231 = vmul.f32 %v11098, %v11229
        %v11232 = vmul.f32 %v11101, %v11229
        %v11233 = vmul.f32 %v11106, %v11229
        %v11234 = vmul.f32 %v11109, %v11229
        %v11235 = vmul.f32 %v11114, %v11229
        %v11236 = vmul.f32 %v11117, %v11229
        %v11237 = vmul.f32 %v11122, %v11229
        %v11238 = vmul.f32 %v11125, %v11229
        %v11239 = vmul.f32 %v11130, %v11229
        %v11240 = vmul.f32 %v11133, %v11229
        %v11241 = vmul.f32 %v11138, %v11229
        %v11242 = vmul.f32 %v11141, %v11229
        %v11243 = vmul.f32 %v11146, %v11229
        %v11244 = vmul.f32 %v11149, %v11229
        %v11245 = vmul.f32 %v11154, %v11229
        %v11246 = vmul.f32 %v11157, %v11229
        %v11247 = vmul.f32 %v11162, %v11229
        %v11248 = vmul.f32 %v11165, %v11229
        %v11249 = vmul.f32 %v11170, %v11229
        %v11250 = vmul.f32 %v11173, %v11229
        %v11251 = vmul.f32 %v11178, %v11229
        %v11252 = vmul.f32 %v11181, %v11229
        %v11253 = vmul.f32 %v11186, %v11229
        %v11254 = vmul.f32 %v11189, %v11229
        %v11255 = vmul.f32 %v11194, %v11229
        %v11256 = vmul.f32 %v11197, %v11229
        %v11257 = vmul.f32 %v11202, %v11229
        %v11258 = vmul.f32 %v11205, %v11229
        %v11259 = vmul.f32 %v11210, %v11229
        %v11260 = vmul.f32 %v11213, %v11229
        %v11261 = vmul.f32 %v11218, %v11229
        %v11262 = vmul.f32 %v11221, %v11229
        %v11263 = vld [vmem:[%s6] sm:$0x1]
        %v11265 = vlaneseq
        %v11266 = vshrl.u32 %v11265, 7
        %v11267 = vsub.s32 0, %v11266
        %v11268 = vrot.slane %v11263, %v11267
        %v11270 = vadd.f32 %v11231, %v11268
        %v11271 = vadd.f32 %v11232, %v11268
        %v11272 = vadd.f32 %v11233, %v11268
        %v11273 = vadd.f32 %v11234, %v11268
        %v11274 = vadd.f32 %v11235, %v11268
        %v11275 = vadd.f32 %v11236, %v11268
        %v11276 = vadd.f32 %v11237, %v11268
        %v11277 = vadd.f32 %v11238, %v11268
        %v11278 = vadd.f32 %v11239, %v11268
        %v11279 = vadd.f32 %v11240, %v11268
        %v11280 = vadd.f32 %v11241, %v11268
        %v11281 = vadd.f32 %v11242, %v11268
        %v11282 = vadd.f32 %v11243, %v11268
        %v11283 = vadd.f32 %v11244, %v11268
        %v11284 = vadd.f32 %v11245, %v11268
        %v11285 = vadd.f32 %v11246, %v11268
        %v11286 = vadd.f32 %v11247, %v11268
        %v11287 = vadd.f32 %v11248, %v11268
        %v11288 = vadd.f32 %v11249, %v11268
        %v11289 = vadd.f32 %v11250, %v11268
        %v11290 = vadd.f32 %v11251, %v11268
        %v11291 = vadd.f32 %v11252, %v11268
        %v11292 = vadd.f32 %v11253, %v11268
        %v11293 = vadd.f32 %v11254, %v11268
        %v11294 = vadd.f32 %v11255, %v11268
        %v11295 = vadd.f32 %v11256, %v11268
        %v11296 = vadd.f32 %v11257, %v11268
        %v11297 = vadd.f32 %v11258, %v11268
        %v11298 = vadd.f32 %v11259, %v11268
        %v11299 = vadd.f32 %v11260, %v11268
        %v11300 = vadd.f32 %v11261, %v11268
        %v11301 = vadd.f32 %v11262, %v11268
        %v11302 = vld [vmem:[%s287] sm:$0xf]
        %v11303 = vld [vmem:[%s287 + $0x4] sm:$0xf]
        %v11304 = vld [vmem:[%s287 + $0x8] sm:$0xf]
        %v11305 = vld [vmem:[%s287 + $0xc] sm:$0xf]
        %v11306 = vld [vmem:[%s287 + $0x10] sm:$0xf]
        %v11307 = vld [vmem:[%s287 + $0x14] sm:$0xf]
        %v11308 = vld [vmem:[%s287 + $0x18] sm:$0xf]
        %v11309 = vld [vmem:[%s287 + $0x1c] sm:$0xf]
        %v11310 = vld [vmem:[%s287 + $0x20] sm:$0xf]
        %v11311 = vld [vmem:[%s287 + $0x24] sm:$0xf]
        %v11312 = vld [vmem:[%s287 + $0x28] sm:$0xf]
        %v11313 = vld [vmem:[%s287 + $0x2c] sm:$0xf]
        %v11314 = vld [vmem:[%s287 + $0x30] sm:$0xf]
        %v11315 = vld [vmem:[%s287 + $0x34] sm:$0xf]
        %v11316 = vld [vmem:[%s287 + $0x38] sm:$0xf]
        %v11317 = vld [vmem:[%s287 + $0x3c] sm:$0xf]
        %v11318 = vld [vmem:[%s287 + $0x40] sm:$0xf]
        %v11319 = vld [vmem:[%s287 + $0x44] sm:$0xf]
        %v11320 = vld [vmem:[%s287 + $0x48] sm:$0xf]
        %v11321 = vld [vmem:[%s287 + $0x4c] sm:$0xf]
        %v11322 = vld [vmem:[%s287 + $0x50] sm:$0xf]
        %v11323 = vld [vmem:[%s287 + $0x54] sm:$0xf]
        %v11324 = vld [vmem:[%s287 + $0x58] sm:$0xf]
        %v11325 = vld [vmem:[%s287 + $0x5c] sm:$0xf]
        %v11326 = vld [vmem:[%s287 + $0x60] sm:$0xf]
        %v11327 = vld [vmem:[%s287 + $0x64] sm:$0xf]
        %v11328 = vld [vmem:[%s287 + $0x68] sm:$0xf]
        %v11329 = vld [vmem:[%s287 + $0x6c] sm:$0xf]
        %v11330 = vld [vmem:[%s287 + $0x70] sm:$0xf]
        %v11331 = vld [vmem:[%s287 + $0x74] sm:$0xf]
        %v11332 = vld [vmem:[%s287 + $0x78] sm:$0xf]
        %v11333 = vld [vmem:[%s287 + $0x7c] sm:$0xf]
        %v11334 = vunpack.c.l.bf16 %v11302
        %v11335 = vunpack.c.l.bf16 %v11303
        %v11336 = vunpack.c.l.bf16 %v11304
        %v11337 = vunpack.c.l.bf16 %v11305
        %v11338 = vunpack.c.l.bf16 %v11306
        %v11339 = vunpack.c.l.bf16 %v11307
        %v11340 = vunpack.c.l.bf16 %v11308
        %v11341 = vunpack.c.l.bf16 %v11309
        %v11342 = vunpack.c.l.bf16 %v11310
        %v11343 = vunpack.c.l.bf16 %v11311
        %v11344 = vunpack.c.l.bf16 %v11312
        %v11345 = vunpack.c.l.bf16 %v11313
        %v11346 = vunpack.c.l.bf16 %v11314
        %v11347 = vunpack.c.l.bf16 %v11315
        %v11348 = vunpack.c.l.bf16 %v11316
        %v11349 = vunpack.c.l.bf16 %v11317
        %v11350 = vunpack.c.l.bf16 %v11318
        %v11351 = vunpack.c.l.bf16 %v11319
        %v11352 = vunpack.c.l.bf16 %v11320
        %v11353 = vunpack.c.l.bf16 %v11321
        %v11354 = vunpack.c.l.bf16 %v11322
        %v11355 = vunpack.c.l.bf16 %v11323
        %v11356 = vunpack.c.l.bf16 %v11324
        %v11357 = vunpack.c.l.bf16 %v11325
        %v11358 = vunpack.c.l.bf16 %v11326
        %v11359 = vunpack.c.l.bf16 %v11327
        %v11360 = vunpack.c.l.bf16 %v11328
        %v11361 = vunpack.c.l.bf16 %v11329
        %v11362 = vunpack.c.l.bf16 %v11330
        %v11363 = vunpack.c.l.bf16 %v11331
        %v11364 = vunpack.c.l.bf16 %v11332
        %v11365 = vunpack.c.l.bf16 %v11333
        %v11366 = vadd.f32 %v11270, %v11334
        %v11367 = vadd.f32 %v11271, %v11335
        %v11368 = vadd.f32 %v11272, %v11336
        %v11369 = vadd.f32 %v11273, %v11337
        %v11370 = vadd.f32 %v11274, %v11338
        %v11371 = vadd.f32 %v11275, %v11339
        %v11372 = vadd.f32 %v11276, %v11340
        %v11373 = vadd.f32 %v11277, %v11341
        %v11374 = vadd.f32 %v11278, %v11342
        %v11375 = vadd.f32 %v11279, %v11343
        %v11376 = vadd.f32 %v11280, %v11344
        %v11377 = vadd.f32 %v11281, %v11345
        %v11378 = vadd.f32 %v11282, %v11346
        %v11379 = vadd.f32 %v11283, %v11347
        %v11380 = vadd.f32 %v11284, %v11348
        %v11381 = vadd.f32 %v11285, %v11349
        %v11382 = vadd.f32 %v11286, %v11350
        %v11383 = vadd.f32 %v11287, %v11351
        %v11384 = vadd.f32 %v11288, %v11352
        %v11385 = vadd.f32 %v11289, %v11353
        %v11386 = vadd.f32 %v11290, %v11354
        %v11387 = vadd.f32 %v11291, %v11355
        %v11388 = vadd.f32 %v11292, %v11356
        %v11389 = vadd.f32 %v11293, %v11357
        %v11390 = vadd.f32 %v11294, %v11358
        %v11391 = vadd.f32 %v11295, %v11359
        %v11392 = vadd.f32 %v11296, %v11360
        %v11393 = vadd.f32 %v11297, %v11361
        %v11394 = vadd.f32 %v11298, %v11362
        %v11395 = vadd.f32 %v11299, %v11363
        %v11396 = vadd.f32 %v11300, %v11364
        %v11397 = vadd.f32 %v11301, %v11365
        %v11398 = vmax.f32 %v11366, 0.0
        %v11399 = vmax.f32 %v11367, 0.0
        %v11400 = vmax.f32 %v11368, 0.0
        %v11401 = vmax.f32 %v11369, 0.0
        %v11402 = vmax.f32 %v11370, 0.0
        %v11403 = vmax.f32 %v11371, 0.0
        %v11404 = vmax.f32 %v11372, 0.0
        %v11405 = vmax.f32 %v11373, 0.0
        %v11406 = vmax.f32 %v11374, 0.0
        %v11407 = vmax.f32 %v11375, 0.0
        %v11408 = vmax.f32 %v11376, 0.0
        %v11409 = vmax.f32 %v11377, 0.0
        %v11410 = vmax.f32 %v11378, 0.0
        %v11411 = vmax.f32 %v11379, 0.0
        %v11412 = vmax.f32 %v11380, 0.0
        %v11413 = vmax.f32 %v11381, 0.0
        %v11414 = vmax.f32 %v11382, 0.0
        %v11415 = vmax.f32 %v11383, 0.0
        %v11416 = vmax.f32 %v11384, 0.0
        %v11417 = vmax.f32 %v11385, 0.0
        %v11418 = vmax.f32 %v11386, 0.0
        %v11419 = vmax.f32 %v11387, 0.0
        %v11420 = vmax.f32 %v11388, 0.0
        %v11421 = vmax.f32 %v11389, 0.0
        %v11422 = vmax.f32 %v11390, 0.0
        %v11423 = vmax.f32 %v11391, 0.0
        %v11424 = vmax.f32 %v11392, 0.0
        %v11425 = vmax.f32 %v11393, 0.0
        %v11426 = vmax.f32 %v11394, 0.0
        %v11427 = vmax.f32 %v11395, 0.0
        %v11428 = vmax.f32 %v11396, 0.0
        %v11429 = vmax.f32 %v11397, 0.0
        %v11430 = vpack.c.bf16 %v11399, %v11398
        %v11431 = vpack.c.bf16 %v11401, %v11400
        %v11432 = vpack.c.bf16 %v11403, %v11402
        %v11433 = vpack.c.bf16 %v11405, %v11404
        %v11434 = vpack.c.bf16 %v11407, %v11406
        %v11435 = vpack.c.bf16 %v11409, %v11408
        %v11436 = vpack.c.bf16 %v11411, %v11410
        %v11437 = vpack.c.bf16 %v11413, %v11412
        %v11438 = vpack.c.bf16 %v11415, %v11414
        %v11439 = vpack.c.bf16 %v11417, %v11416
        %v11440 = vpack.c.bf16 %v11419, %v11418
        %v11441 = vpack.c.bf16 %v11421, %v11420
        %v11442 = vpack.c.bf16 %v11423, %v11422
        %v11443 = vpack.c.bf16 %v11425, %v11424
        %v11444 = vpack.c.bf16 %v11427, %v11426
        %v11445 = vpack.c.bf16 %v11429, %v11428
        %v11462 = vunpack.c.l.b16 %v11430
        %v11463 = vunpack.c.h.b16 %v11430
        %v11464 = vunpack.c.l.b16 %v11431
        %v11465 = vunpack.c.h.b16 %v11431
        %v11466 = vunpack.c.l.b16 %v11432
        %v11467 = vunpack.c.h.b16 %v11432
        %v11468 = vunpack.c.l.b16 %v11433
        %v11469 = vunpack.c.h.b16 %v11433
        %v11470 = vunpack.c.l.b16 %v11434
        %v11471 = vunpack.c.h.b16 %v11434
        %v11472 = vunpack.c.l.b16 %v11435
        %v11473 = vunpack.c.h.b16 %v11435
        %v11474 = vunpack.c.l.b16 %v11436
        %v11475 = vunpack.c.h.b16 %v11436
        %v11476 = vunpack.c.l.b16 %v11437
        %v11477 = vunpack.c.h.b16 %v11437
        %v11478 = vunpack.c.l.b16 %v11438
        %v11479 = vunpack.c.h.b16 %v11438
        %v11480 = vunpack.c.l.b16 %v11439
        %v11481 = vunpack.c.h.b16 %v11439
        %v11482 = vunpack.c.l.b16 %v11440
        %v11483 = vunpack.c.h.b16 %v11440
        %v11484 = vunpack.c.l.b16 %v11441
        %v11485 = vunpack.c.h.b16 %v11441
        %v11486 = vunpack.c.l.b16 %v11442
        %v11487 = vunpack.c.h.b16 %v11442
        %v11488 = vunpack.c.l.b16 %v11443
        %v11489 = vunpack.c.h.b16 %v11443
        %v11490 = vunpack.c.l.b16 %v11444
        %v11491 = vunpack.c.h.b16 %v11444
        %v11492 = vunpack.c.l.b16 %v11445
        %v11493 = vunpack.c.h.b16 %v11445
        %v11494 = vpack.c.b16 %v11462, %v11462
        %v11495 = vpack.c.b16 %v11463, %v11463
        %v11496 = vpack.c.b16 %v11464, %v11464
        %v11497 = vpack.c.b16 %v11465, %v11465
        %v11498 = vpack.c.b16 %v11466, %v11466
        %v11499 = vpack.c.b16 %v11467, %v11467
        %v11500 = vpack.c.b16 %v11468, %v11468
        %v11501 = vpack.c.b16 %v11469, %v11469
        %v11502 = vpack.c.b16 %v11470, %v11470
        %v11503 = vpack.c.b16 %v11471, %v11471
        %v11504 = vpack.c.b16 %v11472, %v11472
        %v11505 = vpack.c.b16 %v11473, %v11473
        %v11506 = vpack.c.b16 %v11474, %v11474
        %v11507 = vpack.c.b16 %v11475, %v11475
        %v11508 = vpack.c.b16 %v11476, %v11476
        %v11509 = vpack.c.b16 %v11477, %v11477
        %v11510 = vpack.c.b16 %v11478, %v11478
        %v11511 = vpack.c.b16 %v11479, %v11479
        %v11512 = vpack.c.b16 %v11480, %v11480
        %v11513 = vpack.c.b16 %v11481, %v11481
        %v11514 = vpack.c.b16 %v11482, %v11482
        %v11515 = vpack.c.b16 %v11483, %v11483
        %v11516 = vpack.c.b16 %v11484, %v11484
        %v11517 = vpack.c.b16 %v11485, %v11485
        %v11518 = vpack.c.b16 %v11486, %v11486
        %v11519 = vpack.c.b16 %v11487, %v11487
        %v11520 = vpack.c.b16 %v11488, %v11488
        %v11521 = vpack.c.b16 %v11489, %v11489
        %v11522 = vpack.c.b16 %v11490, %v11490
        %v11523 = vpack.c.b16 %v11491, %v11491
        %v11524 = vpack.c.b16 %v11492, %v11492
        %v11525 = vpack.c.b16 %v11493, %v11493
        %11558 = vst [vmem:[%s325] sm:$0xf] %v11494
        %11559 = vst [vmem:[%s325 + $0x4] sm:$0xf] %v11495
        %11560 = vst [vmem:[%s325 + $0x8] sm:$0xf] %v11496
        %11561 = vst [vmem:[%s325 + $0xc] sm:$0xf] %v11497
        %11562 = vst [vmem:[%s325 + $0x10] sm:$0xf] %v11498
        %11563 = vst [vmem:[%s325 + $0x14] sm:$0xf] %v11499
        %11564 = vst [vmem:[%s325 + $0x18] sm:$0xf] %v11500
        %11565 = vst [vmem:[%s325 + $0x1c] sm:$0xf] %v11501
        %11566 = vst [vmem:[%s325 + $0x20] sm:$0xf] %v11502
        %11567 = vst [vmem:[%s325 + $0x24] sm:$0xf] %v11503
        %11568 = vst [vmem:[%s325 + $0x28] sm:$0xf] %v11504
        %11569 = vst [vmem:[%s325 + $0x2c] sm:$0xf] %v11505
        %11570 = vst [vmem:[%s325 + $0x30] sm:$0xf] %v11506
        %11571 = vst [vmem:[%s325 + $0x34] sm:$0xf] %v11507
        %11572 = vst [vmem:[%s325 + $0x38] sm:$0xf] %v11508
        %11573 = vst [vmem:[%s325 + $0x3c] sm:$0xf] %v11509
        %11574 = vst [vmem:[%s325 + $0x40] sm:$0xf] %v11510
        %11575 = vst [vmem:[%s325 + $0x44] sm:$0xf] %v11511
        %11576 = vst [vmem:[%s325 + $0x48] sm:$0xf] %v11512
        %11577 = vst [vmem:[%s325 + $0x4c] sm:$0xf] %v11513
        %11578 = vst [vmem:[%s325 + $0x50] sm:$0xf] %v11514
        %11579 = vst [vmem:[%s325 + $0x54] sm:$0xf] %v11515
        %11580 = vst [vmem:[%s325 + $0x58] sm:$0xf] %v11516
        %11581 = vst [vmem:[%s325 + $0x5c] sm:$0xf] %v11517
        %11582 = vst [vmem:[%s325 + $0x60] sm:$0xf] %v11518
        %11583 = vst [vmem:[%s325 + $0x64] sm:$0xf] %v11519
        %11584 = vst [vmem:[%s325 + $0x68] sm:$0xf] %v11520
        %11585 = vst [vmem:[%s325 + $0x6c] sm:$0xf] %v11521
        %11586 = vst [vmem:[%s325 + $0x70] sm:$0xf] %v11522
        %11587 = vst [vmem:[%s325 + $0x74] sm:$0xf] %v11523
        %11588 = vst [vmem:[%s325 + $0x78] sm:$0xf] %v11524
        %11589 = vst [vmem:[%s325 + $0x7c] sm:$0xf] %v11525
        %s11590 = sand.u32 %s185, 1
        %s11591 = scalar_lea.sflag [#allocation7], %s11590
        %s11592 = sand.u32 %s185, 1
        %s11593 = smul.addr %s11592, 128
        %s11594 = scalar_lea.vmem [#allocation11], %s11593
        // Predicated region
        $region61: #{tpu_custom_call.1} parent=47 // pred_check
          %p11595 = pneg %p195
        $region62: #{tpu_custom_call.1} parent=47 // pred_check_branch
          %11597 = sbr.rel (%p11595) target = $region64
        $region63: #{tpu_custom_call.1} parent=47 // pred_region
          %s11599 = ssub.s32 2048, 2048
          %11600 = vsyncadd %s11591, %s11599
          %s11601 = smul.addr %s25, 32
          %s11602 = smul.addr %s11601, 64
          %s11603 = scalar_lea.hbm %s7, %s11602
          %s11604 = sshll.u32 %s11594, 4
          %s11605 = int_to_ptr.vmem [resolvable:$true] %s11604
          %11610 = dma.vmem_to_hbm [thread:$0]  %s11605, 2048, %s11603, %s11591, 64, 64, 4
        $region64: #{tpu_custom_call.1} parent=47 // pred_fallthru
          _
      $region48: #{tpu_custom_call.1} parent=5 // pred_fallthru
        _
      %p11611 = scmp.le.s32.totalorder 2, %s20
      // Predicated region
      $region65: #{tpu_custom_call.1} parent=5 // pred_check
        %p11612 = pneg %p11611
      $region66: #{tpu_custom_call.1} parent=5 // pred_check_branch
        %11614 = sbr.rel (%p11612) target = $region68
      $region67: #{tpu_custom_call.1} parent=5 // pred_region
        %s11615 = ssub.s32 %s20, 2
        // Predicated region
        $region69: #{tpu_custom_call.1} parent=67 // pred_check
          %p11616 = pneg %p201
        $region70: #{tpu_custom_call.1} parent=67 // pred_check_branch
          %11618 = sbr.rel (%p11616) target = $region72
        $region71: #{tpu_custom_call.1} parent=67 // pred_region
          %s11619 = sand.u32 %s186, 1
          %s11620 = scalar_lea.sflag [#allocation7], %s11619
          %s11621 = sand.u32 %s186, 1
          %s11622 = smul.addr %s11621, 128
          %s11623 = scalar_lea.vmem [#allocation11], %s11622
          %11624 = dma.done %s11620, 2048
        $region72: #{tpu_custom_call.1} parent=67 // pred_fallthru
          _
      $region68: #{tpu_custom_call.1} parent=5 // pred_fallthru
        _
    $region6: #{tpu_custom_call.1} parent=1 // loop_footer
      %s24 = sadd.s32 1, %s20
    $region7: #{tpu_custom_call.1} parent=1 // loop_footer_branch
      %19 = sbr.rel target = $region3
    $region8: #{tpu_custom_call.1} parent=1 // loop_exit
      _
    %11625 = vsyncpa [#allocation6], 1
    %s11626 = scalar_lea.sflag [#allocation6], 1
    %11627 = vsyncpa %s11626, 1
    %11628 = vsyncpa [#allocation9], 1
    %11629 = vsyncpa [#allocation7], 1
    %s11630 = scalar_lea.sflag [#allocation7], 1
    %11631 = vsyncpa %s11630, 1

</llo_original>
